<compile_context>
chip_gen: v7x
topology: tpu7x:2x2x1
jax: 0.10.0
libtpu: 0.0.40
codegen_flags: <defaults>
</compile_context>

<pallas_src>
import functools

import jax
import jax.numpy as jnp
from jax.experimental import pallas as pl
from jax.experimental.pallas import tpu as pltpu

# Left padding (in W units) inside the padded VMEM scratch. 8 keeps the
# interior copy sublane-aligned; the logical conv padding is still 1 (only
# columns _PADW-1 and _PADW+W of the halo are ever read by the taps).
_PADW = 8


def _double_conv_kernel(x_ref, w1_ref, w2_ref, gamma_ref, beta_ref, o_ref,
                        xpad, hpad, *, eps):
    """Fully fused DoubleConv forward.

    x_ref     : (N, H, W, Cin)                 input activation (NHWC)
    w1_ref    : (9, Cin, Cmid)                 conv1 weights, per-tap (kh*3+kw)
    w2_ref    : (9, Cmid, Cout)                conv2 weights, per-tap
    gamma_ref : (1, Cout)                      BN affine scale
    beta_ref  : (1, Cout)                      BN affine shift
    o_ref     : (N*Cout, H*W)                  output, NCHW row-major (lane-dense)
    xpad      : VMEM (N, H+2, W+2*_PADW, Cin)  zero-halo copy of x
    hpad      : VMEM (N, H+2, W+2*_PADW, Cmid) zero-halo conv1+ReLU output
    """
    N, H, W, Cin = x_ref.shape
    Cmid = w1_ref.shape[2]
    Cout = w2_ref.shape[2]
    P = N * H * W
    Wp = W + 2 * _PADW

    def fill_padded(dst, interior, c):
        # Zero ONLY the halo cells the 3x3 taps read (top/bottom rows and the
        # two columns flanking the interior); unread scratch cells stay junk.
        zrow = jnp.zeros((N, 1, Wp, c), jnp.float32)
        dst[:, 0:1, :, :] = zrow
        dst[:, H + 1:H + 2, :, :] = zrow
        zcol = jnp.zeros((N, H, 1, c), jnp.float32)
        dst[:, 1:H + 1, _PADW - 1:_PADW, :] = zcol
        dst[:, 1:H + 1, _PADW + W:_PADW + W + 1, :] = zcol
        dst[:, 1:H + 1, _PADW:_PADW + W, :] = interior   # sublane-aligned copy

    def conv3x3(src_pad, w_ref, cin, cout):
        # 3x3 conv as 9 shifted-slab dots accumulated in f32 (no materialized
        # im2col buffer).  dw=0/2 reads are sublane-misaligned loads; at
        # production scale generate them via pltpu.roll on the idle XLU.
        acc = jnp.zeros((P, cout), jnp.float32)
        for dh in range(3):
            for dw in range(3):
                t = dh * 3 + dw
                slab = src_pad[:, dh:dh + H,
                               _PADW - 1 + dw:_PADW - 1 + dw + W, :]
                acc = acc + jnp.dot(slab.reshape(P, cin), w_ref[t],
                                    preferred_element_type=jnp.float32)
        return acc

    # -------------------- conv1 (3x3, pad=1, no bias) + ReLU -----------------
    fill_padded(xpad, x_ref[...], Cin)
    h = jnp.maximum(conv3x3(xpad, w1_ref, Cin, Cmid), 0.0)

    # ------------- conv2 (3x3, pad=1, no bias); h never leaves VMEM ----------
    fill_padded(hpad, h.reshape(N, H, W, Cmid), Cmid)
    h2 = conv3x3(hpad, w2_ref, Cmid, Cout)                      # (P, Cout) f32

    # -------- BatchNorm2d (training-mode batch stats, fused pass) + tanh -----
    inv_p = 1.0 / P
    s1 = jnp.sum(h2, axis=0, keepdims=True)                     # (1, Cout)
    s2 = jnp.sum(h2 * h2, axis=0, keepdims=True)                # (1, Cout)
    mean = s1 * inv_p
    var = s2 * inv_p - mean * mean                              # biased variance
    inv_std = jax.lax.rsqrt(var + eps)
    scale = gamma_ref[...] * inv_std
    shift = beta_ref[...] - mean * scale
    y = jnp.tanh(h2 * scale + shift)                            # (P, Cout)

    # Lane-dense NCHW store: per image, transpose the (H*W, Cout) block to
    # (Cout, H*W) and store it as rows n*Cout .. (n+1)*Cout of o_ref.  Each
    # store is 8 sublanes x 256 dense lanes (unmasked).
    hw = H * W
    for n in range(N):
        o_ref[n * Cout:(n + 1) * Cout, :] = (
            y[n * hw:(n + 1) * hw, :].T.astype(o_ref.dtype))


def double_conv(x_nchw, w1_oihw, w2_oihw, gamma, beta, *, eps=1e-5):
    """Fused DoubleConv forward. Input/output in PyTorch NCHW layout."""
    N, Cin, H, W = x_nchw.shape
    Cmid = w1_oihw.shape[0]
    Cout = w2_oihw.shape[0]

    # Input layout NCHW -> NHWC (the kernel wants channels in lanes for the
    # per-tap dots).  Tiny here; for production keep the model NHWC end-to-end
    # so this transpose disappears.
    x = jnp.transpose(x_nchw, (0, 2, 3, 1)).astype(jnp.float32)
    # OIHW -> (tap, Cin, Cout): tap order (kh*3+kw) matches the kernel's
    # (dh, dw) loop, so w[t, ci, co] == weight[co, ci, kh, kw].
    w1 = jnp.transpose(w1_oihw, (2, 3, 1, 0)).astype(jnp.float32)
    w1 = w1.reshape(9, Cin, Cmid)
    w2 = jnp.transpose(w2_oihw, (2, 3, 1, 0)).astype(jnp.float32)
    w2 = w2.reshape(9, Cmid, Cout)
    gamma2 = gamma.astype(jnp.float32).reshape(1, Cout)
    beta2 = beta.astype(jnp.float32).reshape(1, Cout)

    kern = functools.partial(_double_conv_kernel, eps=eps)
    y = pl.pallas_call(
        kern,
        # Output already in NCHW row-major order: (N*Cout, H*W), lane-dense.
        out_shape=jax.ShapeDtypeStruct((N * Cout, H * W), jnp.float32),
        # Whole batch in one VMEM-resident step (BN needs global batch stats).
        grid=(1,),
        in_specs=[
            pl.BlockSpec((N, H, W, Cin), lambda i: (0, 0, 0, 0)),
            pl.BlockSpec((9, Cin, Cmid), lambda i: (0, 0, 0)),
            pl.BlockSpec((9, Cmid, Cout), lambda i: (0, 0, 0)),
            pl.BlockSpec((1, Cout), lambda i: (0, 0)),
            pl.BlockSpec((1, Cout), lambda i: (0, 0)),
        ],
        out_specs=pl.BlockSpec((N * Cout, H * W), lambda i: (0, 0)),
        scratch_shapes=[
            pltpu.VMEM((N, H + 2, W + 2 * _PADW, Cin), jnp.float32),   # xpad
            pltpu.VMEM((N, H + 2, W + 2 * _PADW, Cmid), jnp.float32),  # hpad
        ],
        compiler_params=pltpu.CompilerParams(
            dimension_semantics=("arbitrary",)),
    )(x, w1, w2, gamma2, beta2)

    # (N*Cout, H*W) is exactly NCHW row-major: free reshape, no transpose.
    return y.reshape(N, Cout, H, W)


def _reference(x, w1, w2, gamma, beta, eps=1e-5):
    """Pure-JAX reference (f32 precision) matching the PyTorch module."""
    dn = ('NCHW', 'OIHW', 'NCHW')
    h = jax.lax.conv_general_dilated(x, w1, (1, 1), ((1, 1), (1, 1)),
                                     dimension_numbers=dn,
                                     precision=jax.lax.Precision.HIGHEST)
    h = jnp.maximum(h, 0.0)
    h = jax.lax.conv_general_dilated(h, w2, (1, 1), ((1, 1), (1, 1)),
                                     dimension_numbers=dn,
                                     precision=jax.lax.Precision.HIGHEST)
    mean = jnp.mean(h, axis=(0, 2, 3), keepdims=True)
    var = jnp.mean((h - mean) ** 2, axis=(0, 2, 3), keepdims=True)
    hn = (h - mean) * jax.lax.rsqrt(var + eps)
    return jnp.tanh(hn * gamma.reshape(1, -1, 1, 1) + beta.reshape(1, -1, 1, 1))


if __name__ == "__main__":
    # Small shapes consistent with the module: N=2, Cin=4, Cmid=Cout=8, H=W=16.
    N, Cin, Cout, H, W = 2, 4, 8, 16, 16

    key = jax.random.PRNGKey(0)
    kx, k1, k2 = jax.random.split(key, 3)
    x = jax.random.normal(kx, (N, Cin, H, W), dtype=jnp.float32)
    # Deterministic synthetic weights (PyTorch OIHW layout), bias=False.
    w1 = 0.1 * jax.random.normal(k1, (Cout, Cin, 3, 3), dtype=jnp.float32)
    w2 = 0.1 * jax.random.normal(k2, (Cout, Cout, 3, 3), dtype=jnp.float32)
    # BatchNorm2d affine params at their PyTorch init values.
    gamma = jnp.ones((Cout,), jnp.float32)
    beta = jnp.zeros((Cout,), jnp.float32)

    # TODO(synk): BatchNorm2d running_mean/running_var side-effect updates are
    # not modeled (they do not affect the training-mode forward output).
    fwd = jax.jit(double_conv)
    out = fwd(x, w1, w2, gamma, beta)
    jax.block_until_ready(out)

    assert out.shape == (N, Cout, H, W)
    ref = _reference(x, w1, w2, gamma, beta)
    assert bool(jnp.allclose(out, ref, atol=1e-3, rtol=1e-3)), \
        "numerical mismatch vs reference"
    print("KERNEL_OK")
</pallas_src>

<mosaic_0001>
module attributes {stable_mosaic.version = 11 : i64} {
  func.func @_double_conv_kernel(%arg0: i32, %arg1: memref<2x16x16x4xf32, #tpu.memory_space<vmem>>, %arg2: memref<9x4x8xf32, #tpu.memory_space<vmem>>, %arg3: memref<9x8x8xf32, #tpu.memory_space<vmem>>, %arg4: memref<1x8xf32, #tpu.memory_space<vmem>>, %arg5: memref<1x8xf32, #tpu.memory_space<vmem>>, %arg6: memref<16x256xf32, #tpu.memory_space<vmem>>, %arg7: memref<2x18x32x4xf32, #tpu.memory_space<vmem>>, %arg8: memref<2x18x32x8xf32, #tpu.memory_space<vmem>>) attributes {dimension_semantics = [#tpu.dimension_semantics<arbitrary>], iteration_bounds = array<i64: 1>, scalar_prefetch = 0 : i64, scratch_operands = 2 : i64, tpu.core_type = #tpu.core_type<tc>, window_params = [{pipeline_mode = #tpu.pipeline_mode<synchronous>, transform_indices = @transform_0, window_bounds = array<i64: 2, 16, 16, 4>}, {pipeline_mode = #tpu.pipeline_mode<synchronous>, transform_indices = @transform_1, window_bounds = array<i64: 9, 4, 8>}, {pipeline_mode = #tpu.pipeline_mode<synchronous>, transform_indices = @transform_2, window_bounds = array<i64: 9, 8, 8>}, {pipeline_mode = #tpu.pipeline_mode<synchronous>, transform_indices = @transform_3, window_bounds = array<i64: 1, 8>}, {pipeline_mode = #tpu.pipeline_mode<synchronous>, transform_indices = @transform_4, window_bounds = array<i64: 1, 8>}, {pipeline_mode = #tpu.pipeline_mode<synchronous>, transform_indices = @transform_5, window_bounds = array<i64: 16, 256>}]} {
    %c0 = arith.constant 0 : index
    %c0_0 = arith.constant 0 : index
    %c0_1 = arith.constant 0 : index
    %c0_2 = arith.constant 0 : index
    %0 = vector.load %arg1[%c0, %c0_0, %c0_1, %c0_2] : memref<2x16x16x4xf32, #tpu.memory_space<vmem>>, vector<2x16x16x4xf32>
    %cst = arith.constant 0.000000e+00 : f32
    %1 = vector.broadcast %cst : f32 to vector<2x1x32x4xf32>
    %c0_3 = arith.constant 0 : index
    %c0_4 = arith.constant 0 : index
    %c0_5 = arith.constant 0 : index
    %c0_6 = arith.constant 0 : index
    %2 = vector.load %arg7[%c0_3, %c0_4, %c0_5, %c0_6] : memref<2x18x32x4xf32, #tpu.memory_space<vmem>>, vector<2x1x32x4xf32>
    tpu.vector_store %arg7[%c0_3, %c0_4, %c0_5, %c0_6], %1 {strides = array<i32>} : memref<2x18x32x4xf32, #tpu.memory_space<vmem>>, vector<2x1x32x4xf32>,
    %c0_7 = arith.constant 0 : index
    %c17 = arith.constant 17 : index
    %c0_8 = arith.constant 0 : index
    %c0_9 = arith.constant 0 : index
    %3 = vector.load %arg7[%c0_7, %c17, %c0_8, %c0_9] : memref<2x18x32x4xf32, #tpu.memory_space<vmem>>, vector<2x1x32x4xf32>
    tpu.vector_store %arg7[%c0_7, %c17, %c0_8, %c0_9], %1 {strides = array<i32>} : memref<2x18x32x4xf32, #tpu.memory_space<vmem>>, vector<2x1x32x4xf32>,
    %cst_10 = arith.constant 0.000000e+00 : f32
    %4 = vector.broadcast %cst_10 : f32 to vector<2x16x1x4xf32>
    %c0_11 = arith.constant 0 : index
    %c1 = arith.constant 1 : index
    %c7 = arith.constant 7 : index
    %c0_12 = arith.constant 0 : index
    %5 = vector.load %arg7[%c0_11, %c1, %c7, %c0_12] : memref<2x18x32x4xf32, #tpu.memory_space<vmem>>, vector<2x16x1x4xf32>
    tpu.vector_store %arg7[%c0_11, %c1, %c7, %c0_12], %4 {strides = array<i32>} : memref<2x18x32x4xf32, #tpu.memory_space<vmem>>, vector<2x16x1x4xf32>,
    %c0_13 = arith.constant 0 : index
    %c1_14 = arith.constant 1 : index
    %c24 = arith.constant 24 : index
    %c0_15 = arith.constant 0 : index
    %6 = vector.load %arg7[%c0_13, %c1_14, %c24, %c0_15] : memref<2x18x32x4xf32, #tpu.memory_space<vmem>>, vector<2x16x1x4xf32>
    tpu.vector_store %arg7[%c0_13, %c1_14, %c24, %c0_15], %4 {strides = array<i32>} : memref<2x18x32x4xf32, #tpu.memory_space<vmem>>, vector<2x16x1x4xf32>,
    %c0_16 = arith.constant 0 : index
    %c1_17 = arith.constant 1 : index
    %c8 = arith.constant 8 : index
    %c0_18 = arith.constant 0 : index
    %7 = vector.load %arg7[%c0_16, %c1_17, %c8, %c0_18] : memref<2x18x32x4xf32, #tpu.memory_space<vmem>>, vector<2x16x16x4xf32>
    tpu.vector_store %arg7[%c0_16, %c1_17, %c8, %c0_18], %0 {strides = array<i32>} : memref<2x18x32x4xf32, #tpu.memory_space<vmem>>, vector<2x16x16x4xf32>,
    %cst_19 = arith.constant 0.000000e+00 : f32
    %8 = vector.broadcast %cst_19 : f32 to vector<512x8xf32>
    %c0_20 = arith.constant 0 : index
    %c0_21 = arith.constant 0 : index
    %c7_22 = arith.constant 7 : index
    %c0_23 = arith.constant 0 : index
    %9 = vector.load %arg7[%c0_20, %c0_21, %c7_22, %c0_23] : memref<2x18x32x4xf32, #tpu.memory_space<vmem>>, vector<2x16x16x4xf32>
    %10 = vector.shape_cast %9 : vector<2x16x16x4xf32> to vector<512x4xf32>
    %c0_24 = arith.constant 0 : index
    %c0_25 = arith.constant 0 : index
    %c0_26 = arith.constant 0 : index
    %11 = vector.load %arg2[%c0_24, %c0_25, %c0_26] : memref<9x4x8xf32, #tpu.memory_space<vmem>>, vector<1x4x8xf32>
    %12 = vector.shape_cast %11 : vector<1x4x8xf32> to vector<4x8xf32>
    %cst_27 = arith.constant dense<0.000000e+00> : vector<512x8xf32>
    %13 = tpu.matmul %10, %12, %cst_27 {dimension_numbers = #tpu.dot_dimension_numbers<[1], [0], [0], [1], [0, 0, 1, 1], [], []>} : vector<512x4xf32>, vector<4x8xf32>, vector<512x8xf32> -> vector<512x8xf32>
    %14 = arith.addf %8, %13 : vector<512x8xf32>
    %c0_28 = arith.constant 0 : index
    %c0_29 = arith.constant 0 : index
    %c8_30 = arith.constant 8 : index
    %c0_31 = arith.constant 0 : index
    %15 = vector.load %arg7[%c0_28, %c0_29, %c8_30, %c0_31] : memref<2x18x32x4xf32, #tpu.memory_space<vmem>>, vector<2x16x16x4xf32>
    %16 = vector.shape_cast %15 : vector<2x16x16x4xf32> to vector<512x4xf32>
    %c1_32 = arith.constant 1 : index
    %c0_33 = arith.constant 0 : index
    %c0_34 = arith.constant 0 : index
    %17 = vector.load %arg2[%c1_32, %c0_33, %c0_34] : memref<9x4x8xf32, #tpu.memory_space<vmem>>, vector<1x4x8xf32>
    %18 = vector.shape_cast %17 : vector<1x4x8xf32> to vector<4x8xf32>
    %cst_35 = arith.constant dense<0.000000e+00> : vector<512x8xf32>
    %19 = tpu.matmul %16, %18, %cst_35 {dimension_numbers = #tpu.dot_dimension_numbers<[1], [0], [0], [1], [0, 0, 1, 1], [], []>} : vector<512x4xf32>, vector<4x8xf32>, vector<512x8xf32> -> vector<512x8xf32>
    %20 = arith.addf %14, %19 : vector<512x8xf32>
    %c0_36 = arith.constant 0 : index
    %c0_37 = arith.constant 0 : index
    %c9 = arith.constant 9 : index
    %c0_38 = arith.constant 0 : index
    %21 = vector.load %arg7[%c0_36, %c0_37, %c9, %c0_38] : memref<2x18x32x4xf32, #tpu.memory_space<vmem>>, vector<2x16x16x4xf32>
    %22 = vector.shape_cast %21 : vector<2x16x16x4xf32> to vector<512x4xf32>
    %c2 = arith.constant 2 : index
    %c0_39 = arith.constant 0 : index
    %c0_40 = arith.constant 0 : index
    %23 = vector.load %arg2[%c2, %c0_39, %c0_40] : memref<9x4x8xf32, #tpu.memory_space<vmem>>, vector<1x4x8xf32>
    %24 = vector.shape_cast %23 : vector<1x4x8xf32> to vector<4x8xf32>
    %cst_41 = arith.constant dense<0.000000e+00> : vector<512x8xf32>
    %25 = tpu.matmul %22, %24, %cst_41 {dimension_numbers = #tpu.dot_dimension_numbers<[1], [0], [0], [1], [0, 0, 1, 1], [], []>} : vector<512x4xf32>, vector<4x8xf32>, vector<512x8xf32> -> vector<512x8xf32>
    %26 = arith.addf %20, %25 : vector<512x8xf32>
    %c0_42 = arith.constant 0 : index
    %c1_43 = arith.constant 1 : index
    %c7_44 = arith.constant 7 : index
    %c0_45 = arith.constant 0 : index
    %27 = vector.load %arg7[%c0_42, %c1_43, %c7_44, %c0_45] : memref<2x18x32x4xf32, #tpu.memory_space<vmem>>, vector<2x16x16x4xf32>
    %28 = vector.shape_cast %27 : vector<2x16x16x4xf32> to vector<512x4xf32>
    %c3 = arith.constant 3 : index
    %c0_46 = arith.constant 0 : index
    %c0_47 = arith.constant 0 : index
    %29 = vector.load %arg2[%c3, %c0_46, %c0_47] : memref<9x4x8xf32, #tpu.memory_space<vmem>>, vector<1x4x8xf32>
    %30 = vector.shape_cast %29 : vector<1x4x8xf32> to vector<4x8xf32>
    %cst_48 = arith.constant dense<0.000000e+00> : vector<512x8xf32>
    %31 = tpu.matmul %28, %30, %cst_48 {dimension_numbers = #tpu.dot_dimension_numbers<[1], [0], [0], [1], [0, 0, 1, 1], [], []>} : vector<512x4xf32>, vector<4x8xf32>, vector<512x8xf32> -> vector<512x8xf32>
    %32 = arith.addf %26, %31 : vector<512x8xf32>
    %c0_49 = arith.constant 0 : index
    %c1_50 = arith.constant 1 : index
    %c8_51 = arith.constant 8 : index
    %c0_52 = arith.constant 0 : index
    %33 = vector.load %arg7[%c0_49, %c1_50, %c8_51, %c0_52] : memref<2x18x32x4xf32, #tpu.memory_space<vmem>>, vector<2x16x16x4xf32>
    %34 = vector.shape_cast %33 : vector<2x16x16x4xf32> to vector<512x4xf32>
    %c4 = arith.constant 4 : index
    %c0_53 = arith.constant 0 : index
    %c0_54 = arith.constant 0 : index
    %35 = vector.load %arg2[%c4, %c0_53, %c0_54] : memref<9x4x8xf32, #tpu.memory_space<vmem>>, vector<1x4x8xf32>
    %36 = vector.shape_cast %35 : vector<1x4x8xf32> to vector<4x8xf32>
    %cst_55 = arith.constant dense<0.000000e+00> : vector<512x8xf32>
    %37 = tpu.matmul %34, %36, %cst_55 {dimension_numbers = #tpu.dot_dimension_numbers<[1], [0], [0], [1], [0, 0, 1, 1], [], []>} : vector<512x4xf32>, vector<4x8xf32>, vector<512x8xf32> -> vector<512x8xf32>
    %38 = arith.addf %32, %37 : vector<512x8xf32>
    %c0_56 = arith.constant 0 : index
    %c1_57 = arith.constant 1 : index
    %c9_58 = arith.constant 9 : index
    %c0_59 = arith.constant 0 : index
    %39 = vector.load %arg7[%c0_56, %c1_57, %c9_58, %c0_59] : memref<2x18x32x4xf32, #tpu.memory_space<vmem>>, vector<2x16x16x4xf32>
    %40 = vector.shape_cast %39 : vector<2x16x16x4xf32> to vector<512x4xf32>
    %c5 = arith.constant 5 : index
    %c0_60 = arith.constant 0 : index
    %c0_61 = arith.constant 0 : index
    %41 = vector.load %arg2[%c5, %c0_60, %c0_61] : memref<9x4x8xf32, #tpu.memory_space<vmem>>, vector<1x4x8xf32>
    %42 = vector.shape_cast %41 : vector<1x4x8xf32> to vector<4x8xf32>
    %cst_62 = arith.constant dense<0.000000e+00> : vector<512x8xf32>
    %43 = tpu.matmul %40, %42, %cst_62 {dimension_numbers = #tpu.dot_dimension_numbers<[1], [0], [0], [1], [0, 0, 1, 1], [], []>} : vector<512x4xf32>, vector<4x8xf32>, vector<512x8xf32> -> vector<512x8xf32>
    %44 = arith.addf %38, %43 : vector<512x8xf32>
    %c0_63 = arith.constant 0 : index
    %c2_64 = arith.constant 2 : index
    %c7_65 = arith.constant 7 : index
    %c0_66 = arith.constant 0 : index
    %45 = vector.load %arg7[%c0_63, %c2_64, %c7_65, %c0_66] : memref<2x18x32x4xf32, #tpu.memory_space<vmem>>, vector<2x16x16x4xf32>
    %46 = vector.shape_cast %45 : vector<2x16x16x4xf32> to vector<512x4xf32>
    %c6 = arith.constant 6 : index
    %c0_67 = arith.constant 0 : index
    %c0_68 = arith.constant 0 : index
    %47 = vector.load %arg2[%c6, %c0_67, %c0_68] : memref<9x4x8xf32, #tpu.memory_space<vmem>>, vector<1x4x8xf32>
    %48 = vector.shape_cast %47 : vector<1x4x8xf32> to vector<4x8xf32>
    %cst_69 = arith.constant dense<0.000000e+00> : vector<512x8xf32>
    %49 = tpu.matmul %46, %48, %cst_69 {dimension_numbers = #tpu.dot_dimension_numbers<[1], [0], [0], [1], [0, 0, 1, 1], [], []>} : vector<512x4xf32>, vector<4x8xf32>, vector<512x8xf32> -> vector<512x8xf32>
    %50 = arith.addf %44, %49 : vector<512x8xf32>
    %c0_70 = arith.constant 0 : index
    %c2_71 = arith.constant 2 : index
    %c8_72 = arith.constant 8 : index
    %c0_73 = arith.constant 0 : index
    %51 = vector.load %arg7[%c0_70, %c2_71, %c8_72, %c0_73] : memref<2x18x32x4xf32, #tpu.memory_space<vmem>>, vector<2x16x16x4xf32>
    %52 = vector.shape_cast %51 : vector<2x16x16x4xf32> to vector<512x4xf32>
    %c7_74 = arith.constant 7 : index
    %c0_75 = arith.constant 0 : index
    %c0_76 = arith.constant 0 : index
    %53 = vector.load %arg2[%c7_74, %c0_75, %c0_76] : memref<9x4x8xf32, #tpu.memory_space<vmem>>, vector<1x4x8xf32>
    %54 = vector.shape_cast %53 : vector<1x4x8xf32> to vector<4x8xf32>
    %cst_77 = arith.constant dense<0.000000e+00> : vector<512x8xf32>
    %55 = tpu.matmul %52, %54, %cst_77 {dimension_numbers = #tpu.dot_dimension_numbers<[1], [0], [0], [1], [0, 0, 1, 1], [], []>} : vector<512x4xf32>, vector<4x8xf32>, vector<512x8xf32> -> vector<512x8xf32>
    %56 = arith.addf %50, %55 : vector<512x8xf32>
    %c0_78 = arith.constant 0 : index
    %c2_79 = arith.constant 2 : index
    %c9_80 = arith.constant 9 : index
    %c0_81 = arith.constant 0 : index
    %57 = vector.load %arg7[%c0_78, %c2_79, %c9_80, %c0_81] : memref<2x18x32x4xf32, #tpu.memory_space<vmem>>, vector<2x16x16x4xf32>
    %58 = vector.shape_cast %57 : vector<2x16x16x4xf32> to vector<512x4xf32>
    %c8_82 = arith.constant 8 : index
    %c0_83 = arith.constant 0 : index
    %c0_84 = arith.constant 0 : index
    %59 = vector.load %arg2[%c8_82, %c0_83, %c0_84] : memref<9x4x8xf32, #tpu.memory_space<vmem>>, vector<1x4x8xf32>
    %60 = vector.shape_cast %59 : vector<1x4x8xf32> to vector<4x8xf32>
    %cst_85 = arith.constant dense<0.000000e+00> : vector<512x8xf32>
    %61 = tpu.matmul %58, %60, %cst_85 {dimension_numbers = #tpu.dot_dimension_numbers<[1], [0], [0], [1], [0, 0, 1, 1], [], []>} : vector<512x4xf32>, vector<4x8xf32>, vector<512x8xf32> -> vector<512x8xf32>
    %62 = arith.addf %56, %61 : vector<512x8xf32>
    %cst_86 = arith.constant 0.000000e+00 : f32
    %63 = vector.broadcast %cst_86 : f32 to vector<512x8xf32>
    %64 = arith.maximumf %62, %63 : vector<512x8xf32>
    %65 = vector.shape_cast %64 : vector<512x8xf32> to vector<2x16x16x8xf32>
    %cst_87 = arith.constant 0.000000e+00 : f32
    %66 = vector.broadcast %cst_87 : f32 to vector<2x1x32x8xf32>
    %c0_88 = arith.constant 0 : index
    %c0_89 = arith.constant 0 : index
    %c0_90 = arith.constant 0 : index
    %c0_91 = arith.constant 0 : index
    %67 = vector.load %arg8[%c0_88, %c0_89, %c0_90, %c0_91] : memref<2x18x32x8xf32, #tpu.memory_space<vmem>>, vector<2x1x32x8xf32>
    tpu.vector_store %arg8[%c0_88, %c0_89, %c0_90, %c0_91], %66 {strides = array<i32>} : memref<2x18x32x8xf32, #tpu.memory_space<vmem>>, vector<2x1x32x8xf32>,
    %c0_92 = arith.constant 0 : index
    %c17_93 = arith.constant 17 : index
    %c0_94 = arith.constant 0 : index
    %c0_95 = arith.constant 0 : index
    %68 = vector.load %arg8[%c0_92, %c17_93, %c0_94, %c0_95] : memref<2x18x32x8xf32, #tpu.memory_space<vmem>>, vector<2x1x32x8xf32>
    tpu.vector_store %arg8[%c0_92, %c17_93, %c0_94, %c0_95], %66 {strides = array<i32>} : memref<2x18x32x8xf32, #tpu.memory_space<vmem>>, vector<2x1x32x8xf32>,
    %cst_96 = arith.constant 0.000000e+00 : f32
    %69 = vector.broadcast %cst_96 : f32 to vector<2x16x1x8xf32>
    %c0_97 = arith.constant 0 : index
    %c1_98 = arith.constant 1 : index
    %c7_99 = arith.constant 7 : index
    %c0_100 = arith.constant 0 : index
    %70 = vector.load %arg8[%c0_97, %c1_98, %c7_99, %c0_100] : memref<2x18x32x8xf32, #tpu.memory_space<vmem>>, vector<2x16x1x8xf32>
    tpu.vector_store %arg8[%c0_97, %c1_98, %c7_99, %c0_100], %69 {strides = array<i32>} : memref<2x18x32x8xf32, #tpu.memory_space<vmem>>, vector<2x16x1x8xf32>,
    %c0_101 = arith.constant 0 : index
    %c1_102 = arith.constant 1 : index
    %c24_103 = arith.constant 24 : index
    %c0_104 = arith.constant 0 : index
    %71 = vector.load %arg8[%c0_101, %c1_102, %c24_103, %c0_104] : memref<2x18x32x8xf32, #tpu.memory_space<vmem>>, vector<2x16x1x8xf32>
    tpu.vector_store %arg8[%c0_101, %c1_102, %c24_103, %c0_104], %69 {strides = array<i32>} : memref<2x18x32x8xf32, #tpu.memory_space<vmem>>, vector<2x16x1x8xf32>,
    %c0_105 = arith.constant 0 : index
    %c1_106 = arith.constant 1 : index
    %c8_107 = arith.constant 8 : index
    %c0_108 = arith.constant 0 : index
    %72 = vector.load %arg8[%c0_105, %c1_106, %c8_107, %c0_108] : memref<2x18x32x8xf32, #tpu.memory_space<vmem>>, vector<2x16x16x8xf32>
    tpu.vector_store %arg8[%c0_105, %c1_106, %c8_107, %c0_108], %65 {strides = array<i32>} : memref<2x18x32x8xf32, #tpu.memory_space<vmem>>, vector<2x16x16x8xf32>,
    %cst_109 = arith.constant 0.000000e+00 : f32
    %73 = vector.broadcast %cst_109 : f32 to vector<512x8xf32>
    %c0_110 = arith.constant 0 : index
    %c0_111 = arith.constant 0 : index
    %c7_112 = arith.constant 7 : index
    %c0_113 = arith.constant 0 : index
    %74 = vector.load %arg8[%c0_110, %c0_111, %c7_112, %c0_113] : memref<2x18x32x8xf32, #tpu.memory_space<vmem>>, vector<2x16x16x8xf32>
    %75 = vector.shape_cast %74 : vector<2x16x16x8xf32> to vector<512x8xf32>
    %c0_114 = arith.constant 0 : index
    %c0_115 = arith.constant 0 : index
    %c0_116 = arith.constant 0 : index
    %76 = vector.load %arg3[%c0_114, %c0_115, %c0_116] : memref<9x8x8xf32, #tpu.memory_space<vmem>>, vector<1x8x8xf32>
    %77 = vector.shape_cast %76 : vector<1x8x8xf32> to vector<8x8xf32>
    %cst_117 = arith.constant dense<0.000000e+00> : vector<512x8xf32>
    %78 = tpu.matmul %75, %77, %cst_117 {dimension_numbers = #tpu.dot_dimension_numbers<[1], [0], [0], [1], [0, 0, 1, 1], [], []>} : vector<512x8xf32>, vector<8x8xf32>, vector<512x8xf32> -> vector<512x8xf32>
    %79 = arith.addf %73, %78 : vector<512x8xf32>
    %c0_118 = arith.constant 0 : index
    %c0_119 = arith.constant 0 : index
    %c8_120 = arith.constant 8 : index
    %c0_121 = arith.constant 0 : index
    %80 = vector.load %arg8[%c0_118, %c0_119, %c8_120, %c0_121] : memref<2x18x32x8xf32, #tpu.memory_space<vmem>>, vector<2x16x16x8xf32>
    %81 = vector.shape_cast %80 : vector<2x16x16x8xf32> to vector<512x8xf32>
    %c1_122 = arith.constant 1 : index
    %c0_123 = arith.constant 0 : index
    %c0_124 = arith.constant 0 : index
    %82 = vector.load %arg3[%c1_122, %c0_123, %c0_124] : memref<9x8x8xf32, #tpu.memory_space<vmem>>, vector<1x8x8xf32>
    %83 = vector.shape_cast %82 : vector<1x8x8xf32> to vector<8x8xf32>
    %cst_125 = arith.constant dense<0.000000e+00> : vector<512x8xf32>
    %84 = tpu.matmul %81, %83, %cst_125 {dimension_numbers = #tpu.dot_dimension_numbers<[1], [0], [0], [1], [0, 0, 1, 1], [], []>} : vector<512x8xf32>, vector<8x8xf32>, vector<512x8xf32> -> vector<512x8xf32>
    %85 = arith.addf %79, %84 : vector<512x8xf32>
    %c0_126 = arith.constant 0 : index
    %c0_127 = arith.constant 0 : index
    %c9_128 = arith.constant 9 : index
    %c0_129 = arith.constant 0 : index
    %86 = vector.load %arg8[%c0_126, %c0_127, %c9_128, %c0_129] : memref<2x18x32x8xf32, #tpu.memory_space<vmem>>, vector<2x16x16x8xf32>
    %87 = vector.shape_cast %86 : vector<2x16x16x8xf32> to vector<512x8xf32>
    %c2_130 = arith.constant 2 : index
    %c0_131 = arith.constant 0 : index
    %c0_132 = arith.constant 0 : index
    %88 = vector.load %arg3[%c2_130, %c0_131, %c0_132] : memref<9x8x8xf32, #tpu.memory_space<vmem>>, vector<1x8x8xf32>
    %89 = vector.shape_cast %88 : vector<1x8x8xf32> to vector<8x8xf32>
    %cst_133 = arith.constant dense<0.000000e+00> : vector<512x8xf32>
    %90 = tpu.matmul %87, %89, %cst_133 {dimension_numbers = #tpu.dot_dimension_numbers<[1], [0], [0], [1], [0, 0, 1, 1], [], []>} : vector<512x8xf32>, vector<8x8xf32>, vector<512x8xf32> -> vector<512x8xf32>
    %91 = arith.addf %85, %90 : vector<512x8xf32>
    %c0_134 = arith.constant 0 : index
    %c1_135 = arith.constant 1 : index
    %c7_136 = arith.constant 7 : index
    %c0_137 = arith.constant 0 : index
    %92 = vector.load %arg8[%c0_134, %c1_135, %c7_136, %c0_137] : memref<2x18x32x8xf32, #tpu.memory_space<vmem>>, vector<2x16x16x8xf32>
    %93 = vector.shape_cast %92 : vector<2x16x16x8xf32> to vector<512x8xf32>
    %c3_138 = arith.constant 3 : index
    %c0_139 = arith.constant 0 : index
    %c0_140 = arith.constant 0 : index
    %94 = vector.load %arg3[%c3_138, %c0_139, %c0_140] : memref<9x8x8xf32, #tpu.memory_space<vmem>>, vector<1x8x8xf32>
    %95 = vector.shape_cast %94 : vector<1x8x8xf32> to vector<8x8xf32>
    %cst_141 = arith.constant dense<0.000000e+00> : vector<512x8xf32>
    %96 = tpu.matmul %93, %95, %cst_141 {dimension_numbers = #tpu.dot_dimension_numbers<[1], [0], [0], [1], [0, 0, 1, 1], [], []>} : vector<512x8xf32>, vector<8x8xf32>, vector<512x8xf32> -> vector<512x8xf32>
    %97 = arith.addf %91, %96 : vector<512x8xf32>
    %c0_142 = arith.constant 0 : index
    %c1_143 = arith.constant 1 : index
    %c8_144 = arith.constant 8 : index
    %c0_145 = arith.constant 0 : index
    %98 = vector.load %arg8[%c0_142, %c1_143, %c8_144, %c0_145] : memref<2x18x32x8xf32, #tpu.memory_space<vmem>>, vector<2x16x16x8xf32>
    %99 = vector.shape_cast %98 : vector<2x16x16x8xf32> to vector<512x8xf32>
    %c4_146 = arith.constant 4 : index
    %c0_147 = arith.constant 0 : index
    %c0_148 = arith.constant 0 : index
    %100 = vector.load %arg3[%c4_146, %c0_147, %c0_148] : memref<9x8x8xf32, #tpu.memory_space<vmem>>, vector<1x8x8xf32>
    %101 = vector.shape_cast %100 : vector<1x8x8xf32> to vector<8x8xf32>
    %cst_149 = arith.constant dense<0.000000e+00> : vector<512x8xf32>
    %102 = tpu.matmul %99, %101, %cst_149 {dimension_numbers = #tpu.dot_dimension_numbers<[1], [0], [0], [1], [0, 0, 1, 1], [], []>} : vector<512x8xf32>, vector<8x8xf32>, vector<512x8xf32> -> vector<512x8xf32>
    %103 = arith.addf %97, %102 : vector<512x8xf32>
    %c0_150 = arith.constant 0 : index
    %c1_151 = arith.constant 1 : index
    %c9_152 = arith.constant 9 : index
    %c0_153 = arith.constant 0 : index
    %104 = vector.load %arg8[%c0_150, %c1_151, %c9_152, %c0_153] : memref<2x18x32x8xf32, #tpu.memory_space<vmem>>, vector<2x16x16x8xf32>
    %105 = vector.shape_cast %104 : vector<2x16x16x8xf32> to vector<512x8xf32>
    %c5_154 = arith.constant 5 : index
    %c0_155 = arith.constant 0 : index
    %c0_156 = arith.constant 0 : index
    %106 = vector.load %arg3[%c5_154, %c0_155, %c0_156] : memref<9x8x8xf32, #tpu.memory_space<vmem>>, vector<1x8x8xf32>
    %107 = vector.shape_cast %106 : vector<1x8x8xf32> to vector<8x8xf32>
    %cst_157 = arith.constant dense<0.000000e+00> : vector<512x8xf32>
    %108 = tpu.matmul %105, %107, %cst_157 {dimension_numbers = #tpu.dot_dimension_numbers<[1], [0], [0], [1], [0, 0, 1, 1], [], []>} : vector<512x8xf32>, vector<8x8xf32>, vector<512x8xf32> -> vector<512x8xf32>
    %109 = arith.addf %103, %108 : vector<512x8xf32>
    %c0_158 = arith.constant 0 : index
    %c2_159 = arith.constant 2 : index
    %c7_160 = arith.constant 7 : index
    %c0_161 = arith.constant 0 : index
    %110 = vector.load %arg8[%c0_158, %c2_159, %c7_160, %c0_161] : memref<2x18x32x8xf32, #tpu.memory_space<vmem>>, vector<2x16x16x8xf32>
    %111 = vector.shape_cast %110 : vector<2x16x16x8xf32> to vector<512x8xf32>
    %c6_162 = arith.constant 6 : index
    %c0_163 = arith.constant 0 : index
    %c0_164 = arith.constant 0 : index
    %112 = vector.load %arg3[%c6_162, %c0_163, %c0_164] : memref<9x8x8xf32, #tpu.memory_space<vmem>>, vector<1x8x8xf32>
    %113 = vector.shape_cast %112 : vector<1x8x8xf32> to vector<8x8xf32>
    %cst_165 = arith.constant dense<0.000000e+00> : vector<512x8xf32>
    %114 = tpu.matmul %111, %113, %cst_165 {dimension_numbers = #tpu.dot_dimension_numbers<[1], [0], [0], [1], [0, 0, 1, 1], [], []>} : vector<512x8xf32>, vector<8x8xf32>, vector<512x8xf32> -> vector<512x8xf32>
    %115 = arith.addf %109, %114 : vector<512x8xf32>
    %c0_166 = arith.constant 0 : index
    %c2_167 = arith.constant 2 : index
    %c8_168 = arith.constant 8 : index
    %c0_169 = arith.constant 0 : index
    %116 = vector.load %arg8[%c0_166, %c2_167, %c8_168, %c0_169] : memref<2x18x32x8xf32, #tpu.memory_space<vmem>>, vector<2x16x16x8xf32>
    %117 = vector.shape_cast %116 : vector<2x16x16x8xf32> to vector<512x8xf32>
    %c7_170 = arith.constant 7 : index
    %c0_171 = arith.constant 0 : index
    %c0_172 = arith.constant 0 : index
    %118 = vector.load %arg3[%c7_170, %c0_171, %c0_172] : memref<9x8x8xf32, #tpu.memory_space<vmem>>, vector<1x8x8xf32>
    %119 = vector.shape_cast %118 : vector<1x8x8xf32> to vector<8x8xf32>
    %cst_173 = arith.constant dense<0.000000e+00> : vector<512x8xf32>
    %120 = tpu.matmul %117, %119, %cst_173 {dimension_numbers = #tpu.dot_dimension_numbers<[1], [0], [0], [1], [0, 0, 1, 1], [], []>} : vector<512x8xf32>, vector<8x8xf32>, vector<512x8xf32> -> vector<512x8xf32>
    %121 = arith.addf %115, %120 : vector<512x8xf32>
    %c0_174 = arith.constant 0 : index
    %c2_175 = arith.constant 2 : index
    %c9_176 = arith.constant 9 : index
    %c0_177 = arith.constant 0 : index
    %122 = vector.load %arg8[%c0_174, %c2_175, %c9_176, %c0_177] : memref<2x18x32x8xf32, #tpu.memory_space<vmem>>, vector<2x16x16x8xf32>
    %123 = vector.shape_cast %122 : vector<2x16x16x8xf32> to vector<512x8xf32>
    %c8_178 = arith.constant 8 : index
    %c0_179 = arith.constant 0 : index
    %c0_180 = arith.constant 0 : index
    %124 = vector.load %arg3[%c8_178, %c0_179, %c0_180] : memref<9x8x8xf32, #tpu.memory_space<vmem>>, vector<1x8x8xf32>
    %125 = vector.shape_cast %124 : vector<1x8x8xf32> to vector<8x8xf32>
    %cst_181 = arith.constant dense<0.000000e+00> : vector<512x8xf32>
    %126 = tpu.matmul %123, %125, %cst_181 {dimension_numbers = #tpu.dot_dimension_numbers<[1], [0], [0], [1], [0, 0, 1, 1], [], []>} : vector<512x8xf32>, vector<8x8xf32>, vector<512x8xf32> -> vector<512x8xf32>
    %127 = arith.addf %121, %126 : vector<512x8xf32>
    %cst_182 = arith.constant dense<0.000000e+00> : vector<8xf32>
    %128 = vector.multi_reduction <add>, %127, %cst_182 [0] : vector<512x8xf32> to vector<8xf32>
    %129 = vector.shape_cast %128 : vector<8xf32> to vector<1x8xf32>
    %130 = arith.mulf %127, %127 : vector<512x8xf32>
    %cst_183 = arith.constant dense<0.000000e+00> : vector<8xf32>
    %131 = vector.multi_reduction <add>, %130, %cst_183 [0] : vector<512x8xf32> to vector<8xf32>
    %132 = vector.shape_cast %131 : vector<8xf32> to vector<1x8xf32>
    %cst_184 = arith.constant 0.001953125 : f32
    %133 = vector.broadcast %cst_184 : f32 to vector<1x8xf32>
    %134 = arith.mulf %129, %133 : vector<1x8xf32>
    %cst_185 = arith.constant 0.001953125 : f32
    %135 = vector.broadcast %cst_185 : f32 to vector<1x8xf32>
    %136 = arith.mulf %132, %135 : vector<1x8xf32>
    %137 = arith.mulf %134, %134 : vector<1x8xf32>
    %138 = arith.subf %136, %137 : vector<1x8xf32>
    %cst_186 = arith.constant 9.99999974E-6 : f32
    %139 = vector.broadcast %cst_186 : f32 to vector<1x8xf32>
    %140 = arith.addf %138, %139 : vector<1x8xf32>
    %141 = math.rsqrt %140 : vector<1x8xf32>
    %c0_187 = arith.constant 0 : index
    %c0_188 = arith.constant 0 : index
    %142 = vector.load %arg4[%c0_187, %c0_188] : memref<1x8xf32, #tpu.memory_space<vmem>>, vector<1x8xf32>
    %143 = arith.mulf %142, %141 : vector<1x8xf32>
    %c0_189 = arith.constant 0 : index
    %c0_190 = arith.constant 0 : index
    %144 = vector.load %arg5[%c0_189, %c0_190] : memref<1x8xf32, #tpu.memory_space<vmem>>, vector<1x8xf32>
    %145 = arith.mulf %134, %143 : vector<1x8xf32>
    %146 = arith.subf %144, %145 : vector<1x8xf32>
    %147 = vector.broadcast %143 : vector<1x8xf32> to vector<512x8xf32>
    %148 = arith.mulf %127, %147 : vector<512x8xf32>
    %149 = vector.broadcast %146 : vector<1x8xf32> to vector<512x8xf32>
    %150 = arith.addf %148, %149 : vector<512x8xf32>
    %151 = math.tanh %150 : vector<512x8xf32>
    %152 = vector.extract_strided_slice %151 {offsets = [0, 0], sizes = [256, 8], strides = [1, 1]} : vector<512x8xf32> to vector<256x8xf32>
    %153 = tpu.transpose %152, [1, 0] : vector<256x8xf32> -> vector<8x256xf32>
    %c0_191 = arith.constant 0 : index
    %c0_192 = arith.constant 0 : index
    %154 = vector.load %arg6[%c0_191, %c0_192] : memref<16x256xf32, #tpu.memory_space<vmem>>, vector<8x256xf32>
    tpu.vector_store %arg6[%c0_191, %c0_192], %153 {strides = array<i32>} : memref<16x256xf32, #tpu.memory_space<vmem>>, vector<8x256xf32>,
    %155 = vector.extract_strided_slice %151 {offsets = [256, 0], sizes = [256, 8], strides = [1, 1]} : vector<512x8xf32> to vector<256x8xf32>
    %156 = tpu.transpose %155, [1, 0] : vector<256x8xf32> -> vector<8x256xf32>
    %c8_193 = arith.constant 8 : index
    %c0_194 = arith.constant 0 : index
    %157 = vector.load %arg6[%c8_193, %c0_194] : memref<16x256xf32, #tpu.memory_space<vmem>>, vector<8x256xf32>
    tpu.vector_store %arg6[%c8_193, %c0_194], %156 {strides = array<i32>} : memref<16x256xf32, #tpu.memory_space<vmem>>, vector<8x256xf32>,
    return
  }
  func.func @transform_0(%arg0: i32) -> (i32, i32, i32, i32) {
    %c0_i32 = arith.constant 0 : i32
    %c0_i32_0 = arith.constant 0 : i32
    %c0_i32_1 = arith.constant 0 : i32
    %c0_i32_2 = arith.constant 0 : i32
    %c0_i32_3 = arith.constant 0 : i32
    return %c0_i32, %c0_i32_0, %c0_i32_1, %c0_i32_2 : i32, i32, i32, i32
  }
  func.func @transform_1(%arg0: i32) -> (i32, i32, i32) {
    %c0_i32 = arith.constant 0 : i32
    %c0_i32_0 = arith.constant 0 : i32
    %c0_i32_1 = arith.constant 0 : i32
    %c0_i32_2 = arith.constant 0 : i32
    return %c0_i32, %c0_i32_0, %c0_i32_1 : i32, i32, i32
  }
  func.func @transform_2(%arg0: i32) -> (i32, i32, i32) {
    %c0_i32 = arith.constant 0 : i32
    %c0_i32_0 = arith.constant 0 : i32
    %c0_i32_1 = arith.constant 0 : i32
    %c0_i32_2 = arith.constant 0 : i32
    return %c0_i32, %c0_i32_0, %c0_i32_1 : i32, i32, i32
  }
  func.func @transform_3(%arg0: i32) -> (i32, i32) {
    %c0_i32 = arith.constant 0 : i32
    %c0_i32_0 = arith.constant 0 : i32
    %c0_i32_1 = arith.constant 0 : i32
    return %c0_i32, %c0_i32_0 : i32, i32
  }
  func.func @transform_4(%arg0: i32) -> (i32, i32) {
    %c0_i32 = arith.constant 0 : i32
    %c0_i32_0 = arith.constant 0 : i32
    %c0_i32_1 = arith.constant 0 : i32
    return %c0_i32, %c0_i32_0 : i32, i32
  }
  func.func @transform_5(%arg0: i32) -> (i32, i32) {
    %c0_i32 = arith.constant 0 : i32
    %c0_i32_0 = arith.constant 0 : i32
    %c0_i32_1 = arith.constant 0 : i32
    return %c0_i32, %c0_i32_0 : i32, i32
  }
}

</mosaic_0001>

<llo_original>
// kernel: double_conv.1
$region0: #{double_conv.1}
  #allocation0 [shape = 'u32[]', space=smem, size = 0x4, offset = 0x4, fixed_abs, tag = 'smem constant byte address 0x4 - core index']
  #allocation1 [shape = 'u32[144,128]{1,0:T(1,128)}', space=vmem, size = 0x12000, scoped, tag = 'internal scratch']
  #allocation2 [shape = 'f32[2,18,32,4]{3,2,1,0:T(8,128)}', space=vmem, size = 0x90000, scoped, tag = 'scratch operand']
  #allocation3 [shape = 'f32[2,18,32,8]{3,2,1,0:T(8,128)}', space=vmem, size = 0x90000, scoped, tag = 'scratch operand']
  %s0 = inlined_call_operand.vmem [shape: f32[2,16,16,4], index: 0, kind: input, shape index: {}]
  %s1 = inlined_call_operand.vmem [shape: f32[9,4,8], index: 1, kind: input, shape index: {}]
  %s2 = inlined_call_operand.vmem [shape: f32[9,8,8], index: 2, kind: input, shape index: {}]
  %s3 = inlined_call_operand.vmem [shape: f32[1,8], index: 3, kind: input, shape index: {}]
  %s4 = inlined_call_operand.vmem [shape: f32[1,8], index: 4, kind: input, shape index: {}]
  %s5 = inlined_call_operand.vmem [shape: f32[16,256], index: 5, kind: output, shape index: {}]
  %s6 = sld [smem:[#allocation0]]
  $region30: #{double_conv.1} parent=0
    _
  %s8 = ssub.s32 1, %s6
  %s9 = scalar_select 0, %s8, %s6
  // Predicated region
  $region2: #{double_conv.1} parent=0 // pred_check
    _
  $region3: #{double_conv.1} parent=0 // pred_check_branch
    %11 = sbr.rel (0) target = $region5
  $region4: #{double_conv.1} parent=0 // pred_region
    _
  $region5: #{double_conv.1} parent=0 // pred_fallthru
    _
  // Predicated region
  $region6: #{double_conv.1} parent=0 // pred_check
    _
  $region7: #{double_conv.1} parent=0 // pred_check_branch
    %13 = sbr.rel (0) target = $region9
  $region8: #{double_conv.1} parent=0 // pred_region
    _
  $region9: #{double_conv.1} parent=0 // pred_fallthru
    _
  // Predicated region
  $region10: #{double_conv.1} parent=0 // pred_check
    _
  $region11: #{double_conv.1} parent=0 // pred_check_branch
    %15 = sbr.rel (0) target = $region13
  $region12: #{double_conv.1} parent=0 // pred_region
    _
  $region13: #{double_conv.1} parent=0 // pred_fallthru
    _
  // Predicated region
  $region14: #{double_conv.1} parent=0 // pred_check
    _
  $region15: #{double_conv.1} parent=0 // pred_check_branch
    %17 = sbr.rel (0) target = $region17
  $region16: #{double_conv.1} parent=0 // pred_region
    _
  $region17: #{double_conv.1} parent=0 // pred_fallthru
    _
  // Predicated region
  $region18: #{double_conv.1} parent=0 // pred_check
    _
  $region19: #{double_conv.1} parent=0 // pred_check_branch
    %19 = sbr.rel (0) target = $region21
  $region20: #{double_conv.1} parent=0 // pred_region
    _
  $region21: #{double_conv.1} parent=0 // pred_fallthru
    _
  %v20 = vld [vmem:[%s0] sm:$0xff]
  %v21 = vld [vmem:[%s0 + $0x8] sm:$0xff]
  %v22 = vld [vmem:[%s0 + $0x10] sm:$0xff]
  %v23 = vld [vmem:[%s0 + $0x18] sm:$0xff]
  %v24 = vld [vmem:[%s0 + $0x20] sm:$0xff]
  %v25 = vld [vmem:[%s0 + $0x28] sm:$0xff]
  %v26 = vld [vmem:[%s0 + $0x30] sm:$0xff]
  %v27 = vld [vmem:[%s0 + $0x38] sm:$0xff]
  %v28 = vld [vmem:[%s0 + $0x40] sm:$0xff]
  %v29 = vld [vmem:[%s0 + $0x48] sm:$0xff]
  %v30 = vld [vmem:[%s0 + $0x50] sm:$0xff]
  %v31 = vld [vmem:[%s0 + $0x58] sm:$0xff]
  %v32 = vld [vmem:[%s0 + $0x60] sm:$0xff]
  %v33 = vld [vmem:[%s0 + $0x68] sm:$0xff]
  %v34 = vld [vmem:[%s0 + $0x70] sm:$0xff]
  %v35 = vld [vmem:[%s0 + $0x78] sm:$0xff]
  %v36 = vld [vmem:[%s0 + $0x80] sm:$0xff]
  %v37 = vld [vmem:[%s0 + $0x88] sm:$0xff]
  %v38 = vld [vmem:[%s0 + $0x90] sm:$0xff]
  %v39 = vld [vmem:[%s0 + $0x98] sm:$0xff]
  %v40 = vld [vmem:[%s0 + $0xa0] sm:$0xff]
  %v41 = vld [vmem:[%s0 + $0xa8] sm:$0xff]
  %v42 = vld [vmem:[%s0 + $0xb0] sm:$0xff]
  %v43 = vld [vmem:[%s0 + $0xb8] sm:$0xff]
  %v44 = vld [vmem:[%s0 + $0xc0] sm:$0xff]
  %v45 = vld [vmem:[%s0 + $0xc8] sm:$0xff]
  %v46 = vld [vmem:[%s0 + $0xd0] sm:$0xff]
  %v47 = vld [vmem:[%s0 + $0xd8] sm:$0xff]
  %v48 = vld [vmem:[%s0 + $0xe0] sm:$0xff]
  %v49 = vld [vmem:[%s0 + $0xe8] sm:$0xff]
  %v50 = vld [vmem:[%s0 + $0xf0] sm:$0xff]
  %v51 = vld [vmem:[%s0 + $0xf8] sm:$0xff]
  %v52 = vld [vmem:[%s0 + $0x100] sm:$0xff]
  %v53 = vld [vmem:[%s0 + $0x108] sm:$0xff]
  %v54 = vld [vmem:[%s0 + $0x110] sm:$0xff]
  %v55 = vld [vmem:[%s0 + $0x118] sm:$0xff]
  %v56 = vld [vmem:[%s0 + $0x120] sm:$0xff]
  %v57 = vld [vmem:[%s0 + $0x128] sm:$0xff]
  %v58 = vld [vmem:[%s0 + $0x130] sm:$0xff]
  %v59 = vld [vmem:[%s0 + $0x138] sm:$0xff]
  %v60 = vld [vmem:[%s0 + $0x140] sm:$0xff]
  %v61 = vld [vmem:[%s0 + $0x148] sm:$0xff]
  %v62 = vld [vmem:[%s0 + $0x150] sm:$0xff]
  %v63 = vld [vmem:[%s0 + $0x158] sm:$0xff]
  %v64 = vld [vmem:[%s0 + $0x160] sm:$0xff]
  %v65 = vld [vmem:[%s0 + $0x168] sm:$0xff]
  %v66 = vld [vmem:[%s0 + $0x170] sm:$0xff]
  %v67 = vld [vmem:[%s0 + $0x178] sm:$0xff]
  %v68 = vld [vmem:[%s0 + $0x180] sm:$0xff]
  %v69 = vld [vmem:[%s0 + $0x188] sm:$0xff]
  %v70 = vld [vmem:[%s0 + $0x190] sm:$0xff]
  %v71 = vld [vmem:[%s0 + $0x198] sm:$0xff]
  %v72 = vld [vmem:[%s0 + $0x1a0] sm:$0xff]
  %v73 = vld [vmem:[%s0 + $0x1a8] sm:$0xff]
  %v74 = vld [vmem:[%s0 + $0x1b0] sm:$0xff]
  %v75 = vld [vmem:[%s0 + $0x1b8] sm:$0xff]
  %v76 = vld [vmem:[%s0 + $0x1c0] sm:$0xff]
  %v77 = vld [vmem:[%s0 + $0x1c8] sm:$0xff]
  %v78 = vld [vmem:[%s0 + $0x1d0] sm:$0xff]
  %v79 = vld [vmem:[%s0 + $0x1d8] sm:$0xff]
  %v80 = vld [vmem:[%s0 + $0x1e0] sm:$0xff]
  %v81 = vld [vmem:[%s0 + $0x1e8] sm:$0xff]
  %v82 = vld [vmem:[%s0 + $0x1f0] sm:$0xff]
  %v83 = vld [vmem:[%s0 + $0x1f8] sm:$0xff]
  %vm84 = vcmask 31744
  %85 = vst.msk [vmem:[#allocation2] sm:$0xff] %vm84, 0.0
  %86 = vst.msk [vmem:[#allocation2 + $0x8] sm:$0xff] %vm84, 0.0
  %87 = vst.msk [vmem:[#allocation2 + $0x10] sm:$0xff] %vm84, 0.0
  %88 = vst.msk [vmem:[#allocation2 + $0x18] sm:$0xff] %vm84, 0.0
  %89 = vst.msk [vmem:[#allocation2 + $0x240] sm:$0xff] %vm84, 0.0
  %90 = vst.msk [vmem:[#allocation2 + $0x248] sm:$0xff] %vm84, 0.0
  %91 = vst.msk [vmem:[#allocation2 + $0x250] sm:$0xff] %vm84, 0.0
  %92 = vst.msk [vmem:[#allocation2 + $0x258] sm:$0xff] %vm84, 0.0
  %s93 = scalar_lea.vmem [#allocation2], 544
  %94 = vst.msk [vmem:[%s93] sm:$0xff] %vm84, 0.0
  %95 = vst.msk [vmem:[%s93 + $0x8] sm:$0xff] %vm84, 0.0
  %96 = vst.msk [vmem:[%s93 + $0x10] sm:$0xff] %vm84, 0.0
  %97 = vst.msk [vmem:[%s93 + $0x18] sm:$0xff] %vm84, 0.0
  %98 = vst.msk [vmem:[%s93 + $0x240] sm:$0xff] %vm84, 0.0
  %99 = vst.msk [vmem:[%s93 + $0x248] sm:$0xff] %vm84, 0.0
  %100 = vst.msk [vmem:[%s93 + $0x250] sm:$0xff] %vm84, 0.0
  %101 = vst.msk [vmem:[%s93 + $0x258] sm:$0xff] %vm84, 0.0
  %s102 = scalar_lea.vmem [#allocation2], 32
  %vm103 = vcmask 24576
  %104 = vst.msk [vmem:[%s102 + $0x7] sm:$0x1] %vm103, 0.0
  %105 = vst.msk [vmem:[%s102 + $0x27] sm:$0x1] %vm103, 0.0
  %106 = vst.msk [vmem:[%s102 + $0x47] sm:$0x1] %vm103, 0.0
  %107 = vst.msk [vmem:[%s102 + $0x67] sm:$0x1] %vm103, 0.0
  %108 = vst.msk [vmem:[%s102 + $0x87] sm:$0x1] %vm103, 0.0
  %109 = vst.msk [vmem:[%s102 + $0xa7] sm:$0x1] %vm103, 0.0
  %110 = vst.msk [vmem:[%s102 + $0xc7] sm:$0x1] %vm103, 0.0
  %111 = vst.msk [vmem:[%s102 + $0xe7] sm:$0x1] %vm103, 0.0
  %112 = vst.msk [vmem:[%s102 + $0x107] sm:$0x1] %vm103, 0.0
  %113 = vst.msk [vmem:[%s102 + $0x127] sm:$0x1] %vm103, 0.0
  %114 = vst.msk [vmem:[%s102 + $0x147] sm:$0x1] %vm103, 0.0
  %115 = vst.msk [vmem:[%s102 + $0x167] sm:$0x1] %vm103, 0.0
  %116 = vst.msk [vmem:[%s102 + $0x187] sm:$0x1] %vm103, 0.0
  %117 = vst.msk [vmem:[%s102 + $0x1a7] sm:$0x1] %vm103, 0.0
  %118 = vst.msk [vmem:[%s102 + $0x1c7] sm:$0x1] %vm103, 0.0
  %119 = vst.msk [vmem:[%s102 + $0x1e7] sm:$0x1] %vm103, 0.0
  %120 = vst.msk [vmem:[%s102 + $0x247] sm:$0x1] %vm103, 0.0
  %121 = vst.msk [vmem:[%s102 + $0x267] sm:$0x1] %vm103, 0.0
  %122 = vst.msk [vmem:[%s102 + $0x287] sm:$0x1] %vm103, 0.0
  %123 = vst.msk [vmem:[%s102 + $0x2a7] sm:$0x1] %vm103, 0.0
  %124 = vst.msk [vmem:[%s102 + $0x2c7] sm:$0x1] %vm103, 0.0
  %125 = vst.msk [vmem:[%s102 + $0x2e7] sm:$0x1] %vm103, 0.0
  %126 = vst.msk [vmem:[%s102 + $0x307] sm:$0x1] %vm103, 0.0
  %127 = vst.msk [vmem:[%s102 + $0x327] sm:$0x1] %vm103, 0.0
  %128 = vst.msk [vmem:[%s102 + $0x347] sm:$0x1] %vm103, 0.0
  %129 = vst.msk [vmem:[%s102 + $0x367] sm:$0x1] %vm103, 0.0
  %130 = vst.msk [vmem:[%s102 + $0x387] sm:$0x1] %vm103, 0.0
  %131 = vst.msk [vmem:[%s102 + $0x3a7] sm:$0x1] %vm103, 0.0
  %132 = vst.msk [vmem:[%s102 + $0x3c7] sm:$0x1] %vm103, 0.0
  %133 = vst.msk [vmem:[%s102 + $0x3e7] sm:$0x1] %vm103, 0.0
  %134 = vst.msk [vmem:[%s102 + $0x407] sm:$0x1] %vm103, 0.0
  %135 = vst.msk [vmem:[%s102 + $0x427] sm:$0x1] %vm103, 0.0
  %136 = vst.msk [vmem:[%s102 + $0x18] sm:$0x1] %vm103, 0.0
  %137 = vst.msk [vmem:[%s102 + $0x38] sm:$0x1] %vm103, 0.0
  %138 = vst.msk [vmem:[%s102 + $0x58] sm:$0x1] %vm103, 0.0
  %139 = vst.msk [vmem:[%s102 + $0x78] sm:$0x1] %vm103, 0.0
  %140 = vst.msk [vmem:[%s102 + $0x98] sm:$0x1] %vm103, 0.0
  %141 = vst.msk [vmem:[%s102 + $0xb8] sm:$0x1] %vm103, 0.0
  %142 = vst.msk [vmem:[%s102 + $0xd8] sm:$0x1] %vm103, 0.0
  %143 = vst.msk [vmem:[%s102 + $0xf8] sm:$0x1] %vm103, 0.0
  %144 = vst.msk [vmem:[%s102 + $0x118] sm:$0x1] %vm103, 0.0
  %145 = vst.msk [vmem:[%s102 + $0x138] sm:$0x1] %vm103, 0.0
  %146 = vst.msk [vmem:[%s102 + $0x158] sm:$0x1] %vm103, 0.0
  %147 = vst.msk [vmem:[%s102 + $0x178] sm:$0x1] %vm103, 0.0
  %148 = vst.msk [vmem:[%s102 + $0x198] sm:$0x1] %vm103, 0.0
  %149 = vst.msk [vmem:[%s102 + $0x1b8] sm:$0x1] %vm103, 0.0
  %150 = vst.msk [vmem:[%s102 + $0x1d8] sm:$0x1] %vm103, 0.0
  %151 = vst.msk [vmem:[%s102 + $0x1f8] sm:$0x1] %vm103, 0.0
  %152 = vst.msk [vmem:[%s102 + $0x258] sm:$0x1] %vm103, 0.0
  %153 = vst.msk [vmem:[%s102 + $0x278] sm:$0x1] %vm103, 0.0
  %154 = vst.msk [vmem:[%s102 + $0x298] sm:$0x1] %vm103, 0.0
  %155 = vst.msk [vmem:[%s102 + $0x2b8] sm:$0x1] %vm103, 0.0
  %156 = vst.msk [vmem:[%s102 + $0x2d8] sm:$0x1] %vm103, 0.0
  %157 = vst.msk [vmem:[%s102 + $0x2f8] sm:$0x1] %vm103, 0.0
  %158 = vst.msk [vmem:[%s102 + $0x318] sm:$0x1] %vm103, 0.0
  %159 = vst.msk [vmem:[%s102 + $0x338] sm:$0x1] %vm103, 0.0
  %160 = vst.msk [vmem:[%s102 + $0x358] sm:$0x1] %vm103, 0.0
  %161 = vst.msk [vmem:[%s102 + $0x378] sm:$0x1] %vm103, 0.0
  %162 = vst.msk [vmem:[%s102 + $0x398] sm:$0x1] %vm103, 0.0
  %163 = vst.msk [vmem:[%s102 + $0x3b8] sm:$0x1] %vm103, 0.0
  %164 = vst.msk [vmem:[%s102 + $0x3d8] sm:$0x1] %vm103, 0.0
  %165 = vst.msk [vmem:[%s102 + $0x3f8] sm:$0x1] %vm103, 0.0
  %166 = vst.msk [vmem:[%s102 + $0x418] sm:$0x1] %vm103, 0.0
  %167 = vst.msk [vmem:[%s102 + $0x438] sm:$0x1] %vm103, 0.0
  %168 = vst.msk [vmem:[%s102 + $0x8] sm:$0xff] %vm84, %v20
  %169 = vst.msk [vmem:[%s102 + $0x10] sm:$0xff] %vm84, %v21
  %170 = vst.msk [vmem:[%s102 + $0x28] sm:$0xff] %vm84, %v22
  %171 = vst.msk [vmem:[%s102 + $0x30] sm:$0xff] %vm84, %v23
  %172 = vst.msk [vmem:[%s102 + $0x48] sm:$0xff] %vm84, %v24
  %173 = vst.msk [vmem:[%s102 + $0x50] sm:$0xff] %vm84, %v25
  %174 = vst.msk [vmem:[%s102 + $0x68] sm:$0xff] %vm84, %v26
  %175 = vst.msk [vmem:[%s102 + $0x70] sm:$0xff] %vm84, %v27
  %176 = vst.msk [vmem:[%s102 + $0x88] sm:$0xff] %vm84, %v28
  %177 = vst.msk [vmem:[%s102 + $0x90] sm:$0xff] %vm84, %v29
  %178 = vst.msk [vmem:[%s102 + $0xa8] sm:$0xff] %vm84, %v30
  %179 = vst.msk [vmem:[%s102 + $0xb0] sm:$0xff] %vm84, %v31
  %180 = vst.msk [vmem:[%s102 + $0xc8] sm:$0xff] %vm84, %v32
  %181 = vst.msk [vmem:[%s102 + $0xd0] sm:$0xff] %vm84, %v33
  %182 = vst.msk [vmem:[%s102 + $0xe8] sm:$0xff] %vm84, %v34
  %183 = vst.msk [vmem:[%s102 + $0xf0] sm:$0xff] %vm84, %v35
  %184 = vst.msk [vmem:[%s102 + $0x108] sm:$0xff] %vm84, %v36
  %185 = vst.msk [vmem:[%s102 + $0x110] sm:$0xff] %vm84, %v37
  %186 = vst.msk [vmem:[%s102 + $0x128] sm:$0xff] %vm84, %v38
  %187 = vst.msk [vmem:[%s102 + $0x130] sm:$0xff] %vm84, %v39
  %188 = vst.msk [vmem:[%s102 + $0x148] sm:$0xff] %vm84, %v40
  %189 = vst.msk [vmem:[%s102 + $0x150] sm:$0xff] %vm84, %v41
  %190 = vst.msk [vmem:[%s102 + $0x168] sm:$0xff] %vm84, %v42
  %191 = vst.msk [vmem:[%s102 + $0x170] sm:$0xff] %vm84, %v43
  %192 = vst.msk [vmem:[%s102 + $0x188] sm:$0xff] %vm84, %v44
  %193 = vst.msk [vmem:[%s102 + $0x190] sm:$0xff] %vm84, %v45
  %194 = vst.msk [vmem:[%s102 + $0x1a8] sm:$0xff] %vm84, %v46
  %195 = vst.msk [vmem:[%s102 + $0x1b0] sm:$0xff] %vm84, %v47
  %196 = vst.msk [vmem:[%s102 + $0x1c8] sm:$0xff] %vm84, %v48
  %197 = vst.msk [vmem:[%s102 + $0x1d0] sm:$0xff] %vm84, %v49
  %198 = vst.msk [vmem:[%s102 + $0x1e8] sm:$0xff] %vm84, %v50
  %199 = vst.msk [vmem:[%s102 + $0x1f0] sm:$0xff] %vm84, %v51
  %200 = vst.msk [vmem:[%s102 + $0x248] sm:$0xff] %vm84, %v52
  %201 = vst.msk [vmem:[%s102 + $0x250] sm:$0xff] %vm84, %v53
  %202 = vst.msk [vmem:[%s102 + $0x268] sm:$0xff] %vm84, %v54
  %203 = vst.msk [vmem:[%s102 + $0x270] sm:$0xff] %vm84, %v55
  %204 = vst.msk [vmem:[%s102 + $0x288] sm:$0xff] %vm84, %v56
  %205 = vst.msk [vmem:[%s102 + $0x290] sm:$0xff] %vm84, %v57
  %206 = vst.msk [vmem:[%s102 + $0x2a8] sm:$0xff] %vm84, %v58
  %207 = vst.msk [vmem:[%s102 + $0x2b0] sm:$0xff] %vm84, %v59
  %208 = vst.msk [vmem:[%s102 + $0x2c8] sm:$0xff] %vm84, %v60
  %209 = vst.msk [vmem:[%s102 + $0x2d0] sm:$0xff] %vm84, %v61
  %210 = vst.msk [vmem:[%s102 + $0x2e8] sm:$0xff] %vm84, %v62
  %211 = vst.msk [vmem:[%s102 + $0x2f0] sm:$0xff] %vm84, %v63
  %212 = vst.msk [vmem:[%s102 + $0x308] sm:$0xff] %vm84, %v64
  %213 = vst.msk [vmem:[%s102 + $0x310] sm:$0xff] %vm84, %v65
  %214 = vst.msk [vmem:[%s102 + $0x328] sm:$0xff] %vm84, %v66
  %215 = vst.msk [vmem:[%s102 + $0x330] sm:$0xff] %vm84, %v67
  %216 = vst.msk [vmem:[%s102 + $0x348] sm:$0xff] %vm84, %v68
  %217 = vst.msk [vmem:[%s102 + $0x350] sm:$0xff] %vm84, %v69
  %218 = vst.msk [vmem:[%s102 + $0x368] sm:$0xff] %vm84, %v70
  %219 = vst.msk [vmem:[%s102 + $0x370] sm:$0xff] %vm84, %v71
  %220 = vst.msk [vmem:[%s102 + $0x388] sm:$0xff] %vm84, %v72
  %221 = vst.msk [vmem:[%s102 + $0x390] sm:$0xff] %vm84, %v73
  %222 = vst.msk [vmem:[%s102 + $0x3a8] sm:$0xff] %vm84, %v74
  %223 = vst.msk [vmem:[%s102 + $0x3b0] sm:$0xff] %vm84, %v75
  %224 = vst.msk [vmem:[%s102 + $0x3c8] sm:$0xff] %vm84, %v76
  %225 = vst.msk [vmem:[%s102 + $0x3d0] sm:$0xff] %vm84, %v77
  %226 = vst.msk [vmem:[%s102 + $0x3e8] sm:$0xff] %vm84, %v78
  %227 = vst.msk [vmem:[%s102 + $0x3f0] sm:$0xff] %vm84, %v79
  %228 = vst.msk [vmem:[%s102 + $0x408] sm:$0xff] %vm84, %v80
  %229 = vst.msk [vmem:[%s102 + $0x410] sm:$0xff] %vm84, %v81
  %230 = vst.msk [vmem:[%s102 + $0x428] sm:$0xff] %vm84, %v82
  %231 = vst.msk [vmem:[%s102 + $0x430] sm:$0xff] %vm84, %v83
  %v232 = vld [vmem:[#allocation2 + $0x7] sm:$0xff]
  %v233 = vld [vmem:[#allocation2 + $0xf] sm:$0xff]
  %v234 = vld [vmem:[#allocation2 + $0x27] sm:$0xff]
  %v235 = vld [vmem:[#allocation2 + $0x2f] sm:$0xff]
  %v236 = vld [vmem:[#allocation2 + $0x47] sm:$0xff]
  %v237 = vld [vmem:[#allocation2 + $0x4f] sm:$0xff]
  %v238 = vld [vmem:[#allocation2 + $0x67] sm:$0xff]
  %v239 = vld [vmem:[#allocation2 + $0x6f] sm:$0xff]
  %v240 = vld [vmem:[#allocation2 + $0x87] sm:$0xff]
  %v241 = vld [vmem:[#allocation2 + $0x8f] sm:$0xff]
  %v242 = vld [vmem:[#allocation2 + $0xa7] sm:$0xff]
  %v243 = vld [vmem:[#allocation2 + $0xaf] sm:$0xff]
  %v244 = vld [vmem:[#allocation2 + $0xc7] sm:$0xff]
  %v245 = vld [vmem:[#allocation2 + $0xcf] sm:$0xff]
  %v246 = vld [vmem:[#allocation2 + $0xe7] sm:$0xff]
  %v247 = vld [vmem:[#allocation2 + $0xef] sm:$0xff]
  %v248 = vld [vmem:[#allocation2 + $0x107] sm:$0xff]
  %v249 = vld [vmem:[#allocation2 + $0x10f] sm:$0xff]
  %v250 = vld [vmem:[#allocation2 + $0x127] sm:$0xff]
  %v251 = vld [vmem:[#allocation2 + $0x12f] sm:$0xff]
  %v252 = vld [vmem:[#allocation2 + $0x147] sm:$0xff]
  %v253 = vld [vmem:[#allocation2 + $0x14f] sm:$0xff]
  %v254 = vld [vmem:[#allocation2 + $0x167] sm:$0xff]
  %v255 = vld [vmem:[#allocation2 + $0x16f] sm:$0xff]
  %v256 = vld [vmem:[#allocation2 + $0x187] sm:$0xff]
  %v257 = vld [vmem:[#allocation2 + $0x18f] sm:$0xff]
  %v258 = vld [vmem:[#allocation2 + $0x1a7] sm:$0xff]
  %v259 = vld [vmem:[#allocation2 + $0x1af] sm:$0xff]
  %v260 = vld [vmem:[#allocation2 + $0x1c7] sm:$0xff]
  %v261 = vld [vmem:[#allocation2 + $0x1cf] sm:$0xff]
  %v262 = vld [vmem:[#allocation2 + $0x1e7] sm:$0xff]
  %v263 = vld [vmem:[#allocation2 + $0x1ef] sm:$0xff]
  %v264 = vld [vmem:[#allocation2 + $0x247] sm:$0xff]
  %v265 = vld [vmem:[#allocation2 + $0x24f] sm:$0xff]
  %v266 = vld [vmem:[#allocation2 + $0x267] sm:$0xff]
  %v267 = vld [vmem:[#allocation2 + $0x26f] sm:$0xff]
  %v268 = vld [vmem:[#allocation2 + $0x287] sm:$0xff]
  %v269 = vld [vmem:[#allocation2 + $0x28f] sm:$0xff]
  %v270 = vld [vmem:[#allocation2 + $0x2a7] sm:$0xff]
  %v271 = vld [vmem:[#allocation2 + $0x2af] sm:$0xff]
  %v272 = vld [vmem:[#allocation2 + $0x2c7] sm:$0xff]
  %v273 = vld [vmem:[#allocation2 + $0x2cf] sm:$0xff]
  %v274 = vld [vmem:[#allocation2 + $0x2e7] sm:$0xff]
  %v275 = vld [vmem:[#allocation2 + $0x2ef] sm:$0xff]
  %v276 = vld [vmem:[#allocation2 + $0x307] sm:$0xff]
  %v277 = vld [vmem:[#allocation2 + $0x30f] sm:$0xff]
  %v278 = vld [vmem:[#allocation2 + $0x327] sm:$0xff]
  %v279 = vld [vmem:[#allocation2 + $0x32f] sm:$0xff]
  %v280 = vld [vmem:[#allocation2 + $0x347] sm:$0xff]
  %v281 = vld [vmem:[#allocation2 + $0x34f] sm:$0xff]
  %v282 = vld [vmem:[#allocation2 + $0x367] sm:$0xff]
  %v283 = vld [vmem:[#allocation2 + $0x36f] sm:$0xff]
  %v284 = vld [vmem:[#allocation2 + $0x387] sm:$0xff]
  %v285 = vld [vmem:[#allocation2 + $0x38f] sm:$0xff]
  %v286 = vld [vmem:[#allocation2 + $0x3a7] sm:$0xff]
  %v287 = vld [vmem:[#allocation2 + $0x3af] sm:$0xff]
  %v288 = vld [vmem:[#allocation2 + $0x3c7] sm:$0xff]
  %v289 = vld [vmem:[#allocation2 + $0x3cf] sm:$0xff]
  %v290 = vld [vmem:[#allocation2 + $0x3e7] sm:$0xff]
  %v291 = vld [vmem:[#allocation2 + $0x3ef] sm:$0xff]
  %v292 = vld [vmem:[#allocation2 + $0x407] sm:$0xff]
  %v293 = vld [vmem:[#allocation2 + $0x40f] sm:$0xff]
  %v294 = vld [vmem:[#allocation2 + $0x427] sm:$0xff]
  %v295 = vld [vmem:[#allocation2 + $0x42f] sm:$0xff]
  %v296 = vld [vmem:[%s1] sm:$0xf]
  %v297 = vld [vmem:[#allocation2 + $0x8] sm:$0xff]
  %v298 = vld [vmem:[#allocation2 + $0x10] sm:$0xff]
  %v299 = vld [vmem:[#allocation2 + $0x28] sm:$0xff]
  %v300 = vld [vmem:[#allocation2 + $0x30] sm:$0xff]
  %v301 = vld [vmem:[#allocation2 + $0x48] sm:$0xff]
  %v302 = vld [vmem:[#allocation2 + $0x50] sm:$0xff]
  %v303 = vld [vmem:[#allocation2 + $0x68] sm:$0xff]
  %v304 = vld [vmem:[#allocation2 + $0x70] sm:$0xff]
  %v305 = vld [vmem:[#allocation2 + $0x88] sm:$0xff]
  %v306 = vld [vmem:[#allocation2 + $0x90] sm:$0xff]
  %v307 = vld [vmem:[#allocation2 + $0xa8] sm:$0xff]
  %v308 = vld [vmem:[#allocation2 + $0xb0] sm:$0xff]
  %v309 = vld [vmem:[#allocation2 + $0xc8] sm:$0xff]
  %v310 = vld [vmem:[#allocation2 + $0xd0] sm:$0xff]
  %v311 = vld [vmem:[#allocation2 + $0xe8] sm:$0xff]
  %v312 = vld [vmem:[#allocation2 + $0xf0] sm:$0xff]
  %v313 = vld [vmem:[#allocation2 + $0x108] sm:$0xff]
  %v314 = vld [vmem:[#allocation2 + $0x110] sm:$0xff]
  %v315 = vld [vmem:[#allocation2 + $0x128] sm:$0xff]
  %v316 = vld [vmem:[#allocation2 + $0x130] sm:$0xff]
  %v317 = vld [vmem:[#allocation2 + $0x148] sm:$0xff]
  %v318 = vld [vmem:[#allocation2 + $0x150] sm:$0xff]
  %v319 = vld [vmem:[#allocation2 + $0x168] sm:$0xff]
  %v320 = vld [vmem:[#allocation2 + $0x170] sm:$0xff]
  %v321 = vld [vmem:[#allocation2 + $0x188] sm:$0xff]
  %v322 = vld [vmem:[#allocation2 + $0x190] sm:$0xff]
  %v323 = vld [vmem:[#allocation2 + $0x1a8] sm:$0xff]
  %v324 = vld [vmem:[#allocation2 + $0x1b0] sm:$0xff]
  %v325 = vld [vmem:[#allocation2 + $0x1c8] sm:$0xff]
  %v326 = vld [vmem:[#allocation2 + $0x1d0] sm:$0xff]
  %v327 = vld [vmem:[#allocation2 + $0x1e8] sm:$0xff]
  %v328 = vld [vmem:[#allocation2 + $0x1f0] sm:$0xff]
  %v329 = vld [vmem:[#allocation2 + $0x248] sm:$0xff]
  %v330 = vld [vmem:[#allocation2 + $0x250] sm:$0xff]
  %v331 = vld [vmem:[#allocation2 + $0x268] sm:$0xff]
  %v332 = vld [vmem:[#allocation2 + $0x270] sm:$0xff]
  %v333 = vld [vmem:[#allocation2 + $0x288] sm:$0xff]
  %v334 = vld [vmem:[#allocation2 + $0x290] sm:$0xff]
  %v335 = vld [vmem:[#allocation2 + $0x2a8] sm:$0xff]
  %v336 = vld [vmem:[#allocation2 + $0x2b0] sm:$0xff]
  %v337 = vld [vmem:[#allocation2 + $0x2c8] sm:$0xff]
  %v338 = vld [vmem:[#allocation2 + $0x2d0] sm:$0xff]
  %v339 = vld [vmem:[#allocation2 + $0x2e8] sm:$0xff]
  %v340 = vld [vmem:[#allocation2 + $0x2f0] sm:$0xff]
  %v341 = vld [vmem:[#allocation2 + $0x308] sm:$0xff]
  %v342 = vld [vmem:[#allocation2 + $0x310] sm:$0xff]
  %v343 = vld [vmem:[#allocation2 + $0x328] sm:$0xff]
  %v344 = vld [vmem:[#allocation2 + $0x330] sm:$0xff]
  %v345 = vld [vmem:[#allocation2 + $0x348] sm:$0xff]
  %v346 = vld [vmem:[#allocation2 + $0x350] sm:$0xff]
  %v347 = vld [vmem:[#allocation2 + $0x368] sm:$0xff]
  %v348 = vld [vmem:[#allocation2 + $0x370] sm:$0xff]
  %v349 = vld [vmem:[#allocation2 + $0x388] sm:$0xff]
  %v350 = vld [vmem:[#allocation2 + $0x390] sm:$0xff]
  %v351 = vld [vmem:[#allocation2 + $0x3a8] sm:$0xff]
  %v352 = vld [vmem:[#allocation2 + $0x3b0] sm:$0xff]
  %v353 = vld [vmem:[#allocation2 + $0x3c8] sm:$0xff]
  %v354 = vld [vmem:[#allocation2 + $0x3d0] sm:$0xff]
  %v355 = vld [vmem:[#allocation2 + $0x3e8] sm:$0xff]
  %v356 = vld [vmem:[#allocation2 + $0x3f0] sm:$0xff]
  %v357 = vld [vmem:[#allocation2 + $0x408] sm:$0xff]
  %v358 = vld [vmem:[#allocation2 + $0x410] sm:$0xff]
  %v359 = vld [vmem:[#allocation2 + $0x428] sm:$0xff]
  %v360 = vld [vmem:[#allocation2 + $0x430] sm:$0xff]
  %s361 = scalar_lea.vmem %s1, 4
  %v362 = vld [vmem:[%s361] sm:$0xf]
  %v364 = vsel %vm84, %v297, 0
  %v367 = vsel %vm84, %v298, 0
  %v370 = vsel %vm84, %v299, 0
  %v373 = vsel %vm84, %v300, 0
  %v376 = vsel %vm84, %v301, 0
  %v379 = vsel %vm84, %v302, 0
  %v382 = vsel %vm84, %v303, 0
  %v385 = vsel %vm84, %v304, 0
  %v388 = vsel %vm84, %v305, 0
  %v391 = vsel %vm84, %v306, 0
  %v394 = vsel %vm84, %v307, 0
  %v397 = vsel %vm84, %v308, 0
  %v400 = vsel %vm84, %v309, 0
  %v403 = vsel %vm84, %v310, 0
  %v406 = vsel %vm84, %v311, 0
  %v409 = vsel %vm84, %v312, 0
  %v412 = vsel %vm84, %v313, 0
  %v415 = vsel %vm84, %v314, 0
  %v418 = vsel %vm84, %v315, 0
  %v421 = vsel %vm84, %v316, 0
  %v424 = vsel %vm84, %v317, 0
  %v427 = vsel %vm84, %v318, 0
  %v430 = vsel %vm84, %v319, 0
  %v433 = vsel %vm84, %v320, 0
  %v436 = vsel %vm84, %v321, 0
  %v439 = vsel %vm84, %v322, 0
  %v442 = vsel %vm84, %v323, 0
  %v445 = vsel %vm84, %v324, 0
  %v448 = vsel %vm84, %v325, 0
  %v451 = vsel %vm84, %v326, 0
  %v454 = vsel %vm84, %v327, 0
  %v457 = vsel %vm84, %v328, 0
  %v460 = vsel %vm84, %v329, 0
  %v463 = vsel %vm84, %v330, 0
  %v466 = vsel %vm84, %v331, 0
  %v469 = vsel %vm84, %v332, 0
  %v472 = vsel %vm84, %v333, 0
  %v475 = vsel %vm84, %v334, 0
  %v478 = vsel %vm84, %v335, 0
  %v481 = vsel %vm84, %v336, 0
  %v484 = vsel %vm84, %v337, 0
  %v487 = vsel %vm84, %v338, 0
  %v490 = vsel %vm84, %v339, 0
  %v493 = vsel %vm84, %v340, 0
  %v496 = vsel %vm84, %v341, 0
  %v499 = vsel %vm84, %v342, 0
  %v502 = vsel %vm84, %v343, 0
  %v505 = vsel %vm84, %v344, 0
  %v508 = vsel %vm84, %v345, 0
  %v511 = vsel %vm84, %v346, 0
  %v514 = vsel %vm84, %v347, 0
  %v517 = vsel %vm84, %v348, 0
  %v520 = vsel %vm84, %v349, 0
  %v523 = vsel %vm84, %v350, 0
  %v526 = vsel %vm84, %v351, 0
  %v529 = vsel %vm84, %v352, 0
  %v532 = vsel %vm84, %v353, 0
  %v535 = vsel %vm84, %v354, 0
  %v538 = vsel %vm84, %v355, 0
  %v541 = vsel %vm84, %v356, 0
  %v544 = vsel %vm84, %v357, 0
  %v547 = vsel %vm84, %v358, 0
  %v550 = vsel %vm84, %v359, 0
  %v553 = vsel %vm84, %v360, 0
  %vm555 = vcmask 1043456
  %v557 = vsel %vm555, %v362, 0
  %559 = vmatprep.subr.mxu0 0.0
  %560 = vmatpush1.msra.mxu0 %v557
  %561 = vmatprep.subr.mxu0 0.0
  %562 = vmatpush1.msra.mxu0 0.0
  %563 = vmatprep.subr.mxu0 0.0
  %564 = vmatpush1.msra.mxu0 0.0
  %565 = vmatprep.subr.mxu0 0.0
  %566 = vmatpush1.msra.mxu0 0.0
  %567 = vmatprep.subr.mxu0 0.0
  %568 = vmatpush1.msra.mxu0 0.0
  %569 = vmatprep.subr.mxu0 0.0
  %570 = vmatpush1.msra.mxu0 0.0
  %571 = vmatprep.subr.mxu0 0.0
  %572 = vmatpush1.msra.mxu0 0.0
  %573 = vmatprep.subr.mxu0 0.0
  %574 = vmatpush1.msra.mxu0 0.0
  %575 = vmatprep.subr.mxu0 0.0
  %576 = vmatpush1.msra.mxu0 0.0
  %577 = vmatprep.subr.mxu0 0.0
  %578 = vmatpush1.msra.mxu0 0.0
  %579 = vmatprep.subr.mxu0 0.0
  %580 = vmatpush1.msra.mxu0 0.0
  %581 = vmatprep.subr.mxu0 0.0
  %582 = vmatpush1.msra.mxu0 0.0
  %583 = vmatprep.subr.mxu0 0.0
  %584 = vmatpush1.msra.mxu0 0.0
  %585 = vmatprep.subr.mxu0 0.0
  %586 = vmatpush1.msra.mxu0 0.0
  %587 = vmatprep.subr.mxu0 0.0
  %588 = vmatpush1.msra.mxu0 0.0
  %589 = vmatprep.subr.mxu0 0.0
  %590 = vmatpush1.msra.mxu0 0.0
  %591 = vmatprep.subr.mxu0 0.0
  %592 = vmatpush1.msra.mxu0 0.0
  %593 = vmatprep.subr.mxu0 0.0
  %594 = vmatpush1.msra.mxu0 0.0
  %595 = vmatprep.subr.mxu0 0.0
  %596 = vmatpush1.msra.mxu0 0.0
  %597 = vmatprep.subr.mxu0 0.0
  %598 = vmatpush1.msra.mxu0 0.0
  %599 = vmatprep.subr.mxu0 0.0
  %600 = vmatpush1.msra.mxu0 0.0
  %601 = vmatprep.subr.mxu0 0.0
  %602 = vmatpush1.msra.mxu0 0.0
  %603 = vmatprep.subr.mxu0 0.0
  %604 = vmatpush1.msra.mxu0 0.0
  %605 = vmatprep.subr.mxu0 0.0
  %606 = vmatpush1.msra.mxu0 0.0
  %607 = vmatprep.subr.mxu0 0.0
  %608 = vmatpush1.msra.mxu0 0.0
  %609 = vmatprep.subr.mxu0 0.0
  %610 = vmatpush1.msra.mxu0 0.0
  %611 = vmatprep.subr.mxu0 0.0
  %612 = vmatpush1.msra.mxu0 0.0
  %613 = vmatprep.subr.mxu0 0.0
  %614 = vmatpush1.msra.mxu0 0.0
  %615 = vmatprep.subr.mxu0 0.0
  %616 = vmatpush1.msra.mxu0 0.0
  %617 = vmatprep.subr.mxu0 0.0
  %618 = vmatpush1.msra.mxu0 0.0
  %619 = vmatprep.subr.mxu0 0.0
  %620 = vmatpush1.msra.mxu0 0.0
  %621 = vmatprep.subr.mxu0 0.0
  %622 = vmatpush1.msra.mxu0 0.0
  %623 = vmatprep.mubr.f32.mxu0 0.0
  %624 = vmatmul.mubr.f32.gmra.mrb[0].mxu0 %v364
  %v625 = vpop.f32.mrb[0].mxu0
  %v626 = vadd.f32 0.0, %v625
  %v627 = vpop.f32.mrb[0].mxu0
  %628 = vmatprep.mubr.f32.mxu0 0.0
  %629 = vmatmul.mubr.f32.gmra.mrb[0].mxu0 %v367
  %v630 = vpop.f32.mrb[0].mxu0
  %v631 = vadd.f32 0.0, %v630
  %v632 = vpop.f32.mrb[0].mxu0
  %633 = vmatprep.mubr.f32.mxu0 0.0
  %634 = vmatmul.mubr.f32.gmra.mrb[0].mxu0 %v370
  %v635 = vpop.f32.mrb[0].mxu0
  %v636 = vadd.f32 0.0, %v635
  %v637 = vpop.f32.mrb[0].mxu0
  %638 = vmatprep.mubr.f32.mxu0 0.0
  %639 = vmatmul.mubr.f32.gmra.mrb[0].mxu0 %v373
  %v640 = vpop.f32.mrb[0].mxu0
  %v641 = vadd.f32 0.0, %v640
  %v642 = vpop.f32.mrb[0].mxu0
  %643 = vmatprep.mubr.f32.mxu0 0.0
  %644 = vmatmul.mubr.f32.gmra.mrb[0].mxu0 %v376
  %v645 = vpop.f32.mrb[0].mxu0
  %v646 = vadd.f32 0.0, %v645
  %v647 = vpop.f32.mrb[0].mxu0
  %648 = vmatprep.mubr.f32.mxu0 0.0
  %649 = vmatmul.mubr.f32.gmra.mrb[0].mxu0 %v379
  %v650 = vpop.f32.mrb[0].mxu0
  %v651 = vadd.f32 0.0, %v650
  %v652 = vpop.f32.mrb[0].mxu0
  %653 = vmatprep.mubr.f32.mxu0 0.0
  %654 = vmatmul.mubr.f32.gmra.mrb[0].mxu0 %v382
  %v655 = vpop.f32.mrb[0].mxu0
  %v656 = vadd.f32 0.0, %v655
  %v657 = vpop.f32.mrb[0].mxu0
  %658 = vmatprep.mubr.f32.mxu0 0.0
  %659 = vmatmul.mubr.f32.gmra.mrb[0].mxu0 %v385
  %v660 = vpop.f32.mrb[0].mxu0
  %v661 = vadd.f32 0.0, %v660
  %v662 = vpop.f32.mrb[0].mxu0
  %663 = vmatprep.mubr.f32.mxu0 0.0
  %664 = vmatmul.mubr.f32.gmra.mrb[0].mxu0 %v388
  %v665 = vpop.f32.mrb[0].mxu0
  %v666 = vadd.f32 0.0, %v665
  %v667 = vpop.f32.mrb[0].mxu0
  %668 = vmatprep.mubr.f32.mxu0 0.0
  %669 = vmatmul.mubr.f32.gmra.mrb[0].mxu0 %v391
  %v670 = vpop.f32.mrb[0].mxu0
  %v671 = vadd.f32 0.0, %v670
  %v672 = vpop.f32.mrb[0].mxu0
  %673 = vmatprep.mubr.f32.mxu0 0.0
  %674 = vmatmul.mubr.f32.gmra.mrb[0].mxu0 %v394
  %v675 = vpop.f32.mrb[0].mxu0
  %v676 = vadd.f32 0.0, %v675
  %v677 = vpop.f32.mrb[0].mxu0
  %678 = vmatprep.mubr.f32.mxu0 0.0
  %679 = vmatmul.mubr.f32.gmra.mrb[0].mxu0 %v397
  %v680 = vpop.f32.mrb[0].mxu0
  %v681 = vadd.f32 0.0, %v680
  %v682 = vpop.f32.mrb[0].mxu0
  %683 = vmatprep.mubr.f32.mxu0 0.0
  %684 = vmatmul.mubr.f32.gmra.mrb[0].mxu0 %v400
  %v685 = vpop.f32.mrb[0].mxu0
  %v686 = vadd.f32 0.0, %v685
  %v687 = vpop.f32.mrb[0].mxu0
  %688 = vmatprep.mubr.f32.mxu0 0.0
  %689 = vmatmul.mubr.f32.gmra.mrb[0].mxu0 %v403
  %v690 = vpop.f32.mrb[0].mxu0
  %v691 = vadd.f32 0.0, %v690
  %v692 = vpop.f32.mrb[0].mxu0
  %693 = vmatprep.mubr.f32.mxu0 0.0
  %694 = vmatmul.mubr.f32.gmra.mrb[0].mxu0 %v406
  %v695 = vpop.f32.mrb[0].mxu0
  %v696 = vadd.f32 0.0, %v695
  %v697 = vpop.f32.mrb[0].mxu0
  %698 = vmatprep.mubr.f32.mxu0 0.0
  %699 = vmatmul.mubr.f32.gmra.mrb[0].mxu0 %v409
  %v700 = vpop.f32.mrb[0].mxu0
  %v701 = vadd.f32 0.0, %v700
  %v702 = vpop.f32.mrb[0].mxu0
  %703 = vmatprep.mubr.f32.mxu0 0.0
  %704 = vmatmul.mubr.f32.gmra.mrb[0].mxu0 %v412
  %v705 = vpop.f32.mrb[0].mxu0
  %v706 = vadd.f32 0.0, %v705
  %v707 = vpop.f32.mrb[0].mxu0
  %708 = vmatprep.mubr.f32.mxu0 0.0
  %709 = vmatmul.mubr.f32.gmra.mrb[0].mxu0 %v415
  %v710 = vpop.f32.mrb[0].mxu0
  %v711 = vadd.f32 0.0, %v710
  %v712 = vpop.f32.mrb[0].mxu0
  %713 = vmatprep.mubr.f32.mxu0 0.0
  %714 = vmatmul.mubr.f32.gmra.mrb[0].mxu0 %v418
  %v715 = vpop.f32.mrb[0].mxu0
  %v716 = vadd.f32 0.0, %v715
  %v717 = vpop.f32.mrb[0].mxu0
  %718 = vmatprep.mubr.f32.mxu0 0.0
  %719 = vmatmul.mubr.f32.gmra.mrb[0].mxu0 %v421
  %v720 = vpop.f32.mrb[0].mxu0
  %v721 = vadd.f32 0.0, %v720
  %v722 = vpop.f32.mrb[0].mxu0
  %723 = vmatprep.mubr.f32.mxu0 0.0
  %724 = vmatmul.mubr.f32.gmra.mrb[0].mxu0 %v424
  %v725 = vpop.f32.mrb[0].mxu0
  %v726 = vadd.f32 0.0, %v725
  %v727 = vpop.f32.mrb[0].mxu0
  %728 = vmatprep.mubr.f32.mxu0 0.0
  %729 = vmatmul.mubr.f32.gmra.mrb[0].mxu0 %v427
  %v730 = vpop.f32.mrb[0].mxu0
  %v731 = vadd.f32 0.0, %v730
  %v732 = vpop.f32.mrb[0].mxu0
  %733 = vmatprep.mubr.f32.mxu0 0.0
  %734 = vmatmul.mubr.f32.gmra.mrb[0].mxu0 %v430
  %v735 = vpop.f32.mrb[0].mxu0
  %v736 = vadd.f32 0.0, %v735
  %v737 = vpop.f32.mrb[0].mxu0
  %738 = vmatprep.mubr.f32.mxu0 0.0
  %739 = vmatmul.mubr.f32.gmra.mrb[0].mxu0 %v433
  %v740 = vpop.f32.mrb[0].mxu0
  %v741 = vadd.f32 0.0, %v740
  %v742 = vpop.f32.mrb[0].mxu0
  %743 = vmatprep.mubr.f32.mxu0 0.0
  %744 = vmatmul.mubr.f32.gmra.mrb[0].mxu0 %v436
  %v745 = vpop.f32.mrb[0].mxu0
  %v746 = vadd.f32 0.0, %v745
  %v747 = vpop.f32.mrb[0].mxu0
  %748 = vmatprep.mubr.f32.mxu0 0.0
  %749 = vmatmul.mubr.f32.gmra.mrb[0].mxu0 %v439
  %v750 = vpop.f32.mrb[0].mxu0
  %v751 = vadd.f32 0.0, %v750
  %v752 = vpop.f32.mrb[0].mxu0
  %753 = vmatprep.mubr.f32.mxu0 0.0
  %754 = vmatmul.mubr.f32.gmra.mrb[0].mxu0 %v442
  %v755 = vpop.f32.mrb[0].mxu0
  %v756 = vadd.f32 0.0, %v755
  %v757 = vpop.f32.mrb[0].mxu0
  %758 = vmatprep.mubr.f32.mxu0 0.0
  %759 = vmatmul.mubr.f32.gmra.mrb[0].mxu0 %v445
  %v760 = vpop.f32.mrb[0].mxu0
  %v761 = vadd.f32 0.0, %v760
  %v762 = vpop.f32.mrb[0].mxu0
  %763 = vmatprep.mubr.f32.mxu0 0.0
  %764 = vmatmul.mubr.f32.gmra.mrb[0].mxu0 %v448
  %v765 = vpop.f32.mrb[0].mxu0
  %v766 = vadd.f32 0.0, %v765
  %v767 = vpop.f32.mrb[0].mxu0
  %768 = vmatprep.mubr.f32.mxu0 0.0
  %769 = vmatmul.mubr.f32.gmra.mrb[0].mxu0 %v451
  %v770 = vpop.f32.mrb[0].mxu0
  %v771 = vadd.f32 0.0, %v770
  %v772 = vpop.f32.mrb[0].mxu0
  %773 = vmatprep.mubr.f32.mxu0 0.0
  %774 = vmatmul.mubr.f32.gmra.mrb[0].mxu0 %v454
  %v775 = vpop.f32.mrb[0].mxu0
  %v776 = vadd.f32 0.0, %v775
  %v777 = vpop.f32.mrb[0].mxu0
  %778 = vmatprep.mubr.f32.mxu0 0.0
  %779 = vmatmul.mubr.f32.gmra.mrb[0].mxu0 %v457
  %v780 = vpop.f32.mrb[0].mxu0
  %v781 = vadd.f32 0.0, %v780
  %v782 = vpop.f32.mrb[0].mxu0
  %783 = vmatprep.mubr.f32.mxu0 0.0
  %784 = vmatmul.mubr.f32.gmra.mrb[0].mxu0 %v460
  %v785 = vpop.f32.mrb[0].mxu0
  %v786 = vadd.f32 0.0, %v785
  %v787 = vpop.f32.mrb[0].mxu0
  %788 = vmatprep.mubr.f32.mxu0 0.0
  %789 = vmatmul.mubr.f32.gmra.mrb[0].mxu0 %v463
  %v790 = vpop.f32.mrb[0].mxu0
  %v791 = vadd.f32 0.0, %v790
  %v792 = vpop.f32.mrb[0].mxu0
  %793 = vmatprep.mubr.f32.mxu0 0.0
  %794 = vmatmul.mubr.f32.gmra.mrb[0].mxu0 %v466
  %v795 = vpop.f32.mrb[0].mxu0
  %v796 = vadd.f32 0.0, %v795
  %v797 = vpop.f32.mrb[0].mxu0
  %798 = vmatprep.mubr.f32.mxu0 0.0
  %799 = vmatmul.mubr.f32.gmra.mrb[0].mxu0 %v469
  %v800 = vpop.f32.mrb[0].mxu0
  %v801 = vadd.f32 0.0, %v800
  %v802 = vpop.f32.mrb[0].mxu0
  %803 = vmatprep.mubr.f32.mxu0 0.0
  %804 = vmatmul.mubr.f32.gmra.mrb[0].mxu0 %v472
  %v805 = vpop.f32.mrb[0].mxu0
  %v806 = vadd.f32 0.0, %v805
  %v807 = vpop.f32.mrb[0].mxu0
  %808 = vmatprep.mubr.f32.mxu0 0.0
  %809 = vmatmul.mubr.f32.gmra.mrb[0].mxu0 %v475
  %v810 = vpop.f32.mrb[0].mxu0
  %v811 = vadd.f32 0.0, %v810
  %v812 = vpop.f32.mrb[0].mxu0
  %813 = vmatprep.mubr.f32.mxu0 0.0
  %814 = vmatmul.mubr.f32.gmra.mrb[0].mxu0 %v478
  %v815 = vpop.f32.mrb[0].mxu0
  %v816 = vadd.f32 0.0, %v815
  %v817 = vpop.f32.mrb[0].mxu0
  %818 = vmatprep.mubr.f32.mxu0 0.0
  %819 = vmatmul.mubr.f32.gmra.mrb[0].mxu0 %v481
  %v820 = vpop.f32.mrb[0].mxu0
  %v821 = vadd.f32 0.0, %v820
  %v822 = vpop.f32.mrb[0].mxu0
  %823 = vmatprep.mubr.f32.mxu0 0.0
  %824 = vmatmul.mubr.f32.gmra.mrb[0].mxu0 %v484
  %v825 = vpop.f32.mrb[0].mxu0
  %v826 = vadd.f32 0.0, %v825
  %v827 = vpop.f32.mrb[0].mxu0
  %828 = vmatprep.mubr.f32.mxu0 0.0
  %829 = vmatmul.mubr.f32.gmra.mrb[0].mxu0 %v487
  %v830 = vpop.f32.mrb[0].mxu0
  %v831 = vadd.f32 0.0, %v830
  %v832 = vpop.f32.mrb[0].mxu0
  %833 = vmatprep.mubr.f32.mxu0 0.0
  %834 = vmatmul.mubr.f32.gmra.mrb[0].mxu0 %v490
  %v835 = vpop.f32.mrb[0].mxu0
  %v836 = vadd.f32 0.0, %v835
  %v837 = vpop.f32.mrb[0].mxu0
  %838 = vmatprep.mubr.f32.mxu0 0.0
  %839 = vmatmul.mubr.f32.gmra.mrb[0].mxu0 %v493
  %v840 = vpop.f32.mrb[0].mxu0
  %v841 = vadd.f32 0.0, %v840
  %v842 = vpop.f32.mrb[0].mxu0
  %843 = vmatprep.mubr.f32.mxu0 0.0
  %844 = vmatmul.mubr.f32.gmra.mrb[0].mxu0 %v496
  %v845 = vpop.f32.mrb[0].mxu0
  %v846 = vadd.f32 0.0, %v845
  %v847 = vpop.f32.mrb[0].mxu0
  %848 = vmatprep.mubr.f32.mxu0 0.0
  %849 = vmatmul.mubr.f32.gmra.mrb[0].mxu0 %v499
  %v850 = vpop.f32.mrb[0].mxu0
  %v851 = vadd.f32 0.0, %v850
  %v852 = vpop.f32.mrb[0].mxu0
  %853 = vmatprep.mubr.f32.mxu0 0.0
  %854 = vmatmul.mubr.f32.gmra.mrb[0].mxu0 %v502
  %v855 = vpop.f32.mrb[0].mxu0
  %v856 = vadd.f32 0.0, %v855
  %v857 = vpop.f32.mrb[0].mxu0
  %858 = vmatprep.mubr.f32.mxu0 0.0
  %859 = vmatmul.mubr.f32.gmra.mrb[0].mxu0 %v505
  %v860 = vpop.f32.mrb[0].mxu0
  %v861 = vadd.f32 0.0, %v860
  %v862 = vpop.f32.mrb[0].mxu0
  %863 = vmatprep.mubr.f32.mxu0 0.0
  %864 = vmatmul.mubr.f32.gmra.mrb[0].mxu0 %v508
  %v865 = vpop.f32.mrb[0].mxu0
  %v866 = vadd.f32 0.0, %v865
  %v867 = vpop.f32.mrb[0].mxu0
  %868 = vmatprep.mubr.f32.mxu0 0.0
  %869 = vmatmul.mubr.f32.gmra.mrb[0].mxu0 %v511
  %v870 = vpop.f32.mrb[0].mxu0
  %v871 = vadd.f32 0.0, %v870
  %v872 = vpop.f32.mrb[0].mxu0
  %873 = vmatprep.mubr.f32.mxu0 0.0
  %874 = vmatmul.mubr.f32.gmra.mrb[0].mxu0 %v514
  %v875 = vpop.f32.mrb[0].mxu0
  %v876 = vadd.f32 0.0, %v875
  %v877 = vpop.f32.mrb[0].mxu0
  %878 = vmatprep.mubr.f32.mxu0 0.0
  %879 = vmatmul.mubr.f32.gmra.mrb[0].mxu0 %v517
  %v880 = vpop.f32.mrb[0].mxu0
  %v881 = vadd.f32 0.0, %v880
  %v882 = vpop.f32.mrb[0].mxu0
  %883 = vmatprep.mubr.f32.mxu0 0.0
  %884 = vmatmul.mubr.f32.gmra.mrb[0].mxu0 %v520
  %v885 = vpop.f32.mrb[0].mxu0
  %v886 = vadd.f32 0.0, %v885
  %v887 = vpop.f32.mrb[0].mxu0
  %888 = vmatprep.mubr.f32.mxu0 0.0
  %889 = vmatmul.mubr.f32.gmra.mrb[0].mxu0 %v523
  %v890 = vpop.f32.mrb[0].mxu0
  %v891 = vadd.f32 0.0, %v890
  %v892 = vpop.f32.mrb[0].mxu0
  %893 = vmatprep.mubr.f32.mxu0 0.0
  %894 = vmatmul.mubr.f32.gmra.mrb[0].mxu0 %v526
  %v895 = vpop.f32.mrb[0].mxu0
  %v896 = vadd.f32 0.0, %v895
  %v897 = vpop.f32.mrb[0].mxu0
  %898 = vmatprep.mubr.f32.mxu0 0.0
  %899 = vmatmul.mubr.f32.gmra.mrb[0].mxu0 %v529
  %v900 = vpop.f32.mrb[0].mxu0
  %v901 = vadd.f32 0.0, %v900
  %v902 = vpop.f32.mrb[0].mxu0
  %903 = vmatprep.mubr.f32.mxu0 0.0
  %904 = vmatmul.mubr.f32.gmra.mrb[0].mxu0 %v532
  %v905 = vpop.f32.mrb[0].mxu0
  %v906 = vadd.f32 0.0, %v905
  %v907 = vpop.f32.mrb[0].mxu0
  %908 = vmatprep.mubr.f32.mxu0 0.0
  %909 = vmatmul.mubr.f32.gmra.mrb[0].mxu0 %v535
  %v910 = vpop.f32.mrb[0].mxu0
  %v911 = vadd.f32 0.0, %v910
  %v912 = vpop.f32.mrb[0].mxu0
  %913 = vmatprep.mubr.f32.mxu0 0.0
  %914 = vmatmul.mubr.f32.gmra.mrb[0].mxu0 %v538
  %v915 = vpop.f32.mrb[0].mxu0
  %v916 = vadd.f32 0.0, %v915
  %v917 = vpop.f32.mrb[0].mxu0
  %918 = vmatprep.mubr.f32.mxu0 0.0
  %919 = vmatmul.mubr.f32.gmra.mrb[0].mxu0 %v541
  %v920 = vpop.f32.mrb[0].mxu0
  %v921 = vadd.f32 0.0, %v920
  %v922 = vpop.f32.mrb[0].mxu0
  %923 = vmatprep.mubr.f32.mxu0 0.0
  %924 = vmatmul.mubr.f32.gmra.mrb[0].mxu0 %v544
  %v925 = vpop.f32.mrb[0].mxu0
  %v926 = vadd.f32 0.0, %v925
  %v927 = vpop.f32.mrb[0].mxu0
  %928 = vmatprep.mubr.f32.mxu0 0.0
  %929 = vmatmul.mubr.f32.gmra.mrb[0].mxu0 %v547
  %v930 = vpop.f32.mrb[0].mxu0
  %v931 = vadd.f32 0.0, %v930
  %v932 = vpop.f32.mrb[0].mxu0
  %933 = vmatprep.mubr.f32.mxu0 0.0
  %934 = vmatmul.mubr.f32.gmra.mrb[0].mxu0 %v550
  %v935 = vpop.f32.mrb[0].mxu0
  %v936 = vadd.f32 0.0, %v935
  %v937 = vpop.f32.mrb[0].mxu0
  %938 = vmatprep.mubr.f32.mxu0 0.0
  %939 = vmatmul.mubr.f32.gmra.mrb[0].mxu0 %v553
  %v940 = vpop.f32.mrb[0].mxu0
  %v941 = vadd.f32 0.0, %v940
  %v942 = vpop.f32.mrb[0].mxu0
  %943 = vdwg.mxu0
  %v945 = vsel %vm84, %v232, 0
  %v948 = vsel %vm84, %v233, 0
  %v951 = vsel %vm84, %v234, 0
  %v954 = vsel %vm84, %v235, 0
  %v957 = vsel %vm84, %v236, 0
  %v960 = vsel %vm84, %v237, 0
  %v963 = vsel %vm84, %v238, 0
  %v966 = vsel %vm84, %v239, 0
  %v969 = vsel %vm84, %v240, 0
  %v972 = vsel %vm84, %v241, 0
  %v975 = vsel %vm84, %v242, 0
  %v978 = vsel %vm84, %v243, 0
  %v981 = vsel %vm84, %v244, 0
  %v984 = vsel %vm84, %v245, 0
  %v987 = vsel %vm84, %v246, 0
  %v990 = vsel %vm84, %v247, 0
  %v993 = vsel %vm84, %v248, 0
  %v996 = vsel %vm84, %v249, 0
  %v999 = vsel %vm84, %v250, 0
  %v1002 = vsel %vm84, %v251, 0
  %v1005 = vsel %vm84, %v252, 0
  %v1008 = vsel %vm84, %v253, 0
  %v1011 = vsel %vm84, %v254, 0
  %v1014 = vsel %vm84, %v255, 0
  %v1017 = vsel %vm84, %v256, 0
  %v1020 = vsel %vm84, %v257, 0
  %v1023 = vsel %vm84, %v258, 0
  %v1026 = vsel %vm84, %v259, 0
  %v1029 = vsel %vm84, %v260, 0
  %v1032 = vsel %vm84, %v261, 0
  %v1035 = vsel %vm84, %v262, 0
  %v1038 = vsel %vm84, %v263, 0
  %v1041 = vsel %vm84, %v264, 0
  %v1044 = vsel %vm84, %v265, 0
  %v1047 = vsel %vm84, %v266, 0
  %v1050 = vsel %vm84, %v267, 0
  %v1053 = vsel %vm84, %v268, 0
  %v1056 = vsel %vm84, %v269, 0
  %v1059 = vsel %vm84, %v270, 0
  %v1062 = vsel %vm84, %v271, 0
  %v1065 = vsel %vm84, %v272, 0
  %v1068 = vsel %vm84, %v273, 0
  %v1071 = vsel %vm84, %v274, 0
  %v1074 = vsel %vm84, %v275, 0
  %v1077 = vsel %vm84, %v276, 0
  %v1080 = vsel %vm84, %v277, 0
  %v1083 = vsel %vm84, %v278, 0
  %v1086 = vsel %vm84, %v279, 0
  %v1089 = vsel %vm84, %v280, 0
  %v1092 = vsel %vm84, %v281, 0
  %v1095 = vsel %vm84, %v282, 0
  %v1098 = vsel %vm84, %v283, 0
  %v1101 = vsel %vm84, %v284, 0
  %v1104 = vsel %vm84, %v285, 0
  %v1107 = vsel %vm84, %v286, 0
  %v1110 = vsel %vm84, %v287, 0
  %v1113 = vsel %vm84, %v288, 0
  %v1116 = vsel %vm84, %v289, 0
  %v1119 = vsel %vm84, %v290, 0
  %v1122 = vsel %vm84, %v291, 0
  %v1125 = vsel %vm84, %v292, 0
  %v1128 = vsel %vm84, %v293, 0
  %v1131 = vsel %vm84, %v294, 0
  %v1134 = vsel %vm84, %v295, 0
  %v1137 = vsel %vm555, %v296, 0
  %1139 = vmatprep.subr.mxu0 0.0
  %1140 = vmatpush1.msra.mxu0 %v1137
  %1141 = vmatprep.subr.mxu0 0.0
  %1142 = vmatpush1.msra.mxu0 0.0
  %1143 = vmatprep.subr.mxu0 0.0
  %1144 = vmatpush1.msra.mxu0 0.0
  %1145 = vmatprep.subr.mxu0 0.0
  %1146 = vmatpush1.msra.mxu0 0.0
  %1147 = vmatprep.subr.mxu0 0.0
  %1148 = vmatpush1.msra.mxu0 0.0
  %1149 = vmatprep.subr.mxu0 0.0
  %1150 = vmatpush1.msra.mxu0 0.0
  %1151 = vmatprep.subr.mxu0 0.0
  %1152 = vmatpush1.msra.mxu0 0.0
  %1153 = vmatprep.subr.mxu0 0.0
  %1154 = vmatpush1.msra.mxu0 0.0
  %1155 = vmatprep.subr.mxu0 0.0
  %1156 = vmatpush1.msra.mxu0 0.0
  %1157 = vmatprep.subr.mxu0 0.0
  %1158 = vmatpush1.msra.mxu0 0.0
  %1159 = vmatprep.subr.mxu0 0.0
  %1160 = vmatpush1.msra.mxu0 0.0
  %1161 = vmatprep.subr.mxu0 0.0
  %1162 = vmatpush1.msra.mxu0 0.0
  %1163 = vmatprep.subr.mxu0 0.0
  %1164 = vmatpush1.msra.mxu0 0.0
  %1165 = vmatprep.subr.mxu0 0.0
  %1166 = vmatpush1.msra.mxu0 0.0
  %1167 = vmatprep.subr.mxu0 0.0
  %1168 = vmatpush1.msra.mxu0 0.0
  %1169 = vmatprep.subr.mxu0 0.0
  %1170 = vmatpush1.msra.mxu0 0.0
  %1171 = vmatprep.subr.mxu0 0.0
  %1172 = vmatpush1.msra.mxu0 0.0
  %1173 = vmatprep.subr.mxu0 0.0
  %1174 = vmatpush1.msra.mxu0 0.0
  %1175 = vmatprep.subr.mxu0 0.0
  %1176 = vmatpush1.msra.mxu0 0.0
  %1177 = vmatprep.subr.mxu0 0.0
  %1178 = vmatpush1.msra.mxu0 0.0
  %1179 = vmatprep.subr.mxu0 0.0
  %1180 = vmatpush1.msra.mxu0 0.0
  %1181 = vmatprep.subr.mxu0 0.0
  %1182 = vmatpush1.msra.mxu0 0.0
  %1183 = vmatprep.subr.mxu0 0.0
  %1184 = vmatpush1.msra.mxu0 0.0
  %1185 = vmatprep.subr.mxu0 0.0
  %1186 = vmatpush1.msra.mxu0 0.0
  %1187 = vmatprep.subr.mxu0 0.0
  %1188 = vmatpush1.msra.mxu0 0.0
  %1189 = vmatprep.subr.mxu0 0.0
  %1190 = vmatpush1.msra.mxu0 0.0
  %1191 = vmatprep.subr.mxu0 0.0
  %1192 = vmatpush1.msra.mxu0 0.0
  %1193 = vmatprep.subr.mxu0 0.0
  %1194 = vmatpush1.msra.mxu0 0.0
  %1195 = vmatprep.subr.mxu0 0.0
  %1196 = vmatpush1.msra.mxu0 0.0
  %1197 = vmatprep.subr.mxu0 0.0
  %1198 = vmatpush1.msra.mxu0 0.0
  %1199 = vmatprep.subr.mxu0 0.0
  %1200 = vmatpush1.msra.mxu0 0.0
  %1201 = vmatprep.subr.mxu0 0.0
  %1202 = vmatpush1.msra.mxu0 0.0
  %1203 = vmatprep.mubr.f32.mxu0 0.0
  %1204 = vmatmul.mubr.f32.gmra.mrb[0].mxu0 %v945
  %v1205 = vpop.f32.mrb[0].mxu0
  %v1206 = vadd.f32 %v626, %v1205
  %v1207 = vpop.f32.mrb[0].mxu0
  %1208 = vmatprep.mubr.f32.mxu0 0.0
  %1209 = vmatmul.mubr.f32.gmra.mrb[0].mxu0 %v948
  %v1210 = vpop.f32.mrb[0].mxu0
  %v1211 = vadd.f32 %v631, %v1210
  %v1212 = vpop.f32.mrb[0].mxu0
  %1213 = vmatprep.mubr.f32.mxu0 0.0
  %1214 = vmatmul.mubr.f32.gmra.mrb[0].mxu0 %v951
  %v1215 = vpop.f32.mrb[0].mxu0
  %v1216 = vadd.f32 %v636, %v1215
  %v1217 = vpop.f32.mrb[0].mxu0
  %1218 = vmatprep.mubr.f32.mxu0 0.0
  %1219 = vmatmul.mubr.f32.gmra.mrb[0].mxu0 %v954
  %v1220 = vpop.f32.mrb[0].mxu0
  %v1221 = vadd.f32 %v641, %v1220
  %v1222 = vpop.f32.mrb[0].mxu0
  %1223 = vmatprep.mubr.f32.mxu0 0.0
  %1224 = vmatmul.mubr.f32.gmra.mrb[0].mxu0 %v957
  %v1225 = vpop.f32.mrb[0].mxu0
  %v1226 = vadd.f32 %v646, %v1225
  %v1227 = vpop.f32.mrb[0].mxu0
  %1228 = vmatprep.mubr.f32.mxu0 0.0
  %1229 = vmatmul.mubr.f32.gmra.mrb[0].mxu0 %v960
  %v1230 = vpop.f32.mrb[0].mxu0
  %v1231 = vadd.f32 %v651, %v1230
  %v1232 = vpop.f32.mrb[0].mxu0
  %1233 = vmatprep.mubr.f32.mxu0 0.0
  %1234 = vmatmul.mubr.f32.gmra.mrb[0].mxu0 %v963
  %v1235 = vpop.f32.mrb[0].mxu0
  %v1236 = vadd.f32 %v656, %v1235
  %v1237 = vpop.f32.mrb[0].mxu0
  %1238 = vmatprep.mubr.f32.mxu0 0.0
  %1239 = vmatmul.mubr.f32.gmra.mrb[0].mxu0 %v966
  %v1240 = vpop.f32.mrb[0].mxu0
  %v1241 = vadd.f32 %v661, %v1240
  %v1242 = vpop.f32.mrb[0].mxu0
  %1243 = vmatprep.mubr.f32.mxu0 0.0
  %1244 = vmatmul.mubr.f32.gmra.mrb[0].mxu0 %v969
  %v1245 = vpop.f32.mrb[0].mxu0
  %v1246 = vadd.f32 %v666, %v1245
  %v1247 = vpop.f32.mrb[0].mxu0
  %1248 = vmatprep.mubr.f32.mxu0 0.0
  %1249 = vmatmul.mubr.f32.gmra.mrb[0].mxu0 %v972
  %v1250 = vpop.f32.mrb[0].mxu0
  %v1251 = vadd.f32 %v671, %v1250
  %v1252 = vpop.f32.mrb[0].mxu0
  %1253 = vmatprep.mubr.f32.mxu0 0.0
  %1254 = vmatmul.mubr.f32.gmra.mrb[0].mxu0 %v975
  %v1255 = vpop.f32.mrb[0].mxu0
  %v1256 = vadd.f32 %v676, %v1255
  %v1257 = vpop.f32.mrb[0].mxu0
  %1258 = vmatprep.mubr.f32.mxu0 0.0
  %1259 = vmatmul.mubr.f32.gmra.mrb[0].mxu0 %v978
  %v1260 = vpop.f32.mrb[0].mxu0
  %v1261 = vadd.f32 %v681, %v1260
  %v1262 = vpop.f32.mrb[0].mxu0
  %1263 = vmatprep.mubr.f32.mxu0 0.0
  %1264 = vmatmul.mubr.f32.gmra.mrb[0].mxu0 %v981
  %v1265 = vpop.f32.mrb[0].mxu0
  %v1266 = vadd.f32 %v686, %v1265
  %v1267 = vpop.f32.mrb[0].mxu0
  %1268 = vmatprep.mubr.f32.mxu0 0.0
  %1269 = vmatmul.mubr.f32.gmra.mrb[0].mxu0 %v984
  %v1270 = vpop.f32.mrb[0].mxu0
  %v1271 = vadd.f32 %v691, %v1270
  %v1272 = vpop.f32.mrb[0].mxu0
  %1273 = vmatprep.mubr.f32.mxu0 0.0
  %1274 = vmatmul.mubr.f32.gmra.mrb[0].mxu0 %v987
  %v1275 = vpop.f32.mrb[0].mxu0
  %v1276 = vadd.f32 %v696, %v1275
  %v1277 = vpop.f32.mrb[0].mxu0
  %1278 = vmatprep.mubr.f32.mxu0 0.0
  %1279 = vmatmul.mubr.f32.gmra.mrb[0].mxu0 %v990
  %v1280 = vpop.f32.mrb[0].mxu0
  %v1281 = vadd.f32 %v701, %v1280
  %v1282 = vpop.f32.mrb[0].mxu0
  %1283 = vmatprep.mubr.f32.mxu0 0.0
  %1284 = vmatmul.mubr.f32.gmra.mrb[0].mxu0 %v993
  %v1285 = vpop.f32.mrb[0].mxu0
  %v1286 = vadd.f32 %v706, %v1285
  %v1287 = vpop.f32.mrb[0].mxu0
  %1288 = vmatprep.mubr.f32.mxu0 0.0
  %1289 = vmatmul.mubr.f32.gmra.mrb[0].mxu0 %v996
  %v1290 = vpop.f32.mrb[0].mxu0
  %v1291 = vadd.f32 %v711, %v1290
  %v1292 = vpop.f32.mrb[0].mxu0
  %1293 = vmatprep.mubr.f32.mxu0 0.0
  %1294 = vmatmul.mubr.f32.gmra.mrb[0].mxu0 %v999
  %v1295 = vpop.f32.mrb[0].mxu0
  %v1296 = vadd.f32 %v716, %v1295
  %v1297 = vpop.f32.mrb[0].mxu0
  %1298 = vmatprep.mubr.f32.mxu0 0.0
  %1299 = vmatmul.mubr.f32.gmra.mrb[0].mxu0 %v1002
  %v1300 = vpop.f32.mrb[0].mxu0
  %v1301 = vadd.f32 %v721, %v1300
  %v1302 = vpop.f32.mrb[0].mxu0
  %1303 = vmatprep.mubr.f32.mxu0 0.0
  %1304 = vmatmul.mubr.f32.gmra.mrb[0].mxu0 %v1005
  %v1305 = vpop.f32.mrb[0].mxu0
  %v1306 = vadd.f32 %v726, %v1305
  %v1307 = vpop.f32.mrb[0].mxu0
  %1308 = vmatprep.mubr.f32.mxu0 0.0
  %1309 = vmatmul.mubr.f32.gmra.mrb[0].mxu0 %v1008
  %v1310 = vpop.f32.mrb[0].mxu0
  %v1311 = vadd.f32 %v731, %v1310
  %v1312 = vpop.f32.mrb[0].mxu0
  %1313 = vmatprep.mubr.f32.mxu0 0.0
  %1314 = vmatmul.mubr.f32.gmra.mrb[0].mxu0 %v1011
  %v1315 = vpop.f32.mrb[0].mxu0
  %v1316 = vadd.f32 %v736, %v1315
  %v1317 = vpop.f32.mrb[0].mxu0
  %1318 = vmatprep.mubr.f32.mxu0 0.0
  %1319 = vmatmul.mubr.f32.gmra.mrb[0].mxu0 %v1014
  %v1320 = vpop.f32.mrb[0].mxu0
  %v1321 = vadd.f32 %v741, %v1320
  %v1322 = vpop.f32.mrb[0].mxu0
  %1323 = vmatprep.mubr.f32.mxu0 0.0
  %1324 = vmatmul.mubr.f32.gmra.mrb[0].mxu0 %v1017
  %v1325 = vpop.f32.mrb[0].mxu0
  %v1326 = vadd.f32 %v746, %v1325
  %v1327 = vpop.f32.mrb[0].mxu0
  %1328 = vmatprep.mubr.f32.mxu0 0.0
  %1329 = vmatmul.mubr.f32.gmra.mrb[0].mxu0 %v1020
  %v1330 = vpop.f32.mrb[0].mxu0
  %v1331 = vadd.f32 %v751, %v1330
  %v1332 = vpop.f32.mrb[0].mxu0
  %1333 = vmatprep.mubr.f32.mxu0 0.0
  %1334 = vmatmul.mubr.f32.gmra.mrb[0].mxu0 %v1023
  %v1335 = vpop.f32.mrb[0].mxu0
  %v1336 = vadd.f32 %v756, %v1335
  %v1337 = vpop.f32.mrb[0].mxu0
  %1338 = vmatprep.mubr.f32.mxu0 0.0
  %1339 = vmatmul.mubr.f32.gmra.mrb[0].mxu0 %v1026
  %v1340 = vpop.f32.mrb[0].mxu0
  %v1341 = vadd.f32 %v761, %v1340
  %v1342 = vpop.f32.mrb[0].mxu0
  %1343 = vmatprep.mubr.f32.mxu0 0.0
  %1344 = vmatmul.mubr.f32.gmra.mrb[0].mxu0 %v1029
  %v1345 = vpop.f32.mrb[0].mxu0
  %v1346 = vadd.f32 %v766, %v1345
  %v1347 = vpop.f32.mrb[0].mxu0
  %1348 = vmatprep.mubr.f32.mxu0 0.0
  %1349 = vmatmul.mubr.f32.gmra.mrb[0].mxu0 %v1032
  %v1350 = vpop.f32.mrb[0].mxu0
  %v1351 = vadd.f32 %v771, %v1350
  %v1352 = vpop.f32.mrb[0].mxu0
  %1353 = vmatprep.mubr.f32.mxu0 0.0
  %1354 = vmatmul.mubr.f32.gmra.mrb[0].mxu0 %v1035
  %v1355 = vpop.f32.mrb[0].mxu0
  %v1356 = vadd.f32 %v776, %v1355
  %v1357 = vpop.f32.mrb[0].mxu0
  %1358 = vmatprep.mubr.f32.mxu0 0.0
  %1359 = vmatmul.mubr.f32.gmra.mrb[0].mxu0 %v1038
  %v1360 = vpop.f32.mrb[0].mxu0
  %v1361 = vadd.f32 %v781, %v1360
  %v1362 = vpop.f32.mrb[0].mxu0
  %1363 = vmatprep.mubr.f32.mxu0 0.0
  %1364 = vmatmul.mubr.f32.gmra.mrb[0].mxu0 %v1041
  %v1365 = vpop.f32.mrb[0].mxu0
  %v1366 = vadd.f32 %v786, %v1365
  %v1367 = vpop.f32.mrb[0].mxu0
  %1368 = vmatprep.mubr.f32.mxu0 0.0
  %1369 = vmatmul.mubr.f32.gmra.mrb[0].mxu0 %v1044
  %v1370 = vpop.f32.mrb[0].mxu0
  %v1371 = vadd.f32 %v791, %v1370
  %v1372 = vpop.f32.mrb[0].mxu0
  %1373 = vmatprep.mubr.f32.mxu0 0.0
  %1374 = vmatmul.mubr.f32.gmra.mrb[0].mxu0 %v1047
  %v1375 = vpop.f32.mrb[0].mxu0
  %v1376 = vadd.f32 %v796, %v1375
  %v1377 = vpop.f32.mrb[0].mxu0
  %1378 = vmatprep.mubr.f32.mxu0 0.0
  %1379 = vmatmul.mubr.f32.gmra.mrb[0].mxu0 %v1050
  %v1380 = vpop.f32.mrb[0].mxu0
  %v1381 = vadd.f32 %v801, %v1380
  %v1382 = vpop.f32.mrb[0].mxu0
  %1383 = vmatprep.mubr.f32.mxu0 0.0
  %1384 = vmatmul.mubr.f32.gmra.mrb[0].mxu0 %v1053
  %v1385 = vpop.f32.mrb[0].mxu0
  %v1386 = vadd.f32 %v806, %v1385
  %v1387 = vpop.f32.mrb[0].mxu0
  %1388 = vmatprep.mubr.f32.mxu0 0.0
  %1389 = vmatmul.mubr.f32.gmra.mrb[0].mxu0 %v1056
  %v1390 = vpop.f32.mrb[0].mxu0
  %v1391 = vadd.f32 %v811, %v1390
  %v1392 = vpop.f32.mrb[0].mxu0
  %1393 = vmatprep.mubr.f32.mxu0 0.0
  %1394 = vmatmul.mubr.f32.gmra.mrb[0].mxu0 %v1059
  %v1395 = vpop.f32.mrb[0].mxu0
  %v1396 = vadd.f32 %v816, %v1395
  %v1397 = vpop.f32.mrb[0].mxu0
  %1398 = vmatprep.mubr.f32.mxu0 0.0
  %1399 = vmatmul.mubr.f32.gmra.mrb[0].mxu0 %v1062
  %v1400 = vpop.f32.mrb[0].mxu0
  %v1401 = vadd.f32 %v821, %v1400
  %v1402 = vpop.f32.mrb[0].mxu0
  %1403 = vmatprep.mubr.f32.mxu0 0.0
  %1404 = vmatmul.mubr.f32.gmra.mrb[0].mxu0 %v1065
  %v1405 = vpop.f32.mrb[0].mxu0
  %v1406 = vadd.f32 %v826, %v1405
  %v1407 = vpop.f32.mrb[0].mxu0
  %1408 = vmatprep.mubr.f32.mxu0 0.0
  %1409 = vmatmul.mubr.f32.gmra.mrb[0].mxu0 %v1068
  %v1410 = vpop.f32.mrb[0].mxu0
  %v1411 = vadd.f32 %v831, %v1410
  %v1412 = vpop.f32.mrb[0].mxu0
  %1413 = vmatprep.mubr.f32.mxu0 0.0
  %1414 = vmatmul.mubr.f32.gmra.mrb[0].mxu0 %v1071
  %v1415 = vpop.f32.mrb[0].mxu0
  %v1416 = vadd.f32 %v836, %v1415
  %v1417 = vpop.f32.mrb[0].mxu0
  %1418 = vmatprep.mubr.f32.mxu0 0.0
  %1419 = vmatmul.mubr.f32.gmra.mrb[0].mxu0 %v1074
  %v1420 = vpop.f32.mrb[0].mxu0
  %v1421 = vadd.f32 %v841, %v1420
  %v1422 = vpop.f32.mrb[0].mxu0
  %1423 = vmatprep.mubr.f32.mxu0 0.0
  %1424 = vmatmul.mubr.f32.gmra.mrb[0].mxu0 %v1077
  %v1425 = vpop.f32.mrb[0].mxu0
  %v1426 = vadd.f32 %v846, %v1425
  %v1427 = vpop.f32.mrb[0].mxu0
  %1428 = vmatprep.mubr.f32.mxu0 0.0
  %1429 = vmatmul.mubr.f32.gmra.mrb[0].mxu0 %v1080
  %v1430 = vpop.f32.mrb[0].mxu0
  %v1431 = vadd.f32 %v851, %v1430
  %v1432 = vpop.f32.mrb[0].mxu0
  %1433 = vmatprep.mubr.f32.mxu0 0.0
  %1434 = vmatmul.mubr.f32.gmra.mrb[0].mxu0 %v1083
  %v1435 = vpop.f32.mrb[0].mxu0
  %v1436 = vadd.f32 %v856, %v1435
  %v1437 = vpop.f32.mrb[0].mxu0
  %1438 = vmatprep.mubr.f32.mxu0 0.0
  %1439 = vmatmul.mubr.f32.gmra.mrb[0].mxu0 %v1086
  %v1440 = vpop.f32.mrb[0].mxu0
  %v1441 = vadd.f32 %v861, %v1440
  %v1442 = vpop.f32.mrb[0].mxu0
  %1443 = vmatprep.mubr.f32.mxu0 0.0
  %1444 = vmatmul.mubr.f32.gmra.mrb[0].mxu0 %v1089
  %v1445 = vpop.f32.mrb[0].mxu0
  %v1446 = vadd.f32 %v866, %v1445
  %v1447 = vpop.f32.mrb[0].mxu0
  %1448 = vmatprep.mubr.f32.mxu0 0.0
  %1449 = vmatmul.mubr.f32.gmra.mrb[0].mxu0 %v1092
  %v1450 = vpop.f32.mrb[0].mxu0
  %v1451 = vadd.f32 %v871, %v1450
  %v1452 = vpop.f32.mrb[0].mxu0
  %1453 = vmatprep.mubr.f32.mxu0 0.0
  %1454 = vmatmul.mubr.f32.gmra.mrb[0].mxu0 %v1095
  %v1455 = vpop.f32.mrb[0].mxu0
  %v1456 = vadd.f32 %v876, %v1455
  %v1457 = vpop.f32.mrb[0].mxu0
  %1458 = vmatprep.mubr.f32.mxu0 0.0
  %1459 = vmatmul.mubr.f32.gmra.mrb[0].mxu0 %v1098
  %v1460 = vpop.f32.mrb[0].mxu0
  %v1461 = vadd.f32 %v881, %v1460
  %v1462 = vpop.f32.mrb[0].mxu0
  %1463 = vmatprep.mubr.f32.mxu0 0.0
  %1464 = vmatmul.mubr.f32.gmra.mrb[0].mxu0 %v1101
  %v1465 = vpop.f32.mrb[0].mxu0
  %v1466 = vadd.f32 %v886, %v1465
  %v1467 = vpop.f32.mrb[0].mxu0
  %1468 = vmatprep.mubr.f32.mxu0 0.0
  %1469 = vmatmul.mubr.f32.gmra.mrb[0].mxu0 %v1104
  %v1470 = vpop.f32.mrb[0].mxu0
  %v1471 = vadd.f32 %v891, %v1470
  %v1472 = vpop.f32.mrb[0].mxu0
  %1473 = vmatprep.mubr.f32.mxu0 0.0
  %1474 = vmatmul.mubr.f32.gmra.mrb[0].mxu0 %v1107
  %v1475 = vpop.f32.mrb[0].mxu0
  %v1476 = vadd.f32 %v896, %v1475
  %v1477 = vpop.f32.mrb[0].mxu0
  %1478 = vmatprep.mubr.f32.mxu0 0.0
  %1479 = vmatmul.mubr.f32.gmra.mrb[0].mxu0 %v1110
  %v1480 = vpop.f32.mrb[0].mxu0
  %v1481 = vadd.f32 %v901, %v1480
  %v1482 = vpop.f32.mrb[0].mxu0
  %1483 = vmatprep.mubr.f32.mxu0 0.0
  %1484 = vmatmul.mubr.f32.gmra.mrb[0].mxu0 %v1113
  %v1485 = vpop.f32.mrb[0].mxu0
  %v1486 = vadd.f32 %v906, %v1485
  %v1487 = vpop.f32.mrb[0].mxu0
  %1488 = vmatprep.mubr.f32.mxu0 0.0
  %1489 = vmatmul.mubr.f32.gmra.mrb[0].mxu0 %v1116
  %v1490 = vpop.f32.mrb[0].mxu0
  %v1491 = vadd.f32 %v911, %v1490
  %v1492 = vpop.f32.mrb[0].mxu0
  %1493 = vmatprep.mubr.f32.mxu0 0.0
  %1494 = vmatmul.mubr.f32.gmra.mrb[0].mxu0 %v1119
  %v1495 = vpop.f32.mrb[0].mxu0
  %v1496 = vadd.f32 %v916, %v1495
  %v1497 = vpop.f32.mrb[0].mxu0
  %1498 = vmatprep.mubr.f32.mxu0 0.0
  %1499 = vmatmul.mubr.f32.gmra.mrb[0].mxu0 %v1122
  %v1500 = vpop.f32.mrb[0].mxu0
  %v1501 = vadd.f32 %v921, %v1500
  %v1502 = vpop.f32.mrb[0].mxu0
  %1503 = vmatprep.mubr.f32.mxu0 0.0
  %1504 = vmatmul.mubr.f32.gmra.mrb[0].mxu0 %v1125
  %v1505 = vpop.f32.mrb[0].mxu0
  %v1506 = vadd.f32 %v926, %v1505
  %v1507 = vpop.f32.mrb[0].mxu0
  %1508 = vmatprep.mubr.f32.mxu0 0.0
  %1509 = vmatmul.mubr.f32.gmra.mrb[0].mxu0 %v1128
  %v1510 = vpop.f32.mrb[0].mxu0
  %v1511 = vadd.f32 %v931, %v1510
  %v1512 = vpop.f32.mrb[0].mxu0
  %1513 = vmatprep.mubr.f32.mxu0 0.0
  %1514 = vmatmul.mubr.f32.gmra.mrb[0].mxu0 %v1131
  %v1515 = vpop.f32.mrb[0].mxu0
  %v1516 = vadd.f32 %v936, %v1515
  %v1517 = vpop.f32.mrb[0].mxu0
  %1518 = vmatprep.mubr.f32.mxu0 0.0
  %1519 = vmatmul.mubr.f32.gmra.mrb[0].mxu0 %v1134
  %v1520 = vpop.f32.mrb[0].mxu0
  %v1521 = vadd.f32 %v941, %v1520
  %v1522 = vpop.f32.mrb[0].mxu0
  %1523 = vdwg.mxu0
  %v1524 = vld [vmem:[#allocation2 + $0x9] sm:$0xff]
  %v1525 = vld [vmem:[#allocation2 + $0x11] sm:$0xff]
  %v1526 = vld [vmem:[#allocation2 + $0x29] sm:$0xff]
  %v1527 = vld [vmem:[#allocation2 + $0x31] sm:$0xff]
  %v1528 = vld [vmem:[#allocation2 + $0x49] sm:$0xff]
  %v1529 = vld [vmem:[#allocation2 + $0x51] sm:$0xff]
  %v1530 = vld [vmem:[#allocation2 + $0x69] sm:$0xff]
  %v1531 = vld [vmem:[#allocation2 + $0x71] sm:$0xff]
  %v1532 = vld [vmem:[#allocation2 + $0x89] sm:$0xff]
  %v1533 = vld [vmem:[#allocation2 + $0x91] sm:$0xff]
  %v1534 = vld [vmem:[#allocation2 + $0xa9] sm:$0xff]
  %v1535 = vld [vmem:[#allocation2 + $0xb1] sm:$0xff]
  %v1536 = vld [vmem:[#allocation2 + $0xc9] sm:$0xff]
  %v1537 = vld [vmem:[#allocation2 + $0xd1] sm:$0xff]
  %v1538 = vld [vmem:[#allocation2 + $0xe9] sm:$0xff]
  %v1539 = vld [vmem:[#allocation2 + $0xf1] sm:$0xff]
  %v1540 = vld [vmem:[#allocation2 + $0x109] sm:$0xff]
  %v1541 = vld [vmem:[#allocation2 + $0x111] sm:$0xff]
  %v1542 = vld [vmem:[#allocation2 + $0x129] sm:$0xff]
  %v1543 = vld [vmem:[#allocation2 + $0x131] sm:$0xff]
  %v1544 = vld [vmem:[#allocation2 + $0x149] sm:$0xff]
  %v1545 = vld [vmem:[#allocation2 + $0x151] sm:$0xff]
  %v1546 = vld [vmem:[#allocation2 + $0x169] sm:$0xff]
  %v1547 = vld [vmem:[#allocation2 + $0x171] sm:$0xff]
  %v1548 = vld [vmem:[#allocation2 + $0x189] sm:$0xff]
  %v1549 = vld [vmem:[#allocation2 + $0x191] sm:$0xff]
  %v1550 = vld [vmem:[#allocation2 + $0x1a9] sm:$0xff]
  %v1551 = vld [vmem:[#allocation2 + $0x1b1] sm:$0xff]
  %v1552 = vld [vmem:[#allocation2 + $0x1c9] sm:$0xff]
  %v1553 = vld [vmem:[#allocation2 + $0x1d1] sm:$0xff]
  %v1554 = vld [vmem:[#allocation2 + $0x1e9] sm:$0xff]
  %v1555 = vld [vmem:[#allocation2 + $0x1f1] sm:$0xff]
  %v1556 = vld [vmem:[#allocation2 + $0x249] sm:$0xff]
  %v1557 = vld [vmem:[#allocation2 + $0x251] sm:$0xff]
  %v1558 = vld [vmem:[#allocation2 + $0x269] sm:$0xff]
  %v1559 = vld [vmem:[#allocation2 + $0x271] sm:$0xff]
  %v1560 = vld [vmem:[#allocation2 + $0x289] sm:$0xff]
  %v1561 = vld [vmem:[#allocation2 + $0x291] sm:$0xff]
  %v1562 = vld [vmem:[#allocation2 + $0x2a9] sm:$0xff]
  %v1563 = vld [vmem:[#allocation2 + $0x2b1] sm:$0xff]
  %v1564 = vld [vmem:[#allocation2 + $0x2c9] sm:$0xff]
  %v1565 = vld [vmem:[#allocation2 + $0x2d1] sm:$0xff]
  %v1566 = vld [vmem:[#allocation2 + $0x2e9] sm:$0xff]
  %v1567 = vld [vmem:[#allocation2 + $0x2f1] sm:$0xff]
  %v1568 = vld [vmem:[#allocation2 + $0x309] sm:$0xff]
  %v1569 = vld [vmem:[#allocation2 + $0x311] sm:$0xff]
  %v1570 = vld [vmem:[#allocation2 + $0x329] sm:$0xff]
  %v1571 = vld [vmem:[#allocation2 + $0x331] sm:$0xff]
  %v1572 = vld [vmem:[#allocation2 + $0x349] sm:$0xff]
  %v1573 = vld [vmem:[#allocation2 + $0x351] sm:$0xff]
  %v1574 = vld [vmem:[#allocation2 + $0x369] sm:$0xff]
  %v1575 = vld [vmem:[#allocation2 + $0x371] sm:$0xff]
  %v1576 = vld [vmem:[#allocation2 + $0x389] sm:$0xff]
  %v1577 = vld [vmem:[#allocation2 + $0x391] sm:$0xff]
  %v1578 = vld [vmem:[#allocation2 + $0x3a9] sm:$0xff]
  %v1579 = vld [vmem:[#allocation2 + $0x3b1] sm:$0xff]
  %v1580 = vld [vmem:[#allocation2 + $0x3c9] sm:$0xff]
  %v1581 = vld [vmem:[#allocation2 + $0x3d1] sm:$0xff]
  %v1582 = vld [vmem:[#allocation2 + $0x3e9] sm:$0xff]
  %v1583 = vld [vmem:[#allocation2 + $0x3f1] sm:$0xff]
  %v1584 = vld [vmem:[#allocation2 + $0x409] sm:$0xff]
  %v1585 = vld [vmem:[#allocation2 + $0x411] sm:$0xff]
  %v1586 = vld [vmem:[#allocation2 + $0x429] sm:$0xff]
  %v1587 = vld [vmem:[#allocation2 + $0x431] sm:$0xff]
  %s1588 = scalar_lea.vmem %s1, 8
  %v1589 = vld [vmem:[%s1588] sm:$0xf]
  %v1591 = vsel %vm84, %v1524, 0
  %v1594 = vsel %vm84, %v1525, 0
  %v1597 = vsel %vm84, %v1526, 0
  %v1600 = vsel %vm84, %v1527, 0
  %v1603 = vsel %vm84, %v1528, 0
  %v1606 = vsel %vm84, %v1529, 0
  %v1609 = vsel %vm84, %v1530, 0
  %v1612 = vsel %vm84, %v1531, 0
  %v1615 = vsel %vm84, %v1532, 0
  %v1618 = vsel %vm84, %v1533, 0
  %v1621 = vsel %vm84, %v1534, 0
  %v1624 = vsel %vm84, %v1535, 0
  %v1627 = vsel %vm84, %v1536, 0
  %v1630 = vsel %vm84, %v1537, 0
  %v1633 = vsel %vm84, %v1538, 0
  %v1636 = vsel %vm84, %v1539, 0
  %v1639 = vsel %vm84, %v1540, 0
  %v1642 = vsel %vm84, %v1541, 0
  %v1645 = vsel %vm84, %v1542, 0
  %v1648 = vsel %vm84, %v1543, 0
  %v1651 = vsel %vm84, %v1544, 0
  %v1654 = vsel %vm84, %v1545, 0
  %v1657 = vsel %vm84, %v1546, 0
  %v1660 = vsel %vm84, %v1547, 0
  %v1663 = vsel %vm84, %v1548, 0
  %v1666 = vsel %vm84, %v1549, 0
  %v1669 = vsel %vm84, %v1550, 0
  %v1672 = vsel %vm84, %v1551, 0
  %v1675 = vsel %vm84, %v1552, 0
  %v1678 = vsel %vm84, %v1553, 0
  %v1681 = vsel %vm84, %v1554, 0
  %v1684 = vsel %vm84, %v1555, 0
  %v1687 = vsel %vm84, %v1556, 0
  %v1690 = vsel %vm84, %v1557, 0
  %v1693 = vsel %vm84, %v1558, 0
  %v1696 = vsel %vm84, %v1559, 0
  %v1699 = vsel %vm84, %v1560, 0
  %v1702 = vsel %vm84, %v1561, 0
  %v1705 = vsel %vm84, %v1562, 0
  %v1708 = vsel %vm84, %v1563, 0
  %v1711 = vsel %vm84, %v1564, 0
  %v1714 = vsel %vm84, %v1565, 0
  %v1717 = vsel %vm84, %v1566, 0
  %v1720 = vsel %vm84, %v1567, 0
  %v1723 = vsel %vm84, %v1568, 0
  %v1726 = vsel %vm84, %v1569, 0
  %v1729 = vsel %vm84, %v1570, 0
  %v1732 = vsel %vm84, %v1571, 0
  %v1735 = vsel %vm84, %v1572, 0
  %v1738 = vsel %vm84, %v1573, 0
  %v1741 = vsel %vm84, %v1574, 0
  %v1744 = vsel %vm84, %v1575, 0
  %v1747 = vsel %vm84, %v1576, 0
  %v1750 = vsel %vm84, %v1577, 0
  %v1753 = vsel %vm84, %v1578, 0
  %v1756 = vsel %vm84, %v1579, 0
  %v1759 = vsel %vm84, %v1580, 0
  %v1762 = vsel %vm84, %v1581, 0
  %v1765 = vsel %vm84, %v1582, 0
  %v1768 = vsel %vm84, %v1583, 0
  %v1771 = vsel %vm84, %v1584, 0
  %v1774 = vsel %vm84, %v1585, 0
  %v1777 = vsel %vm84, %v1586, 0
  %v1780 = vsel %vm84, %v1587, 0
  %v1783 = vsel %vm555, %v1589, 0
  %1785 = vmatprep.subr.mxu0 0.0
  %1786 = vmatpush1.msra.mxu0 %v1783
  %1787 = vmatprep.subr.mxu0 0.0
  %1788 = vmatpush1.msra.mxu0 0.0
  %1789 = vmatprep.subr.mxu0 0.0
  %1790 = vmatpush1.msra.mxu0 0.0
  %1791 = vmatprep.subr.mxu0 0.0
  %1792 = vmatpush1.msra.mxu0 0.0
  %1793 = vmatprep.subr.mxu0 0.0
  %1794 = vmatpush1.msra.mxu0 0.0
  %1795 = vmatprep.subr.mxu0 0.0
  %1796 = vmatpush1.msra.mxu0 0.0
  %1797 = vmatprep.subr.mxu0 0.0
  %1798 = vmatpush1.msra.mxu0 0.0
  %1799 = vmatprep.subr.mxu0 0.0
  %1800 = vmatpush1.msra.mxu0 0.0
  %1801 = vmatprep.subr.mxu0 0.0
  %1802 = vmatpush1.msra.mxu0 0.0
  %1803 = vmatprep.subr.mxu0 0.0
  %1804 = vmatpush1.msra.mxu0 0.0
  %1805 = vmatprep.subr.mxu0 0.0
  %1806 = vmatpush1.msra.mxu0 0.0
  %1807 = vmatprep.subr.mxu0 0.0
  %1808 = vmatpush1.msra.mxu0 0.0
  %1809 = vmatprep.subr.mxu0 0.0
  %1810 = vmatpush1.msra.mxu0 0.0
  %1811 = vmatprep.subr.mxu0 0.0
  %1812 = vmatpush1.msra.mxu0 0.0
  %1813 = vmatprep.subr.mxu0 0.0
  %1814 = vmatpush1.msra.mxu0 0.0
  %1815 = vmatprep.subr.mxu0 0.0
  %1816 = vmatpush1.msra.mxu0 0.0
  %1817 = vmatprep.subr.mxu0 0.0
  %1818 = vmatpush1.msra.mxu0 0.0
  %1819 = vmatprep.subr.mxu0 0.0
  %1820 = vmatpush1.msra.mxu0 0.0
  %1821 = vmatprep.subr.mxu0 0.0
  %1822 = vmatpush1.msra.mxu0 0.0
  %1823 = vmatprep.subr.mxu0 0.0
  %1824 = vmatpush1.msra.mxu0 0.0
  %1825 = vmatprep.subr.mxu0 0.0
  %1826 = vmatpush1.msra.mxu0 0.0
  %1827 = vmatprep.subr.mxu0 0.0
  %1828 = vmatpush1.msra.mxu0 0.0
  %1829 = vmatprep.subr.mxu0 0.0
  %1830 = vmatpush1.msra.mxu0 0.0
  %1831 = vmatprep.subr.mxu0 0.0
  %1832 = vmatpush1.msra.mxu0 0.0
  %1833 = vmatprep.subr.mxu0 0.0
  %1834 = vmatpush1.msra.mxu0 0.0
  %1835 = vmatprep.subr.mxu0 0.0
  %1836 = vmatpush1.msra.mxu0 0.0
  %1837 = vmatprep.subr.mxu0 0.0
  %1838 = vmatpush1.msra.mxu0 0.0
  %1839 = vmatprep.subr.mxu0 0.0
  %1840 = vmatpush1.msra.mxu0 0.0
  %1841 = vmatprep.subr.mxu0 0.0
  %1842 = vmatpush1.msra.mxu0 0.0
  %1843 = vmatprep.subr.mxu0 0.0
  %1844 = vmatpush1.msra.mxu0 0.0
  %1845 = vmatprep.subr.mxu0 0.0
  %1846 = vmatpush1.msra.mxu0 0.0
  %1847 = vmatprep.subr.mxu0 0.0
  %1848 = vmatpush1.msra.mxu0 0.0
  %1849 = vmatprep.mubr.f32.mxu0 0.0
  %1850 = vmatmul.mubr.f32.gmra.mrb[0].mxu0 %v1591
  %v1851 = vpop.f32.mrb[0].mxu0
  %v1852 = vadd.f32 0.0, %v1851
  %v1853 = vpop.f32.mrb[0].mxu0
  %1854 = vmatprep.mubr.f32.mxu0 0.0
  %1855 = vmatmul.mubr.f32.gmra.mrb[0].mxu0 %v1594
  %v1856 = vpop.f32.mrb[0].mxu0
  %v1857 = vadd.f32 0.0, %v1856
  %v1858 = vpop.f32.mrb[0].mxu0
  %1859 = vmatprep.mubr.f32.mxu0 0.0
  %1860 = vmatmul.mubr.f32.gmra.mrb[0].mxu0 %v1597
  %v1861 = vpop.f32.mrb[0].mxu0
  %v1862 = vadd.f32 0.0, %v1861
  %v1863 = vpop.f32.mrb[0].mxu0
  %1864 = vmatprep.mubr.f32.mxu0 0.0
  %1865 = vmatmul.mubr.f32.gmra.mrb[0].mxu0 %v1600
  %v1866 = vpop.f32.mrb[0].mxu0
  %v1867 = vadd.f32 0.0, %v1866
  %v1868 = vpop.f32.mrb[0].mxu0
  %1869 = vmatprep.mubr.f32.mxu0 0.0
  %1870 = vmatmul.mubr.f32.gmra.mrb[0].mxu0 %v1603
  %v1871 = vpop.f32.mrb[0].mxu0
  %v1872 = vadd.f32 0.0, %v1871
  %v1873 = vpop.f32.mrb[0].mxu0
  %1874 = vmatprep.mubr.f32.mxu0 0.0
  %1875 = vmatmul.mubr.f32.gmra.mrb[0].mxu0 %v1606
  %v1876 = vpop.f32.mrb[0].mxu0
  %v1877 = vadd.f32 0.0, %v1876
  %v1878 = vpop.f32.mrb[0].mxu0
  %1879 = vmatprep.mubr.f32.mxu0 0.0
  %1880 = vmatmul.mubr.f32.gmra.mrb[0].mxu0 %v1609
  %v1881 = vpop.f32.mrb[0].mxu0
  %v1882 = vadd.f32 0.0, %v1881
  %v1883 = vpop.f32.mrb[0].mxu0
  %1884 = vmatprep.mubr.f32.mxu0 0.0
  %1885 = vmatmul.mubr.f32.gmra.mrb[0].mxu0 %v1612
  %v1886 = vpop.f32.mrb[0].mxu0
  %v1887 = vadd.f32 0.0, %v1886
  %v1888 = vpop.f32.mrb[0].mxu0
  %1889 = vmatprep.mubr.f32.mxu0 0.0
  %1890 = vmatmul.mubr.f32.gmra.mrb[0].mxu0 %v1615
  %v1891 = vpop.f32.mrb[0].mxu0
  %v1892 = vadd.f32 0.0, %v1891
  %v1893 = vpop.f32.mrb[0].mxu0
  %1894 = vmatprep.mubr.f32.mxu0 0.0
  %1895 = vmatmul.mubr.f32.gmra.mrb[0].mxu0 %v1618
  %v1896 = vpop.f32.mrb[0].mxu0
  %v1897 = vadd.f32 0.0, %v1896
  %v1898 = vpop.f32.mrb[0].mxu0
  %1899 = vmatprep.mubr.f32.mxu0 0.0
  %1900 = vmatmul.mubr.f32.gmra.mrb[0].mxu0 %v1621
  %v1901 = vpop.f32.mrb[0].mxu0
  %v1902 = vadd.f32 0.0, %v1901
  %v1903 = vpop.f32.mrb[0].mxu0
  %1904 = vmatprep.mubr.f32.mxu0 0.0
  %1905 = vmatmul.mubr.f32.gmra.mrb[0].mxu0 %v1624
  %v1906 = vpop.f32.mrb[0].mxu0
  %v1907 = vadd.f32 0.0, %v1906
  %v1908 = vpop.f32.mrb[0].mxu0
  %1909 = vmatprep.mubr.f32.mxu0 0.0
  %1910 = vmatmul.mubr.f32.gmra.mrb[0].mxu0 %v1627
  %v1911 = vpop.f32.mrb[0].mxu0
  %v1912 = vadd.f32 0.0, %v1911
  %v1913 = vpop.f32.mrb[0].mxu0
  %1914 = vmatprep.mubr.f32.mxu0 0.0
  %1915 = vmatmul.mubr.f32.gmra.mrb[0].mxu0 %v1630
  %v1916 = vpop.f32.mrb[0].mxu0
  %v1917 = vadd.f32 0.0, %v1916
  %v1918 = vpop.f32.mrb[0].mxu0
  %1919 = vmatprep.mubr.f32.mxu0 0.0
  %1920 = vmatmul.mubr.f32.gmra.mrb[0].mxu0 %v1633
  %v1921 = vpop.f32.mrb[0].mxu0
  %v1922 = vadd.f32 0.0, %v1921
  %v1923 = vpop.f32.mrb[0].mxu0
  %1924 = vmatprep.mubr.f32.mxu0 0.0
  %1925 = vmatmul.mubr.f32.gmra.mrb[0].mxu0 %v1636
  %v1926 = vpop.f32.mrb[0].mxu0
  %v1927 = vadd.f32 0.0, %v1926
  %v1928 = vpop.f32.mrb[0].mxu0
  %1929 = vmatprep.mubr.f32.mxu0 0.0
  %1930 = vmatmul.mubr.f32.gmra.mrb[0].mxu0 %v1639
  %v1931 = vpop.f32.mrb[0].mxu0
  %v1932 = vadd.f32 0.0, %v1931
  %v1933 = vpop.f32.mrb[0].mxu0
  %1934 = vmatprep.mubr.f32.mxu0 0.0
  %1935 = vmatmul.mubr.f32.gmra.mrb[0].mxu0 %v1642
  %v1936 = vpop.f32.mrb[0].mxu0
  %v1937 = vadd.f32 0.0, %v1936
  %v1938 = vpop.f32.mrb[0].mxu0
  %1939 = vmatprep.mubr.f32.mxu0 0.0
  %1940 = vmatmul.mubr.f32.gmra.mrb[0].mxu0 %v1645
  %v1941 = vpop.f32.mrb[0].mxu0
  %v1942 = vadd.f32 0.0, %v1941
  %v1943 = vpop.f32.mrb[0].mxu0
  %1944 = vmatprep.mubr.f32.mxu0 0.0
  %1945 = vmatmul.mubr.f32.gmra.mrb[0].mxu0 %v1648
  %v1946 = vpop.f32.mrb[0].mxu0
  %v1947 = vadd.f32 0.0, %v1946
  %v1948 = vpop.f32.mrb[0].mxu0
  %1949 = vmatprep.mubr.f32.mxu0 0.0
  %1950 = vmatmul.mubr.f32.gmra.mrb[0].mxu0 %v1651
  %v1951 = vpop.f32.mrb[0].mxu0
  %v1952 = vadd.f32 0.0, %v1951
  %v1953 = vpop.f32.mrb[0].mxu0
  %1954 = vmatprep.mubr.f32.mxu0 0.0
  %1955 = vmatmul.mubr.f32.gmra.mrb[0].mxu0 %v1654
  %v1956 = vpop.f32.mrb[0].mxu0
  %v1957 = vadd.f32 0.0, %v1956
  %v1958 = vpop.f32.mrb[0].mxu0
  %1959 = vmatprep.mubr.f32.mxu0 0.0
  %1960 = vmatmul.mubr.f32.gmra.mrb[0].mxu0 %v1657
  %v1961 = vpop.f32.mrb[0].mxu0
  %v1962 = vadd.f32 0.0, %v1961
  %v1963 = vpop.f32.mrb[0].mxu0
  %1964 = vmatprep.mubr.f32.mxu0 0.0
  %1965 = vmatmul.mubr.f32.gmra.mrb[0].mxu0 %v1660
  %v1966 = vpop.f32.mrb[0].mxu0
  %v1967 = vadd.f32 0.0, %v1966
  %v1968 = vpop.f32.mrb[0].mxu0
  %1969 = vmatprep.mubr.f32.mxu0 0.0
  %1970 = vmatmul.mubr.f32.gmra.mrb[0].mxu0 %v1663
  %v1971 = vpop.f32.mrb[0].mxu0
  %v1972 = vadd.f32 0.0, %v1971
  %v1973 = vpop.f32.mrb[0].mxu0
  %1974 = vmatprep.mubr.f32.mxu0 0.0
  %1975 = vmatmul.mubr.f32.gmra.mrb[0].mxu0 %v1666
  %v1976 = vpop.f32.mrb[0].mxu0
  %v1977 = vadd.f32 0.0, %v1976
  %v1978 = vpop.f32.mrb[0].mxu0
  %1979 = vmatprep.mubr.f32.mxu0 0.0
  %1980 = vmatmul.mubr.f32.gmra.mrb[0].mxu0 %v1669
  %v1981 = vpop.f32.mrb[0].mxu0
  %v1982 = vadd.f32 0.0, %v1981
  %v1983 = vpop.f32.mrb[0].mxu0
  %1984 = vmatprep.mubr.f32.mxu0 0.0
  %1985 = vmatmul.mubr.f32.gmra.mrb[0].mxu0 %v1672
  %v1986 = vpop.f32.mrb[0].mxu0
  %v1987 = vadd.f32 0.0, %v1986
  %v1988 = vpop.f32.mrb[0].mxu0
  %1989 = vmatprep.mubr.f32.mxu0 0.0
  %1990 = vmatmul.mubr.f32.gmra.mrb[0].mxu0 %v1675
  %v1991 = vpop.f32.mrb[0].mxu0
  %v1992 = vadd.f32 0.0, %v1991
  %v1993 = vpop.f32.mrb[0].mxu0
  %1994 = vmatprep.mubr.f32.mxu0 0.0
  %1995 = vmatmul.mubr.f32.gmra.mrb[0].mxu0 %v1678
  %v1996 = vpop.f32.mrb[0].mxu0
  %v1997 = vadd.f32 0.0, %v1996
  %v1998 = vpop.f32.mrb[0].mxu0
  %1999 = vmatprep.mubr.f32.mxu0 0.0
  %2000 = vmatmul.mubr.f32.gmra.mrb[0].mxu0 %v1681
  %v2001 = vpop.f32.mrb[0].mxu0
  %v2002 = vadd.f32 0.0, %v2001
  %v2003 = vpop.f32.mrb[0].mxu0
  %2004 = vmatprep.mubr.f32.mxu0 0.0
  %2005 = vmatmul.mubr.f32.gmra.mrb[0].mxu0 %v1684
  %v2006 = vpop.f32.mrb[0].mxu0
  %v2007 = vadd.f32 0.0, %v2006
  %v2008 = vpop.f32.mrb[0].mxu0
  %2009 = vmatprep.mubr.f32.mxu0 0.0
  %2010 = vmatmul.mubr.f32.gmra.mrb[0].mxu0 %v1687
  %v2011 = vpop.f32.mrb[0].mxu0
  %v2012 = vadd.f32 0.0, %v2011
  %v2013 = vpop.f32.mrb[0].mxu0
  %2014 = vmatprep.mubr.f32.mxu0 0.0
  %2015 = vmatmul.mubr.f32.gmra.mrb[0].mxu0 %v1690
  %v2016 = vpop.f32.mrb[0].mxu0
  %v2017 = vadd.f32 0.0, %v2016
  %v2018 = vpop.f32.mrb[0].mxu0
  %2019 = vmatprep.mubr.f32.mxu0 0.0
  %2020 = vmatmul.mubr.f32.gmra.mrb[0].mxu0 %v1693
  %v2021 = vpop.f32.mrb[0].mxu0
  %v2022 = vadd.f32 0.0, %v2021
  %v2023 = vpop.f32.mrb[0].mxu0
  %2024 = vmatprep.mubr.f32.mxu0 0.0
  %2025 = vmatmul.mubr.f32.gmra.mrb[0].mxu0 %v1696
  %v2026 = vpop.f32.mrb[0].mxu0
  %v2027 = vadd.f32 0.0, %v2026
  %v2028 = vpop.f32.mrb[0].mxu0
  %2029 = vmatprep.mubr.f32.mxu0 0.0
  %2030 = vmatmul.mubr.f32.gmra.mrb[0].mxu0 %v1699
  %v2031 = vpop.f32.mrb[0].mxu0
  %v2032 = vadd.f32 0.0, %v2031
  %v2033 = vpop.f32.mrb[0].mxu0
  %2034 = vmatprep.mubr.f32.mxu0 0.0
  %2035 = vmatmul.mubr.f32.gmra.mrb[0].mxu0 %v1702
  %v2036 = vpop.f32.mrb[0].mxu0
  %v2037 = vadd.f32 0.0, %v2036
  %v2038 = vpop.f32.mrb[0].mxu0
  %2039 = vmatprep.mubr.f32.mxu0 0.0
  %2040 = vmatmul.mubr.f32.gmra.mrb[0].mxu0 %v1705
  %v2041 = vpop.f32.mrb[0].mxu0
  %v2042 = vadd.f32 0.0, %v2041
  %v2043 = vpop.f32.mrb[0].mxu0
  %2044 = vmatprep.mubr.f32.mxu0 0.0
  %2045 = vmatmul.mubr.f32.gmra.mrb[0].mxu0 %v1708
  %v2046 = vpop.f32.mrb[0].mxu0
  %v2047 = vadd.f32 0.0, %v2046
  %v2048 = vpop.f32.mrb[0].mxu0
  %2049 = vmatprep.mubr.f32.mxu0 0.0
  %2050 = vmatmul.mubr.f32.gmra.mrb[0].mxu0 %v1711
  %v2051 = vpop.f32.mrb[0].mxu0
  %v2052 = vadd.f32 0.0, %v2051
  %v2053 = vpop.f32.mrb[0].mxu0
  %2054 = vmatprep.mubr.f32.mxu0 0.0
  %2055 = vmatmul.mubr.f32.gmra.mrb[0].mxu0 %v1714
  %v2056 = vpop.f32.mrb[0].mxu0
  %v2057 = vadd.f32 0.0, %v2056
  %v2058 = vpop.f32.mrb[0].mxu0
  %2059 = vmatprep.mubr.f32.mxu0 0.0
  %2060 = vmatmul.mubr.f32.gmra.mrb[0].mxu0 %v1717
  %v2061 = vpop.f32.mrb[0].mxu0
  %v2062 = vadd.f32 0.0, %v2061
  %v2063 = vpop.f32.mrb[0].mxu0
  %2064 = vmatprep.mubr.f32.mxu0 0.0
  %2065 = vmatmul.mubr.f32.gmra.mrb[0].mxu0 %v1720
  %v2066 = vpop.f32.mrb[0].mxu0
  %v2067 = vadd.f32 0.0, %v2066
  %v2068 = vpop.f32.mrb[0].mxu0
  %2069 = vmatprep.mubr.f32.mxu0 0.0
  %2070 = vmatmul.mubr.f32.gmra.mrb[0].mxu0 %v1723
  %v2071 = vpop.f32.mrb[0].mxu0
  %v2072 = vadd.f32 0.0, %v2071
  %v2073 = vpop.f32.mrb[0].mxu0
  %2074 = vmatprep.mubr.f32.mxu0 0.0
  %2075 = vmatmul.mubr.f32.gmra.mrb[0].mxu0 %v1726
  %v2076 = vpop.f32.mrb[0].mxu0
  %v2077 = vadd.f32 0.0, %v2076
  %v2078 = vpop.f32.mrb[0].mxu0
  %2079 = vmatprep.mubr.f32.mxu0 0.0
  %2080 = vmatmul.mubr.f32.gmra.mrb[0].mxu0 %v1729
  %v2081 = vpop.f32.mrb[0].mxu0
  %v2082 = vadd.f32 0.0, %v2081
  %v2083 = vpop.f32.mrb[0].mxu0
  %2084 = vmatprep.mubr.f32.mxu0 0.0
  %2085 = vmatmul.mubr.f32.gmra.mrb[0].mxu0 %v1732
  %v2086 = vpop.f32.mrb[0].mxu0
  %v2087 = vadd.f32 0.0, %v2086
  %v2088 = vpop.f32.mrb[0].mxu0
  %2089 = vmatprep.mubr.f32.mxu0 0.0
  %2090 = vmatmul.mubr.f32.gmra.mrb[0].mxu0 %v1735
  %v2091 = vpop.f32.mrb[0].mxu0
  %v2092 = vadd.f32 0.0, %v2091
  %v2093 = vpop.f32.mrb[0].mxu0
  %2094 = vmatprep.mubr.f32.mxu0 0.0
  %2095 = vmatmul.mubr.f32.gmra.mrb[0].mxu0 %v1738
  %v2096 = vpop.f32.mrb[0].mxu0
  %v2097 = vadd.f32 0.0, %v2096
  %v2098 = vpop.f32.mrb[0].mxu0
  %2099 = vmatprep.mubr.f32.mxu0 0.0
  %2100 = vmatmul.mubr.f32.gmra.mrb[0].mxu0 %v1741
  %v2101 = vpop.f32.mrb[0].mxu0
  %v2102 = vadd.f32 0.0, %v2101
  %v2103 = vpop.f32.mrb[0].mxu0
  %2104 = vmatprep.mubr.f32.mxu0 0.0
  %2105 = vmatmul.mubr.f32.gmra.mrb[0].mxu0 %v1744
  %v2106 = vpop.f32.mrb[0].mxu0
  %v2107 = vadd.f32 0.0, %v2106
  %v2108 = vpop.f32.mrb[0].mxu0
  %2109 = vmatprep.mubr.f32.mxu0 0.0
  %2110 = vmatmul.mubr.f32.gmra.mrb[0].mxu0 %v1747
  %v2111 = vpop.f32.mrb[0].mxu0
  %v2112 = vadd.f32 0.0, %v2111
  %v2113 = vpop.f32.mrb[0].mxu0
  %2114 = vmatprep.mubr.f32.mxu0 0.0
  %2115 = vmatmul.mubr.f32.gmra.mrb[0].mxu0 %v1750
  %v2116 = vpop.f32.mrb[0].mxu0
  %v2117 = vadd.f32 0.0, %v2116
  %v2118 = vpop.f32.mrb[0].mxu0
  %2119 = vmatprep.mubr.f32.mxu0 0.0
  %2120 = vmatmul.mubr.f32.gmra.mrb[0].mxu0 %v1753
  %v2121 = vpop.f32.mrb[0].mxu0
  %v2122 = vadd.f32 0.0, %v2121
  %v2123 = vpop.f32.mrb[0].mxu0
  %2124 = vmatprep.mubr.f32.mxu0 0.0
  %2125 = vmatmul.mubr.f32.gmra.mrb[0].mxu0 %v1756
  %v2126 = vpop.f32.mrb[0].mxu0
  %v2127 = vadd.f32 0.0, %v2126
  %v2128 = vpop.f32.mrb[0].mxu0
  %2129 = vmatprep.mubr.f32.mxu0 0.0
  %2130 = vmatmul.mubr.f32.gmra.mrb[0].mxu0 %v1759
  %v2131 = vpop.f32.mrb[0].mxu0
  %v2132 = vadd.f32 0.0, %v2131
  %v2133 = vpop.f32.mrb[0].mxu0
  %2134 = vmatprep.mubr.f32.mxu0 0.0
  %2135 = vmatmul.mubr.f32.gmra.mrb[0].mxu0 %v1762
  %v2136 = vpop.f32.mrb[0].mxu0
  %v2137 = vadd.f32 0.0, %v2136
  %v2138 = vpop.f32.mrb[0].mxu0
  %2139 = vmatprep.mubr.f32.mxu0 0.0
  %2140 = vmatmul.mubr.f32.gmra.mrb[0].mxu0 %v1765
  %v2141 = vpop.f32.mrb[0].mxu0
  %v2142 = vadd.f32 0.0, %v2141
  %v2143 = vpop.f32.mrb[0].mxu0
  %2144 = vmatprep.mubr.f32.mxu0 0.0
  %2145 = vmatmul.mubr.f32.gmra.mrb[0].mxu0 %v1768
  %v2146 = vpop.f32.mrb[0].mxu0
  %v2147 = vadd.f32 0.0, %v2146
  %v2148 = vpop.f32.mrb[0].mxu0
  %2149 = vmatprep.mubr.f32.mxu0 0.0
  %2150 = vmatmul.mubr.f32.gmra.mrb[0].mxu0 %v1771
  %v2151 = vpop.f32.mrb[0].mxu0
  %v2152 = vadd.f32 0.0, %v2151
  %v2153 = vpop.f32.mrb[0].mxu0
  %2154 = vmatprep.mubr.f32.mxu0 0.0
  %2155 = vmatmul.mubr.f32.gmra.mrb[0].mxu0 %v1774
  %v2156 = vpop.f32.mrb[0].mxu0
  %v2157 = vadd.f32 0.0, %v2156
  %v2158 = vpop.f32.mrb[0].mxu0
  %2159 = vmatprep.mubr.f32.mxu0 0.0
  %2160 = vmatmul.mubr.f32.gmra.mrb[0].mxu0 %v1777
  %v2161 = vpop.f32.mrb[0].mxu0
  %v2162 = vadd.f32 0.0, %v2161
  %v2163 = vpop.f32.mrb[0].mxu0
  %2164 = vmatprep.mubr.f32.mxu0 0.0
  %2165 = vmatmul.mubr.f32.gmra.mrb[0].mxu0 %v1780
  %v2166 = vpop.f32.mrb[0].mxu0
  %v2167 = vadd.f32 0.0, %v2166
  %v2168 = vpop.f32.mrb[0].mxu0
  %2169 = vdwg.mxu0
  %v2170 = vadd.f32 %v1206, %v1852
  %v2171 = vadd.f32 %v1211, %v1857
  %v2172 = vadd.f32 %v1216, %v1862
  %v2173 = vadd.f32 %v1221, %v1867
  %v2174 = vadd.f32 %v1226, %v1872
  %v2175 = vadd.f32 %v1231, %v1877
  %v2176 = vadd.f32 %v1236, %v1882
  %v2177 = vadd.f32 %v1241, %v1887
  %v2178 = vadd.f32 %v1246, %v1892
  %v2179 = vadd.f32 %v1251, %v1897
  %v2180 = vadd.f32 %v1256, %v1902
  %v2181 = vadd.f32 %v1261, %v1907
  %v2182 = vadd.f32 %v1266, %v1912
  %v2183 = vadd.f32 %v1271, %v1917
  %v2184 = vadd.f32 %v1276, %v1922
  %v2185 = vadd.f32 %v1281, %v1927
  %v2186 = vadd.f32 %v1286, %v1932
  %v2187 = vadd.f32 %v1291, %v1937
  %v2188 = vadd.f32 %v1296, %v1942
  %v2189 = vadd.f32 %v1301, %v1947
  %v2190 = vadd.f32 %v1306, %v1952
  %v2191 = vadd.f32 %v1311, %v1957
  %v2192 = vadd.f32 %v1316, %v1962
  %v2193 = vadd.f32 %v1321, %v1967
  %v2194 = vadd.f32 %v1326, %v1972
  %v2195 = vadd.f32 %v1331, %v1977
  %v2196 = vadd.f32 %v1336, %v1982
  %v2197 = vadd.f32 %v1341, %v1987
  %v2198 = vadd.f32 %v1346, %v1992
  %v2199 = vadd.f32 %v1351, %v1997
  %v2200 = vadd.f32 %v1356, %v2002
  %v2201 = vadd.f32 %v1361, %v2007
  %v2202 = vadd.f32 %v1366, %v2012
  %v2203 = vadd.f32 %v1371, %v2017
  %v2204 = vadd.f32 %v1376, %v2022
  %v2205 = vadd.f32 %v1381, %v2027
  %v2206 = vadd.f32 %v1386, %v2032
  %v2207 = vadd.f32 %v1391, %v2037
  %v2208 = vadd.f32 %v1396, %v2042
  %v2209 = vadd.f32 %v1401, %v2047
  %v2210 = vadd.f32 %v1406, %v2052
  %v2211 = vadd.f32 %v1411, %v2057
  %v2212 = vadd.f32 %v1416, %v2062
  %v2213 = vadd.f32 %v1421, %v2067
  %v2214 = vadd.f32 %v1426, %v2072
  %v2215 = vadd.f32 %v1431, %v2077
  %v2216 = vadd.f32 %v1436, %v2082
  %v2217 = vadd.f32 %v1441, %v2087
  %v2218 = vadd.f32 %v1446, %v2092
  %v2219 = vadd.f32 %v1451, %v2097
  %v2220 = vadd.f32 %v1456, %v2102
  %v2221 = vadd.f32 %v1461, %v2107
  %v2222 = vadd.f32 %v1466, %v2112
  %v2223 = vadd.f32 %v1471, %v2117
  %v2224 = vadd.f32 %v1476, %v2122
  %v2225 = vadd.f32 %v1481, %v2127
  %v2226 = vadd.f32 %v1486, %v2132
  %v2227 = vadd.f32 %v1491, %v2137
  %v2228 = vadd.f32 %v1496, %v2142
  %v2229 = vadd.f32 %v1501, %v2147
  %v2230 = vadd.f32 %v1506, %v2152
  %v2231 = vadd.f32 %v1511, %v2157
  %v2232 = vadd.f32 %v1516, %v2162
  %v2233 = vadd.f32 %v1521, %v2167
  %v2234 = vld [vmem:[%s102 + $0x7] sm:$0xff]
  %v2235 = vld [vmem:[%s102 + $0xf] sm:$0xff]
  %v2236 = vld [vmem:[%s102 + $0x27] sm:$0xff]
  %v2237 = vld [vmem:[%s102 + $0x2f] sm:$0xff]
  %v2238 = vld [vmem:[%s102 + $0x47] sm:$0xff]
  %v2239 = vld [vmem:[%s102 + $0x4f] sm:$0xff]
  %v2240 = vld [vmem:[%s102 + $0x67] sm:$0xff]
  %v2241 = vld [vmem:[%s102 + $0x6f] sm:$0xff]
  %v2242 = vld [vmem:[%s102 + $0x87] sm:$0xff]
  %v2243 = vld [vmem:[%s102 + $0x8f] sm:$0xff]
  %v2244 = vld [vmem:[%s102 + $0xa7] sm:$0xff]
  %v2245 = vld [vmem:[%s102 + $0xaf] sm:$0xff]
  %v2246 = vld [vmem:[%s102 + $0xc7] sm:$0xff]
  %v2247 = vld [vmem:[%s102 + $0xcf] sm:$0xff]
  %v2248 = vld [vmem:[%s102 + $0xe7] sm:$0xff]
  %v2249 = vld [vmem:[%s102 + $0xef] sm:$0xff]
  %v2250 = vld [vmem:[%s102 + $0x107] sm:$0xff]
  %v2251 = vld [vmem:[%s102 + $0x10f] sm:$0xff]
  %v2252 = vld [vmem:[%s102 + $0x127] sm:$0xff]
  %v2253 = vld [vmem:[%s102 + $0x12f] sm:$0xff]
  %v2254 = vld [vmem:[%s102 + $0x147] sm:$0xff]
  %v2255 = vld [vmem:[%s102 + $0x14f] sm:$0xff]
  %v2256 = vld [vmem:[%s102 + $0x167] sm:$0xff]
  %v2257 = vld [vmem:[%s102 + $0x16f] sm:$0xff]
  %v2258 = vld [vmem:[%s102 + $0x187] sm:$0xff]
  %v2259 = vld [vmem:[%s102 + $0x18f] sm:$0xff]
  %v2260 = vld [vmem:[%s102 + $0x1a7] sm:$0xff]
  %v2261 = vld [vmem:[%s102 + $0x1af] sm:$0xff]
  %v2262 = vld [vmem:[%s102 + $0x1c7] sm:$0xff]
  %v2263 = vld [vmem:[%s102 + $0x1cf] sm:$0xff]
  %v2264 = vld [vmem:[%s102 + $0x1e7] sm:$0xff]
  %v2265 = vld [vmem:[%s102 + $0x1ef] sm:$0xff]
  %v2266 = vld [vmem:[%s102 + $0x247] sm:$0xff]
  %v2267 = vld [vmem:[%s102 + $0x24f] sm:$0xff]
  %v2268 = vld [vmem:[%s102 + $0x267] sm:$0xff]
  %v2269 = vld [vmem:[%s102 + $0x26f] sm:$0xff]
  %v2270 = vld [vmem:[%s102 + $0x287] sm:$0xff]
  %v2271 = vld [vmem:[%s102 + $0x28f] sm:$0xff]
  %v2272 = vld [vmem:[%s102 + $0x2a7] sm:$0xff]
  %v2273 = vld [vmem:[%s102 + $0x2af] sm:$0xff]
  %v2274 = vld [vmem:[%s102 + $0x2c7] sm:$0xff]
  %v2275 = vld [vmem:[%s102 + $0x2cf] sm:$0xff]
  %v2276 = vld [vmem:[%s102 + $0x2e7] sm:$0xff]
  %v2277 = vld [vmem:[%s102 + $0x2ef] sm:$0xff]
  %v2278 = vld [vmem:[%s102 + $0x307] sm:$0xff]
  %v2279 = vld [vmem:[%s102 + $0x30f] sm:$0xff]
  %v2280 = vld [vmem:[%s102 + $0x327] sm:$0xff]
  %v2281 = vld [vmem:[%s102 + $0x32f] sm:$0xff]
  %v2282 = vld [vmem:[%s102 + $0x347] sm:$0xff]
  %v2283 = vld [vmem:[%s102 + $0x34f] sm:$0xff]
  %v2284 = vld [vmem:[%s102 + $0x367] sm:$0xff]
  %v2285 = vld [vmem:[%s102 + $0x36f] sm:$0xff]
  %v2286 = vld [vmem:[%s102 + $0x387] sm:$0xff]
  %v2287 = vld [vmem:[%s102 + $0x38f] sm:$0xff]
  %v2288 = vld [vmem:[%s102 + $0x3a7] sm:$0xff]
  %v2289 = vld [vmem:[%s102 + $0x3af] sm:$0xff]
  %v2290 = vld [vmem:[%s102 + $0x3c7] sm:$0xff]
  %v2291 = vld [vmem:[%s102 + $0x3cf] sm:$0xff]
  %v2292 = vld [vmem:[%s102 + $0x3e7] sm:$0xff]
  %v2293 = vld [vmem:[%s102 + $0x3ef] sm:$0xff]
  %v2294 = vld [vmem:[%s102 + $0x407] sm:$0xff]
  %v2295 = vld [vmem:[%s102 + $0x40f] sm:$0xff]
  %v2296 = vld [vmem:[%s102 + $0x427] sm:$0xff]
  %v2297 = vld [vmem:[%s102 + $0x42f] sm:$0xff]
  %s2298 = scalar_lea.vmem %s1, 12
  %v2299 = vld [vmem:[%s2298] sm:$0xf]
  %v2301 = vsel %vm84, %v2234, 0
  %v2304 = vsel %vm84, %v2235, 0
  %v2307 = vsel %vm84, %v2236, 0
  %v2310 = vsel %vm84, %v2237, 0
  %v2313 = vsel %vm84, %v2238, 0
  %v2316 = vsel %vm84, %v2239, 0
  %v2319 = vsel %vm84, %v2240, 0
  %v2322 = vsel %vm84, %v2241, 0
  %v2325 = vsel %vm84, %v2242, 0
  %v2328 = vsel %vm84, %v2243, 0
  %v2331 = vsel %vm84, %v2244, 0
  %v2334 = vsel %vm84, %v2245, 0
  %v2337 = vsel %vm84, %v2246, 0
  %v2340 = vsel %vm84, %v2247, 0
  %v2343 = vsel %vm84, %v2248, 0
  %v2346 = vsel %vm84, %v2249, 0
  %v2349 = vsel %vm84, %v2250, 0
  %v2352 = vsel %vm84, %v2251, 0
  %v2355 = vsel %vm84, %v2252, 0
  %v2358 = vsel %vm84, %v2253, 0
  %v2361 = vsel %vm84, %v2254, 0
  %v2364 = vsel %vm84, %v2255, 0
  %v2367 = vsel %vm84, %v2256, 0
  %v2370 = vsel %vm84, %v2257, 0
  %v2373 = vsel %vm84, %v2258, 0
  %v2376 = vsel %vm84, %v2259, 0
  %v2379 = vsel %vm84, %v2260, 0
  %v2382 = vsel %vm84, %v2261, 0
  %v2385 = vsel %vm84, %v2262, 0
  %v2388 = vsel %vm84, %v2263, 0
  %v2391 = vsel %vm84, %v2264, 0
  %v2394 = vsel %vm84, %v2265, 0
  %v2397 = vsel %vm84, %v2266, 0
  %v2400 = vsel %vm84, %v2267, 0
  %v2403 = vsel %vm84, %v2268, 0
  %v2406 = vsel %vm84, %v2269, 0
  %v2409 = vsel %vm84, %v2270, 0
  %v2412 = vsel %vm84, %v2271, 0
  %v2415 = vsel %vm84, %v2272, 0
  %v2418 = vsel %vm84, %v2273, 0
  %v2421 = vsel %vm84, %v2274, 0
  %v2424 = vsel %vm84, %v2275, 0
  %v2427 = vsel %vm84, %v2276, 0
  %v2430 = vsel %vm84, %v2277, 0
  %v2433 = vsel %vm84, %v2278, 0
  %v2436 = vsel %vm84, %v2279, 0
  %v2439 = vsel %vm84, %v2280, 0
  %v2442 = vsel %vm84, %v2281, 0
  %v2445 = vsel %vm84, %v2282, 0
  %v2448 = vsel %vm84, %v2283, 0
  %v2451 = vsel %vm84, %v2284, 0
  %v2454 = vsel %vm84, %v2285, 0
  %v2457 = vsel %vm84, %v2286, 0
  %v2460 = vsel %vm84, %v2287, 0
  %v2463 = vsel %vm84, %v2288, 0
  %v2466 = vsel %vm84, %v2289, 0
  %v2469 = vsel %vm84, %v2290, 0
  %v2472 = vsel %vm84, %v2291, 0
  %v2475 = vsel %vm84, %v2292, 0
  %v2478 = vsel %vm84, %v2293, 0
  %v2481 = vsel %vm84, %v2294, 0
  %v2484 = vsel %vm84, %v2295, 0
  %v2487 = vsel %vm84, %v2296, 0
  %v2490 = vsel %vm84, %v2297, 0
  %v2493 = vsel %vm555, %v2299, 0
  %2495 = vmatprep.subr.mxu0 0.0
  %2496 = vmatpush1.msra.mxu0 %v2493
  %2497 = vmatprep.subr.mxu0 0.0
  %2498 = vmatpush1.msra.mxu0 0.0
  %2499 = vmatprep.subr.mxu0 0.0
  %2500 = vmatpush1.msra.mxu0 0.0
  %2501 = vmatprep.subr.mxu0 0.0
  %2502 = vmatpush1.msra.mxu0 0.0
  %2503 = vmatprep.subr.mxu0 0.0
  %2504 = vmatpush1.msra.mxu0 0.0
  %2505 = vmatprep.subr.mxu0 0.0
  %2506 = vmatpush1.msra.mxu0 0.0
  %2507 = vmatprep.subr.mxu0 0.0
  %2508 = vmatpush1.msra.mxu0 0.0
  %2509 = vmatprep.subr.mxu0 0.0
  %2510 = vmatpush1.msra.mxu0 0.0
  %2511 = vmatprep.subr.mxu0 0.0
  %2512 = vmatpush1.msra.mxu0 0.0
  %2513 = vmatprep.subr.mxu0 0.0
  %2514 = vmatpush1.msra.mxu0 0.0
  %2515 = vmatprep.subr.mxu0 0.0
  %2516 = vmatpush1.msra.mxu0 0.0
  %2517 = vmatprep.subr.mxu0 0.0
  %2518 = vmatpush1.msra.mxu0 0.0
  %2519 = vmatprep.subr.mxu0 0.0
  %2520 = vmatpush1.msra.mxu0 0.0
  %2521 = vmatprep.subr.mxu0 0.0
  %2522 = vmatpush1.msra.mxu0 0.0
  %2523 = vmatprep.subr.mxu0 0.0
  %2524 = vmatpush1.msra.mxu0 0.0
  %2525 = vmatprep.subr.mxu0 0.0
  %2526 = vmatpush1.msra.mxu0 0.0
  %2527 = vmatprep.subr.mxu0 0.0
  %2528 = vmatpush1.msra.mxu0 0.0
  %2529 = vmatprep.subr.mxu0 0.0
  %2530 = vmatpush1.msra.mxu0 0.0
  %2531 = vmatprep.subr.mxu0 0.0
  %2532 = vmatpush1.msra.mxu0 0.0
  %2533 = vmatprep.subr.mxu0 0.0
  %2534 = vmatpush1.msra.mxu0 0.0
  %2535 = vmatprep.subr.mxu0 0.0
  %2536 = vmatpush1.msra.mxu0 0.0
  %2537 = vmatprep.subr.mxu0 0.0
  %2538 = vmatpush1.msra.mxu0 0.0
  %2539 = vmatprep.subr.mxu0 0.0
  %2540 = vmatpush1.msra.mxu0 0.0
  %2541 = vmatprep.subr.mxu0 0.0
  %2542 = vmatpush1.msra.mxu0 0.0
  %2543 = vmatprep.subr.mxu0 0.0
  %2544 = vmatpush1.msra.mxu0 0.0
  %2545 = vmatprep.subr.mxu0 0.0
  %2546 = vmatpush1.msra.mxu0 0.0
  %2547 = vmatprep.subr.mxu0 0.0
  %2548 = vmatpush1.msra.mxu0 0.0
  %2549 = vmatprep.subr.mxu0 0.0
  %2550 = vmatpush1.msra.mxu0 0.0
  %2551 = vmatprep.subr.mxu0 0.0
  %2552 = vmatpush1.msra.mxu0 0.0
  %2553 = vmatprep.subr.mxu0 0.0
  %2554 = vmatpush1.msra.mxu0 0.0
  %2555 = vmatprep.subr.mxu0 0.0
  %2556 = vmatpush1.msra.mxu0 0.0
  %2557 = vmatprep.subr.mxu0 0.0
  %2558 = vmatpush1.msra.mxu0 0.0
  %2559 = vmatprep.mubr.f32.mxu0 0.0
  %2560 = vmatmul.mubr.f32.gmra.mrb[0].mxu0 %v2301
  %v2561 = vpop.f32.mrb[0].mxu0
  %v2562 = vadd.f32 0.0, %v2561
  %v2563 = vpop.f32.mrb[0].mxu0
  %2564 = vmatprep.mubr.f32.mxu0 0.0
  %2565 = vmatmul.mubr.f32.gmra.mrb[0].mxu0 %v2304
  %v2566 = vpop.f32.mrb[0].mxu0
  %v2567 = vadd.f32 0.0, %v2566
  %v2568 = vpop.f32.mrb[0].mxu0
  %2569 = vmatprep.mubr.f32.mxu0 0.0
  %2570 = vmatmul.mubr.f32.gmra.mrb[0].mxu0 %v2307
  %v2571 = vpop.f32.mrb[0].mxu0
  %v2572 = vadd.f32 0.0, %v2571
  %v2573 = vpop.f32.mrb[0].mxu0
  %2574 = vmatprep.mubr.f32.mxu0 0.0
  %2575 = vmatmul.mubr.f32.gmra.mrb[0].mxu0 %v2310
  %v2576 = vpop.f32.mrb[0].mxu0
  %v2577 = vadd.f32 0.0, %v2576
  %v2578 = vpop.f32.mrb[0].mxu0
  %2579 = vmatprep.mubr.f32.mxu0 0.0
  %2580 = vmatmul.mubr.f32.gmra.mrb[0].mxu0 %v2313
  %v2581 = vpop.f32.mrb[0].mxu0
  %v2582 = vadd.f32 0.0, %v2581
  %v2583 = vpop.f32.mrb[0].mxu0
  %2584 = vmatprep.mubr.f32.mxu0 0.0
  %2585 = vmatmul.mubr.f32.gmra.mrb[0].mxu0 %v2316
  %v2586 = vpop.f32.mrb[0].mxu0
  %v2587 = vadd.f32 0.0, %v2586
  %v2588 = vpop.f32.mrb[0].mxu0
  %2589 = vmatprep.mubr.f32.mxu0 0.0
  %2590 = vmatmul.mubr.f32.gmra.mrb[0].mxu0 %v2319
  %v2591 = vpop.f32.mrb[0].mxu0
  %v2592 = vadd.f32 0.0, %v2591
  %v2593 = vpop.f32.mrb[0].mxu0
  %2594 = vmatprep.mubr.f32.mxu0 0.0
  %2595 = vmatmul.mubr.f32.gmra.mrb[0].mxu0 %v2322
  %v2596 = vpop.f32.mrb[0].mxu0
  %v2597 = vadd.f32 0.0, %v2596
  %v2598 = vpop.f32.mrb[0].mxu0
  %2599 = vmatprep.mubr.f32.mxu0 0.0
  %2600 = vmatmul.mubr.f32.gmra.mrb[0].mxu0 %v2325
  %v2601 = vpop.f32.mrb[0].mxu0
  %v2602 = vadd.f32 0.0, %v2601
  %v2603 = vpop.f32.mrb[0].mxu0
  %2604 = vmatprep.mubr.f32.mxu0 0.0
  %2605 = vmatmul.mubr.f32.gmra.mrb[0].mxu0 %v2328
  %v2606 = vpop.f32.mrb[0].mxu0
  %v2607 = vadd.f32 0.0, %v2606
  %v2608 = vpop.f32.mrb[0].mxu0
  %2609 = vmatprep.mubr.f32.mxu0 0.0
  %2610 = vmatmul.mubr.f32.gmra.mrb[0].mxu0 %v2331
  %v2611 = vpop.f32.mrb[0].mxu0
  %v2612 = vadd.f32 0.0, %v2611
  %v2613 = vpop.f32.mrb[0].mxu0
  %2614 = vmatprep.mubr.f32.mxu0 0.0
  %2615 = vmatmul.mubr.f32.gmra.mrb[0].mxu0 %v2334
  %v2616 = vpop.f32.mrb[0].mxu0
  %v2617 = vadd.f32 0.0, %v2616
  %v2618 = vpop.f32.mrb[0].mxu0
  %2619 = vmatprep.mubr.f32.mxu0 0.0
  %2620 = vmatmul.mubr.f32.gmra.mrb[0].mxu0 %v2337
  %v2621 = vpop.f32.mrb[0].mxu0
  %v2622 = vadd.f32 0.0, %v2621
  %v2623 = vpop.f32.mrb[0].mxu0
  %2624 = vmatprep.mubr.f32.mxu0 0.0
  %2625 = vmatmul.mubr.f32.gmra.mrb[0].mxu0 %v2340
  %v2626 = vpop.f32.mrb[0].mxu0
  %v2627 = vadd.f32 0.0, %v2626
  %v2628 = vpop.f32.mrb[0].mxu0
  %2629 = vmatprep.mubr.f32.mxu0 0.0
  %2630 = vmatmul.mubr.f32.gmra.mrb[0].mxu0 %v2343
  %v2631 = vpop.f32.mrb[0].mxu0
  %v2632 = vadd.f32 0.0, %v2631
  %v2633 = vpop.f32.mrb[0].mxu0
  %2634 = vmatprep.mubr.f32.mxu0 0.0
  %2635 = vmatmul.mubr.f32.gmra.mrb[0].mxu0 %v2346
  %v2636 = vpop.f32.mrb[0].mxu0
  %v2637 = vadd.f32 0.0, %v2636
  %v2638 = vpop.f32.mrb[0].mxu0
  %2639 = vmatprep.mubr.f32.mxu0 0.0
  %2640 = vmatmul.mubr.f32.gmra.mrb[0].mxu0 %v2349
  %v2641 = vpop.f32.mrb[0].mxu0
  %v2642 = vadd.f32 0.0, %v2641
  %v2643 = vpop.f32.mrb[0].mxu0
  %2644 = vmatprep.mubr.f32.mxu0 0.0
  %2645 = vmatmul.mubr.f32.gmra.mrb[0].mxu0 %v2352
  %v2646 = vpop.f32.mrb[0].mxu0
  %v2647 = vadd.f32 0.0, %v2646
  %v2648 = vpop.f32.mrb[0].mxu0
  %2649 = vmatprep.mubr.f32.mxu0 0.0
  %2650 = vmatmul.mubr.f32.gmra.mrb[0].mxu0 %v2355
  %v2651 = vpop.f32.mrb[0].mxu0
  %v2652 = vadd.f32 0.0, %v2651
  %v2653 = vpop.f32.mrb[0].mxu0
  %2654 = vmatprep.mubr.f32.mxu0 0.0
  %2655 = vmatmul.mubr.f32.gmra.mrb[0].mxu0 %v2358
  %v2656 = vpop.f32.mrb[0].mxu0
  %v2657 = vadd.f32 0.0, %v2656
  %v2658 = vpop.f32.mrb[0].mxu0
  %2659 = vmatprep.mubr.f32.mxu0 0.0
  %2660 = vmatmul.mubr.f32.gmra.mrb[0].mxu0 %v2361
  %v2661 = vpop.f32.mrb[0].mxu0
  %v2662 = vadd.f32 0.0, %v2661
  %v2663 = vpop.f32.mrb[0].mxu0
  %2664 = vmatprep.mubr.f32.mxu0 0.0
  %2665 = vmatmul.mubr.f32.gmra.mrb[0].mxu0 %v2364
  %v2666 = vpop.f32.mrb[0].mxu0
  %v2667 = vadd.f32 0.0, %v2666
  %v2668 = vpop.f32.mrb[0].mxu0
  %2669 = vmatprep.mubr.f32.mxu0 0.0
  %2670 = vmatmul.mubr.f32.gmra.mrb[0].mxu0 %v2367
  %v2671 = vpop.f32.mrb[0].mxu0
  %v2672 = vadd.f32 0.0, %v2671
  %v2673 = vpop.f32.mrb[0].mxu0
  %2674 = vmatprep.mubr.f32.mxu0 0.0
  %2675 = vmatmul.mubr.f32.gmra.mrb[0].mxu0 %v2370
  %v2676 = vpop.f32.mrb[0].mxu0
  %v2677 = vadd.f32 0.0, %v2676
  %v2678 = vpop.f32.mrb[0].mxu0
  %2679 = vmatprep.mubr.f32.mxu0 0.0
  %2680 = vmatmul.mubr.f32.gmra.mrb[0].mxu0 %v2373
  %v2681 = vpop.f32.mrb[0].mxu0
  %v2682 = vadd.f32 0.0, %v2681
  %v2683 = vpop.f32.mrb[0].mxu0
  %2684 = vmatprep.mubr.f32.mxu0 0.0
  %2685 = vmatmul.mubr.f32.gmra.mrb[0].mxu0 %v2376
  %v2686 = vpop.f32.mrb[0].mxu0
  %v2687 = vadd.f32 0.0, %v2686
  %v2688 = vpop.f32.mrb[0].mxu0
  %2689 = vmatprep.mubr.f32.mxu0 0.0
  %2690 = vmatmul.mubr.f32.gmra.mrb[0].mxu0 %v2379
  %v2691 = vpop.f32.mrb[0].mxu0
  %v2692 = vadd.f32 0.0, %v2691
  %v2693 = vpop.f32.mrb[0].mxu0
  %2694 = vmatprep.mubr.f32.mxu0 0.0
  %2695 = vmatmul.mubr.f32.gmra.mrb[0].mxu0 %v2382
  %v2696 = vpop.f32.mrb[0].mxu0
  %v2697 = vadd.f32 0.0, %v2696
  %v2698 = vpop.f32.mrb[0].mxu0
  %2699 = vmatprep.mubr.f32.mxu0 0.0
  %2700 = vmatmul.mubr.f32.gmra.mrb[0].mxu0 %v2385
  %v2701 = vpop.f32.mrb[0].mxu0
  %v2702 = vadd.f32 0.0, %v2701
  %v2703 = vpop.f32.mrb[0].mxu0
  %2704 = vmatprep.mubr.f32.mxu0 0.0
  %2705 = vmatmul.mubr.f32.gmra.mrb[0].mxu0 %v2388
  %v2706 = vpop.f32.mrb[0].mxu0
  %v2707 = vadd.f32 0.0, %v2706
  %v2708 = vpop.f32.mrb[0].mxu0
  %2709 = vmatprep.mubr.f32.mxu0 0.0
  %2710 = vmatmul.mubr.f32.gmra.mrb[0].mxu0 %v2391
  %v2711 = vpop.f32.mrb[0].mxu0
  %v2712 = vadd.f32 0.0, %v2711
  %v2713 = vpop.f32.mrb[0].mxu0
  %2714 = vmatprep.mubr.f32.mxu0 0.0
  %2715 = vmatmul.mubr.f32.gmra.mrb[0].mxu0 %v2394
  %v2716 = vpop.f32.mrb[0].mxu0
  %v2717 = vadd.f32 0.0, %v2716
  %v2718 = vpop.f32.mrb[0].mxu0
  %2719 = vmatprep.mubr.f32.mxu0 0.0
  %2720 = vmatmul.mubr.f32.gmra.mrb[0].mxu0 %v2397
  %v2721 = vpop.f32.mrb[0].mxu0
  %v2722 = vadd.f32 0.0, %v2721
  %v2723 = vpop.f32.mrb[0].mxu0
  %2724 = vmatprep.mubr.f32.mxu0 0.0
  %2725 = vmatmul.mubr.f32.gmra.mrb[0].mxu0 %v2400
  %v2726 = vpop.f32.mrb[0].mxu0
  %v2727 = vadd.f32 0.0, %v2726
  %v2728 = vpop.f32.mrb[0].mxu0
  %2729 = vmatprep.mubr.f32.mxu0 0.0
  %2730 = vmatmul.mubr.f32.gmra.mrb[0].mxu0 %v2403
  %v2731 = vpop.f32.mrb[0].mxu0
  %v2732 = vadd.f32 0.0, %v2731
  %v2733 = vpop.f32.mrb[0].mxu0
  %2734 = vmatprep.mubr.f32.mxu0 0.0
  %2735 = vmatmul.mubr.f32.gmra.mrb[0].mxu0 %v2406
  %v2736 = vpop.f32.mrb[0].mxu0
  %v2737 = vadd.f32 0.0, %v2736
  %v2738 = vpop.f32.mrb[0].mxu0
  %2739 = vmatprep.mubr.f32.mxu0 0.0
  %2740 = vmatmul.mubr.f32.gmra.mrb[0].mxu0 %v2409
  %v2741 = vpop.f32.mrb[0].mxu0
  %v2742 = vadd.f32 0.0, %v2741
  %v2743 = vpop.f32.mrb[0].mxu0
  %2744 = vmatprep.mubr.f32.mxu0 0.0
  %2745 = vmatmul.mubr.f32.gmra.mrb[0].mxu0 %v2412
  %v2746 = vpop.f32.mrb[0].mxu0
  %v2747 = vadd.f32 0.0, %v2746
  %v2748 = vpop.f32.mrb[0].mxu0
  %2749 = vmatprep.mubr.f32.mxu0 0.0
  %2750 = vmatmul.mubr.f32.gmra.mrb[0].mxu0 %v2415
  %v2751 = vpop.f32.mrb[0].mxu0
  %v2752 = vadd.f32 0.0, %v2751
  %v2753 = vpop.f32.mrb[0].mxu0
  %2754 = vmatprep.mubr.f32.mxu0 0.0
  %2755 = vmatmul.mubr.f32.gmra.mrb[0].mxu0 %v2418
  %v2756 = vpop.f32.mrb[0].mxu0
  %v2757 = vadd.f32 0.0, %v2756
  %v2758 = vpop.f32.mrb[0].mxu0
  %2759 = vmatprep.mubr.f32.mxu0 0.0
  %2760 = vmatmul.mubr.f32.gmra.mrb[0].mxu0 %v2421
  %v2761 = vpop.f32.mrb[0].mxu0
  %v2762 = vadd.f32 0.0, %v2761
  %v2763 = vpop.f32.mrb[0].mxu0
  %2764 = vmatprep.mubr.f32.mxu0 0.0
  %2765 = vmatmul.mubr.f32.gmra.mrb[0].mxu0 %v2424
  %v2766 = vpop.f32.mrb[0].mxu0
  %v2767 = vadd.f32 0.0, %v2766
  %v2768 = vpop.f32.mrb[0].mxu0
  %2769 = vmatprep.mubr.f32.mxu0 0.0
  %2770 = vmatmul.mubr.f32.gmra.mrb[0].mxu0 %v2427
  %v2771 = vpop.f32.mrb[0].mxu0
  %v2772 = vadd.f32 0.0, %v2771
  %v2773 = vpop.f32.mrb[0].mxu0
  %2774 = vmatprep.mubr.f32.mxu0 0.0
  %2775 = vmatmul.mubr.f32.gmra.mrb[0].mxu0 %v2430
  %v2776 = vpop.f32.mrb[0].mxu0
  %v2777 = vadd.f32 0.0, %v2776
  %v2778 = vpop.f32.mrb[0].mxu0
  %2779 = vmatprep.mubr.f32.mxu0 0.0
  %2780 = vmatmul.mubr.f32.gmra.mrb[0].mxu0 %v2433
  %v2781 = vpop.f32.mrb[0].mxu0
  %v2782 = vadd.f32 0.0, %v2781
  %v2783 = vpop.f32.mrb[0].mxu0
  %2784 = vmatprep.mubr.f32.mxu0 0.0
  %2785 = vmatmul.mubr.f32.gmra.mrb[0].mxu0 %v2436
  %v2786 = vpop.f32.mrb[0].mxu0
  %v2787 = vadd.f32 0.0, %v2786
  %v2788 = vpop.f32.mrb[0].mxu0
  %2789 = vmatprep.mubr.f32.mxu0 0.0
  %2790 = vmatmul.mubr.f32.gmra.mrb[0].mxu0 %v2439
  %v2791 = vpop.f32.mrb[0].mxu0
  %v2792 = vadd.f32 0.0, %v2791
  %v2793 = vpop.f32.mrb[0].mxu0
  %2794 = vmatprep.mubr.f32.mxu0 0.0
  %2795 = vmatmul.mubr.f32.gmra.mrb[0].mxu0 %v2442
  %v2796 = vpop.f32.mrb[0].mxu0
  %v2797 = vadd.f32 0.0, %v2796
  %v2798 = vpop.f32.mrb[0].mxu0
  %2799 = vmatprep.mubr.f32.mxu0 0.0
  %2800 = vmatmul.mubr.f32.gmra.mrb[0].mxu0 %v2445
  %v2801 = vpop.f32.mrb[0].mxu0
  %v2802 = vadd.f32 0.0, %v2801
  %v2803 = vpop.f32.mrb[0].mxu0
  %2804 = vmatprep.mubr.f32.mxu0 0.0
  %2805 = vmatmul.mubr.f32.gmra.mrb[0].mxu0 %v2448
  %v2806 = vpop.f32.mrb[0].mxu0
  %v2807 = vadd.f32 0.0, %v2806
  %v2808 = vpop.f32.mrb[0].mxu0
  %2809 = vmatprep.mubr.f32.mxu0 0.0
  %2810 = vmatmul.mubr.f32.gmra.mrb[0].mxu0 %v2451
  %v2811 = vpop.f32.mrb[0].mxu0
  %v2812 = vadd.f32 0.0, %v2811
  %v2813 = vpop.f32.mrb[0].mxu0
  %2814 = vmatprep.mubr.f32.mxu0 0.0
  %2815 = vmatmul.mubr.f32.gmra.mrb[0].mxu0 %v2454
  %v2816 = vpop.f32.mrb[0].mxu0
  %v2817 = vadd.f32 0.0, %v2816
  %v2818 = vpop.f32.mrb[0].mxu0
  %2819 = vmatprep.mubr.f32.mxu0 0.0
  %2820 = vmatmul.mubr.f32.gmra.mrb[0].mxu0 %v2457
  %v2821 = vpop.f32.mrb[0].mxu0
  %v2822 = vadd.f32 0.0, %v2821
  %v2823 = vpop.f32.mrb[0].mxu0
  %2824 = vmatprep.mubr.f32.mxu0 0.0
  %2825 = vmatmul.mubr.f32.gmra.mrb[0].mxu0 %v2460
  %v2826 = vpop.f32.mrb[0].mxu0
  %v2827 = vadd.f32 0.0, %v2826
  %v2828 = vpop.f32.mrb[0].mxu0
  %2829 = vmatprep.mubr.f32.mxu0 0.0
  %2830 = vmatmul.mubr.f32.gmra.mrb[0].mxu0 %v2463
  %v2831 = vpop.f32.mrb[0].mxu0
  %v2832 = vadd.f32 0.0, %v2831
  %v2833 = vpop.f32.mrb[0].mxu0
  %2834 = vmatprep.mubr.f32.mxu0 0.0
  %2835 = vmatmul.mubr.f32.gmra.mrb[0].mxu0 %v2466
  %v2836 = vpop.f32.mrb[0].mxu0
  %v2837 = vadd.f32 0.0, %v2836
  %v2838 = vpop.f32.mrb[0].mxu0
  %2839 = vmatprep.mubr.f32.mxu0 0.0
  %2840 = vmatmul.mubr.f32.gmra.mrb[0].mxu0 %v2469
  %v2841 = vpop.f32.mrb[0].mxu0
  %v2842 = vadd.f32 0.0, %v2841
  %v2843 = vpop.f32.mrb[0].mxu0
  %2844 = vmatprep.mubr.f32.mxu0 0.0
  %2845 = vmatmul.mubr.f32.gmra.mrb[0].mxu0 %v2472
  %v2846 = vpop.f32.mrb[0].mxu0
  %v2847 = vadd.f32 0.0, %v2846
  %v2848 = vpop.f32.mrb[0].mxu0
  %2849 = vmatprep.mubr.f32.mxu0 0.0
  %2850 = vmatmul.mubr.f32.gmra.mrb[0].mxu0 %v2475
  %v2851 = vpop.f32.mrb[0].mxu0
  %v2852 = vadd.f32 0.0, %v2851
  %v2853 = vpop.f32.mrb[0].mxu0
  %2854 = vmatprep.mubr.f32.mxu0 0.0
  %2855 = vmatmul.mubr.f32.gmra.mrb[0].mxu0 %v2478
  %v2856 = vpop.f32.mrb[0].mxu0
  %v2857 = vadd.f32 0.0, %v2856
  %v2858 = vpop.f32.mrb[0].mxu0
  %2859 = vmatprep.mubr.f32.mxu0 0.0
  %2860 = vmatmul.mubr.f32.gmra.mrb[0].mxu0 %v2481
  %v2861 = vpop.f32.mrb[0].mxu0
  %v2862 = vadd.f32 0.0, %v2861
  %v2863 = vpop.f32.mrb[0].mxu0
  %2864 = vmatprep.mubr.f32.mxu0 0.0
  %2865 = vmatmul.mubr.f32.gmra.mrb[0].mxu0 %v2484
  %v2866 = vpop.f32.mrb[0].mxu0
  %v2867 = vadd.f32 0.0, %v2866
  %v2868 = vpop.f32.mrb[0].mxu0
  %2869 = vmatprep.mubr.f32.mxu0 0.0
  %2870 = vmatmul.mubr.f32.gmra.mrb[0].mxu0 %v2487
  %v2871 = vpop.f32.mrb[0].mxu0
  %v2872 = vadd.f32 0.0, %v2871
  %v2873 = vpop.f32.mrb[0].mxu0
  %2874 = vmatprep.mubr.f32.mxu0 0.0
  %2875 = vmatmul.mubr.f32.gmra.mrb[0].mxu0 %v2490
  %v2876 = vpop.f32.mrb[0].mxu0
  %v2877 = vadd.f32 0.0, %v2876
  %v2878 = vpop.f32.mrb[0].mxu0
  %2879 = vdwg.mxu0
  %v2880 = vadd.f32 %v2170, %v2562
  %v2881 = vadd.f32 %v2171, %v2567
  %v2882 = vadd.f32 %v2172, %v2572
  %v2883 = vadd.f32 %v2173, %v2577
  %v2884 = vadd.f32 %v2174, %v2582
  %v2885 = vadd.f32 %v2175, %v2587
  %v2886 = vadd.f32 %v2176, %v2592
  %v2887 = vadd.f32 %v2177, %v2597
  %v2888 = vadd.f32 %v2178, %v2602
  %v2889 = vadd.f32 %v2179, %v2607
  %v2890 = vadd.f32 %v2180, %v2612
  %v2891 = vadd.f32 %v2181, %v2617
  %v2892 = vadd.f32 %v2182, %v2622
  %v2893 = vadd.f32 %v2183, %v2627
  %v2894 = vadd.f32 %v2184, %v2632
  %v2895 = vadd.f32 %v2185, %v2637
  %v2896 = vadd.f32 %v2186, %v2642
  %v2897 = vadd.f32 %v2187, %v2647
  %v2898 = vadd.f32 %v2188, %v2652
  %v2899 = vadd.f32 %v2189, %v2657
  %v2900 = vadd.f32 %v2190, %v2662
  %v2901 = vadd.f32 %v2191, %v2667
  %v2902 = vadd.f32 %v2192, %v2672
  %v2903 = vadd.f32 %v2193, %v2677
  %v2904 = vadd.f32 %v2194, %v2682
  %v2905 = vadd.f32 %v2195, %v2687
  %v2906 = vadd.f32 %v2196, %v2692
  %v2907 = vadd.f32 %v2197, %v2697
  %v2908 = vadd.f32 %v2198, %v2702
  %v2909 = vadd.f32 %v2199, %v2707
  %v2910 = vadd.f32 %v2200, %v2712
  %v2911 = vadd.f32 %v2201, %v2717
  %v2912 = vadd.f32 %v2202, %v2722
  %v2913 = vadd.f32 %v2203, %v2727
  %v2914 = vadd.f32 %v2204, %v2732
  %v2915 = vadd.f32 %v2205, %v2737
  %v2916 = vadd.f32 %v2206, %v2742
  %v2917 = vadd.f32 %v2207, %v2747
  %v2918 = vadd.f32 %v2208, %v2752
  %v2919 = vadd.f32 %v2209, %v2757
  %v2920 = vadd.f32 %v2210, %v2762
  %v2921 = vadd.f32 %v2211, %v2767
  %v2922 = vadd.f32 %v2212, %v2772
  %v2923 = vadd.f32 %v2213, %v2777
  %v2924 = vadd.f32 %v2214, %v2782
  %v2925 = vadd.f32 %v2215, %v2787
  %v2926 = vadd.f32 %v2216, %v2792
  %v2927 = vadd.f32 %v2217, %v2797
  %v2928 = vadd.f32 %v2218, %v2802
  %v2929 = vadd.f32 %v2219, %v2807
  %v2930 = vadd.f32 %v2220, %v2812
  %v2931 = vadd.f32 %v2221, %v2817
  %v2932 = vadd.f32 %v2222, %v2822
  %v2933 = vadd.f32 %v2223, %v2827
  %v2934 = vadd.f32 %v2224, %v2832
  %v2935 = vadd.f32 %v2225, %v2837
  %v2936 = vadd.f32 %v2226, %v2842
  %v2937 = vadd.f32 %v2227, %v2847
  %v2938 = vadd.f32 %v2228, %v2852
  %v2939 = vadd.f32 %v2229, %v2857
  %v2940 = vadd.f32 %v2230, %v2862
  %v2941 = vadd.f32 %v2231, %v2867
  %v2942 = vadd.f32 %v2232, %v2872
  %v2943 = vadd.f32 %v2233, %v2877
  %v2944 = vld [vmem:[%s102 + $0x8] sm:$0xff]
  %v2945 = vld [vmem:[%s102 + $0x10] sm:$0xff]
  %v2946 = vld [vmem:[%s102 + $0x28] sm:$0xff]
  %v2947 = vld [vmem:[%s102 + $0x30] sm:$0xff]
  %v2948 = vld [vmem:[%s102 + $0x48] sm:$0xff]
  %v2949 = vld [vmem:[%s102 + $0x50] sm:$0xff]
  %v2950 = vld [vmem:[%s102 + $0x68] sm:$0xff]
  %v2951 = vld [vmem:[%s102 + $0x70] sm:$0xff]
  %v2952 = vld [vmem:[%s102 + $0x88] sm:$0xff]
  %v2953 = vld [vmem:[%s102 + $0x90] sm:$0xff]
  %v2954 = vld [vmem:[%s102 + $0xa8] sm:$0xff]
  %v2955 = vld [vmem:[%s102 + $0xb0] sm:$0xff]
  %v2956 = vld [vmem:[%s102 + $0xc8] sm:$0xff]
  %v2957 = vld [vmem:[%s102 + $0xd0] sm:$0xff]
  %v2958 = vld [vmem:[%s102 + $0xe8] sm:$0xff]
  %v2959 = vld [vmem:[%s102 + $0xf0] sm:$0xff]
  %v2960 = vld [vmem:[%s102 + $0x108] sm:$0xff]
  %v2961 = vld [vmem:[%s102 + $0x110] sm:$0xff]
  %v2962 = vld [vmem:[%s102 + $0x128] sm:$0xff]
  %v2963 = vld [vmem:[%s102 + $0x130] sm:$0xff]
  %v2964 = vld [vmem:[%s102 + $0x148] sm:$0xff]
  %v2965 = vld [vmem:[%s102 + $0x150] sm:$0xff]
  %v2966 = vld [vmem:[%s102 + $0x168] sm:$0xff]
  %v2967 = vld [vmem:[%s102 + $0x170] sm:$0xff]
  %v2968 = vld [vmem:[%s102 + $0x188] sm:$0xff]
  %v2969 = vld [vmem:[%s102 + $0x190] sm:$0xff]
  %v2970 = vld [vmem:[%s102 + $0x1a8] sm:$0xff]
  %v2971 = vld [vmem:[%s102 + $0x1b0] sm:$0xff]
  %v2972 = vld [vmem:[%s102 + $0x1c8] sm:$0xff]
  %v2973 = vld [vmem:[%s102 + $0x1d0] sm:$0xff]
  %v2974 = vld [vmem:[%s102 + $0x1e8] sm:$0xff]
  %v2975 = vld [vmem:[%s102 + $0x1f0] sm:$0xff]
  %v2976 = vld [vmem:[%s102 + $0x248] sm:$0xff]
  %v2977 = vld [vmem:[%s102 + $0x250] sm:$0xff]
  %v2978 = vld [vmem:[%s102 + $0x268] sm:$0xff]
  %v2979 = vld [vmem:[%s102 + $0x270] sm:$0xff]
  %v2980 = vld [vmem:[%s102 + $0x288] sm:$0xff]
  %v2981 = vld [vmem:[%s102 + $0x290] sm:$0xff]
  %v2982 = vld [vmem:[%s102 + $0x2a8] sm:$0xff]
  %v2983 = vld [vmem:[%s102 + $0x2b0] sm:$0xff]
  %v2984 = vld [vmem:[%s102 + $0x2c8] sm:$0xff]
  %v2985 = vld [vmem:[%s102 + $0x2d0] sm:$0xff]
  %v2986 = vld [vmem:[%s102 + $0x2e8] sm:$0xff]
  %v2987 = vld [vmem:[%s102 + $0x2f0] sm:$0xff]
  %v2988 = vld [vmem:[%s102 + $0x308] sm:$0xff]
  %v2989 = vld [vmem:[%s102 + $0x310] sm:$0xff]
  %v2990 = vld [vmem:[%s102 + $0x328] sm:$0xff]
  %v2991 = vld [vmem:[%s102 + $0x330] sm:$0xff]
  %v2992 = vld [vmem:[%s102 + $0x348] sm:$0xff]
  %v2993 = vld [vmem:[%s102 + $0x350] sm:$0xff]
  %v2994 = vld [vmem:[%s102 + $0x368] sm:$0xff]
  %v2995 = vld [vmem:[%s102 + $0x370] sm:$0xff]
  %v2996 = vld [vmem:[%s102 + $0x388] sm:$0xff]
  %v2997 = vld [vmem:[%s102 + $0x390] sm:$0xff]
  %v2998 = vld [vmem:[%s102 + $0x3a8] sm:$0xff]
  %v2999 = vld [vmem:[%s102 + $0x3b0] sm:$0xff]
  %v3000 = vld [vmem:[%s102 + $0x3c8] sm:$0xff]
  %v3001 = vld [vmem:[%s102 + $0x3d0] sm:$0xff]
  %v3002 = vld [vmem:[%s102 + $0x3e8] sm:$0xff]
  %v3003 = vld [vmem:[%s102 + $0x3f0] sm:$0xff]
  %v3004 = vld [vmem:[%s102 + $0x408] sm:$0xff]
  %v3005 = vld [vmem:[%s102 + $0x410] sm:$0xff]
  %v3006 = vld [vmem:[%s102 + $0x428] sm:$0xff]
  %v3007 = vld [vmem:[%s102 + $0x430] sm:$0xff]
  %s3008 = scalar_lea.vmem %s1, 16
  %v3009 = vld [vmem:[%s3008] sm:$0xf]
  %v3011 = vsel %vm84, %v2944, 0
  %v3014 = vsel %vm84, %v2945, 0
  %v3017 = vsel %vm84, %v2946, 0
  %v3020 = vsel %vm84, %v2947, 0
  %v3023 = vsel %vm84, %v2948, 0
  %v3026 = vsel %vm84, %v2949, 0
  %v3029 = vsel %vm84, %v2950, 0
  %v3032 = vsel %vm84, %v2951, 0
  %v3035 = vsel %vm84, %v2952, 0
  %v3038 = vsel %vm84, %v2953, 0
  %v3041 = vsel %vm84, %v2954, 0
  %v3044 = vsel %vm84, %v2955, 0
  %v3047 = vsel %vm84, %v2956, 0
  %v3050 = vsel %vm84, %v2957, 0
  %v3053 = vsel %vm84, %v2958, 0
  %v3056 = vsel %vm84, %v2959, 0
  %v3059 = vsel %vm84, %v2960, 0
  %v3062 = vsel %vm84, %v2961, 0
  %v3065 = vsel %vm84, %v2962, 0
  %v3068 = vsel %vm84, %v2963, 0
  %v3071 = vsel %vm84, %v2964, 0
  %v3074 = vsel %vm84, %v2965, 0
  %v3077 = vsel %vm84, %v2966, 0
  %v3080 = vsel %vm84, %v2967, 0
  %v3083 = vsel %vm84, %v2968, 0
  %v3086 = vsel %vm84, %v2969, 0
  %v3089 = vsel %vm84, %v2970, 0
  %v3092 = vsel %vm84, %v2971, 0
  %v3095 = vsel %vm84, %v2972, 0
  %v3098 = vsel %vm84, %v2973, 0
  %v3101 = vsel %vm84, %v2974, 0
  %v3104 = vsel %vm84, %v2975, 0
  %v3107 = vsel %vm84, %v2976, 0
  %v3110 = vsel %vm84, %v2977, 0
  %v3113 = vsel %vm84, %v2978, 0
  %v3116 = vsel %vm84, %v2979, 0
  %v3119 = vsel %vm84, %v2980, 0
  %v3122 = vsel %vm84, %v2981, 0
  %v3125 = vsel %vm84, %v2982, 0
  %v3128 = vsel %vm84, %v2983, 0
  %v3131 = vsel %vm84, %v2984, 0
  %v3134 = vsel %vm84, %v2985, 0
  %v3137 = vsel %vm84, %v2986, 0
  %v3140 = vsel %vm84, %v2987, 0
  %v3143 = vsel %vm84, %v2988, 0
  %v3146 = vsel %vm84, %v2989, 0
  %v3149 = vsel %vm84, %v2990, 0
  %v3152 = vsel %vm84, %v2991, 0
  %v3155 = vsel %vm84, %v2992, 0
  %v3158 = vsel %vm84, %v2993, 0
  %v3161 = vsel %vm84, %v2994, 0
  %v3164 = vsel %vm84, %v2995, 0
  %v3167 = vsel %vm84, %v2996, 0
  %v3170 = vsel %vm84, %v2997, 0
  %v3173 = vsel %vm84, %v2998, 0
  %v3176 = vsel %vm84, %v2999, 0
  %v3179 = vsel %vm84, %v3000, 0
  %v3182 = vsel %vm84, %v3001, 0
  %v3185 = vsel %vm84, %v3002, 0
  %v3188 = vsel %vm84, %v3003, 0
  %v3191 = vsel %vm84, %v3004, 0
  %v3194 = vsel %vm84, %v3005, 0
  %v3197 = vsel %vm84, %v3006, 0
  %v3200 = vsel %vm84, %v3007, 0
  %v3203 = vsel %vm555, %v3009, 0
  %3205 = vmatprep.subr.mxu0 0.0
  %3206 = vmatpush1.msra.mxu0 %v3203
  %3207 = vmatprep.subr.mxu0 0.0
  %3208 = vmatpush1.msra.mxu0 0.0
  %3209 = vmatprep.subr.mxu0 0.0
  %3210 = vmatpush1.msra.mxu0 0.0
  %3211 = vmatprep.subr.mxu0 0.0
  %3212 = vmatpush1.msra.mxu0 0.0
  %3213 = vmatprep.subr.mxu0 0.0
  %3214 = vmatpush1.msra.mxu0 0.0
  %3215 = vmatprep.subr.mxu0 0.0
  %3216 = vmatpush1.msra.mxu0 0.0
  %3217 = vmatprep.subr.mxu0 0.0
  %3218 = vmatpush1.msra.mxu0 0.0
  %3219 = vmatprep.subr.mxu0 0.0
  %3220 = vmatpush1.msra.mxu0 0.0
  %3221 = vmatprep.subr.mxu0 0.0
  %3222 = vmatpush1.msra.mxu0 0.0
  %3223 = vmatprep.subr.mxu0 0.0
  %3224 = vmatpush1.msra.mxu0 0.0
  %3225 = vmatprep.subr.mxu0 0.0
  %3226 = vmatpush1.msra.mxu0 0.0
  %3227 = vmatprep.subr.mxu0 0.0
  %3228 = vmatpush1.msra.mxu0 0.0
  %3229 = vmatprep.subr.mxu0 0.0
  %3230 = vmatpush1.msra.mxu0 0.0
  %3231 = vmatprep.subr.mxu0 0.0
  %3232 = vmatpush1.msra.mxu0 0.0
  %3233 = vmatprep.subr.mxu0 0.0
  %3234 = vmatpush1.msra.mxu0 0.0
  %3235 = vmatprep.subr.mxu0 0.0
  %3236 = vmatpush1.msra.mxu0 0.0
  %3237 = vmatprep.subr.mxu0 0.0
  %3238 = vmatpush1.msra.mxu0 0.0
  %3239 = vmatprep.subr.mxu0 0.0
  %3240 = vmatpush1.msra.mxu0 0.0
  %3241 = vmatprep.subr.mxu0 0.0
  %3242 = vmatpush1.msra.mxu0 0.0
  %3243 = vmatprep.subr.mxu0 0.0
  %3244 = vmatpush1.msra.mxu0 0.0
  %3245 = vmatprep.subr.mxu0 0.0
  %3246 = vmatpush1.msra.mxu0 0.0
  %3247 = vmatprep.subr.mxu0 0.0
  %3248 = vmatpush1.msra.mxu0 0.0
  %3249 = vmatprep.subr.mxu0 0.0
  %3250 = vmatpush1.msra.mxu0 0.0
  %3251 = vmatprep.subr.mxu0 0.0
  %3252 = vmatpush1.msra.mxu0 0.0
  %3253 = vmatprep.subr.mxu0 0.0
  %3254 = vmatpush1.msra.mxu0 0.0
  %3255 = vmatprep.subr.mxu0 0.0
  %3256 = vmatpush1.msra.mxu0 0.0
  %3257 = vmatprep.subr.mxu0 0.0
  %3258 = vmatpush1.msra.mxu0 0.0
  %3259 = vmatprep.subr.mxu0 0.0
  %3260 = vmatpush1.msra.mxu0 0.0
  %3261 = vmatprep.subr.mxu0 0.0
  %3262 = vmatpush1.msra.mxu0 0.0
  %3263 = vmatprep.subr.mxu0 0.0
  %3264 = vmatpush1.msra.mxu0 0.0
  %3265 = vmatprep.subr.mxu0 0.0
  %3266 = vmatpush1.msra.mxu0 0.0
  %3267 = vmatprep.subr.mxu0 0.0
  %3268 = vmatpush1.msra.mxu0 0.0
  %3269 = vmatprep.mubr.f32.mxu0 0.0
  %3270 = vmatmul.mubr.f32.gmra.mrb[0].mxu0 %v3011
  %v3271 = vpop.f32.mrb[0].mxu0
  %v3272 = vadd.f32 0.0, %v3271
  %v3273 = vpop.f32.mrb[0].mxu0
  %3274 = vmatprep.mubr.f32.mxu0 0.0
  %3275 = vmatmul.mubr.f32.gmra.mrb[0].mxu0 %v3014
  %v3276 = vpop.f32.mrb[0].mxu0
  %v3277 = vadd.f32 0.0, %v3276
  %v3278 = vpop.f32.mrb[0].mxu0
  %3279 = vmatprep.mubr.f32.mxu0 0.0
  %3280 = vmatmul.mubr.f32.gmra.mrb[0].mxu0 %v3017
  %v3281 = vpop.f32.mrb[0].mxu0
  %v3282 = vadd.f32 0.0, %v3281
  %v3283 = vpop.f32.mrb[0].mxu0
  %3284 = vmatprep.mubr.f32.mxu0 0.0
  %3285 = vmatmul.mubr.f32.gmra.mrb[0].mxu0 %v3020
  %v3286 = vpop.f32.mrb[0].mxu0
  %v3287 = vadd.f32 0.0, %v3286
  %v3288 = vpop.f32.mrb[0].mxu0
  %3289 = vmatprep.mubr.f32.mxu0 0.0
  %3290 = vmatmul.mubr.f32.gmra.mrb[0].mxu0 %v3023
  %v3291 = vpop.f32.mrb[0].mxu0
  %v3292 = vadd.f32 0.0, %v3291
  %v3293 = vpop.f32.mrb[0].mxu0
  %3294 = vmatprep.mubr.f32.mxu0 0.0
  %3295 = vmatmul.mubr.f32.gmra.mrb[0].mxu0 %v3026
  %v3296 = vpop.f32.mrb[0].mxu0
  %v3297 = vadd.f32 0.0, %v3296
  %v3298 = vpop.f32.mrb[0].mxu0
  %3299 = vmatprep.mubr.f32.mxu0 0.0
  %3300 = vmatmul.mubr.f32.gmra.mrb[0].mxu0 %v3029
  %v3301 = vpop.f32.mrb[0].mxu0
  %v3302 = vadd.f32 0.0, %v3301
  %v3303 = vpop.f32.mrb[0].mxu0
  %3304 = vmatprep.mubr.f32.mxu0 0.0
  %3305 = vmatmul.mubr.f32.gmra.mrb[0].mxu0 %v3032
  %v3306 = vpop.f32.mrb[0].mxu0
  %v3307 = vadd.f32 0.0, %v3306
  %v3308 = vpop.f32.mrb[0].mxu0
  %3309 = vmatprep.mubr.f32.mxu0 0.0
  %3310 = vmatmul.mubr.f32.gmra.mrb[0].mxu0 %v3035
  %v3311 = vpop.f32.mrb[0].mxu0
  %v3312 = vadd.f32 0.0, %v3311
  %v3313 = vpop.f32.mrb[0].mxu0
  %3314 = vmatprep.mubr.f32.mxu0 0.0
  %3315 = vmatmul.mubr.f32.gmra.mrb[0].mxu0 %v3038
  %v3316 = vpop.f32.mrb[0].mxu0
  %v3317 = vadd.f32 0.0, %v3316
  %v3318 = vpop.f32.mrb[0].mxu0
  %3319 = vmatprep.mubr.f32.mxu0 0.0
  %3320 = vmatmul.mubr.f32.gmra.mrb[0].mxu0 %v3041
  %v3321 = vpop.f32.mrb[0].mxu0
  %v3322 = vadd.f32 0.0, %v3321
  %v3323 = vpop.f32.mrb[0].mxu0
  %3324 = vmatprep.mubr.f32.mxu0 0.0
  %3325 = vmatmul.mubr.f32.gmra.mrb[0].mxu0 %v3044
  %v3326 = vpop.f32.mrb[0].mxu0
  %v3327 = vadd.f32 0.0, %v3326
  %v3328 = vpop.f32.mrb[0].mxu0
  %3329 = vmatprep.mubr.f32.mxu0 0.0
  %3330 = vmatmul.mubr.f32.gmra.mrb[0].mxu0 %v3047
  %v3331 = vpop.f32.mrb[0].mxu0
  %v3332 = vadd.f32 0.0, %v3331
  %v3333 = vpop.f32.mrb[0].mxu0
  %3334 = vmatprep.mubr.f32.mxu0 0.0
  %3335 = vmatmul.mubr.f32.gmra.mrb[0].mxu0 %v3050
  %v3336 = vpop.f32.mrb[0].mxu0
  %v3337 = vadd.f32 0.0, %v3336
  %v3338 = vpop.f32.mrb[0].mxu0
  %3339 = vmatprep.mubr.f32.mxu0 0.0
  %3340 = vmatmul.mubr.f32.gmra.mrb[0].mxu0 %v3053
  %v3341 = vpop.f32.mrb[0].mxu0
  %v3342 = vadd.f32 0.0, %v3341
  %v3343 = vpop.f32.mrb[0].mxu0
  %3344 = vmatprep.mubr.f32.mxu0 0.0
  %3345 = vmatmul.mubr.f32.gmra.mrb[0].mxu0 %v3056
  %v3346 = vpop.f32.mrb[0].mxu0
  %v3347 = vadd.f32 0.0, %v3346
  %v3348 = vpop.f32.mrb[0].mxu0
  %3349 = vmatprep.mubr.f32.mxu0 0.0
  %3350 = vmatmul.mubr.f32.gmra.mrb[0].mxu0 %v3059
  %v3351 = vpop.f32.mrb[0].mxu0
  %v3352 = vadd.f32 0.0, %v3351
  %v3353 = vpop.f32.mrb[0].mxu0
  %3354 = vmatprep.mubr.f32.mxu0 0.0
  %3355 = vmatmul.mubr.f32.gmra.mrb[0].mxu0 %v3062
  %v3356 = vpop.f32.mrb[0].mxu0
  %v3357 = vadd.f32 0.0, %v3356
  %v3358 = vpop.f32.mrb[0].mxu0
  %3359 = vmatprep.mubr.f32.mxu0 0.0
  %3360 = vmatmul.mubr.f32.gmra.mrb[0].mxu0 %v3065
  %v3361 = vpop.f32.mrb[0].mxu0
  %v3362 = vadd.f32 0.0, %v3361
  %v3363 = vpop.f32.mrb[0].mxu0
  %3364 = vmatprep.mubr.f32.mxu0 0.0
  %3365 = vmatmul.mubr.f32.gmra.mrb[0].mxu0 %v3068
  %v3366 = vpop.f32.mrb[0].mxu0
  %v3367 = vadd.f32 0.0, %v3366
  %v3368 = vpop.f32.mrb[0].mxu0
  %3369 = vmatprep.mubr.f32.mxu0 0.0
  %3370 = vmatmul.mubr.f32.gmra.mrb[0].mxu0 %v3071
  %v3371 = vpop.f32.mrb[0].mxu0
  %v3372 = vadd.f32 0.0, %v3371
  %v3373 = vpop.f32.mrb[0].mxu0
  %3374 = vmatprep.mubr.f32.mxu0 0.0
  %3375 = vmatmul.mubr.f32.gmra.mrb[0].mxu0 %v3074
  %v3376 = vpop.f32.mrb[0].mxu0
  %v3377 = vadd.f32 0.0, %v3376
  %v3378 = vpop.f32.mrb[0].mxu0
  %3379 = vmatprep.mubr.f32.mxu0 0.0
  %3380 = vmatmul.mubr.f32.gmra.mrb[0].mxu0 %v3077
  %v3381 = vpop.f32.mrb[0].mxu0
  %v3382 = vadd.f32 0.0, %v3381
  %v3383 = vpop.f32.mrb[0].mxu0
  %3384 = vmatprep.mubr.f32.mxu0 0.0
  %3385 = vmatmul.mubr.f32.gmra.mrb[0].mxu0 %v3080
  %v3386 = vpop.f32.mrb[0].mxu0
  %v3387 = vadd.f32 0.0, %v3386
  %v3388 = vpop.f32.mrb[0].mxu0
  %3389 = vmatprep.mubr.f32.mxu0 0.0
  %3390 = vmatmul.mubr.f32.gmra.mrb[0].mxu0 %v3083
  %v3391 = vpop.f32.mrb[0].mxu0
  %v3392 = vadd.f32 0.0, %v3391
  %v3393 = vpop.f32.mrb[0].mxu0
  %3394 = vmatprep.mubr.f32.mxu0 0.0
  %3395 = vmatmul.mubr.f32.gmra.mrb[0].mxu0 %v3086
  %v3396 = vpop.f32.mrb[0].mxu0
  %v3397 = vadd.f32 0.0, %v3396
  %v3398 = vpop.f32.mrb[0].mxu0
  %3399 = vmatprep.mubr.f32.mxu0 0.0
  %3400 = vmatmul.mubr.f32.gmra.mrb[0].mxu0 %v3089
  %v3401 = vpop.f32.mrb[0].mxu0
  %v3402 = vadd.f32 0.0, %v3401
  %v3403 = vpop.f32.mrb[0].mxu0
  %3404 = vmatprep.mubr.f32.mxu0 0.0
  %3405 = vmatmul.mubr.f32.gmra.mrb[0].mxu0 %v3092
  %v3406 = vpop.f32.mrb[0].mxu0
  %v3407 = vadd.f32 0.0, %v3406
  %v3408 = vpop.f32.mrb[0].mxu0
  %3409 = vmatprep.mubr.f32.mxu0 0.0
  %3410 = vmatmul.mubr.f32.gmra.mrb[0].mxu0 %v3095
  %v3411 = vpop.f32.mrb[0].mxu0
  %v3412 = vadd.f32 0.0, %v3411
  %v3413 = vpop.f32.mrb[0].mxu0
  %3414 = vmatprep.mubr.f32.mxu0 0.0
  %3415 = vmatmul.mubr.f32.gmra.mrb[0].mxu0 %v3098
  %v3416 = vpop.f32.mrb[0].mxu0
  %v3417 = vadd.f32 0.0, %v3416
  %v3418 = vpop.f32.mrb[0].mxu0
  %3419 = vmatprep.mubr.f32.mxu0 0.0
  %3420 = vmatmul.mubr.f32.gmra.mrb[0].mxu0 %v3101
  %v3421 = vpop.f32.mrb[0].mxu0
  %v3422 = vadd.f32 0.0, %v3421
  %v3423 = vpop.f32.mrb[0].mxu0
  %3424 = vmatprep.mubr.f32.mxu0 0.0
  %3425 = vmatmul.mubr.f32.gmra.mrb[0].mxu0 %v3104
  %v3426 = vpop.f32.mrb[0].mxu0
  %v3427 = vadd.f32 0.0, %v3426
  %v3428 = vpop.f32.mrb[0].mxu0
  %3429 = vmatprep.mubr.f32.mxu0 0.0
  %3430 = vmatmul.mubr.f32.gmra.mrb[0].mxu0 %v3107
  %v3431 = vpop.f32.mrb[0].mxu0
  %v3432 = vadd.f32 0.0, %v3431
  %v3433 = vpop.f32.mrb[0].mxu0
  %3434 = vmatprep.mubr.f32.mxu0 0.0
  %3435 = vmatmul.mubr.f32.gmra.mrb[0].mxu0 %v3110
  %v3436 = vpop.f32.mrb[0].mxu0
  %v3437 = vadd.f32 0.0, %v3436
  %v3438 = vpop.f32.mrb[0].mxu0
  %3439 = vmatprep.mubr.f32.mxu0 0.0
  %3440 = vmatmul.mubr.f32.gmra.mrb[0].mxu0 %v3113
  %v3441 = vpop.f32.mrb[0].mxu0
  %v3442 = vadd.f32 0.0, %v3441
  %v3443 = vpop.f32.mrb[0].mxu0
  %3444 = vmatprep.mubr.f32.mxu0 0.0
  %3445 = vmatmul.mubr.f32.gmra.mrb[0].mxu0 %v3116
  %v3446 = vpop.f32.mrb[0].mxu0
  %v3447 = vadd.f32 0.0, %v3446
  %v3448 = vpop.f32.mrb[0].mxu0
  %3449 = vmatprep.mubr.f32.mxu0 0.0
  %3450 = vmatmul.mubr.f32.gmra.mrb[0].mxu0 %v3119
  %v3451 = vpop.f32.mrb[0].mxu0
  %v3452 = vadd.f32 0.0, %v3451
  %v3453 = vpop.f32.mrb[0].mxu0
  %3454 = vmatprep.mubr.f32.mxu0 0.0
  %3455 = vmatmul.mubr.f32.gmra.mrb[0].mxu0 %v3122
  %v3456 = vpop.f32.mrb[0].mxu0
  %v3457 = vadd.f32 0.0, %v3456
  %v3458 = vpop.f32.mrb[0].mxu0
  %3459 = vmatprep.mubr.f32.mxu0 0.0
  %3460 = vmatmul.mubr.f32.gmra.mrb[0].mxu0 %v3125
  %v3461 = vpop.f32.mrb[0].mxu0
  %v3462 = vadd.f32 0.0, %v3461
  %v3463 = vpop.f32.mrb[0].mxu0
  %3464 = vmatprep.mubr.f32.mxu0 0.0
  %3465 = vmatmul.mubr.f32.gmra.mrb[0].mxu0 %v3128
  %v3466 = vpop.f32.mrb[0].mxu0
  %v3467 = vadd.f32 0.0, %v3466
  %v3468 = vpop.f32.mrb[0].mxu0
  %3469 = vmatprep.mubr.f32.mxu0 0.0
  %3470 = vmatmul.mubr.f32.gmra.mrb[0].mxu0 %v3131
  %v3471 = vpop.f32.mrb[0].mxu0
  %v3472 = vadd.f32 0.0, %v3471
  %v3473 = vpop.f32.mrb[0].mxu0
  %3474 = vmatprep.mubr.f32.mxu0 0.0
  %3475 = vmatmul.mubr.f32.gmra.mrb[0].mxu0 %v3134
  %v3476 = vpop.f32.mrb[0].mxu0
  %v3477 = vadd.f32 0.0, %v3476
  %v3478 = vpop.f32.mrb[0].mxu0
  %3479 = vmatprep.mubr.f32.mxu0 0.0
  %3480 = vmatmul.mubr.f32.gmra.mrb[0].mxu0 %v3137
  %v3481 = vpop.f32.mrb[0].mxu0
  %v3482 = vadd.f32 0.0, %v3481
  %v3483 = vpop.f32.mrb[0].mxu0
  %3484 = vmatprep.mubr.f32.mxu0 0.0
  %3485 = vmatmul.mubr.f32.gmra.mrb[0].mxu0 %v3140
  %v3486 = vpop.f32.mrb[0].mxu0
  %v3487 = vadd.f32 0.0, %v3486
  %v3488 = vpop.f32.mrb[0].mxu0
  %3489 = vmatprep.mubr.f32.mxu0 0.0
  %3490 = vmatmul.mubr.f32.gmra.mrb[0].mxu0 %v3143
  %v3491 = vpop.f32.mrb[0].mxu0
  %v3492 = vadd.f32 0.0, %v3491
  %v3493 = vpop.f32.mrb[0].mxu0
  %3494 = vmatprep.mubr.f32.mxu0 0.0
  %3495 = vmatmul.mubr.f32.gmra.mrb[0].mxu0 %v3146
  %v3496 = vpop.f32.mrb[0].mxu0
  %v3497 = vadd.f32 0.0, %v3496
  %v3498 = vpop.f32.mrb[0].mxu0
  %3499 = vmatprep.mubr.f32.mxu0 0.0
  %3500 = vmatmul.mubr.f32.gmra.mrb[0].mxu0 %v3149
  %v3501 = vpop.f32.mrb[0].mxu0
  %v3502 = vadd.f32 0.0, %v3501
  %v3503 = vpop.f32.mrb[0].mxu0
  %3504 = vmatprep.mubr.f32.mxu0 0.0
  %3505 = vmatmul.mubr.f32.gmra.mrb[0].mxu0 %v3152
  %v3506 = vpop.f32.mrb[0].mxu0
  %v3507 = vadd.f32 0.0, %v3506
  %v3508 = vpop.f32.mrb[0].mxu0
  %3509 = vmatprep.mubr.f32.mxu0 0.0
  %3510 = vmatmul.mubr.f32.gmra.mrb[0].mxu0 %v3155
  %v3511 = vpop.f32.mrb[0].mxu0
  %v3512 = vadd.f32 0.0, %v3511
  %v3513 = vpop.f32.mrb[0].mxu0
  %3514 = vmatprep.mubr.f32.mxu0 0.0
  %3515 = vmatmul.mubr.f32.gmra.mrb[0].mxu0 %v3158
  %v3516 = vpop.f32.mrb[0].mxu0
  %v3517 = vadd.f32 0.0, %v3516
  %v3518 = vpop.f32.mrb[0].mxu0
  %3519 = vmatprep.mubr.f32.mxu0 0.0
  %3520 = vmatmul.mubr.f32.gmra.mrb[0].mxu0 %v3161
  %v3521 = vpop.f32.mrb[0].mxu0
  %v3522 = vadd.f32 0.0, %v3521
  %v3523 = vpop.f32.mrb[0].mxu0
  %3524 = vmatprep.mubr.f32.mxu0 0.0
  %3525 = vmatmul.mubr.f32.gmra.mrb[0].mxu0 %v3164
  %v3526 = vpop.f32.mrb[0].mxu0
  %v3527 = vadd.f32 0.0, %v3526
  %v3528 = vpop.f32.mrb[0].mxu0
  %3529 = vmatprep.mubr.f32.mxu0 0.0
  %3530 = vmatmul.mubr.f32.gmra.mrb[0].mxu0 %v3167
  %v3531 = vpop.f32.mrb[0].mxu0
  %v3532 = vadd.f32 0.0, %v3531
  %v3533 = vpop.f32.mrb[0].mxu0
  %3534 = vmatprep.mubr.f32.mxu0 0.0
  %3535 = vmatmul.mubr.f32.gmra.mrb[0].mxu0 %v3170
  %v3536 = vpop.f32.mrb[0].mxu0
  %v3537 = vadd.f32 0.0, %v3536
  %v3538 = vpop.f32.mrb[0].mxu0
  %3539 = vmatprep.mubr.f32.mxu0 0.0
  %3540 = vmatmul.mubr.f32.gmra.mrb[0].mxu0 %v3173
  %v3541 = vpop.f32.mrb[0].mxu0
  %v3542 = vadd.f32 0.0, %v3541
  %v3543 = vpop.f32.mrb[0].mxu0
  %3544 = vmatprep.mubr.f32.mxu0 0.0
  %3545 = vmatmul.mubr.f32.gmra.mrb[0].mxu0 %v3176
  %v3546 = vpop.f32.mrb[0].mxu0
  %v3547 = vadd.f32 0.0, %v3546
  %v3548 = vpop.f32.mrb[0].mxu0
  %3549 = vmatprep.mubr.f32.mxu0 0.0
  %3550 = vmatmul.mubr.f32.gmra.mrb[0].mxu0 %v3179
  %v3551 = vpop.f32.mrb[0].mxu0
  %v3552 = vadd.f32 0.0, %v3551
  %v3553 = vpop.f32.mrb[0].mxu0
  %3554 = vmatprep.mubr.f32.mxu0 0.0
  %3555 = vmatmul.mubr.f32.gmra.mrb[0].mxu0 %v3182
  %v3556 = vpop.f32.mrb[0].mxu0
  %v3557 = vadd.f32 0.0, %v3556
  %v3558 = vpop.f32.mrb[0].mxu0
  %3559 = vmatprep.mubr.f32.mxu0 0.0
  %3560 = vmatmul.mubr.f32.gmra.mrb[0].mxu0 %v3185
  %v3561 = vpop.f32.mrb[0].mxu0
  %v3562 = vadd.f32 0.0, %v3561
  %v3563 = vpop.f32.mrb[0].mxu0
  %3564 = vmatprep.mubr.f32.mxu0 0.0
  %3565 = vmatmul.mubr.f32.gmra.mrb[0].mxu0 %v3188
  %v3566 = vpop.f32.mrb[0].mxu0
  %v3567 = vadd.f32 0.0, %v3566
  %v3568 = vpop.f32.mrb[0].mxu0
  %3569 = vmatprep.mubr.f32.mxu0 0.0
  %3570 = vmatmul.mubr.f32.gmra.mrb[0].mxu0 %v3191
  %v3571 = vpop.f32.mrb[0].mxu0
  %v3572 = vadd.f32 0.0, %v3571
  %v3573 = vpop.f32.mrb[0].mxu0
  %3574 = vmatprep.mubr.f32.mxu0 0.0
  %3575 = vmatmul.mubr.f32.gmra.mrb[0].mxu0 %v3194
  %v3576 = vpop.f32.mrb[0].mxu0
  %v3577 = vadd.f32 0.0, %v3576
  %v3578 = vpop.f32.mrb[0].mxu0
  %3579 = vmatprep.mubr.f32.mxu0 0.0
  %3580 = vmatmul.mubr.f32.gmra.mrb[0].mxu0 %v3197
  %v3581 = vpop.f32.mrb[0].mxu0
  %v3582 = vadd.f32 0.0, %v3581
  %v3583 = vpop.f32.mrb[0].mxu0
  %3584 = vmatprep.mubr.f32.mxu0 0.0
  %3585 = vmatmul.mubr.f32.gmra.mrb[0].mxu0 %v3200
  %v3586 = vpop.f32.mrb[0].mxu0
  %v3587 = vadd.f32 0.0, %v3586
  %v3588 = vpop.f32.mrb[0].mxu0
  %3589 = vdwg.mxu0
  %v3590 = vadd.f32 %v2880, %v3272
  %v3591 = vadd.f32 %v2881, %v3277
  %v3592 = vadd.f32 %v2882, %v3282
  %v3593 = vadd.f32 %v2883, %v3287
  %v3594 = vadd.f32 %v2884, %v3292
  %v3595 = vadd.f32 %v2885, %v3297
  %v3596 = vadd.f32 %v2886, %v3302
  %v3597 = vadd.f32 %v2887, %v3307
  %v3598 = vadd.f32 %v2888, %v3312
  %v3599 = vadd.f32 %v2889, %v3317
  %v3600 = vadd.f32 %v2890, %v3322
  %v3601 = vadd.f32 %v2891, %v3327
  %v3602 = vadd.f32 %v2892, %v3332
  %v3603 = vadd.f32 %v2893, %v3337
  %v3604 = vadd.f32 %v2894, %v3342
  %v3605 = vadd.f32 %v2895, %v3347
  %v3606 = vadd.f32 %v2896, %v3352
  %v3607 = vadd.f32 %v2897, %v3357
  %v3608 = vadd.f32 %v2898, %v3362
  %v3609 = vadd.f32 %v2899, %v3367
  %v3610 = vadd.f32 %v2900, %v3372
  %v3611 = vadd.f32 %v2901, %v3377
  %v3612 = vadd.f32 %v2902, %v3382
  %v3613 = vadd.f32 %v2903, %v3387
  %v3614 = vadd.f32 %v2904, %v3392
  %v3615 = vadd.f32 %v2905, %v3397
  %v3616 = vadd.f32 %v2906, %v3402
  %v3617 = vadd.f32 %v2907, %v3407
  %v3618 = vadd.f32 %v2908, %v3412
  %v3619 = vadd.f32 %v2909, %v3417
  %v3620 = vadd.f32 %v2910, %v3422
  %v3621 = vadd.f32 %v2911, %v3427
  %v3622 = vadd.f32 %v2912, %v3432
  %v3623 = vadd.f32 %v2913, %v3437
  %v3624 = vadd.f32 %v2914, %v3442
  %v3625 = vadd.f32 %v2915, %v3447
  %v3626 = vadd.f32 %v2916, %v3452
  %v3627 = vadd.f32 %v2917, %v3457
  %v3628 = vadd.f32 %v2918, %v3462
  %v3629 = vadd.f32 %v2919, %v3467
  %v3630 = vadd.f32 %v2920, %v3472
  %v3631 = vadd.f32 %v2921, %v3477
  %v3632 = vadd.f32 %v2922, %v3482
  %v3633 = vadd.f32 %v2923, %v3487
  %v3634 = vadd.f32 %v2924, %v3492
  %v3635 = vadd.f32 %v2925, %v3497
  %v3636 = vadd.f32 %v2926, %v3502
  %v3637 = vadd.f32 %v2927, %v3507
  %v3638 = vadd.f32 %v2928, %v3512
  %v3639 = vadd.f32 %v2929, %v3517
  %v3640 = vadd.f32 %v2930, %v3522
  %v3641 = vadd.f32 %v2931, %v3527
  %v3642 = vadd.f32 %v2932, %v3532
  %v3643 = vadd.f32 %v2933, %v3537
  %v3644 = vadd.f32 %v2934, %v3542
  %v3645 = vadd.f32 %v2935, %v3547
  %v3646 = vadd.f32 %v2936, %v3552
  %v3647 = vadd.f32 %v2937, %v3557
  %v3648 = vadd.f32 %v2938, %v3562
  %v3649 = vadd.f32 %v2939, %v3567
  %v3650 = vadd.f32 %v2940, %v3572
  %v3651 = vadd.f32 %v2941, %v3577
  %v3652 = vadd.f32 %v2942, %v3582
  %v3653 = vadd.f32 %v2943, %v3587
  %v3654 = vld [vmem:[%s102 + $0x9] sm:$0xff]
  %v3655 = vld [vmem:[%s102 + $0x11] sm:$0xff]
  %v3656 = vld [vmem:[%s102 + $0x29] sm:$0xff]
  %v3657 = vld [vmem:[%s102 + $0x31] sm:$0xff]
  %v3658 = vld [vmem:[%s102 + $0x49] sm:$0xff]
  %v3659 = vld [vmem:[%s102 + $0x51] sm:$0xff]
  %v3660 = vld [vmem:[%s102 + $0x69] sm:$0xff]
  %v3661 = vld [vmem:[%s102 + $0x71] sm:$0xff]
  %v3662 = vld [vmem:[%s102 + $0x89] sm:$0xff]
  %v3663 = vld [vmem:[%s102 + $0x91] sm:$0xff]
  %v3664 = vld [vmem:[%s102 + $0xa9] sm:$0xff]
  %v3665 = vld [vmem:[%s102 + $0xb1] sm:$0xff]
  %v3666 = vld [vmem:[%s102 + $0xc9] sm:$0xff]
  %v3667 = vld [vmem:[%s102 + $0xd1] sm:$0xff]
  %v3668 = vld [vmem:[%s102 + $0xe9] sm:$0xff]
  %v3669 = vld [vmem:[%s102 + $0xf1] sm:$0xff]
  %v3670 = vld [vmem:[%s102 + $0x109] sm:$0xff]
  %v3671 = vld [vmem:[%s102 + $0x111] sm:$0xff]
  %v3672 = vld [vmem:[%s102 + $0x129] sm:$0xff]
  %v3673 = vld [vmem:[%s102 + $0x131] sm:$0xff]
  %v3674 = vld [vmem:[%s102 + $0x149] sm:$0xff]
  %v3675 = vld [vmem:[%s102 + $0x151] sm:$0xff]
  %v3676 = vld [vmem:[%s102 + $0x169] sm:$0xff]
  %v3677 = vld [vmem:[%s102 + $0x171] sm:$0xff]
  %v3678 = vld [vmem:[%s102 + $0x189] sm:$0xff]
  %v3679 = vld [vmem:[%s102 + $0x191] sm:$0xff]
  %v3680 = vld [vmem:[%s102 + $0x1a9] sm:$0xff]
  %v3681 = vld [vmem:[%s102 + $0x1b1] sm:$0xff]
  %v3682 = vld [vmem:[%s102 + $0x1c9] sm:$0xff]
  %v3683 = vld [vmem:[%s102 + $0x1d1] sm:$0xff]
  %v3684 = vld [vmem:[%s102 + $0x1e9] sm:$0xff]
  %v3685 = vld [vmem:[%s102 + $0x1f1] sm:$0xff]
  %v3686 = vld [vmem:[%s102 + $0x249] sm:$0xff]
  %v3687 = vld [vmem:[%s102 + $0x251] sm:$0xff]
  %v3688 = vld [vmem:[%s102 + $0x269] sm:$0xff]
  %v3689 = vld [vmem:[%s102 + $0x271] sm:$0xff]
  %v3690 = vld [vmem:[%s102 + $0x289] sm:$0xff]
  %v3691 = vld [vmem:[%s102 + $0x291] sm:$0xff]
  %v3692 = vld [vmem:[%s102 + $0x2a9] sm:$0xff]
  %v3693 = vld [vmem:[%s102 + $0x2b1] sm:$0xff]
  %v3694 = vld [vmem:[%s102 + $0x2c9] sm:$0xff]
  %v3695 = vld [vmem:[%s102 + $0x2d1] sm:$0xff]
  %v3696 = vld [vmem:[%s102 + $0x2e9] sm:$0xff]
  %v3697 = vld [vmem:[%s102 + $0x2f1] sm:$0xff]
  %v3698 = vld [vmem:[%s102 + $0x309] sm:$0xff]
  %v3699 = vld [vmem:[%s102 + $0x311] sm:$0xff]
  %v3700 = vld [vmem:[%s102 + $0x329] sm:$0xff]
  %v3701 = vld [vmem:[%s102 + $0x331] sm:$0xff]
  %v3702 = vld [vmem:[%s102 + $0x349] sm:$0xff]
  %v3703 = vld [vmem:[%s102 + $0x351] sm:$0xff]
  %v3704 = vld [vmem:[%s102 + $0x369] sm:$0xff]
  %v3705 = vld [vmem:[%s102 + $0x371] sm:$0xff]
  %v3706 = vld [vmem:[%s102 + $0x389] sm:$0xff]
  %v3707 = vld [vmem:[%s102 + $0x391] sm:$0xff]
  %v3708 = vld [vmem:[%s102 + $0x3a9] sm:$0xff]
  %v3709 = vld [vmem:[%s102 + $0x3b1] sm:$0xff]
  %v3710 = vld [vmem:[%s102 + $0x3c9] sm:$0xff]
  %v3711 = vld [vmem:[%s102 + $0x3d1] sm:$0xff]
  %v3712 = vld [vmem:[%s102 + $0x3e9] sm:$0xff]
  %v3713 = vld [vmem:[%s102 + $0x3f1] sm:$0xff]
  %v3714 = vld [vmem:[%s102 + $0x409] sm:$0xff]
  %v3715 = vld [vmem:[%s102 + $0x411] sm:$0xff]
  %v3716 = vld [vmem:[%s102 + $0x429] sm:$0xff]
  %v3717 = vld [vmem:[%s102 + $0x431] sm:$0xff]
  %s3718 = scalar_lea.vmem %s1, 20
  %v3719 = vld [vmem:[%s3718] sm:$0xf]
  %v3721 = vsel %vm84, %v3654, 0
  %v3724 = vsel %vm84, %v3655, 0
  %v3727 = vsel %vm84, %v3656, 0
  %v3730 = vsel %vm84, %v3657, 0
  %v3733 = vsel %vm84, %v3658, 0
  %v3736 = vsel %vm84, %v3659, 0
  %v3739 = vsel %vm84, %v3660, 0
  %v3742 = vsel %vm84, %v3661, 0
  %v3745 = vsel %vm84, %v3662, 0
  %v3748 = vsel %vm84, %v3663, 0
  %v3751 = vsel %vm84, %v3664, 0
  %v3754 = vsel %vm84, %v3665, 0
  %v3757 = vsel %vm84, %v3666, 0
  %v3760 = vsel %vm84, %v3667, 0
  %v3763 = vsel %vm84, %v3668, 0
  %v3766 = vsel %vm84, %v3669, 0
  %v3769 = vsel %vm84, %v3670, 0
  %v3772 = vsel %vm84, %v3671, 0
  %v3775 = vsel %vm84, %v3672, 0
  %v3778 = vsel %vm84, %v3673, 0
  %v3781 = vsel %vm84, %v3674, 0
  %v3784 = vsel %vm84, %v3675, 0
  %v3787 = vsel %vm84, %v3676, 0
  %v3790 = vsel %vm84, %v3677, 0
  %v3793 = vsel %vm84, %v3678, 0
  %v3796 = vsel %vm84, %v3679, 0
  %v3799 = vsel %vm84, %v3680, 0
  %v3802 = vsel %vm84, %v3681, 0
  %v3805 = vsel %vm84, %v3682, 0
  %v3808 = vsel %vm84, %v3683, 0
  %v3811 = vsel %vm84, %v3684, 0
  %v3814 = vsel %vm84, %v3685, 0
  %v3817 = vsel %vm84, %v3686, 0
  %v3820 = vsel %vm84, %v3687, 0
  %v3823 = vsel %vm84, %v3688, 0
  %v3826 = vsel %vm84, %v3689, 0
  %v3829 = vsel %vm84, %v3690, 0
  %v3832 = vsel %vm84, %v3691, 0
  %v3835 = vsel %vm84, %v3692, 0
  %v3838 = vsel %vm84, %v3693, 0
  %v3841 = vsel %vm84, %v3694, 0
  %v3844 = vsel %vm84, %v3695, 0
  %v3847 = vsel %vm84, %v3696, 0
  %v3850 = vsel %vm84, %v3697, 0
  %v3853 = vsel %vm84, %v3698, 0
  %v3856 = vsel %vm84, %v3699, 0
  %v3859 = vsel %vm84, %v3700, 0
  %v3862 = vsel %vm84, %v3701, 0
  %v3865 = vsel %vm84, %v3702, 0
  %v3868 = vsel %vm84, %v3703, 0
  %v3871 = vsel %vm84, %v3704, 0
  %v3874 = vsel %vm84, %v3705, 0
  %v3877 = vsel %vm84, %v3706, 0
  %v3880 = vsel %vm84, %v3707, 0
  %v3883 = vsel %vm84, %v3708, 0
  %v3886 = vsel %vm84, %v3709, 0
  %v3889 = vsel %vm84, %v3710, 0
  %v3892 = vsel %vm84, %v3711, 0
  %v3895 = vsel %vm84, %v3712, 0
  %v3898 = vsel %vm84, %v3713, 0
  %v3901 = vsel %vm84, %v3714, 0
  %v3904 = vsel %vm84, %v3715, 0
  %v3907 = vsel %vm84, %v3716, 0
  %v3910 = vsel %vm84, %v3717, 0
  %v3913 = vsel %vm555, %v3719, 0
  %3915 = vmatprep.subr.mxu0 0.0
  %3916 = vmatpush1.msra.mxu0 %v3913
  %3917 = vmatprep.subr.mxu0 0.0
  %3918 = vmatpush1.msra.mxu0 0.0
  %3919 = vmatprep.subr.mxu0 0.0
  %3920 = vmatpush1.msra.mxu0 0.0
  %3921 = vmatprep.subr.mxu0 0.0
  %3922 = vmatpush1.msra.mxu0 0.0
  %3923 = vmatprep.subr.mxu0 0.0
  %3924 = vmatpush1.msra.mxu0 0.0
  %3925 = vmatprep.subr.mxu0 0.0
  %3926 = vmatpush1.msra.mxu0 0.0
  %3927 = vmatprep.subr.mxu0 0.0
  %3928 = vmatpush1.msra.mxu0 0.0
  %3929 = vmatprep.subr.mxu0 0.0
  %3930 = vmatpush1.msra.mxu0 0.0
  %3931 = vmatprep.subr.mxu0 0.0
  %3932 = vmatpush1.msra.mxu0 0.0
  %3933 = vmatprep.subr.mxu0 0.0
  %3934 = vmatpush1.msra.mxu0 0.0
  %3935 = vmatprep.subr.mxu0 0.0
  %3936 = vmatpush1.msra.mxu0 0.0
  %3937 = vmatprep.subr.mxu0 0.0
  %3938 = vmatpush1.msra.mxu0 0.0
  %3939 = vmatprep.subr.mxu0 0.0
  %3940 = vmatpush1.msra.mxu0 0.0
  %3941 = vmatprep.subr.mxu0 0.0
  %3942 = vmatpush1.msra.mxu0 0.0
  %3943 = vmatprep.subr.mxu0 0.0
  %3944 = vmatpush1.msra.mxu0 0.0
  %3945 = vmatprep.subr.mxu0 0.0
  %3946 = vmatpush1.msra.mxu0 0.0
  %3947 = vmatprep.subr.mxu0 0.0
  %3948 = vmatpush1.msra.mxu0 0.0
  %3949 = vmatprep.subr.mxu0 0.0
  %3950 = vmatpush1.msra.mxu0 0.0
  %3951 = vmatprep.subr.mxu0 0.0
  %3952 = vmatpush1.msra.mxu0 0.0
  %3953 = vmatprep.subr.mxu0 0.0
  %3954 = vmatpush1.msra.mxu0 0.0
  %3955 = vmatprep.subr.mxu0 0.0
  %3956 = vmatpush1.msra.mxu0 0.0
  %3957 = vmatprep.subr.mxu0 0.0
  %3958 = vmatpush1.msra.mxu0 0.0
  %3959 = vmatprep.subr.mxu0 0.0
  %3960 = vmatpush1.msra.mxu0 0.0
  %3961 = vmatprep.subr.mxu0 0.0
  %3962 = vmatpush1.msra.mxu0 0.0
  %3963 = vmatprep.subr.mxu0 0.0
  %3964 = vmatpush1.msra.mxu0 0.0
  %3965 = vmatprep.subr.mxu0 0.0
  %3966 = vmatpush1.msra.mxu0 0.0
  %3967 = vmatprep.subr.mxu0 0.0
  %3968 = vmatpush1.msra.mxu0 0.0
  %3969 = vmatprep.subr.mxu0 0.0
  %3970 = vmatpush1.msra.mxu0 0.0
  %3971 = vmatprep.subr.mxu0 0.0
  %3972 = vmatpush1.msra.mxu0 0.0
  %3973 = vmatprep.subr.mxu0 0.0
  %3974 = vmatpush1.msra.mxu0 0.0
  %3975 = vmatprep.subr.mxu0 0.0
  %3976 = vmatpush1.msra.mxu0 0.0
  %3977 = vmatprep.subr.mxu0 0.0
  %3978 = vmatpush1.msra.mxu0 0.0
  %3979 = vmatprep.mubr.f32.mxu0 0.0
  %3980 = vmatmul.mubr.f32.gmra.mrb[0].mxu0 %v3721
  %v3981 = vpop.f32.mrb[0].mxu0
  %v3982 = vadd.f32 0.0, %v3981
  %v3983 = vpop.f32.mrb[0].mxu0
  %3984 = vmatprep.mubr.f32.mxu0 0.0
  %3985 = vmatmul.mubr.f32.gmra.mrb[0].mxu0 %v3724
  %v3986 = vpop.f32.mrb[0].mxu0
  %v3987 = vadd.f32 0.0, %v3986
  %v3988 = vpop.f32.mrb[0].mxu0
  %3989 = vmatprep.mubr.f32.mxu0 0.0
  %3990 = vmatmul.mubr.f32.gmra.mrb[0].mxu0 %v3727
  %v3991 = vpop.f32.mrb[0].mxu0
  %v3992 = vadd.f32 0.0, %v3991
  %v3993 = vpop.f32.mrb[0].mxu0
  %3994 = vmatprep.mubr.f32.mxu0 0.0
  %3995 = vmatmul.mubr.f32.gmra.mrb[0].mxu0 %v3730
  %v3996 = vpop.f32.mrb[0].mxu0
  %v3997 = vadd.f32 0.0, %v3996
  %v3998 = vpop.f32.mrb[0].mxu0
  %3999 = vmatprep.mubr.f32.mxu0 0.0
  %4000 = vmatmul.mubr.f32.gmra.mrb[0].mxu0 %v3733
  %v4001 = vpop.f32.mrb[0].mxu0
  %v4002 = vadd.f32 0.0, %v4001
  %v4003 = vpop.f32.mrb[0].mxu0
  %4004 = vmatprep.mubr.f32.mxu0 0.0
  %4005 = vmatmul.mubr.f32.gmra.mrb[0].mxu0 %v3736
  %v4006 = vpop.f32.mrb[0].mxu0
  %v4007 = vadd.f32 0.0, %v4006
  %v4008 = vpop.f32.mrb[0].mxu0
  %4009 = vmatprep.mubr.f32.mxu0 0.0
  %4010 = vmatmul.mubr.f32.gmra.mrb[0].mxu0 %v3739
  %v4011 = vpop.f32.mrb[0].mxu0
  %v4012 = vadd.f32 0.0, %v4011
  %v4013 = vpop.f32.mrb[0].mxu0
  %4014 = vmatprep.mubr.f32.mxu0 0.0
  %4015 = vmatmul.mubr.f32.gmra.mrb[0].mxu0 %v3742
  %v4016 = vpop.f32.mrb[0].mxu0
  %v4017 = vadd.f32 0.0, %v4016
  %v4018 = vpop.f32.mrb[0].mxu0
  %4019 = vmatprep.mubr.f32.mxu0 0.0
  %4020 = vmatmul.mubr.f32.gmra.mrb[0].mxu0 %v3745
  %v4021 = vpop.f32.mrb[0].mxu0
  %v4022 = vadd.f32 0.0, %v4021
  %v4023 = vpop.f32.mrb[0].mxu0
  %4024 = vmatprep.mubr.f32.mxu0 0.0
  %4025 = vmatmul.mubr.f32.gmra.mrb[0].mxu0 %v3748
  %v4026 = vpop.f32.mrb[0].mxu0
  %v4027 = vadd.f32 0.0, %v4026
  %v4028 = vpop.f32.mrb[0].mxu0
  %4029 = vmatprep.mubr.f32.mxu0 0.0
  %4030 = vmatmul.mubr.f32.gmra.mrb[0].mxu0 %v3751
  %v4031 = vpop.f32.mrb[0].mxu0
  %v4032 = vadd.f32 0.0, %v4031
  %v4033 = vpop.f32.mrb[0].mxu0
  %4034 = vmatprep.mubr.f32.mxu0 0.0
  %4035 = vmatmul.mubr.f32.gmra.mrb[0].mxu0 %v3754
  %v4036 = vpop.f32.mrb[0].mxu0
  %v4037 = vadd.f32 0.0, %v4036
  %v4038 = vpop.f32.mrb[0].mxu0
  %4039 = vmatprep.mubr.f32.mxu0 0.0
  %4040 = vmatmul.mubr.f32.gmra.mrb[0].mxu0 %v3757
  %v4041 = vpop.f32.mrb[0].mxu0
  %v4042 = vadd.f32 0.0, %v4041
  %v4043 = vpop.f32.mrb[0].mxu0
  %4044 = vmatprep.mubr.f32.mxu0 0.0
  %4045 = vmatmul.mubr.f32.gmra.mrb[0].mxu0 %v3760
  %v4046 = vpop.f32.mrb[0].mxu0
  %v4047 = vadd.f32 0.0, %v4046
  %v4048 = vpop.f32.mrb[0].mxu0
  %4049 = vmatprep.mubr.f32.mxu0 0.0
  %4050 = vmatmul.mubr.f32.gmra.mrb[0].mxu0 %v3763
  %v4051 = vpop.f32.mrb[0].mxu0
  %v4052 = vadd.f32 0.0, %v4051
  %v4053 = vpop.f32.mrb[0].mxu0
  %4054 = vmatprep.mubr.f32.mxu0 0.0
  %4055 = vmatmul.mubr.f32.gmra.mrb[0].mxu0 %v3766
  %v4056 = vpop.f32.mrb[0].mxu0
  %v4057 = vadd.f32 0.0, %v4056
  %v4058 = vpop.f32.mrb[0].mxu0
  %4059 = vmatprep.mubr.f32.mxu0 0.0
  %4060 = vmatmul.mubr.f32.gmra.mrb[0].mxu0 %v3769
  %v4061 = vpop.f32.mrb[0].mxu0
  %v4062 = vadd.f32 0.0, %v4061
  %v4063 = vpop.f32.mrb[0].mxu0
  %4064 = vmatprep.mubr.f32.mxu0 0.0
  %4065 = vmatmul.mubr.f32.gmra.mrb[0].mxu0 %v3772
  %v4066 = vpop.f32.mrb[0].mxu0
  %v4067 = vadd.f32 0.0, %v4066
  %v4068 = vpop.f32.mrb[0].mxu0
  %4069 = vmatprep.mubr.f32.mxu0 0.0
  %4070 = vmatmul.mubr.f32.gmra.mrb[0].mxu0 %v3775
  %v4071 = vpop.f32.mrb[0].mxu0
  %v4072 = vadd.f32 0.0, %v4071
  %v4073 = vpop.f32.mrb[0].mxu0
  %4074 = vmatprep.mubr.f32.mxu0 0.0
  %4075 = vmatmul.mubr.f32.gmra.mrb[0].mxu0 %v3778
  %v4076 = vpop.f32.mrb[0].mxu0
  %v4077 = vadd.f32 0.0, %v4076
  %v4078 = vpop.f32.mrb[0].mxu0
  %4079 = vmatprep.mubr.f32.mxu0 0.0
  %4080 = vmatmul.mubr.f32.gmra.mrb[0].mxu0 %v3781
  %v4081 = vpop.f32.mrb[0].mxu0
  %v4082 = vadd.f32 0.0, %v4081
  %v4083 = vpop.f32.mrb[0].mxu0
  %4084 = vmatprep.mubr.f32.mxu0 0.0
  %4085 = vmatmul.mubr.f32.gmra.mrb[0].mxu0 %v3784
  %v4086 = vpop.f32.mrb[0].mxu0
  %v4087 = vadd.f32 0.0, %v4086
  %v4088 = vpop.f32.mrb[0].mxu0
  %4089 = vmatprep.mubr.f32.mxu0 0.0
  %4090 = vmatmul.mubr.f32.gmra.mrb[0].mxu0 %v3787
  %v4091 = vpop.f32.mrb[0].mxu0
  %v4092 = vadd.f32 0.0, %v4091
  %v4093 = vpop.f32.mrb[0].mxu0
  %4094 = vmatprep.mubr.f32.mxu0 0.0
  %4095 = vmatmul.mubr.f32.gmra.mrb[0].mxu0 %v3790
  %v4096 = vpop.f32.mrb[0].mxu0
  %v4097 = vadd.f32 0.0, %v4096
  %v4098 = vpop.f32.mrb[0].mxu0
  %4099 = vmatprep.mubr.f32.mxu0 0.0
  %4100 = vmatmul.mubr.f32.gmra.mrb[0].mxu0 %v3793
  %v4101 = vpop.f32.mrb[0].mxu0
  %v4102 = vadd.f32 0.0, %v4101
  %v4103 = vpop.f32.mrb[0].mxu0
  %4104 = vmatprep.mubr.f32.mxu0 0.0
  %4105 = vmatmul.mubr.f32.gmra.mrb[0].mxu0 %v3796
  %v4106 = vpop.f32.mrb[0].mxu0
  %v4107 = vadd.f32 0.0, %v4106
  %v4108 = vpop.f32.mrb[0].mxu0
  %4109 = vmatprep.mubr.f32.mxu0 0.0
  %4110 = vmatmul.mubr.f32.gmra.mrb[0].mxu0 %v3799
  %v4111 = vpop.f32.mrb[0].mxu0
  %v4112 = vadd.f32 0.0, %v4111
  %v4113 = vpop.f32.mrb[0].mxu0
  %4114 = vmatprep.mubr.f32.mxu0 0.0
  %4115 = vmatmul.mubr.f32.gmra.mrb[0].mxu0 %v3802
  %v4116 = vpop.f32.mrb[0].mxu0
  %v4117 = vadd.f32 0.0, %v4116
  %v4118 = vpop.f32.mrb[0].mxu0
  %4119 = vmatprep.mubr.f32.mxu0 0.0
  %4120 = vmatmul.mubr.f32.gmra.mrb[0].mxu0 %v3805
  %v4121 = vpop.f32.mrb[0].mxu0
  %v4122 = vadd.f32 0.0, %v4121
  %v4123 = vpop.f32.mrb[0].mxu0
  %4124 = vmatprep.mubr.f32.mxu0 0.0
  %4125 = vmatmul.mubr.f32.gmra.mrb[0].mxu0 %v3808
  %v4126 = vpop.f32.mrb[0].mxu0
  %v4127 = vadd.f32 0.0, %v4126
  %v4128 = vpop.f32.mrb[0].mxu0
  %4129 = vmatprep.mubr.f32.mxu0 0.0
  %4130 = vmatmul.mubr.f32.gmra.mrb[0].mxu0 %v3811
  %v4131 = vpop.f32.mrb[0].mxu0
  %v4132 = vadd.f32 0.0, %v4131
  %v4133 = vpop.f32.mrb[0].mxu0
  %4134 = vmatprep.mubr.f32.mxu0 0.0
  %4135 = vmatmul.mubr.f32.gmra.mrb[0].mxu0 %v3814
  %v4136 = vpop.f32.mrb[0].mxu0
  %v4137 = vadd.f32 0.0, %v4136
  %v4138 = vpop.f32.mrb[0].mxu0
  %4139 = vmatprep.mubr.f32.mxu0 0.0
  %4140 = vmatmul.mubr.f32.gmra.mrb[0].mxu0 %v3817
  %v4141 = vpop.f32.mrb[0].mxu0
  %v4142 = vadd.f32 0.0, %v4141
  %v4143 = vpop.f32.mrb[0].mxu0
  %4144 = vmatprep.mubr.f32.mxu0 0.0
  %4145 = vmatmul.mubr.f32.gmra.mrb[0].mxu0 %v3820
  %v4146 = vpop.f32.mrb[0].mxu0
  %v4147 = vadd.f32 0.0, %v4146
  %v4148 = vpop.f32.mrb[0].mxu0
  %4149 = vmatprep.mubr.f32.mxu0 0.0
  %4150 = vmatmul.mubr.f32.gmra.mrb[0].mxu0 %v3823
  %v4151 = vpop.f32.mrb[0].mxu0
  %v4152 = vadd.f32 0.0, %v4151
  %v4153 = vpop.f32.mrb[0].mxu0
  %4154 = vmatprep.mubr.f32.mxu0 0.0
  %4155 = vmatmul.mubr.f32.gmra.mrb[0].mxu0 %v3826
  %v4156 = vpop.f32.mrb[0].mxu0
  %v4157 = vadd.f32 0.0, %v4156
  %v4158 = vpop.f32.mrb[0].mxu0
  %4159 = vmatprep.mubr.f32.mxu0 0.0
  %4160 = vmatmul.mubr.f32.gmra.mrb[0].mxu0 %v3829
  %v4161 = vpop.f32.mrb[0].mxu0
  %v4162 = vadd.f32 0.0, %v4161
  %v4163 = vpop.f32.mrb[0].mxu0
  %4164 = vmatprep.mubr.f32.mxu0 0.0
  %4165 = vmatmul.mubr.f32.gmra.mrb[0].mxu0 %v3832
  %v4166 = vpop.f32.mrb[0].mxu0
  %v4167 = vadd.f32 0.0, %v4166
  %v4168 = vpop.f32.mrb[0].mxu0
  %4169 = vmatprep.mubr.f32.mxu0 0.0
  %4170 = vmatmul.mubr.f32.gmra.mrb[0].mxu0 %v3835
  %v4171 = vpop.f32.mrb[0].mxu0
  %v4172 = vadd.f32 0.0, %v4171
  %v4173 = vpop.f32.mrb[0].mxu0
  %4174 = vmatprep.mubr.f32.mxu0 0.0
  %4175 = vmatmul.mubr.f32.gmra.mrb[0].mxu0 %v3838
  %v4176 = vpop.f32.mrb[0].mxu0
  %v4177 = vadd.f32 0.0, %v4176
  %v4178 = vpop.f32.mrb[0].mxu0
  %4179 = vmatprep.mubr.f32.mxu0 0.0
  %4180 = vmatmul.mubr.f32.gmra.mrb[0].mxu0 %v3841
  %v4181 = vpop.f32.mrb[0].mxu0
  %v4182 = vadd.f32 0.0, %v4181
  %v4183 = vpop.f32.mrb[0].mxu0
  %4184 = vmatprep.mubr.f32.mxu0 0.0
  %4185 = vmatmul.mubr.f32.gmra.mrb[0].mxu0 %v3844
  %v4186 = vpop.f32.mrb[0].mxu0
  %v4187 = vadd.f32 0.0, %v4186
  %v4188 = vpop.f32.mrb[0].mxu0
  %4189 = vmatprep.mubr.f32.mxu0 0.0
  %4190 = vmatmul.mubr.f32.gmra.mrb[0].mxu0 %v3847
  %v4191 = vpop.f32.mrb[0].mxu0
  %v4192 = vadd.f32 0.0, %v4191
  %v4193 = vpop.f32.mrb[0].mxu0
  %4194 = vmatprep.mubr.f32.mxu0 0.0
  %4195 = vmatmul.mubr.f32.gmra.mrb[0].mxu0 %v3850
  %v4196 = vpop.f32.mrb[0].mxu0
  %v4197 = vadd.f32 0.0, %v4196
  %v4198 = vpop.f32.mrb[0].mxu0
  %4199 = vmatprep.mubr.f32.mxu0 0.0
  %4200 = vmatmul.mubr.f32.gmra.mrb[0].mxu0 %v3853
  %v4201 = vpop.f32.mrb[0].mxu0
  %v4202 = vadd.f32 0.0, %v4201
  %v4203 = vpop.f32.mrb[0].mxu0
  %4204 = vmatprep.mubr.f32.mxu0 0.0
  %4205 = vmatmul.mubr.f32.gmra.mrb[0].mxu0 %v3856
  %v4206 = vpop.f32.mrb[0].mxu0
  %v4207 = vadd.f32 0.0, %v4206
  %v4208 = vpop.f32.mrb[0].mxu0
  %4209 = vmatprep.mubr.f32.mxu0 0.0
  %4210 = vmatmul.mubr.f32.gmra.mrb[0].mxu0 %v3859
  %v4211 = vpop.f32.mrb[0].mxu0
  %v4212 = vadd.f32 0.0, %v4211
  %v4213 = vpop.f32.mrb[0].mxu0
  %4214 = vmatprep.mubr.f32.mxu0 0.0
  %4215 = vmatmul.mubr.f32.gmra.mrb[0].mxu0 %v3862
  %v4216 = vpop.f32.mrb[0].mxu0
  %v4217 = vadd.f32 0.0, %v4216
  %v4218 = vpop.f32.mrb[0].mxu0
  %4219 = vmatprep.mubr.f32.mxu0 0.0
  %4220 = vmatmul.mubr.f32.gmra.mrb[0].mxu0 %v3865
  %v4221 = vpop.f32.mrb[0].mxu0
  %v4222 = vadd.f32 0.0, %v4221
  %v4223 = vpop.f32.mrb[0].mxu0
  %4224 = vmatprep.mubr.f32.mxu0 0.0
  %4225 = vmatmul.mubr.f32.gmra.mrb[0].mxu0 %v3868
  %v4226 = vpop.f32.mrb[0].mxu0
  %v4227 = vadd.f32 0.0, %v4226
  %v4228 = vpop.f32.mrb[0].mxu0
  %4229 = vmatprep.mubr.f32.mxu0 0.0
  %4230 = vmatmul.mubr.f32.gmra.mrb[0].mxu0 %v3871
  %v4231 = vpop.f32.mrb[0].mxu0
  %v4232 = vadd.f32 0.0, %v4231
  %v4233 = vpop.f32.mrb[0].mxu0
  %4234 = vmatprep.mubr.f32.mxu0 0.0
  %4235 = vmatmul.mubr.f32.gmra.mrb[0].mxu0 %v3874
  %v4236 = vpop.f32.mrb[0].mxu0
  %v4237 = vadd.f32 0.0, %v4236
  %v4238 = vpop.f32.mrb[0].mxu0
  %4239 = vmatprep.mubr.f32.mxu0 0.0
  %4240 = vmatmul.mubr.f32.gmra.mrb[0].mxu0 %v3877
  %v4241 = vpop.f32.mrb[0].mxu0
  %v4242 = vadd.f32 0.0, %v4241
  %v4243 = vpop.f32.mrb[0].mxu0
  %4244 = vmatprep.mubr.f32.mxu0 0.0
  %4245 = vmatmul.mubr.f32.gmra.mrb[0].mxu0 %v3880
  %v4246 = vpop.f32.mrb[0].mxu0
  %v4247 = vadd.f32 0.0, %v4246
  %v4248 = vpop.f32.mrb[0].mxu0
  %4249 = vmatprep.mubr.f32.mxu0 0.0
  %4250 = vmatmul.mubr.f32.gmra.mrb[0].mxu0 %v3883
  %v4251 = vpop.f32.mrb[0].mxu0
  %v4252 = vadd.f32 0.0, %v4251
  %v4253 = vpop.f32.mrb[0].mxu0
  %4254 = vmatprep.mubr.f32.mxu0 0.0
  %4255 = vmatmul.mubr.f32.gmra.mrb[0].mxu0 %v3886
  %v4256 = vpop.f32.mrb[0].mxu0
  %v4257 = vadd.f32 0.0, %v4256
  %v4258 = vpop.f32.mrb[0].mxu0
  %4259 = vmatprep.mubr.f32.mxu0 0.0
  %4260 = vmatmul.mubr.f32.gmra.mrb[0].mxu0 %v3889
  %v4261 = vpop.f32.mrb[0].mxu0
  %v4262 = vadd.f32 0.0, %v4261
  %v4263 = vpop.f32.mrb[0].mxu0
  %4264 = vmatprep.mubr.f32.mxu0 0.0
  %4265 = vmatmul.mubr.f32.gmra.mrb[0].mxu0 %v3892
  %v4266 = vpop.f32.mrb[0].mxu0
  %v4267 = vadd.f32 0.0, %v4266
  %v4268 = vpop.f32.mrb[0].mxu0
  %4269 = vmatprep.mubr.f32.mxu0 0.0
  %4270 = vmatmul.mubr.f32.gmra.mrb[0].mxu0 %v3895
  %v4271 = vpop.f32.mrb[0].mxu0
  %v4272 = vadd.f32 0.0, %v4271
  %v4273 = vpop.f32.mrb[0].mxu0
  %4274 = vmatprep.mubr.f32.mxu0 0.0
  %4275 = vmatmul.mubr.f32.gmra.mrb[0].mxu0 %v3898
  %v4276 = vpop.f32.mrb[0].mxu0
  %v4277 = vadd.f32 0.0, %v4276
  %v4278 = vpop.f32.mrb[0].mxu0
  %4279 = vmatprep.mubr.f32.mxu0 0.0
  %4280 = vmatmul.mubr.f32.gmra.mrb[0].mxu0 %v3901
  %v4281 = vpop.f32.mrb[0].mxu0
  %v4282 = vadd.f32 0.0, %v4281
  %v4283 = vpop.f32.mrb[0].mxu0
  %4284 = vmatprep.mubr.f32.mxu0 0.0
  %4285 = vmatmul.mubr.f32.gmra.mrb[0].mxu0 %v3904
  %v4286 = vpop.f32.mrb[0].mxu0
  %v4287 = vadd.f32 0.0, %v4286
  %v4288 = vpop.f32.mrb[0].mxu0
  %4289 = vmatprep.mubr.f32.mxu0 0.0
  %4290 = vmatmul.mubr.f32.gmra.mrb[0].mxu0 %v3907
  %v4291 = vpop.f32.mrb[0].mxu0
  %v4292 = vadd.f32 0.0, %v4291
  %v4293 = vpop.f32.mrb[0].mxu0
  %4294 = vmatprep.mubr.f32.mxu0 0.0
  %4295 = vmatmul.mubr.f32.gmra.mrb[0].mxu0 %v3910
  %v4296 = vpop.f32.mrb[0].mxu0
  %v4297 = vadd.f32 0.0, %v4296
  %v4298 = vpop.f32.mrb[0].mxu0
  %4299 = vdwg.mxu0
  %v4300 = vadd.f32 %v3590, %v3982
  %v4301 = vadd.f32 %v3591, %v3987
  %v4302 = vadd.f32 %v3592, %v3992
  %v4303 = vadd.f32 %v3593, %v3997
  %v4304 = vadd.f32 %v3594, %v4002
  %v4305 = vadd.f32 %v3595, %v4007
  %v4306 = vadd.f32 %v3596, %v4012
  %v4307 = vadd.f32 %v3597, %v4017
  %v4308 = vadd.f32 %v3598, %v4022
  %v4309 = vadd.f32 %v3599, %v4027
  %v4310 = vadd.f32 %v3600, %v4032
  %v4311 = vadd.f32 %v3601, %v4037
  %v4312 = vadd.f32 %v3602, %v4042
  %v4313 = vadd.f32 %v3603, %v4047
  %v4314 = vadd.f32 %v3604, %v4052
  %v4315 = vadd.f32 %v3605, %v4057
  %v4316 = vadd.f32 %v3606, %v4062
  %v4317 = vadd.f32 %v3607, %v4067
  %v4318 = vadd.f32 %v3608, %v4072
  %v4319 = vadd.f32 %v3609, %v4077
  %v4320 = vadd.f32 %v3610, %v4082
  %v4321 = vadd.f32 %v3611, %v4087
  %v4322 = vadd.f32 %v3612, %v4092
  %v4323 = vadd.f32 %v3613, %v4097
  %v4324 = vadd.f32 %v3614, %v4102
  %v4325 = vadd.f32 %v3615, %v4107
  %v4326 = vadd.f32 %v3616, %v4112
  %v4327 = vadd.f32 %v3617, %v4117
  %v4328 = vadd.f32 %v3618, %v4122
  %v4329 = vadd.f32 %v3619, %v4127
  %v4330 = vadd.f32 %v3620, %v4132
  %v4331 = vadd.f32 %v3621, %v4137
  %v4332 = vadd.f32 %v3622, %v4142
  %v4333 = vadd.f32 %v3623, %v4147
  %v4334 = vadd.f32 %v3624, %v4152
  %v4335 = vadd.f32 %v3625, %v4157
  %v4336 = vadd.f32 %v3626, %v4162
  %v4337 = vadd.f32 %v3627, %v4167
  %v4338 = vadd.f32 %v3628, %v4172
  %v4339 = vadd.f32 %v3629, %v4177
  %v4340 = vadd.f32 %v3630, %v4182
  %v4341 = vadd.f32 %v3631, %v4187
  %v4342 = vadd.f32 %v3632, %v4192
  %v4343 = vadd.f32 %v3633, %v4197
  %v4344 = vadd.f32 %v3634, %v4202
  %v4345 = vadd.f32 %v3635, %v4207
  %v4346 = vadd.f32 %v3636, %v4212
  %v4347 = vadd.f32 %v3637, %v4217
  %v4348 = vadd.f32 %v3638, %v4222
  %v4349 = vadd.f32 %v3639, %v4227
  %v4350 = vadd.f32 %v3640, %v4232
  %v4351 = vadd.f32 %v3641, %v4237
  %v4352 = vadd.f32 %v3642, %v4242
  %v4353 = vadd.f32 %v3643, %v4247
  %v4354 = vadd.f32 %v3644, %v4252
  %v4355 = vadd.f32 %v3645, %v4257
  %v4356 = vadd.f32 %v3646, %v4262
  %v4357 = vadd.f32 %v3647, %v4267
  %v4358 = vadd.f32 %v3648, %v4272
  %v4359 = vadd.f32 %v3649, %v4277
  %v4360 = vadd.f32 %v3650, %v4282
  %v4361 = vadd.f32 %v3651, %v4287
  %v4362 = vadd.f32 %v3652, %v4292
  %v4363 = vadd.f32 %v3653, %v4297
  %s4364 = scalar_lea.vmem [#allocation2], 64
  %v4365 = vld [vmem:[%s4364 + $0x7] sm:$0xff]
  %v4366 = vld [vmem:[%s4364 + $0xf] sm:$0xff]
  %v4367 = vld [vmem:[%s4364 + $0x27] sm:$0xff]
  %v4368 = vld [vmem:[%s4364 + $0x2f] sm:$0xff]
  %v4369 = vld [vmem:[%s4364 + $0x47] sm:$0xff]
  %v4370 = vld [vmem:[%s4364 + $0x4f] sm:$0xff]
  %v4371 = vld [vmem:[%s4364 + $0x67] sm:$0xff]
  %v4372 = vld [vmem:[%s4364 + $0x6f] sm:$0xff]
  %v4373 = vld [vmem:[%s4364 + $0x87] sm:$0xff]
  %v4374 = vld [vmem:[%s4364 + $0x8f] sm:$0xff]
  %v4375 = vld [vmem:[%s4364 + $0xa7] sm:$0xff]
  %v4376 = vld [vmem:[%s4364 + $0xaf] sm:$0xff]
  %v4377 = vld [vmem:[%s4364 + $0xc7] sm:$0xff]
  %v4378 = vld [vmem:[%s4364 + $0xcf] sm:$0xff]
  %v4379 = vld [vmem:[%s4364 + $0xe7] sm:$0xff]
  %v4380 = vld [vmem:[%s4364 + $0xef] sm:$0xff]
  %v4381 = vld [vmem:[%s4364 + $0x107] sm:$0xff]
  %v4382 = vld [vmem:[%s4364 + $0x10f] sm:$0xff]
  %v4383 = vld [vmem:[%s4364 + $0x127] sm:$0xff]
  %v4384 = vld [vmem:[%s4364 + $0x12f] sm:$0xff]
  %v4385 = vld [vmem:[%s4364 + $0x147] sm:$0xff]
  %v4386 = vld [vmem:[%s4364 + $0x14f] sm:$0xff]
  %v4387 = vld [vmem:[%s4364 + $0x167] sm:$0xff]
  %v4388 = vld [vmem:[%s4364 + $0x16f] sm:$0xff]
  %v4389 = vld [vmem:[%s4364 + $0x187] sm:$0xff]
  %v4390 = vld [vmem:[%s4364 + $0x18f] sm:$0xff]
  %v4391 = vld [vmem:[%s4364 + $0x1a7] sm:$0xff]
  %v4392 = vld [vmem:[%s4364 + $0x1af] sm:$0xff]
  %v4393 = vld [vmem:[%s4364 + $0x1c7] sm:$0xff]
  %v4394 = vld [vmem:[%s4364 + $0x1cf] sm:$0xff]
  %v4395 = vld [vmem:[%s4364 + $0x1e7] sm:$0xff]
  %v4396 = vld [vmem:[%s4364 + $0x1ef] sm:$0xff]
  %v4397 = vld [vmem:[%s4364 + $0x247] sm:$0xff]
  %v4398 = vld [vmem:[%s4364 + $0x24f] sm:$0xff]
  %v4399 = vld [vmem:[%s4364 + $0x267] sm:$0xff]
  %v4400 = vld [vmem:[%s4364 + $0x26f] sm:$0xff]
  %v4401 = vld [vmem:[%s4364 + $0x287] sm:$0xff]
  %v4402 = vld [vmem:[%s4364 + $0x28f] sm:$0xff]
  %v4403 = vld [vmem:[%s4364 + $0x2a7] sm:$0xff]
  %v4404 = vld [vmem:[%s4364 + $0x2af] sm:$0xff]
  %v4405 = vld [vmem:[%s4364 + $0x2c7] sm:$0xff]
  %v4406 = vld [vmem:[%s4364 + $0x2cf] sm:$0xff]
  %v4407 = vld [vmem:[%s4364 + $0x2e7] sm:$0xff]
  %v4408 = vld [vmem:[%s4364 + $0x2ef] sm:$0xff]
  %v4409 = vld [vmem:[%s4364 + $0x307] sm:$0xff]
  %v4410 = vld [vmem:[%s4364 + $0x30f] sm:$0xff]
  %v4411 = vld [vmem:[%s4364 + $0x327] sm:$0xff]
  %v4412 = vld [vmem:[%s4364 + $0x32f] sm:$0xff]
  %v4413 = vld [vmem:[%s4364 + $0x347] sm:$0xff]
  %v4414 = vld [vmem:[%s4364 + $0x34f] sm:$0xff]
  %v4415 = vld [vmem:[%s4364 + $0x367] sm:$0xff]
  %v4416 = vld [vmem:[%s4364 + $0x36f] sm:$0xff]
  %v4417 = vld [vmem:[%s4364 + $0x387] sm:$0xff]
  %v4418 = vld [vmem:[%s4364 + $0x38f] sm:$0xff]
  %v4419 = vld [vmem:[%s4364 + $0x3a7] sm:$0xff]
  %v4420 = vld [vmem:[%s4364 + $0x3af] sm:$0xff]
  %v4421 = vld [vmem:[%s4364 + $0x3c7] sm:$0xff]
  %v4422 = vld [vmem:[%s4364 + $0x3cf] sm:$0xff]
  %v4423 = vld [vmem:[%s4364 + $0x3e7] sm:$0xff]
  %v4424 = vld [vmem:[%s4364 + $0x3ef] sm:$0xff]
  %v4425 = vld [vmem:[%s4364 + $0x407] sm:$0xff]
  %v4426 = vld [vmem:[%s4364 + $0x40f] sm:$0xff]
  %v4427 = vld [vmem:[%s4364 + $0x427] sm:$0xff]
  %v4428 = vld [vmem:[%s4364 + $0x42f] sm:$0xff]
  %s4429 = scalar_lea.vmem %s1, 24
  %v4430 = vld [vmem:[%s4429] sm:$0xf]
  %v4432 = vsel %vm84, %v4365, 0
  %v4435 = vsel %vm84, %v4366, 0
  %v4438 = vsel %vm84, %v4367, 0
  %v4441 = vsel %vm84, %v4368, 0
  %v4444 = vsel %vm84, %v4369, 0
  %v4447 = vsel %vm84, %v4370, 0
  %v4450 = vsel %vm84, %v4371, 0
  %v4453 = vsel %vm84, %v4372, 0
  %v4456 = vsel %vm84, %v4373, 0
  %v4459 = vsel %vm84, %v4374, 0
  %v4462 = vsel %vm84, %v4375, 0
  %v4465 = vsel %vm84, %v4376, 0
  %v4468 = vsel %vm84, %v4377, 0
  %v4471 = vsel %vm84, %v4378, 0
  %v4474 = vsel %vm84, %v4379, 0
  %v4477 = vsel %vm84, %v4380, 0
  %v4480 = vsel %vm84, %v4381, 0
  %v4483 = vsel %vm84, %v4382, 0
  %v4486 = vsel %vm84, %v4383, 0
  %v4489 = vsel %vm84, %v4384, 0
  %v4492 = vsel %vm84, %v4385, 0
  %v4495 = vsel %vm84, %v4386, 0
  %v4498 = vsel %vm84, %v4387, 0
  %v4501 = vsel %vm84, %v4388, 0
  %v4504 = vsel %vm84, %v4389, 0
  %v4507 = vsel %vm84, %v4390, 0
  %v4510 = vsel %vm84, %v4391, 0
  %v4513 = vsel %vm84, %v4392, 0
  %v4516 = vsel %vm84, %v4393, 0
  %v4519 = vsel %vm84, %v4394, 0
  %v4522 = vsel %vm84, %v4395, 0
  %v4525 = vsel %vm84, %v4396, 0
  %v4528 = vsel %vm84, %v4397, 0
  %v4531 = vsel %vm84, %v4398, 0
  %v4534 = vsel %vm84, %v4399, 0
  %v4537 = vsel %vm84, %v4400, 0
  %v4540 = vsel %vm84, %v4401, 0
  %v4543 = vsel %vm84, %v4402, 0
  %v4546 = vsel %vm84, %v4403, 0
  %v4549 = vsel %vm84, %v4404, 0
  %v4552 = vsel %vm84, %v4405, 0
  %v4555 = vsel %vm84, %v4406, 0
  %v4558 = vsel %vm84, %v4407, 0
  %v4561 = vsel %vm84, %v4408, 0
  %v4564 = vsel %vm84, %v4409, 0
  %v4567 = vsel %vm84, %v4410, 0
  %v4570 = vsel %vm84, %v4411, 0
  %v4573 = vsel %vm84, %v4412, 0
  %v4576 = vsel %vm84, %v4413, 0
  %v4579 = vsel %vm84, %v4414, 0
  %v4582 = vsel %vm84, %v4415, 0
  %v4585 = vsel %vm84, %v4416, 0
  %v4588 = vsel %vm84, %v4417, 0
  %v4591 = vsel %vm84, %v4418, 0
  %v4594 = vsel %vm84, %v4419, 0
  %v4597 = vsel %vm84, %v4420, 0
  %v4600 = vsel %vm84, %v4421, 0
  %v4603 = vsel %vm84, %v4422, 0
  %v4606 = vsel %vm84, %v4423, 0
  %v4609 = vsel %vm84, %v4424, 0
  %v4612 = vsel %vm84, %v4425, 0
  %v4615 = vsel %vm84, %v4426, 0
  %v4618 = vsel %vm84, %v4427, 0
  %v4621 = vsel %vm84, %v4428, 0
  %v4624 = vsel %vm555, %v4430, 0
  %4626 = vmatprep.subr.mxu0 0.0
  %4627 = vmatpush1.msra.mxu0 %v4624
  %4628 = vmatprep.subr.mxu0 0.0
  %4629 = vmatpush1.msra.mxu0 0.0
  %4630 = vmatprep.subr.mxu0 0.0
  %4631 = vmatpush1.msra.mxu0 0.0
  %4632 = vmatprep.subr.mxu0 0.0
  %4633 = vmatpush1.msra.mxu0 0.0
  %4634 = vmatprep.subr.mxu0 0.0
  %4635 = vmatpush1.msra.mxu0 0.0
  %4636 = vmatprep.subr.mxu0 0.0
  %4637 = vmatpush1.msra.mxu0 0.0
  %4638 = vmatprep.subr.mxu0 0.0
  %4639 = vmatpush1.msra.mxu0 0.0
  %4640 = vmatprep.subr.mxu0 0.0
  %4641 = vmatpush1.msra.mxu0 0.0
  %4642 = vmatprep.subr.mxu0 0.0
  %4643 = vmatpush1.msra.mxu0 0.0
  %4644 = vmatprep.subr.mxu0 0.0
  %4645 = vmatpush1.msra.mxu0 0.0
  %4646 = vmatprep.subr.mxu0 0.0
  %4647 = vmatpush1.msra.mxu0 0.0
  %4648 = vmatprep.subr.mxu0 0.0
  %4649 = vmatpush1.msra.mxu0 0.0
  %4650 = vmatprep.subr.mxu0 0.0
  %4651 = vmatpush1.msra.mxu0 0.0
  %4652 = vmatprep.subr.mxu0 0.0
  %4653 = vmatpush1.msra.mxu0 0.0
  %4654 = vmatprep.subr.mxu0 0.0
  %4655 = vmatpush1.msra.mxu0 0.0
  %4656 = vmatprep.subr.mxu0 0.0
  %4657 = vmatpush1.msra.mxu0 0.0
  %4658 = vmatprep.subr.mxu0 0.0
  %4659 = vmatpush1.msra.mxu0 0.0
  %4660 = vmatprep.subr.mxu0 0.0
  %4661 = vmatpush1.msra.mxu0 0.0
  %4662 = vmatprep.subr.mxu0 0.0
  %4663 = vmatpush1.msra.mxu0 0.0
  %4664 = vmatprep.subr.mxu0 0.0
  %4665 = vmatpush1.msra.mxu0 0.0
  %4666 = vmatprep.subr.mxu0 0.0
  %4667 = vmatpush1.msra.mxu0 0.0
  %4668 = vmatprep.subr.mxu0 0.0
  %4669 = vmatpush1.msra.mxu0 0.0
  %4670 = vmatprep.subr.mxu0 0.0
  %4671 = vmatpush1.msra.mxu0 0.0
  %4672 = vmatprep.subr.mxu0 0.0
  %4673 = vmatpush1.msra.mxu0 0.0
  %4674 = vmatprep.subr.mxu0 0.0
  %4675 = vmatpush1.msra.mxu0 0.0
  %4676 = vmatprep.subr.mxu0 0.0
  %4677 = vmatpush1.msra.mxu0 0.0
  %4678 = vmatprep.subr.mxu0 0.0
  %4679 = vmatpush1.msra.mxu0 0.0
  %4680 = vmatprep.subr.mxu0 0.0
  %4681 = vmatpush1.msra.mxu0 0.0
  %4682 = vmatprep.subr.mxu0 0.0
  %4683 = vmatpush1.msra.mxu0 0.0
  %4684 = vmatprep.subr.mxu0 0.0
  %4685 = vmatpush1.msra.mxu0 0.0
  %4686 = vmatprep.subr.mxu0 0.0
  %4687 = vmatpush1.msra.mxu0 0.0
  %4688 = vmatprep.subr.mxu0 0.0
  %4689 = vmatpush1.msra.mxu0 0.0
  %4690 = vmatprep.mubr.f32.mxu0 0.0
  %4691 = vmatmul.mubr.f32.gmra.mrb[0].mxu0 %v4432
  %v4692 = vpop.f32.mrb[0].mxu0
  %v4693 = vadd.f32 0.0, %v4692
  %v4694 = vpop.f32.mrb[0].mxu0
  %4695 = vmatprep.mubr.f32.mxu0 0.0
  %4696 = vmatmul.mubr.f32.gmra.mrb[0].mxu0 %v4435
  %v4697 = vpop.f32.mrb[0].mxu0
  %v4698 = vadd.f32 0.0, %v4697
  %v4699 = vpop.f32.mrb[0].mxu0
  %4700 = vmatprep.mubr.f32.mxu0 0.0
  %4701 = vmatmul.mubr.f32.gmra.mrb[0].mxu0 %v4438
  %v4702 = vpop.f32.mrb[0].mxu0
  %v4703 = vadd.f32 0.0, %v4702
  %v4704 = vpop.f32.mrb[0].mxu0
  %4705 = vmatprep.mubr.f32.mxu0 0.0
  %4706 = vmatmul.mubr.f32.gmra.mrb[0].mxu0 %v4441
  %v4707 = vpop.f32.mrb[0].mxu0
  %v4708 = vadd.f32 0.0, %v4707
  %v4709 = vpop.f32.mrb[0].mxu0
  %4710 = vmatprep.mubr.f32.mxu0 0.0
  %4711 = vmatmul.mubr.f32.gmra.mrb[0].mxu0 %v4444
  %v4712 = vpop.f32.mrb[0].mxu0
  %v4713 = vadd.f32 0.0, %v4712
  %v4714 = vpop.f32.mrb[0].mxu0
  %4715 = vmatprep.mubr.f32.mxu0 0.0
  %4716 = vmatmul.mubr.f32.gmra.mrb[0].mxu0 %v4447
  %v4717 = vpop.f32.mrb[0].mxu0
  %v4718 = vadd.f32 0.0, %v4717
  %v4719 = vpop.f32.mrb[0].mxu0
  %4720 = vmatprep.mubr.f32.mxu0 0.0
  %4721 = vmatmul.mubr.f32.gmra.mrb[0].mxu0 %v4450
  %v4722 = vpop.f32.mrb[0].mxu0
  %v4723 = vadd.f32 0.0, %v4722
  %v4724 = vpop.f32.mrb[0].mxu0
  %4725 = vmatprep.mubr.f32.mxu0 0.0
  %4726 = vmatmul.mubr.f32.gmra.mrb[0].mxu0 %v4453
  %v4727 = vpop.f32.mrb[0].mxu0
  %v4728 = vadd.f32 0.0, %v4727
  %v4729 = vpop.f32.mrb[0].mxu0
  %4730 = vmatprep.mubr.f32.mxu0 0.0
  %4731 = vmatmul.mubr.f32.gmra.mrb[0].mxu0 %v4456
  %v4732 = vpop.f32.mrb[0].mxu0
  %v4733 = vadd.f32 0.0, %v4732
  %v4734 = vpop.f32.mrb[0].mxu0
  %4735 = vmatprep.mubr.f32.mxu0 0.0
  %4736 = vmatmul.mubr.f32.gmra.mrb[0].mxu0 %v4459
  %v4737 = vpop.f32.mrb[0].mxu0
  %v4738 = vadd.f32 0.0, %v4737
  %v4739 = vpop.f32.mrb[0].mxu0
  %4740 = vmatprep.mubr.f32.mxu0 0.0
  %4741 = vmatmul.mubr.f32.gmra.mrb[0].mxu0 %v4462
  %v4742 = vpop.f32.mrb[0].mxu0
  %v4743 = vadd.f32 0.0, %v4742
  %v4744 = vpop.f32.mrb[0].mxu0
  %4745 = vmatprep.mubr.f32.mxu0 0.0
  %4746 = vmatmul.mubr.f32.gmra.mrb[0].mxu0 %v4465
  %v4747 = vpop.f32.mrb[0].mxu0
  %v4748 = vadd.f32 0.0, %v4747
  %v4749 = vpop.f32.mrb[0].mxu0
  %4750 = vmatprep.mubr.f32.mxu0 0.0
  %4751 = vmatmul.mubr.f32.gmra.mrb[0].mxu0 %v4468
  %v4752 = vpop.f32.mrb[0].mxu0
  %v4753 = vadd.f32 0.0, %v4752
  %v4754 = vpop.f32.mrb[0].mxu0
  %4755 = vmatprep.mubr.f32.mxu0 0.0
  %4756 = vmatmul.mubr.f32.gmra.mrb[0].mxu0 %v4471
  %v4757 = vpop.f32.mrb[0].mxu0
  %v4758 = vadd.f32 0.0, %v4757
  %v4759 = vpop.f32.mrb[0].mxu0
  %4760 = vmatprep.mubr.f32.mxu0 0.0
  %4761 = vmatmul.mubr.f32.gmra.mrb[0].mxu0 %v4474
  %v4762 = vpop.f32.mrb[0].mxu0
  %v4763 = vadd.f32 0.0, %v4762
  %v4764 = vpop.f32.mrb[0].mxu0
  %4765 = vmatprep.mubr.f32.mxu0 0.0
  %4766 = vmatmul.mubr.f32.gmra.mrb[0].mxu0 %v4477
  %v4767 = vpop.f32.mrb[0].mxu0
  %v4768 = vadd.f32 0.0, %v4767
  %v4769 = vpop.f32.mrb[0].mxu0
  %4770 = vmatprep.mubr.f32.mxu0 0.0
  %4771 = vmatmul.mubr.f32.gmra.mrb[0].mxu0 %v4480
  %v4772 = vpop.f32.mrb[0].mxu0
  %v4773 = vadd.f32 0.0, %v4772
  %v4774 = vpop.f32.mrb[0].mxu0
  %4775 = vmatprep.mubr.f32.mxu0 0.0
  %4776 = vmatmul.mubr.f32.gmra.mrb[0].mxu0 %v4483
  %v4777 = vpop.f32.mrb[0].mxu0
  %v4778 = vadd.f32 0.0, %v4777
  %v4779 = vpop.f32.mrb[0].mxu0
  %4780 = vmatprep.mubr.f32.mxu0 0.0
  %4781 = vmatmul.mubr.f32.gmra.mrb[0].mxu0 %v4486
  %v4782 = vpop.f32.mrb[0].mxu0
  %v4783 = vadd.f32 0.0, %v4782
  %v4784 = vpop.f32.mrb[0].mxu0
  %4785 = vmatprep.mubr.f32.mxu0 0.0
  %4786 = vmatmul.mubr.f32.gmra.mrb[0].mxu0 %v4489
  %v4787 = vpop.f32.mrb[0].mxu0
  %v4788 = vadd.f32 0.0, %v4787
  %v4789 = vpop.f32.mrb[0].mxu0
  %4790 = vmatprep.mubr.f32.mxu0 0.0
  %4791 = vmatmul.mubr.f32.gmra.mrb[0].mxu0 %v4492
  %v4792 = vpop.f32.mrb[0].mxu0
  %v4793 = vadd.f32 0.0, %v4792
  %v4794 = vpop.f32.mrb[0].mxu0
  %4795 = vmatprep.mubr.f32.mxu0 0.0
  %4796 = vmatmul.mubr.f32.gmra.mrb[0].mxu0 %v4495
  %v4797 = vpop.f32.mrb[0].mxu0
  %v4798 = vadd.f32 0.0, %v4797
  %v4799 = vpop.f32.mrb[0].mxu0
  %4800 = vmatprep.mubr.f32.mxu0 0.0
  %4801 = vmatmul.mubr.f32.gmra.mrb[0].mxu0 %v4498
  %v4802 = vpop.f32.mrb[0].mxu0
  %v4803 = vadd.f32 0.0, %v4802
  %v4804 = vpop.f32.mrb[0].mxu0
  %4805 = vmatprep.mubr.f32.mxu0 0.0
  %4806 = vmatmul.mubr.f32.gmra.mrb[0].mxu0 %v4501
  %v4807 = vpop.f32.mrb[0].mxu0
  %v4808 = vadd.f32 0.0, %v4807
  %v4809 = vpop.f32.mrb[0].mxu0
  %4810 = vmatprep.mubr.f32.mxu0 0.0
  %4811 = vmatmul.mubr.f32.gmra.mrb[0].mxu0 %v4504
  %v4812 = vpop.f32.mrb[0].mxu0
  %v4813 = vadd.f32 0.0, %v4812
  %v4814 = vpop.f32.mrb[0].mxu0
  %4815 = vmatprep.mubr.f32.mxu0 0.0
  %4816 = vmatmul.mubr.f32.gmra.mrb[0].mxu0 %v4507
  %v4817 = vpop.f32.mrb[0].mxu0
  %v4818 = vadd.f32 0.0, %v4817
  %v4819 = vpop.f32.mrb[0].mxu0
  %4820 = vmatprep.mubr.f32.mxu0 0.0
  %4821 = vmatmul.mubr.f32.gmra.mrb[0].mxu0 %v4510
  %v4822 = vpop.f32.mrb[0].mxu0
  %v4823 = vadd.f32 0.0, %v4822
  %v4824 = vpop.f32.mrb[0].mxu0
  %4825 = vmatprep.mubr.f32.mxu0 0.0
  %4826 = vmatmul.mubr.f32.gmra.mrb[0].mxu0 %v4513
  %v4827 = vpop.f32.mrb[0].mxu0
  %v4828 = vadd.f32 0.0, %v4827
  %v4829 = vpop.f32.mrb[0].mxu0
  %4830 = vmatprep.mubr.f32.mxu0 0.0
  %4831 = vmatmul.mubr.f32.gmra.mrb[0].mxu0 %v4516
  %v4832 = vpop.f32.mrb[0].mxu0
  %v4833 = vadd.f32 0.0, %v4832
  %v4834 = vpop.f32.mrb[0].mxu0
  %4835 = vmatprep.mubr.f32.mxu0 0.0
  %4836 = vmatmul.mubr.f32.gmra.mrb[0].mxu0 %v4519
  %v4837 = vpop.f32.mrb[0].mxu0
  %v4838 = vadd.f32 0.0, %v4837
  %v4839 = vpop.f32.mrb[0].mxu0
  %4840 = vmatprep.mubr.f32.mxu0 0.0
  %4841 = vmatmul.mubr.f32.gmra.mrb[0].mxu0 %v4522
  %v4842 = vpop.f32.mrb[0].mxu0
  %v4843 = vadd.f32 0.0, %v4842
  %v4844 = vpop.f32.mrb[0].mxu0
  %4845 = vmatprep.mubr.f32.mxu0 0.0
  %4846 = vmatmul.mubr.f32.gmra.mrb[0].mxu0 %v4525
  %v4847 = vpop.f32.mrb[0].mxu0
  %v4848 = vadd.f32 0.0, %v4847
  %v4849 = vpop.f32.mrb[0].mxu0
  %4850 = vmatprep.mubr.f32.mxu0 0.0
  %4851 = vmatmul.mubr.f32.gmra.mrb[0].mxu0 %v4528
  %v4852 = vpop.f32.mrb[0].mxu0
  %v4853 = vadd.f32 0.0, %v4852
  %v4854 = vpop.f32.mrb[0].mxu0
  %4855 = vmatprep.mubr.f32.mxu0 0.0
  %4856 = vmatmul.mubr.f32.gmra.mrb[0].mxu0 %v4531
  %v4857 = vpop.f32.mrb[0].mxu0
  %v4858 = vadd.f32 0.0, %v4857
  %v4859 = vpop.f32.mrb[0].mxu0
  %4860 = vmatprep.mubr.f32.mxu0 0.0
  %4861 = vmatmul.mubr.f32.gmra.mrb[0].mxu0 %v4534
  %v4862 = vpop.f32.mrb[0].mxu0
  %v4863 = vadd.f32 0.0, %v4862
  %v4864 = vpop.f32.mrb[0].mxu0
  %4865 = vmatprep.mubr.f32.mxu0 0.0
  %4866 = vmatmul.mubr.f32.gmra.mrb[0].mxu0 %v4537
  %v4867 = vpop.f32.mrb[0].mxu0
  %v4868 = vadd.f32 0.0, %v4867
  %v4869 = vpop.f32.mrb[0].mxu0
  %4870 = vmatprep.mubr.f32.mxu0 0.0
  %4871 = vmatmul.mubr.f32.gmra.mrb[0].mxu0 %v4540
  %v4872 = vpop.f32.mrb[0].mxu0
  %v4873 = vadd.f32 0.0, %v4872
  %v4874 = vpop.f32.mrb[0].mxu0
  %4875 = vmatprep.mubr.f32.mxu0 0.0
  %4876 = vmatmul.mubr.f32.gmra.mrb[0].mxu0 %v4543
  %v4877 = vpop.f32.mrb[0].mxu0
  %v4878 = vadd.f32 0.0, %v4877
  %v4879 = vpop.f32.mrb[0].mxu0
  %4880 = vmatprep.mubr.f32.mxu0 0.0
  %4881 = vmatmul.mubr.f32.gmra.mrb[0].mxu0 %v4546
  %v4882 = vpop.f32.mrb[0].mxu0
  %v4883 = vadd.f32 0.0, %v4882
  %v4884 = vpop.f32.mrb[0].mxu0
  %4885 = vmatprep.mubr.f32.mxu0 0.0
  %4886 = vmatmul.mubr.f32.gmra.mrb[0].mxu0 %v4549
  %v4887 = vpop.f32.mrb[0].mxu0
  %v4888 = vadd.f32 0.0, %v4887
  %v4889 = vpop.f32.mrb[0].mxu0
  %4890 = vmatprep.mubr.f32.mxu0 0.0
  %4891 = vmatmul.mubr.f32.gmra.mrb[0].mxu0 %v4552
  %v4892 = vpop.f32.mrb[0].mxu0
  %v4893 = vadd.f32 0.0, %v4892
  %v4894 = vpop.f32.mrb[0].mxu0
  %4895 = vmatprep.mubr.f32.mxu0 0.0
  %4896 = vmatmul.mubr.f32.gmra.mrb[0].mxu0 %v4555
  %v4897 = vpop.f32.mrb[0].mxu0
  %v4898 = vadd.f32 0.0, %v4897
  %v4899 = vpop.f32.mrb[0].mxu0
  %4900 = vmatprep.mubr.f32.mxu0 0.0
  %4901 = vmatmul.mubr.f32.gmra.mrb[0].mxu0 %v4558
  %v4902 = vpop.f32.mrb[0].mxu0
  %v4903 = vadd.f32 0.0, %v4902
  %v4904 = vpop.f32.mrb[0].mxu0
  %4905 = vmatprep.mubr.f32.mxu0 0.0
  %4906 = vmatmul.mubr.f32.gmra.mrb[0].mxu0 %v4561
  %v4907 = vpop.f32.mrb[0].mxu0
  %v4908 = vadd.f32 0.0, %v4907
  %v4909 = vpop.f32.mrb[0].mxu0
  %4910 = vmatprep.mubr.f32.mxu0 0.0
  %4911 = vmatmul.mubr.f32.gmra.mrb[0].mxu0 %v4564
  %v4912 = vpop.f32.mrb[0].mxu0
  %v4913 = vadd.f32 0.0, %v4912
  %v4914 = vpop.f32.mrb[0].mxu0
  %4915 = vmatprep.mubr.f32.mxu0 0.0
  %4916 = vmatmul.mubr.f32.gmra.mrb[0].mxu0 %v4567
  %v4917 = vpop.f32.mrb[0].mxu0
  %v4918 = vadd.f32 0.0, %v4917
  %v4919 = vpop.f32.mrb[0].mxu0
  %4920 = vmatprep.mubr.f32.mxu0 0.0
  %4921 = vmatmul.mubr.f32.gmra.mrb[0].mxu0 %v4570
  %v4922 = vpop.f32.mrb[0].mxu0
  %v4923 = vadd.f32 0.0, %v4922
  %v4924 = vpop.f32.mrb[0].mxu0
  %4925 = vmatprep.mubr.f32.mxu0 0.0
  %4926 = vmatmul.mubr.f32.gmra.mrb[0].mxu0 %v4573
  %v4927 = vpop.f32.mrb[0].mxu0
  %v4928 = vadd.f32 0.0, %v4927
  %v4929 = vpop.f32.mrb[0].mxu0
  %4930 = vmatprep.mubr.f32.mxu0 0.0
  %4931 = vmatmul.mubr.f32.gmra.mrb[0].mxu0 %v4576
  %v4932 = vpop.f32.mrb[0].mxu0
  %v4933 = vadd.f32 0.0, %v4932
  %v4934 = vpop.f32.mrb[0].mxu0
  %4935 = vmatprep.mubr.f32.mxu0 0.0
  %4936 = vmatmul.mubr.f32.gmra.mrb[0].mxu0 %v4579
  %v4937 = vpop.f32.mrb[0].mxu0
  %v4938 = vadd.f32 0.0, %v4937
  %v4939 = vpop.f32.mrb[0].mxu0
  %4940 = vmatprep.mubr.f32.mxu0 0.0
  %4941 = vmatmul.mubr.f32.gmra.mrb[0].mxu0 %v4582
  %v4942 = vpop.f32.mrb[0].mxu0
  %v4943 = vadd.f32 0.0, %v4942
  %v4944 = vpop.f32.mrb[0].mxu0
  %4945 = vmatprep.mubr.f32.mxu0 0.0
  %4946 = vmatmul.mubr.f32.gmra.mrb[0].mxu0 %v4585
  %v4947 = vpop.f32.mrb[0].mxu0
  %v4948 = vadd.f32 0.0, %v4947
  %v4949 = vpop.f32.mrb[0].mxu0
  %4950 = vmatprep.mubr.f32.mxu0 0.0
  %4951 = vmatmul.mubr.f32.gmra.mrb[0].mxu0 %v4588
  %v4952 = vpop.f32.mrb[0].mxu0
  %v4953 = vadd.f32 0.0, %v4952
  %v4954 = vpop.f32.mrb[0].mxu0
  %4955 = vmatprep.mubr.f32.mxu0 0.0
  %4956 = vmatmul.mubr.f32.gmra.mrb[0].mxu0 %v4591
  %v4957 = vpop.f32.mrb[0].mxu0
  %v4958 = vadd.f32 0.0, %v4957
  %v4959 = vpop.f32.mrb[0].mxu0
  %4960 = vmatprep.mubr.f32.mxu0 0.0
  %4961 = vmatmul.mubr.f32.gmra.mrb[0].mxu0 %v4594
  %v4962 = vpop.f32.mrb[0].mxu0
  %v4963 = vadd.f32 0.0, %v4962
  %v4964 = vpop.f32.mrb[0].mxu0
  %4965 = vmatprep.mubr.f32.mxu0 0.0
  %4966 = vmatmul.mubr.f32.gmra.mrb[0].mxu0 %v4597
  %v4967 = vpop.f32.mrb[0].mxu0
  %v4968 = vadd.f32 0.0, %v4967
  %v4969 = vpop.f32.mrb[0].mxu0
  %4970 = vmatprep.mubr.f32.mxu0 0.0
  %4971 = vmatmul.mubr.f32.gmra.mrb[0].mxu0 %v4600
  %v4972 = vpop.f32.mrb[0].mxu0
  %v4973 = vadd.f32 0.0, %v4972
  %v4974 = vpop.f32.mrb[0].mxu0
  %4975 = vmatprep.mubr.f32.mxu0 0.0
  %4976 = vmatmul.mubr.f32.gmra.mrb[0].mxu0 %v4603
  %v4977 = vpop.f32.mrb[0].mxu0
  %v4978 = vadd.f32 0.0, %v4977
  %v4979 = vpop.f32.mrb[0].mxu0
  %4980 = vmatprep.mubr.f32.mxu0 0.0
  %4981 = vmatmul.mubr.f32.gmra.mrb[0].mxu0 %v4606
  %v4982 = vpop.f32.mrb[0].mxu0
  %v4983 = vadd.f32 0.0, %v4982
  %v4984 = vpop.f32.mrb[0].mxu0
  %4985 = vmatprep.mubr.f32.mxu0 0.0
  %4986 = vmatmul.mubr.f32.gmra.mrb[0].mxu0 %v4609
  %v4987 = vpop.f32.mrb[0].mxu0
  %v4988 = vadd.f32 0.0, %v4987
  %v4989 = vpop.f32.mrb[0].mxu0
  %4990 = vmatprep.mubr.f32.mxu0 0.0
  %4991 = vmatmul.mubr.f32.gmra.mrb[0].mxu0 %v4612
  %v4992 = vpop.f32.mrb[0].mxu0
  %v4993 = vadd.f32 0.0, %v4992
  %v4994 = vpop.f32.mrb[0].mxu0
  %4995 = vmatprep.mubr.f32.mxu0 0.0
  %4996 = vmatmul.mubr.f32.gmra.mrb[0].mxu0 %v4615
  %v4997 = vpop.f32.mrb[0].mxu0
  %v4998 = vadd.f32 0.0, %v4997
  %v4999 = vpop.f32.mrb[0].mxu0
  %5000 = vmatprep.mubr.f32.mxu0 0.0
  %5001 = vmatmul.mubr.f32.gmra.mrb[0].mxu0 %v4618
  %v5002 = vpop.f32.mrb[0].mxu0
  %v5003 = vadd.f32 0.0, %v5002
  %v5004 = vpop.f32.mrb[0].mxu0
  %5005 = vmatprep.mubr.f32.mxu0 0.0
  %5006 = vmatmul.mubr.f32.gmra.mrb[0].mxu0 %v4621
  %v5007 = vpop.f32.mrb[0].mxu0
  %v5008 = vadd.f32 0.0, %v5007
  %v5009 = vpop.f32.mrb[0].mxu0
  %5010 = vdwg.mxu0
  %v5011 = vadd.f32 %v4300, %v4693
  %v5012 = vadd.f32 %v4301, %v4698
  %v5013 = vadd.f32 %v4302, %v4703
  %v5014 = vadd.f32 %v4303, %v4708
  %v5015 = vadd.f32 %v4304, %v4713
  %v5016 = vadd.f32 %v4305, %v4718
  %v5017 = vadd.f32 %v4306, %v4723
  %v5018 = vadd.f32 %v4307, %v4728
  %v5019 = vadd.f32 %v4308, %v4733
  %v5020 = vadd.f32 %v4309, %v4738
  %v5021 = vadd.f32 %v4310, %v4743
  %v5022 = vadd.f32 %v4311, %v4748
  %v5023 = vadd.f32 %v4312, %v4753
  %v5024 = vadd.f32 %v4313, %v4758
  %v5025 = vadd.f32 %v4314, %v4763
  %v5026 = vadd.f32 %v4315, %v4768
  %v5027 = vadd.f32 %v4316, %v4773
  %v5028 = vadd.f32 %v4317, %v4778
  %v5029 = vadd.f32 %v4318, %v4783
  %v5030 = vadd.f32 %v4319, %v4788
  %v5031 = vadd.f32 %v4320, %v4793
  %v5032 = vadd.f32 %v4321, %v4798
  %v5033 = vadd.f32 %v4322, %v4803
  %v5034 = vadd.f32 %v4323, %v4808
  %v5035 = vadd.f32 %v4324, %v4813
  %v5036 = vadd.f32 %v4325, %v4818
  %v5037 = vadd.f32 %v4326, %v4823
  %v5038 = vadd.f32 %v4327, %v4828
  %v5039 = vadd.f32 %v4328, %v4833
  %v5040 = vadd.f32 %v4329, %v4838
  %v5041 = vadd.f32 %v4330, %v4843
  %v5042 = vadd.f32 %v4331, %v4848
  %v5043 = vadd.f32 %v4332, %v4853
  %v5044 = vadd.f32 %v4333, %v4858
  %v5045 = vadd.f32 %v4334, %v4863
  %v5046 = vadd.f32 %v4335, %v4868
  %v5047 = vadd.f32 %v4336, %v4873
  %v5048 = vadd.f32 %v4337, %v4878
  %v5049 = vadd.f32 %v4338, %v4883
  %v5050 = vadd.f32 %v4339, %v4888
  %v5051 = vadd.f32 %v4340, %v4893
  %v5052 = vadd.f32 %v4341, %v4898
  %v5053 = vadd.f32 %v4342, %v4903
  %v5054 = vadd.f32 %v4343, %v4908
  %v5055 = vadd.f32 %v4344, %v4913
  %v5056 = vadd.f32 %v4345, %v4918
  %v5057 = vadd.f32 %v4346, %v4923
  %v5058 = vadd.f32 %v4347, %v4928
  %v5059 = vadd.f32 %v4348, %v4933
  %v5060 = vadd.f32 %v4349, %v4938
  %v5061 = vadd.f32 %v4350, %v4943
  %v5062 = vadd.f32 %v4351, %v4948
  %v5063 = vadd.f32 %v4352, %v4953
  %v5064 = vadd.f32 %v4353, %v4958
  %v5065 = vadd.f32 %v4354, %v4963
  %v5066 = vadd.f32 %v4355, %v4968
  %v5067 = vadd.f32 %v4356, %v4973
  %v5068 = vadd.f32 %v4357, %v4978
  %v5069 = vadd.f32 %v4358, %v4983
  %v5070 = vadd.f32 %v4359, %v4988
  %v5071 = vadd.f32 %v4360, %v4993
  %v5072 = vadd.f32 %v4361, %v4998
  %v5073 = vadd.f32 %v4362, %v5003
  %v5074 = vadd.f32 %v4363, %v5008
  %v5075 = vld [vmem:[%s4364 + $0x8] sm:$0xff]
  %v5076 = vld [vmem:[%s4364 + $0x10] sm:$0xff]
  %v5077 = vld [vmem:[%s4364 + $0x28] sm:$0xff]
  %v5078 = vld [vmem:[%s4364 + $0x30] sm:$0xff]
  %v5079 = vld [vmem:[%s4364 + $0x48] sm:$0xff]
  %v5080 = vld [vmem:[%s4364 + $0x50] sm:$0xff]
  %v5081 = vld [vmem:[%s4364 + $0x68] sm:$0xff]
  %v5082 = vld [vmem:[%s4364 + $0x70] sm:$0xff]
  %v5083 = vld [vmem:[%s4364 + $0x88] sm:$0xff]
  %v5084 = vld [vmem:[%s4364 + $0x90] sm:$0xff]
  %v5085 = vld [vmem:[%s4364 + $0xa8] sm:$0xff]
  %v5086 = vld [vmem:[%s4364 + $0xb0] sm:$0xff]
  %v5087 = vld [vmem:[%s4364 + $0xc8] sm:$0xff]
  %v5088 = vld [vmem:[%s4364 + $0xd0] sm:$0xff]
  %v5089 = vld [vmem:[%s4364 + $0xe8] sm:$0xff]
  %v5090 = vld [vmem:[%s4364 + $0xf0] sm:$0xff]
  %v5091 = vld [vmem:[%s4364 + $0x108] sm:$0xff]
  %v5092 = vld [vmem:[%s4364 + $0x110] sm:$0xff]
  %v5093 = vld [vmem:[%s4364 + $0x128] sm:$0xff]
  %v5094 = vld [vmem:[%s4364 + $0x130] sm:$0xff]
  %v5095 = vld [vmem:[%s4364 + $0x148] sm:$0xff]
  %v5096 = vld [vmem:[%s4364 + $0x150] sm:$0xff]
  %v5097 = vld [vmem:[%s4364 + $0x168] sm:$0xff]
  %v5098 = vld [vmem:[%s4364 + $0x170] sm:$0xff]
  %v5099 = vld [vmem:[%s4364 + $0x188] sm:$0xff]
  %v5100 = vld [vmem:[%s4364 + $0x190] sm:$0xff]
  %v5101 = vld [vmem:[%s4364 + $0x1a8] sm:$0xff]
  %v5102 = vld [vmem:[%s4364 + $0x1b0] sm:$0xff]
  %v5103 = vld [vmem:[%s4364 + $0x1c8] sm:$0xff]
  %v5104 = vld [vmem:[%s4364 + $0x1d0] sm:$0xff]
  %v5105 = vld [vmem:[%s4364 + $0x1e8] sm:$0xff]
  %v5106 = vld [vmem:[%s4364 + $0x1f0] sm:$0xff]
  %v5107 = vld [vmem:[%s4364 + $0x248] sm:$0xff]
  %v5108 = vld [vmem:[%s4364 + $0x250] sm:$0xff]
  %v5109 = vld [vmem:[%s4364 + $0x268] sm:$0xff]
  %v5110 = vld [vmem:[%s4364 + $0x270] sm:$0xff]
  %v5111 = vld [vmem:[%s4364 + $0x288] sm:$0xff]
  %v5112 = vld [vmem:[%s4364 + $0x290] sm:$0xff]
  %v5113 = vld [vmem:[%s4364 + $0x2a8] sm:$0xff]
  %v5114 = vld [vmem:[%s4364 + $0x2b0] sm:$0xff]
  %v5115 = vld [vmem:[%s4364 + $0x2c8] sm:$0xff]
  %v5116 = vld [vmem:[%s4364 + $0x2d0] sm:$0xff]
  %v5117 = vld [vmem:[%s4364 + $0x2e8] sm:$0xff]
  %v5118 = vld [vmem:[%s4364 + $0x2f0] sm:$0xff]
  %v5119 = vld [vmem:[%s4364 + $0x308] sm:$0xff]
  %v5120 = vld [vmem:[%s4364 + $0x310] sm:$0xff]
  %v5121 = vld [vmem:[%s4364 + $0x328] sm:$0xff]
  %v5122 = vld [vmem:[%s4364 + $0x330] sm:$0xff]
  %v5123 = vld [vmem:[%s4364 + $0x348] sm:$0xff]
  %v5124 = vld [vmem:[%s4364 + $0x350] sm:$0xff]
  %v5125 = vld [vmem:[%s4364 + $0x368] sm:$0xff]
  %v5126 = vld [vmem:[%s4364 + $0x370] sm:$0xff]
  %v5127 = vld [vmem:[%s4364 + $0x388] sm:$0xff]
  %v5128 = vld [vmem:[%s4364 + $0x390] sm:$0xff]
  %v5129 = vld [vmem:[%s4364 + $0x3a8] sm:$0xff]
  %v5130 = vld [vmem:[%s4364 + $0x3b0] sm:$0xff]
  %v5131 = vld [vmem:[%s4364 + $0x3c8] sm:$0xff]
  %v5132 = vld [vmem:[%s4364 + $0x3d0] sm:$0xff]
  %v5133 = vld [vmem:[%s4364 + $0x3e8] sm:$0xff]
  %v5134 = vld [vmem:[%s4364 + $0x3f0] sm:$0xff]
  %v5135 = vld [vmem:[%s4364 + $0x408] sm:$0xff]
  %v5136 = vld [vmem:[%s4364 + $0x410] sm:$0xff]
  %v5137 = vld [vmem:[%s4364 + $0x428] sm:$0xff]
  %v5138 = vld [vmem:[%s4364 + $0x430] sm:$0xff]
  %s5139 = scalar_lea.vmem %s1, 28
  %v5140 = vld [vmem:[%s5139] sm:$0xf]
  %v5142 = vsel %vm84, %v5075, 0
  %v5145 = vsel %vm84, %v5076, 0
  %v5148 = vsel %vm84, %v5077, 0
  %v5151 = vsel %vm84, %v5078, 0
  %v5154 = vsel %vm84, %v5079, 0
  %v5157 = vsel %vm84, %v5080, 0
  %v5160 = vsel %vm84, %v5081, 0
  %v5163 = vsel %vm84, %v5082, 0
  %v5166 = vsel %vm84, %v5083, 0
  %v5169 = vsel %vm84, %v5084, 0
  %v5172 = vsel %vm84, %v5085, 0
  %v5175 = vsel %vm84, %v5086, 0
  %v5178 = vsel %vm84, %v5087, 0
  %v5181 = vsel %vm84, %v5088, 0
  %v5184 = vsel %vm84, %v5089, 0
  %v5187 = vsel %vm84, %v5090, 0
  %v5190 = vsel %vm84, %v5091, 0
  %v5193 = vsel %vm84, %v5092, 0
  %v5196 = vsel %vm84, %v5093, 0
  %v5199 = vsel %vm84, %v5094, 0
  %v5202 = vsel %vm84, %v5095, 0
  %v5205 = vsel %vm84, %v5096, 0
  %v5208 = vsel %vm84, %v5097, 0
  %v5211 = vsel %vm84, %v5098, 0
  %v5214 = vsel %vm84, %v5099, 0
  %v5217 = vsel %vm84, %v5100, 0
  %v5220 = vsel %vm84, %v5101, 0
  %v5223 = vsel %vm84, %v5102, 0
  %v5226 = vsel %vm84, %v5103, 0
  %v5229 = vsel %vm84, %v5104, 0
  %v5232 = vsel %vm84, %v5105, 0
  %v5235 = vsel %vm84, %v5106, 0
  %v5238 = vsel %vm84, %v5107, 0
  %v5241 = vsel %vm84, %v5108, 0
  %v5244 = vsel %vm84, %v5109, 0
  %v5247 = vsel %vm84, %v5110, 0
  %v5250 = vsel %vm84, %v5111, 0
  %v5253 = vsel %vm84, %v5112, 0
  %v5256 = vsel %vm84, %v5113, 0
  %v5259 = vsel %vm84, %v5114, 0
  %v5262 = vsel %vm84, %v5115, 0
  %v5265 = vsel %vm84, %v5116, 0
  %v5268 = vsel %vm84, %v5117, 0
  %v5271 = vsel %vm84, %v5118, 0
  %v5274 = vsel %vm84, %v5119, 0
  %v5277 = vsel %vm84, %v5120, 0
  %v5280 = vsel %vm84, %v5121, 0
  %v5283 = vsel %vm84, %v5122, 0
  %v5286 = vsel %vm84, %v5123, 0
  %v5289 = vsel %vm84, %v5124, 0
  %v5292 = vsel %vm84, %v5125, 0
  %v5295 = vsel %vm84, %v5126, 0
  %v5298 = vsel %vm84, %v5127, 0
  %v5301 = vsel %vm84, %v5128, 0
  %v5304 = vsel %vm84, %v5129, 0
  %v5307 = vsel %vm84, %v5130, 0
  %v5310 = vsel %vm84, %v5131, 0
  %v5313 = vsel %vm84, %v5132, 0
  %v5316 = vsel %vm84, %v5133, 0
  %v5319 = vsel %vm84, %v5134, 0
  %v5322 = vsel %vm84, %v5135, 0
  %v5325 = vsel %vm84, %v5136, 0
  %v5328 = vsel %vm84, %v5137, 0
  %v5331 = vsel %vm84, %v5138, 0
  %v5334 = vsel %vm555, %v5140, 0
  %5336 = vmatprep.subr.mxu0 0.0
  %5337 = vmatpush1.msra.mxu0 %v5334
  %5338 = vmatprep.subr.mxu0 0.0
  %5339 = vmatpush1.msra.mxu0 0.0
  %5340 = vmatprep.subr.mxu0 0.0
  %5341 = vmatpush1.msra.mxu0 0.0
  %5342 = vmatprep.subr.mxu0 0.0
  %5343 = vmatpush1.msra.mxu0 0.0
  %5344 = vmatprep.subr.mxu0 0.0
  %5345 = vmatpush1.msra.mxu0 0.0
  %5346 = vmatprep.subr.mxu0 0.0
  %5347 = vmatpush1.msra.mxu0 0.0
  %5348 = vmatprep.subr.mxu0 0.0
  %5349 = vmatpush1.msra.mxu0 0.0
  %5350 = vmatprep.subr.mxu0 0.0
  %5351 = vmatpush1.msra.mxu0 0.0
  %5352 = vmatprep.subr.mxu0 0.0
  %5353 = vmatpush1.msra.mxu0 0.0
  %5354 = vmatprep.subr.mxu0 0.0
  %5355 = vmatpush1.msra.mxu0 0.0
  %5356 = vmatprep.subr.mxu0 0.0
  %5357 = vmatpush1.msra.mxu0 0.0
  %5358 = vmatprep.subr.mxu0 0.0
  %5359 = vmatpush1.msra.mxu0 0.0
  %5360 = vmatprep.subr.mxu0 0.0
  %5361 = vmatpush1.msra.mxu0 0.0
  %5362 = vmatprep.subr.mxu0 0.0
  %5363 = vmatpush1.msra.mxu0 0.0
  %5364 = vmatprep.subr.mxu0 0.0
  %5365 = vmatpush1.msra.mxu0 0.0
  %5366 = vmatprep.subr.mxu0 0.0
  %5367 = vmatpush1.msra.mxu0 0.0
  %5368 = vmatprep.subr.mxu0 0.0
  %5369 = vmatpush1.msra.mxu0 0.0
  %5370 = vmatprep.subr.mxu0 0.0
  %5371 = vmatpush1.msra.mxu0 0.0
  %5372 = vmatprep.subr.mxu0 0.0
  %5373 = vmatpush1.msra.mxu0 0.0
  %5374 = vmatprep.subr.mxu0 0.0
  %5375 = vmatpush1.msra.mxu0 0.0
  %5376 = vmatprep.subr.mxu0 0.0
  %5377 = vmatpush1.msra.mxu0 0.0
  %5378 = vmatprep.subr.mxu0 0.0
  %5379 = vmatpush1.msra.mxu0 0.0
  %5380 = vmatprep.subr.mxu0 0.0
  %5381 = vmatpush1.msra.mxu0 0.0
  %5382 = vmatprep.subr.mxu0 0.0
  %5383 = vmatpush1.msra.mxu0 0.0
  %5384 = vmatprep.subr.mxu0 0.0
  %5385 = vmatpush1.msra.mxu0 0.0
  %5386 = vmatprep.subr.mxu0 0.0
  %5387 = vmatpush1.msra.mxu0 0.0
  %5388 = vmatprep.subr.mxu0 0.0
  %5389 = vmatpush1.msra.mxu0 0.0
  %5390 = vmatprep.subr.mxu0 0.0
  %5391 = vmatpush1.msra.mxu0 0.0
  %5392 = vmatprep.subr.mxu0 0.0
  %5393 = vmatpush1.msra.mxu0 0.0
  %5394 = vmatprep.subr.mxu0 0.0
  %5395 = vmatpush1.msra.mxu0 0.0
  %5396 = vmatprep.subr.mxu0 0.0
  %5397 = vmatpush1.msra.mxu0 0.0
  %5398 = vmatprep.subr.mxu0 0.0
  %5399 = vmatpush1.msra.mxu0 0.0
  %5400 = vmatprep.mubr.f32.mxu0 0.0
  %5401 = vmatmul.mubr.f32.gmra.mrb[0].mxu0 %v5142
  %v5402 = vpop.f32.mrb[0].mxu0
  %v5403 = vadd.f32 0.0, %v5402
  %v5404 = vpop.f32.mrb[0].mxu0
  %5405 = vmatprep.mubr.f32.mxu0 0.0
  %5406 = vmatmul.mubr.f32.gmra.mrb[0].mxu0 %v5145
  %v5407 = vpop.f32.mrb[0].mxu0
  %v5408 = vadd.f32 0.0, %v5407
  %v5409 = vpop.f32.mrb[0].mxu0
  %5410 = vmatprep.mubr.f32.mxu0 0.0
  %5411 = vmatmul.mubr.f32.gmra.mrb[0].mxu0 %v5148
  %v5412 = vpop.f32.mrb[0].mxu0
  %v5413 = vadd.f32 0.0, %v5412
  %v5414 = vpop.f32.mrb[0].mxu0
  %5415 = vmatprep.mubr.f32.mxu0 0.0
  %5416 = vmatmul.mubr.f32.gmra.mrb[0].mxu0 %v5151
  %v5417 = vpop.f32.mrb[0].mxu0
  %v5418 = vadd.f32 0.0, %v5417
  %v5419 = vpop.f32.mrb[0].mxu0
  %5420 = vmatprep.mubr.f32.mxu0 0.0
  %5421 = vmatmul.mubr.f32.gmra.mrb[0].mxu0 %v5154
  %v5422 = vpop.f32.mrb[0].mxu0
  %v5423 = vadd.f32 0.0, %v5422
  %v5424 = vpop.f32.mrb[0].mxu0
  %5425 = vmatprep.mubr.f32.mxu0 0.0
  %5426 = vmatmul.mubr.f32.gmra.mrb[0].mxu0 %v5157
  %v5427 = vpop.f32.mrb[0].mxu0
  %v5428 = vadd.f32 0.0, %v5427
  %v5429 = vpop.f32.mrb[0].mxu0
  %5430 = vmatprep.mubr.f32.mxu0 0.0
  %5431 = vmatmul.mubr.f32.gmra.mrb[0].mxu0 %v5160
  %v5432 = vpop.f32.mrb[0].mxu0
  %v5433 = vadd.f32 0.0, %v5432
  %v5434 = vpop.f32.mrb[0].mxu0
  %5435 = vmatprep.mubr.f32.mxu0 0.0
  %5436 = vmatmul.mubr.f32.gmra.mrb[0].mxu0 %v5163
  %v5437 = vpop.f32.mrb[0].mxu0
  %v5438 = vadd.f32 0.0, %v5437
  %v5439 = vpop.f32.mrb[0].mxu0
  %5440 = vmatprep.mubr.f32.mxu0 0.0
  %5441 = vmatmul.mubr.f32.gmra.mrb[0].mxu0 %v5166
  %v5442 = vpop.f32.mrb[0].mxu0
  %v5443 = vadd.f32 0.0, %v5442
  %v5444 = vpop.f32.mrb[0].mxu0
  %5445 = vmatprep.mubr.f32.mxu0 0.0
  %5446 = vmatmul.mubr.f32.gmra.mrb[0].mxu0 %v5169
  %v5447 = vpop.f32.mrb[0].mxu0
  %v5448 = vadd.f32 0.0, %v5447
  %v5449 = vpop.f32.mrb[0].mxu0
  %5450 = vmatprep.mubr.f32.mxu0 0.0
  %5451 = vmatmul.mubr.f32.gmra.mrb[0].mxu0 %v5172
  %v5452 = vpop.f32.mrb[0].mxu0
  %v5453 = vadd.f32 0.0, %v5452
  %v5454 = vpop.f32.mrb[0].mxu0
  %5455 = vmatprep.mubr.f32.mxu0 0.0
  %5456 = vmatmul.mubr.f32.gmra.mrb[0].mxu0 %v5175
  %v5457 = vpop.f32.mrb[0].mxu0
  %v5458 = vadd.f32 0.0, %v5457
  %v5459 = vpop.f32.mrb[0].mxu0
  %5460 = vmatprep.mubr.f32.mxu0 0.0
  %5461 = vmatmul.mubr.f32.gmra.mrb[0].mxu0 %v5178
  %v5462 = vpop.f32.mrb[0].mxu0
  %v5463 = vadd.f32 0.0, %v5462
  %v5464 = vpop.f32.mrb[0].mxu0
  %5465 = vmatprep.mubr.f32.mxu0 0.0
  %5466 = vmatmul.mubr.f32.gmra.mrb[0].mxu0 %v5181
  %v5467 = vpop.f32.mrb[0].mxu0
  %v5468 = vadd.f32 0.0, %v5467
  %v5469 = vpop.f32.mrb[0].mxu0
  %5470 = vmatprep.mubr.f32.mxu0 0.0
  %5471 = vmatmul.mubr.f32.gmra.mrb[0].mxu0 %v5184
  %v5472 = vpop.f32.mrb[0].mxu0
  %v5473 = vadd.f32 0.0, %v5472
  %v5474 = vpop.f32.mrb[0].mxu0
  %5475 = vmatprep.mubr.f32.mxu0 0.0
  %5476 = vmatmul.mubr.f32.gmra.mrb[0].mxu0 %v5187
  %v5477 = vpop.f32.mrb[0].mxu0
  %v5478 = vadd.f32 0.0, %v5477
  %v5479 = vpop.f32.mrb[0].mxu0
  %5480 = vmatprep.mubr.f32.mxu0 0.0
  %5481 = vmatmul.mubr.f32.gmra.mrb[0].mxu0 %v5190
  %v5482 = vpop.f32.mrb[0].mxu0
  %v5483 = vadd.f32 0.0, %v5482
  %v5484 = vpop.f32.mrb[0].mxu0
  %5485 = vmatprep.mubr.f32.mxu0 0.0
  %5486 = vmatmul.mubr.f32.gmra.mrb[0].mxu0 %v5193
  %v5487 = vpop.f32.mrb[0].mxu0
  %v5488 = vadd.f32 0.0, %v5487
  %v5489 = vpop.f32.mrb[0].mxu0
  %5490 = vmatprep.mubr.f32.mxu0 0.0
  %5491 = vmatmul.mubr.f32.gmra.mrb[0].mxu0 %v5196
  %v5492 = vpop.f32.mrb[0].mxu0
  %v5493 = vadd.f32 0.0, %v5492
  %v5494 = vpop.f32.mrb[0].mxu0
  %5495 = vmatprep.mubr.f32.mxu0 0.0
  %5496 = vmatmul.mubr.f32.gmra.mrb[0].mxu0 %v5199
  %v5497 = vpop.f32.mrb[0].mxu0
  %v5498 = vadd.f32 0.0, %v5497
  %v5499 = vpop.f32.mrb[0].mxu0
  %5500 = vmatprep.mubr.f32.mxu0 0.0
  %5501 = vmatmul.mubr.f32.gmra.mrb[0].mxu0 %v5202
  %v5502 = vpop.f32.mrb[0].mxu0
  %v5503 = vadd.f32 0.0, %v5502
  %v5504 = vpop.f32.mrb[0].mxu0
  %5505 = vmatprep.mubr.f32.mxu0 0.0
  %5506 = vmatmul.mubr.f32.gmra.mrb[0].mxu0 %v5205
  %v5507 = vpop.f32.mrb[0].mxu0
  %v5508 = vadd.f32 0.0, %v5507
  %v5509 = vpop.f32.mrb[0].mxu0
  %5510 = vmatprep.mubr.f32.mxu0 0.0
  %5511 = vmatmul.mubr.f32.gmra.mrb[0].mxu0 %v5208
  %v5512 = vpop.f32.mrb[0].mxu0
  %v5513 = vadd.f32 0.0, %v5512
  %v5514 = vpop.f32.mrb[0].mxu0
  %5515 = vmatprep.mubr.f32.mxu0 0.0
  %5516 = vmatmul.mubr.f32.gmra.mrb[0].mxu0 %v5211
  %v5517 = vpop.f32.mrb[0].mxu0
  %v5518 = vadd.f32 0.0, %v5517
  %v5519 = vpop.f32.mrb[0].mxu0
  %5520 = vmatprep.mubr.f32.mxu0 0.0
  %5521 = vmatmul.mubr.f32.gmra.mrb[0].mxu0 %v5214
  %v5522 = vpop.f32.mrb[0].mxu0
  %v5523 = vadd.f32 0.0, %v5522
  %v5524 = vpop.f32.mrb[0].mxu0
  %5525 = vmatprep.mubr.f32.mxu0 0.0
  %5526 = vmatmul.mubr.f32.gmra.mrb[0].mxu0 %v5217
  %v5527 = vpop.f32.mrb[0].mxu0
  %v5528 = vadd.f32 0.0, %v5527
  %v5529 = vpop.f32.mrb[0].mxu0
  %5530 = vmatprep.mubr.f32.mxu0 0.0
  %5531 = vmatmul.mubr.f32.gmra.mrb[0].mxu0 %v5220
  %v5532 = vpop.f32.mrb[0].mxu0
  %v5533 = vadd.f32 0.0, %v5532
  %v5534 = vpop.f32.mrb[0].mxu0
  %5535 = vmatprep.mubr.f32.mxu0 0.0
  %5536 = vmatmul.mubr.f32.gmra.mrb[0].mxu0 %v5223
  %v5537 = vpop.f32.mrb[0].mxu0
  %v5538 = vadd.f32 0.0, %v5537
  %v5539 = vpop.f32.mrb[0].mxu0
  %5540 = vmatprep.mubr.f32.mxu0 0.0
  %5541 = vmatmul.mubr.f32.gmra.mrb[0].mxu0 %v5226
  %v5542 = vpop.f32.mrb[0].mxu0
  %v5543 = vadd.f32 0.0, %v5542
  %v5544 = vpop.f32.mrb[0].mxu0
  %5545 = vmatprep.mubr.f32.mxu0 0.0
  %5546 = vmatmul.mubr.f32.gmra.mrb[0].mxu0 %v5229
  %v5547 = vpop.f32.mrb[0].mxu0
  %v5548 = vadd.f32 0.0, %v5547
  %v5549 = vpop.f32.mrb[0].mxu0
  %5550 = vmatprep.mubr.f32.mxu0 0.0
  %5551 = vmatmul.mubr.f32.gmra.mrb[0].mxu0 %v5232
  %v5552 = vpop.f32.mrb[0].mxu0
  %v5553 = vadd.f32 0.0, %v5552
  %v5554 = vpop.f32.mrb[0].mxu0
  %5555 = vmatprep.mubr.f32.mxu0 0.0
  %5556 = vmatmul.mubr.f32.gmra.mrb[0].mxu0 %v5235
  %v5557 = vpop.f32.mrb[0].mxu0
  %v5558 = vadd.f32 0.0, %v5557
  %v5559 = vpop.f32.mrb[0].mxu0
  %5560 = vmatprep.mubr.f32.mxu0 0.0
  %5561 = vmatmul.mubr.f32.gmra.mrb[0].mxu0 %v5238
  %v5562 = vpop.f32.mrb[0].mxu0
  %v5563 = vadd.f32 0.0, %v5562
  %v5564 = vpop.f32.mrb[0].mxu0
  %5565 = vmatprep.mubr.f32.mxu0 0.0
  %5566 = vmatmul.mubr.f32.gmra.mrb[0].mxu0 %v5241
  %v5567 = vpop.f32.mrb[0].mxu0
  %v5568 = vadd.f32 0.0, %v5567
  %v5569 = vpop.f32.mrb[0].mxu0
  %5570 = vmatprep.mubr.f32.mxu0 0.0
  %5571 = vmatmul.mubr.f32.gmra.mrb[0].mxu0 %v5244
  %v5572 = vpop.f32.mrb[0].mxu0
  %v5573 = vadd.f32 0.0, %v5572
  %v5574 = vpop.f32.mrb[0].mxu0
  %5575 = vmatprep.mubr.f32.mxu0 0.0
  %5576 = vmatmul.mubr.f32.gmra.mrb[0].mxu0 %v5247
  %v5577 = vpop.f32.mrb[0].mxu0
  %v5578 = vadd.f32 0.0, %v5577
  %v5579 = vpop.f32.mrb[0].mxu0
  %5580 = vmatprep.mubr.f32.mxu0 0.0
  %5581 = vmatmul.mubr.f32.gmra.mrb[0].mxu0 %v5250
  %v5582 = vpop.f32.mrb[0].mxu0
  %v5583 = vadd.f32 0.0, %v5582
  %v5584 = vpop.f32.mrb[0].mxu0
  %5585 = vmatprep.mubr.f32.mxu0 0.0
  %5586 = vmatmul.mubr.f32.gmra.mrb[0].mxu0 %v5253
  %v5587 = vpop.f32.mrb[0].mxu0
  %v5588 = vadd.f32 0.0, %v5587
  %v5589 = vpop.f32.mrb[0].mxu0
  %5590 = vmatprep.mubr.f32.mxu0 0.0
  %5591 = vmatmul.mubr.f32.gmra.mrb[0].mxu0 %v5256
  %v5592 = vpop.f32.mrb[0].mxu0
  %v5593 = vadd.f32 0.0, %v5592
  %v5594 = vpop.f32.mrb[0].mxu0
  %5595 = vmatprep.mubr.f32.mxu0 0.0
  %5596 = vmatmul.mubr.f32.gmra.mrb[0].mxu0 %v5259
  %v5597 = vpop.f32.mrb[0].mxu0
  %v5598 = vadd.f32 0.0, %v5597
  %v5599 = vpop.f32.mrb[0].mxu0
  %5600 = vmatprep.mubr.f32.mxu0 0.0
  %5601 = vmatmul.mubr.f32.gmra.mrb[0].mxu0 %v5262
  %v5602 = vpop.f32.mrb[0].mxu0
  %v5603 = vadd.f32 0.0, %v5602
  %v5604 = vpop.f32.mrb[0].mxu0
  %5605 = vmatprep.mubr.f32.mxu0 0.0
  %5606 = vmatmul.mubr.f32.gmra.mrb[0].mxu0 %v5265
  %v5607 = vpop.f32.mrb[0].mxu0
  %v5608 = vadd.f32 0.0, %v5607
  %v5609 = vpop.f32.mrb[0].mxu0
  %5610 = vmatprep.mubr.f32.mxu0 0.0
  %5611 = vmatmul.mubr.f32.gmra.mrb[0].mxu0 %v5268
  %v5612 = vpop.f32.mrb[0].mxu0
  %v5613 = vadd.f32 0.0, %v5612
  %v5614 = vpop.f32.mrb[0].mxu0
  %5615 = vmatprep.mubr.f32.mxu0 0.0
  %5616 = vmatmul.mubr.f32.gmra.mrb[0].mxu0 %v5271
  %v5617 = vpop.f32.mrb[0].mxu0
  %v5618 = vadd.f32 0.0, %v5617
  %v5619 = vpop.f32.mrb[0].mxu0
  %5620 = vmatprep.mubr.f32.mxu0 0.0
  %5621 = vmatmul.mubr.f32.gmra.mrb[0].mxu0 %v5274
  %v5622 = vpop.f32.mrb[0].mxu0
  %v5623 = vadd.f32 0.0, %v5622
  %v5624 = vpop.f32.mrb[0].mxu0
  %5625 = vmatprep.mubr.f32.mxu0 0.0
  %5626 = vmatmul.mubr.f32.gmra.mrb[0].mxu0 %v5277
  %v5627 = vpop.f32.mrb[0].mxu0
  %v5628 = vadd.f32 0.0, %v5627
  %v5629 = vpop.f32.mrb[0].mxu0
  %5630 = vmatprep.mubr.f32.mxu0 0.0
  %5631 = vmatmul.mubr.f32.gmra.mrb[0].mxu0 %v5280
  %v5632 = vpop.f32.mrb[0].mxu0
  %v5633 = vadd.f32 0.0, %v5632
  %v5634 = vpop.f32.mrb[0].mxu0
  %5635 = vmatprep.mubr.f32.mxu0 0.0
  %5636 = vmatmul.mubr.f32.gmra.mrb[0].mxu0 %v5283
  %v5637 = vpop.f32.mrb[0].mxu0
  %v5638 = vadd.f32 0.0, %v5637
  %v5639 = vpop.f32.mrb[0].mxu0
  %5640 = vmatprep.mubr.f32.mxu0 0.0
  %5641 = vmatmul.mubr.f32.gmra.mrb[0].mxu0 %v5286
  %v5642 = vpop.f32.mrb[0].mxu0
  %v5643 = vadd.f32 0.0, %v5642
  %v5644 = vpop.f32.mrb[0].mxu0
  %5645 = vmatprep.mubr.f32.mxu0 0.0
  %5646 = vmatmul.mubr.f32.gmra.mrb[0].mxu0 %v5289
  %v5647 = vpop.f32.mrb[0].mxu0
  %v5648 = vadd.f32 0.0, %v5647
  %v5649 = vpop.f32.mrb[0].mxu0
  %5650 = vmatprep.mubr.f32.mxu0 0.0
  %5651 = vmatmul.mubr.f32.gmra.mrb[0].mxu0 %v5292
  %v5652 = vpop.f32.mrb[0].mxu0
  %v5653 = vadd.f32 0.0, %v5652
  %v5654 = vpop.f32.mrb[0].mxu0
  %5655 = vmatprep.mubr.f32.mxu0 0.0
  %5656 = vmatmul.mubr.f32.gmra.mrb[0].mxu0 %v5295
  %v5657 = vpop.f32.mrb[0].mxu0
  %v5658 = vadd.f32 0.0, %v5657
  %v5659 = vpop.f32.mrb[0].mxu0
  %5660 = vmatprep.mubr.f32.mxu0 0.0
  %5661 = vmatmul.mubr.f32.gmra.mrb[0].mxu0 %v5298
  %v5662 = vpop.f32.mrb[0].mxu0
  %v5663 = vadd.f32 0.0, %v5662
  %v5664 = vpop.f32.mrb[0].mxu0
  %5665 = vmatprep.mubr.f32.mxu0 0.0
  %5666 = vmatmul.mubr.f32.gmra.mrb[0].mxu0 %v5301
  %v5667 = vpop.f32.mrb[0].mxu0
  %v5668 = vadd.f32 0.0, %v5667
  %v5669 = vpop.f32.mrb[0].mxu0
  %5670 = vmatprep.mubr.f32.mxu0 0.0
  %5671 = vmatmul.mubr.f32.gmra.mrb[0].mxu0 %v5304
  %v5672 = vpop.f32.mrb[0].mxu0
  %v5673 = vadd.f32 0.0, %v5672
  %v5674 = vpop.f32.mrb[0].mxu0
  %5675 = vmatprep.mubr.f32.mxu0 0.0
  %5676 = vmatmul.mubr.f32.gmra.mrb[0].mxu0 %v5307
  %v5677 = vpop.f32.mrb[0].mxu0
  %v5678 = vadd.f32 0.0, %v5677
  %v5679 = vpop.f32.mrb[0].mxu0
  %5680 = vmatprep.mubr.f32.mxu0 0.0
  %5681 = vmatmul.mubr.f32.gmra.mrb[0].mxu0 %v5310
  %v5682 = vpop.f32.mrb[0].mxu0
  %v5683 = vadd.f32 0.0, %v5682
  %v5684 = vpop.f32.mrb[0].mxu0
  %5685 = vmatprep.mubr.f32.mxu0 0.0
  %5686 = vmatmul.mubr.f32.gmra.mrb[0].mxu0 %v5313
  %v5687 = vpop.f32.mrb[0].mxu0
  %v5688 = vadd.f32 0.0, %v5687
  %v5689 = vpop.f32.mrb[0].mxu0
  %5690 = vmatprep.mubr.f32.mxu0 0.0
  %5691 = vmatmul.mubr.f32.gmra.mrb[0].mxu0 %v5316
  %v5692 = vpop.f32.mrb[0].mxu0
  %v5693 = vadd.f32 0.0, %v5692
  %v5694 = vpop.f32.mrb[0].mxu0
  %5695 = vmatprep.mubr.f32.mxu0 0.0
  %5696 = vmatmul.mubr.f32.gmra.mrb[0].mxu0 %v5319
  %v5697 = vpop.f32.mrb[0].mxu0
  %v5698 = vadd.f32 0.0, %v5697
  %v5699 = vpop.f32.mrb[0].mxu0
  %5700 = vmatprep.mubr.f32.mxu0 0.0
  %5701 = vmatmul.mubr.f32.gmra.mrb[0].mxu0 %v5322
  %v5702 = vpop.f32.mrb[0].mxu0
  %v5703 = vadd.f32 0.0, %v5702
  %v5704 = vpop.f32.mrb[0].mxu0
  %5705 = vmatprep.mubr.f32.mxu0 0.0
  %5706 = vmatmul.mubr.f32.gmra.mrb[0].mxu0 %v5325
  %v5707 = vpop.f32.mrb[0].mxu0
  %v5708 = vadd.f32 0.0, %v5707
  %v5709 = vpop.f32.mrb[0].mxu0
  %5710 = vmatprep.mubr.f32.mxu0 0.0
  %5711 = vmatmul.mubr.f32.gmra.mrb[0].mxu0 %v5328
  %v5712 = vpop.f32.mrb[0].mxu0
  %v5713 = vadd.f32 0.0, %v5712
  %v5714 = vpop.f32.mrb[0].mxu0
  %5715 = vmatprep.mubr.f32.mxu0 0.0
  %5716 = vmatmul.mubr.f32.gmra.mrb[0].mxu0 %v5331
  %v5717 = vpop.f32.mrb[0].mxu0
  %v5718 = vadd.f32 0.0, %v5717
  %v5719 = vpop.f32.mrb[0].mxu0
  %5720 = vdwg.mxu0
  %v5721 = vadd.f32 %v5011, %v5403
  %v5722 = vadd.f32 %v5012, %v5408
  %v5723 = vadd.f32 %v5013, %v5413
  %v5724 = vadd.f32 %v5014, %v5418
  %v5725 = vadd.f32 %v5015, %v5423
  %v5726 = vadd.f32 %v5016, %v5428
  %v5727 = vadd.f32 %v5017, %v5433
  %v5728 = vadd.f32 %v5018, %v5438
  %v5729 = vadd.f32 %v5019, %v5443
  %v5730 = vadd.f32 %v5020, %v5448
  %v5731 = vadd.f32 %v5021, %v5453
  %v5732 = vadd.f32 %v5022, %v5458
  %v5733 = vadd.f32 %v5023, %v5463
  %v5734 = vadd.f32 %v5024, %v5468
  %v5735 = vadd.f32 %v5025, %v5473
  %v5736 = vadd.f32 %v5026, %v5478
  %v5737 = vadd.f32 %v5027, %v5483
  %v5738 = vadd.f32 %v5028, %v5488
  %v5739 = vadd.f32 %v5029, %v5493
  %v5740 = vadd.f32 %v5030, %v5498
  %v5741 = vadd.f32 %v5031, %v5503
  %v5742 = vadd.f32 %v5032, %v5508
  %v5743 = vadd.f32 %v5033, %v5513
  %v5744 = vadd.f32 %v5034, %v5518
  %v5745 = vadd.f32 %v5035, %v5523
  %v5746 = vadd.f32 %v5036, %v5528
  %v5747 = vadd.f32 %v5037, %v5533
  %v5748 = vadd.f32 %v5038, %v5538
  %v5749 = vadd.f32 %v5039, %v5543
  %v5750 = vadd.f32 %v5040, %v5548
  %v5751 = vadd.f32 %v5041, %v5553
  %v5752 = vadd.f32 %v5042, %v5558
  %v5753 = vadd.f32 %v5043, %v5563
  %v5754 = vadd.f32 %v5044, %v5568
  %v5755 = vadd.f32 %v5045, %v5573
  %v5756 = vadd.f32 %v5046, %v5578
  %v5757 = vadd.f32 %v5047, %v5583
  %v5758 = vadd.f32 %v5048, %v5588
  %v5759 = vadd.f32 %v5049, %v5593
  %v5760 = vadd.f32 %v5050, %v5598
  %v5761 = vadd.f32 %v5051, %v5603
  %v5762 = vadd.f32 %v5052, %v5608
  %v5763 = vadd.f32 %v5053, %v5613
  %v5764 = vadd.f32 %v5054, %v5618
  %v5765 = vadd.f32 %v5055, %v5623
  %v5766 = vadd.f32 %v5056, %v5628
  %v5767 = vadd.f32 %v5057, %v5633
  %v5768 = vadd.f32 %v5058, %v5638
  %v5769 = vadd.f32 %v5059, %v5643
  %v5770 = vadd.f32 %v5060, %v5648
  %v5771 = vadd.f32 %v5061, %v5653
  %v5772 = vadd.f32 %v5062, %v5658
  %v5773 = vadd.f32 %v5063, %v5663
  %v5774 = vadd.f32 %v5064, %v5668
  %v5775 = vadd.f32 %v5065, %v5673
  %v5776 = vadd.f32 %v5066, %v5678
  %v5777 = vadd.f32 %v5067, %v5683
  %v5778 = vadd.f32 %v5068, %v5688
  %v5779 = vadd.f32 %v5069, %v5693
  %v5780 = vadd.f32 %v5070, %v5698
  %v5781 = vadd.f32 %v5071, %v5703
  %v5782 = vadd.f32 %v5072, %v5708
  %v5783 = vadd.f32 %v5073, %v5713
  %v5784 = vadd.f32 %v5074, %v5718
  %v5785 = vld [vmem:[%s4364 + $0x9] sm:$0xff]
  %v5786 = vld [vmem:[%s4364 + $0x11] sm:$0xff]
  %v5787 = vld [vmem:[%s4364 + $0x29] sm:$0xff]
  %v5788 = vld [vmem:[%s4364 + $0x31] sm:$0xff]
  %v5789 = vld [vmem:[%s4364 + $0x49] sm:$0xff]
  %v5790 = vld [vmem:[%s4364 + $0x51] sm:$0xff]
  %v5791 = vld [vmem:[%s4364 + $0x69] sm:$0xff]
  %v5792 = vld [vmem:[%s4364 + $0x71] sm:$0xff]
  %v5793 = vld [vmem:[%s4364 + $0x89] sm:$0xff]
  %v5794 = vld [vmem:[%s4364 + $0x91] sm:$0xff]
  %v5795 = vld [vmem:[%s4364 + $0xa9] sm:$0xff]
  %v5796 = vld [vmem:[%s4364 + $0xb1] sm:$0xff]
  %v5797 = vld [vmem:[%s4364 + $0xc9] sm:$0xff]
  %v5798 = vld [vmem:[%s4364 + $0xd1] sm:$0xff]
  %v5799 = vld [vmem:[%s4364 + $0xe9] sm:$0xff]
  %v5800 = vld [vmem:[%s4364 + $0xf1] sm:$0xff]
  %v5801 = vld [vmem:[%s4364 + $0x109] sm:$0xff]
  %v5802 = vld [vmem:[%s4364 + $0x111] sm:$0xff]
  %v5803 = vld [vmem:[%s4364 + $0x129] sm:$0xff]
  %v5804 = vld [vmem:[%s4364 + $0x131] sm:$0xff]
  %v5805 = vld [vmem:[%s4364 + $0x149] sm:$0xff]
  %v5806 = vld [vmem:[%s4364 + $0x151] sm:$0xff]
  %v5807 = vld [vmem:[%s4364 + $0x169] sm:$0xff]
  %v5808 = vld [vmem:[%s4364 + $0x171] sm:$0xff]
  %v5809 = vld [vmem:[%s4364 + $0x189] sm:$0xff]
  %v5810 = vld [vmem:[%s4364 + $0x191] sm:$0xff]
  %v5811 = vld [vmem:[%s4364 + $0x1a9] sm:$0xff]
  %v5812 = vld [vmem:[%s4364 + $0x1b1] sm:$0xff]
  %v5813 = vld [vmem:[%s4364 + $0x1c9] sm:$0xff]
  %v5814 = vld [vmem:[%s4364 + $0x1d1] sm:$0xff]
  %v5815 = vld [vmem:[%s4364 + $0x1e9] sm:$0xff]
  %v5816 = vld [vmem:[%s4364 + $0x1f1] sm:$0xff]
  %v5817 = vld [vmem:[%s4364 + $0x249] sm:$0xff]
  %v5818 = vld [vmem:[%s4364 + $0x251] sm:$0xff]
  %v5819 = vld [vmem:[%s4364 + $0x269] sm:$0xff]
  %v5820 = vld [vmem:[%s4364 + $0x271] sm:$0xff]
  %v5821 = vld [vmem:[%s4364 + $0x289] sm:$0xff]
  %v5822 = vld [vmem:[%s4364 + $0x291] sm:$0xff]
  %v5823 = vld [vmem:[%s4364 + $0x2a9] sm:$0xff]
  %v5824 = vld [vmem:[%s4364 + $0x2b1] sm:$0xff]
  %v5825 = vld [vmem:[%s4364 + $0x2c9] sm:$0xff]
  %v5826 = vld [vmem:[%s4364 + $0x2d1] sm:$0xff]
  %v5827 = vld [vmem:[%s4364 + $0x2e9] sm:$0xff]
  %v5828 = vld [vmem:[%s4364 + $0x2f1] sm:$0xff]
  %v5829 = vld [vmem:[%s4364 + $0x309] sm:$0xff]
  %v5830 = vld [vmem:[%s4364 + $0x311] sm:$0xff]
  %v5831 = vld [vmem:[%s4364 + $0x329] sm:$0xff]
  %v5832 = vld [vmem:[%s4364 + $0x331] sm:$0xff]
  %v5833 = vld [vmem:[%s4364 + $0x349] sm:$0xff]
  %v5834 = vld [vmem:[%s4364 + $0x351] sm:$0xff]
  %v5835 = vld [vmem:[%s4364 + $0x369] sm:$0xff]
  %v5836 = vld [vmem:[%s4364 + $0x371] sm:$0xff]
  %v5837 = vld [vmem:[%s4364 + $0x389] sm:$0xff]
  %v5838 = vld [vmem:[%s4364 + $0x391] sm:$0xff]
  %v5839 = vld [vmem:[%s4364 + $0x3a9] sm:$0xff]
  %v5840 = vld [vmem:[%s4364 + $0x3b1] sm:$0xff]
  %v5841 = vld [vmem:[%s4364 + $0x3c9] sm:$0xff]
  %v5842 = vld [vmem:[%s4364 + $0x3d1] sm:$0xff]
  %v5843 = vld [vmem:[%s4364 + $0x3e9] sm:$0xff]
  %v5844 = vld [vmem:[%s4364 + $0x3f1] sm:$0xff]
  %v5845 = vld [vmem:[%s4364 + $0x409] sm:$0xff]
  %v5846 = vld [vmem:[%s4364 + $0x411] sm:$0xff]
  %v5847 = vld [vmem:[%s4364 + $0x429] sm:$0xff]
  %v5848 = vld [vmem:[%s4364 + $0x431] sm:$0xff]
  %s5849 = scalar_lea.vmem %s1, 32
  %v5850 = vld [vmem:[%s5849] sm:$0xf]
  %v5852 = vsel %vm84, %v5785, 0
  %v5855 = vsel %vm84, %v5786, 0
  %v5858 = vsel %vm84, %v5787, 0
  %v5861 = vsel %vm84, %v5788, 0
  %v5864 = vsel %vm84, %v5789, 0
  %v5867 = vsel %vm84, %v5790, 0
  %v5870 = vsel %vm84, %v5791, 0
  %v5873 = vsel %vm84, %v5792, 0
  %v5876 = vsel %vm84, %v5793, 0
  %v5879 = vsel %vm84, %v5794, 0
  %v5882 = vsel %vm84, %v5795, 0
  %v5885 = vsel %vm84, %v5796, 0
  %v5888 = vsel %vm84, %v5797, 0
  %v5891 = vsel %vm84, %v5798, 0
  %v5894 = vsel %vm84, %v5799, 0
  %v5897 = vsel %vm84, %v5800, 0
  %v5900 = vsel %vm84, %v5801, 0
  %v5903 = vsel %vm84, %v5802, 0
  %v5906 = vsel %vm84, %v5803, 0
  %v5909 = vsel %vm84, %v5804, 0
  %v5912 = vsel %vm84, %v5805, 0
  %v5915 = vsel %vm84, %v5806, 0
  %v5918 = vsel %vm84, %v5807, 0
  %v5921 = vsel %vm84, %v5808, 0
  %v5924 = vsel %vm84, %v5809, 0
  %v5927 = vsel %vm84, %v5810, 0
  %v5930 = vsel %vm84, %v5811, 0
  %v5933 = vsel %vm84, %v5812, 0
  %v5936 = vsel %vm84, %v5813, 0
  %v5939 = vsel %vm84, %v5814, 0
  %v5942 = vsel %vm84, %v5815, 0
  %v5945 = vsel %vm84, %v5816, 0
  %v5948 = vsel %vm84, %v5817, 0
  %v5951 = vsel %vm84, %v5818, 0
  %v5954 = vsel %vm84, %v5819, 0
  %v5957 = vsel %vm84, %v5820, 0
  %v5960 = vsel %vm84, %v5821, 0
  %v5963 = vsel %vm84, %v5822, 0
  %v5966 = vsel %vm84, %v5823, 0
  %v5969 = vsel %vm84, %v5824, 0
  %v5972 = vsel %vm84, %v5825, 0
  %v5975 = vsel %vm84, %v5826, 0
  %v5978 = vsel %vm84, %v5827, 0
  %v5981 = vsel %vm84, %v5828, 0
  %v5984 = vsel %vm84, %v5829, 0
  %v5987 = vsel %vm84, %v5830, 0
  %v5990 = vsel %vm84, %v5831, 0
  %v5993 = vsel %vm84, %v5832, 0
  %v5996 = vsel %vm84, %v5833, 0
  %v5999 = vsel %vm84, %v5834, 0
  %v6002 = vsel %vm84, %v5835, 0
  %v6005 = vsel %vm84, %v5836, 0
  %v6008 = vsel %vm84, %v5837, 0
  %v6011 = vsel %vm84, %v5838, 0
  %v6014 = vsel %vm84, %v5839, 0
  %v6017 = vsel %vm84, %v5840, 0
  %v6020 = vsel %vm84, %v5841, 0
  %v6023 = vsel %vm84, %v5842, 0
  %v6026 = vsel %vm84, %v5843, 0
  %v6029 = vsel %vm84, %v5844, 0
  %v6032 = vsel %vm84, %v5845, 0
  %v6035 = vsel %vm84, %v5846, 0
  %v6038 = vsel %vm84, %v5847, 0
  %v6041 = vsel %vm84, %v5848, 0
  %v6044 = vsel %vm555, %v5850, 0
  %6046 = vmatprep.subr.mxu0 0.0
  %6047 = vmatpush1.msra.mxu0 %v6044
  %6048 = vmatprep.subr.mxu0 0.0
  %6049 = vmatpush1.msra.mxu0 0.0
  %6050 = vmatprep.subr.mxu0 0.0
  %6051 = vmatpush1.msra.mxu0 0.0
  %6052 = vmatprep.subr.mxu0 0.0
  %6053 = vmatpush1.msra.mxu0 0.0
  %6054 = vmatprep.subr.mxu0 0.0
  %6055 = vmatpush1.msra.mxu0 0.0
  %6056 = vmatprep.subr.mxu0 0.0
  %6057 = vmatpush1.msra.mxu0 0.0
  %6058 = vmatprep.subr.mxu0 0.0
  %6059 = vmatpush1.msra.mxu0 0.0
  %6060 = vmatprep.subr.mxu0 0.0
  %6061 = vmatpush1.msra.mxu0 0.0
  %6062 = vmatprep.subr.mxu0 0.0
  %6063 = vmatpush1.msra.mxu0 0.0
  %6064 = vmatprep.subr.mxu0 0.0
  %6065 = vmatpush1.msra.mxu0 0.0
  %6066 = vmatprep.subr.mxu0 0.0
  %6067 = vmatpush1.msra.mxu0 0.0
  %6068 = vmatprep.subr.mxu0 0.0
  %6069 = vmatpush1.msra.mxu0 0.0
  %6070 = vmatprep.subr.mxu0 0.0
  %6071 = vmatpush1.msra.mxu0 0.0
  %6072 = vmatprep.subr.mxu0 0.0
  %6073 = vmatpush1.msra.mxu0 0.0
  %6074 = vmatprep.subr.mxu0 0.0
  %6075 = vmatpush1.msra.mxu0 0.0
  %6076 = vmatprep.subr.mxu0 0.0
  %6077 = vmatpush1.msra.mxu0 0.0
  %6078 = vmatprep.subr.mxu0 0.0
  %6079 = vmatpush1.msra.mxu0 0.0
  %6080 = vmatprep.subr.mxu0 0.0
  %6081 = vmatpush1.msra.mxu0 0.0
  %6082 = vmatprep.subr.mxu0 0.0
  %6083 = vmatpush1.msra.mxu0 0.0
  %6084 = vmatprep.subr.mxu0 0.0
  %6085 = vmatpush1.msra.mxu0 0.0
  %6086 = vmatprep.subr.mxu0 0.0
  %6087 = vmatpush1.msra.mxu0 0.0
  %6088 = vmatprep.subr.mxu0 0.0
  %6089 = vmatpush1.msra.mxu0 0.0
  %6090 = vmatprep.subr.mxu0 0.0
  %6091 = vmatpush1.msra.mxu0 0.0
  %6092 = vmatprep.subr.mxu0 0.0
  %6093 = vmatpush1.msra.mxu0 0.0
  %6094 = vmatprep.subr.mxu0 0.0
  %6095 = vmatpush1.msra.mxu0 0.0
  %6096 = vmatprep.subr.mxu0 0.0
  %6097 = vmatpush1.msra.mxu0 0.0
  %6098 = vmatprep.subr.mxu0 0.0
  %6099 = vmatpush1.msra.mxu0 0.0
  %6100 = vmatprep.subr.mxu0 0.0
  %6101 = vmatpush1.msra.mxu0 0.0
  %6102 = vmatprep.subr.mxu0 0.0
  %6103 = vmatpush1.msra.mxu0 0.0
  %6104 = vmatprep.subr.mxu0 0.0
  %6105 = vmatpush1.msra.mxu0 0.0
  %6106 = vmatprep.subr.mxu0 0.0
  %6107 = vmatpush1.msra.mxu0 0.0
  %6108 = vmatprep.subr.mxu0 0.0
  %6109 = vmatpush1.msra.mxu0 0.0
  %6110 = vmatprep.mubr.f32.mxu0 0.0
  %6111 = vmatmul.mubr.f32.gmra.mrb[0].mxu0 %v5852
  %v6112 = vpop.f32.mrb[0].mxu0
  %v6113 = vadd.f32 0.0, %v6112
  %v6114 = vpop.f32.mrb[0].mxu0
  %6115 = vmatprep.mubr.f32.mxu0 0.0
  %6116 = vmatmul.mubr.f32.gmra.mrb[0].mxu0 %v5855
  %v6117 = vpop.f32.mrb[0].mxu0
  %v6118 = vadd.f32 0.0, %v6117
  %v6119 = vpop.f32.mrb[0].mxu0
  %6120 = vmatprep.mubr.f32.mxu0 0.0
  %6121 = vmatmul.mubr.f32.gmra.mrb[0].mxu0 %v5858
  %v6122 = vpop.f32.mrb[0].mxu0
  %v6123 = vadd.f32 0.0, %v6122
  %v6124 = vpop.f32.mrb[0].mxu0
  %6125 = vmatprep.mubr.f32.mxu0 0.0
  %6126 = vmatmul.mubr.f32.gmra.mrb[0].mxu0 %v5861
  %v6127 = vpop.f32.mrb[0].mxu0
  %v6128 = vadd.f32 0.0, %v6127
  %v6129 = vpop.f32.mrb[0].mxu0
  %6130 = vmatprep.mubr.f32.mxu0 0.0
  %6131 = vmatmul.mubr.f32.gmra.mrb[0].mxu0 %v5864
  %v6132 = vpop.f32.mrb[0].mxu0
  %v6133 = vadd.f32 0.0, %v6132
  %v6134 = vpop.f32.mrb[0].mxu0
  %6135 = vmatprep.mubr.f32.mxu0 0.0
  %6136 = vmatmul.mubr.f32.gmra.mrb[0].mxu0 %v5867
  %v6137 = vpop.f32.mrb[0].mxu0
  %v6138 = vadd.f32 0.0, %v6137
  %v6139 = vpop.f32.mrb[0].mxu0
  %6140 = vmatprep.mubr.f32.mxu0 0.0
  %6141 = vmatmul.mubr.f32.gmra.mrb[0].mxu0 %v5870
  %v6142 = vpop.f32.mrb[0].mxu0
  %v6143 = vadd.f32 0.0, %v6142
  %v6144 = vpop.f32.mrb[0].mxu0
  %6145 = vmatprep.mubr.f32.mxu0 0.0
  %6146 = vmatmul.mubr.f32.gmra.mrb[0].mxu0 %v5873
  %v6147 = vpop.f32.mrb[0].mxu0
  %v6148 = vadd.f32 0.0, %v6147
  %v6149 = vpop.f32.mrb[0].mxu0
  %6150 = vmatprep.mubr.f32.mxu0 0.0
  %6151 = vmatmul.mubr.f32.gmra.mrb[0].mxu0 %v5876
  %v6152 = vpop.f32.mrb[0].mxu0
  %v6153 = vadd.f32 0.0, %v6152
  %v6154 = vpop.f32.mrb[0].mxu0
  %6155 = vmatprep.mubr.f32.mxu0 0.0
  %6156 = vmatmul.mubr.f32.gmra.mrb[0].mxu0 %v5879
  %v6157 = vpop.f32.mrb[0].mxu0
  %v6158 = vadd.f32 0.0, %v6157
  %v6159 = vpop.f32.mrb[0].mxu0
  %6160 = vmatprep.mubr.f32.mxu0 0.0
  %6161 = vmatmul.mubr.f32.gmra.mrb[0].mxu0 %v5882
  %v6162 = vpop.f32.mrb[0].mxu0
  %v6163 = vadd.f32 0.0, %v6162
  %v6164 = vpop.f32.mrb[0].mxu0
  %6165 = vmatprep.mubr.f32.mxu0 0.0
  %6166 = vmatmul.mubr.f32.gmra.mrb[0].mxu0 %v5885
  %v6167 = vpop.f32.mrb[0].mxu0
  %v6168 = vadd.f32 0.0, %v6167
  %v6169 = vpop.f32.mrb[0].mxu0
  %6170 = vmatprep.mubr.f32.mxu0 0.0
  %6171 = vmatmul.mubr.f32.gmra.mrb[0].mxu0 %v5888
  %v6172 = vpop.f32.mrb[0].mxu0
  %v6173 = vadd.f32 0.0, %v6172
  %v6174 = vpop.f32.mrb[0].mxu0
  %6175 = vmatprep.mubr.f32.mxu0 0.0
  %6176 = vmatmul.mubr.f32.gmra.mrb[0].mxu0 %v5891
  %v6177 = vpop.f32.mrb[0].mxu0
  %v6178 = vadd.f32 0.0, %v6177
  %v6179 = vpop.f32.mrb[0].mxu0
  %6180 = vmatprep.mubr.f32.mxu0 0.0
  %6181 = vmatmul.mubr.f32.gmra.mrb[0].mxu0 %v5894
  %v6182 = vpop.f32.mrb[0].mxu0
  %v6183 = vadd.f32 0.0, %v6182
  %v6184 = vpop.f32.mrb[0].mxu0
  %6185 = vmatprep.mubr.f32.mxu0 0.0
  %6186 = vmatmul.mubr.f32.gmra.mrb[0].mxu0 %v5897
  %v6187 = vpop.f32.mrb[0].mxu0
  %v6188 = vadd.f32 0.0, %v6187
  %v6189 = vpop.f32.mrb[0].mxu0
  %6190 = vmatprep.mubr.f32.mxu0 0.0
  %6191 = vmatmul.mubr.f32.gmra.mrb[0].mxu0 %v5900
  %v6192 = vpop.f32.mrb[0].mxu0
  %v6193 = vadd.f32 0.0, %v6192
  %v6194 = vpop.f32.mrb[0].mxu0
  %6195 = vmatprep.mubr.f32.mxu0 0.0
  %6196 = vmatmul.mubr.f32.gmra.mrb[0].mxu0 %v5903
  %v6197 = vpop.f32.mrb[0].mxu0
  %v6198 = vadd.f32 0.0, %v6197
  %v6199 = vpop.f32.mrb[0].mxu0
  %6200 = vmatprep.mubr.f32.mxu0 0.0
  %6201 = vmatmul.mubr.f32.gmra.mrb[0].mxu0 %v5906
  %v6202 = vpop.f32.mrb[0].mxu0
  %v6203 = vadd.f32 0.0, %v6202
  %v6204 = vpop.f32.mrb[0].mxu0
  %6205 = vmatprep.mubr.f32.mxu0 0.0
  %6206 = vmatmul.mubr.f32.gmra.mrb[0].mxu0 %v5909
  %v6207 = vpop.f32.mrb[0].mxu0
  %v6208 = vadd.f32 0.0, %v6207
  %v6209 = vpop.f32.mrb[0].mxu0
  %6210 = vmatprep.mubr.f32.mxu0 0.0
  %6211 = vmatmul.mubr.f32.gmra.mrb[0].mxu0 %v5912
  %v6212 = vpop.f32.mrb[0].mxu0
  %v6213 = vadd.f32 0.0, %v6212
  %v6214 = vpop.f32.mrb[0].mxu0
  %6215 = vmatprep.mubr.f32.mxu0 0.0
  %6216 = vmatmul.mubr.f32.gmra.mrb[0].mxu0 %v5915
  %v6217 = vpop.f32.mrb[0].mxu0
  %v6218 = vadd.f32 0.0, %v6217
  %v6219 = vpop.f32.mrb[0].mxu0
  %6220 = vmatprep.mubr.f32.mxu0 0.0
  %6221 = vmatmul.mubr.f32.gmra.mrb[0].mxu0 %v5918
  %v6222 = vpop.f32.mrb[0].mxu0
  %v6223 = vadd.f32 0.0, %v6222
  %v6224 = vpop.f32.mrb[0].mxu0
  %6225 = vmatprep.mubr.f32.mxu0 0.0
  %6226 = vmatmul.mubr.f32.gmra.mrb[0].mxu0 %v5921
  %v6227 = vpop.f32.mrb[0].mxu0
  %v6228 = vadd.f32 0.0, %v6227
  %v6229 = vpop.f32.mrb[0].mxu0
  %6230 = vmatprep.mubr.f32.mxu0 0.0
  %6231 = vmatmul.mubr.f32.gmra.mrb[0].mxu0 %v5924
  %v6232 = vpop.f32.mrb[0].mxu0
  %v6233 = vadd.f32 0.0, %v6232
  %v6234 = vpop.f32.mrb[0].mxu0
  %6235 = vmatprep.mubr.f32.mxu0 0.0
  %6236 = vmatmul.mubr.f32.gmra.mrb[0].mxu0 %v5927
  %v6237 = vpop.f32.mrb[0].mxu0
  %v6238 = vadd.f32 0.0, %v6237
  %v6239 = vpop.f32.mrb[0].mxu0
  %6240 = vmatprep.mubr.f32.mxu0 0.0
  %6241 = vmatmul.mubr.f32.gmra.mrb[0].mxu0 %v5930
  %v6242 = vpop.f32.mrb[0].mxu0
  %v6243 = vadd.f32 0.0, %v6242
  %v6244 = vpop.f32.mrb[0].mxu0
  %6245 = vmatprep.mubr.f32.mxu0 0.0
  %6246 = vmatmul.mubr.f32.gmra.mrb[0].mxu0 %v5933
  %v6247 = vpop.f32.mrb[0].mxu0
  %v6248 = vadd.f32 0.0, %v6247
  %v6249 = vpop.f32.mrb[0].mxu0
  %6250 = vmatprep.mubr.f32.mxu0 0.0
  %6251 = vmatmul.mubr.f32.gmra.mrb[0].mxu0 %v5936
  %v6252 = vpop.f32.mrb[0].mxu0
  %v6253 = vadd.f32 0.0, %v6252
  %v6254 = vpop.f32.mrb[0].mxu0
  %6255 = vmatprep.mubr.f32.mxu0 0.0
  %6256 = vmatmul.mubr.f32.gmra.mrb[0].mxu0 %v5939
  %v6257 = vpop.f32.mrb[0].mxu0
  %v6258 = vadd.f32 0.0, %v6257
  %v6259 = vpop.f32.mrb[0].mxu0
  %6260 = vmatprep.mubr.f32.mxu0 0.0
  %6261 = vmatmul.mubr.f32.gmra.mrb[0].mxu0 %v5942
  %v6262 = vpop.f32.mrb[0].mxu0
  %v6263 = vadd.f32 0.0, %v6262
  %v6264 = vpop.f32.mrb[0].mxu0
  %6265 = vmatprep.mubr.f32.mxu0 0.0
  %6266 = vmatmul.mubr.f32.gmra.mrb[0].mxu0 %v5945
  %v6267 = vpop.f32.mrb[0].mxu0
  %v6268 = vadd.f32 0.0, %v6267
  %v6269 = vpop.f32.mrb[0].mxu0
  %6270 = vmatprep.mubr.f32.mxu0 0.0
  %6271 = vmatmul.mubr.f32.gmra.mrb[0].mxu0 %v5948
  %v6272 = vpop.f32.mrb[0].mxu0
  %v6273 = vadd.f32 0.0, %v6272
  %v6274 = vpop.f32.mrb[0].mxu0
  %6275 = vmatprep.mubr.f32.mxu0 0.0
  %6276 = vmatmul.mubr.f32.gmra.mrb[0].mxu0 %v5951
  %v6277 = vpop.f32.mrb[0].mxu0
  %v6278 = vadd.f32 0.0, %v6277
  %v6279 = vpop.f32.mrb[0].mxu0
  %6280 = vmatprep.mubr.f32.mxu0 0.0
  %6281 = vmatmul.mubr.f32.gmra.mrb[0].mxu0 %v5954
  %v6282 = vpop.f32.mrb[0].mxu0
  %v6283 = vadd.f32 0.0, %v6282
  %v6284 = vpop.f32.mrb[0].mxu0
  %6285 = vmatprep.mubr.f32.mxu0 0.0
  %6286 = vmatmul.mubr.f32.gmra.mrb[0].mxu0 %v5957
  %v6287 = vpop.f32.mrb[0].mxu0
  %v6288 = vadd.f32 0.0, %v6287
  %v6289 = vpop.f32.mrb[0].mxu0
  %6290 = vmatprep.mubr.f32.mxu0 0.0
  %6291 = vmatmul.mubr.f32.gmra.mrb[0].mxu0 %v5960
  %v6292 = vpop.f32.mrb[0].mxu0
  %v6293 = vadd.f32 0.0, %v6292
  %v6294 = vpop.f32.mrb[0].mxu0
  %6295 = vmatprep.mubr.f32.mxu0 0.0
  %6296 = vmatmul.mubr.f32.gmra.mrb[0].mxu0 %v5963
  %v6297 = vpop.f32.mrb[0].mxu0
  %v6298 = vadd.f32 0.0, %v6297
  %v6299 = vpop.f32.mrb[0].mxu0
  %6300 = vmatprep.mubr.f32.mxu0 0.0
  %6301 = vmatmul.mubr.f32.gmra.mrb[0].mxu0 %v5966
  %v6302 = vpop.f32.mrb[0].mxu0
  %v6303 = vadd.f32 0.0, %v6302
  %v6304 = vpop.f32.mrb[0].mxu0
  %6305 = vmatprep.mubr.f32.mxu0 0.0
  %6306 = vmatmul.mubr.f32.gmra.mrb[0].mxu0 %v5969
  %v6307 = vpop.f32.mrb[0].mxu0
  %v6308 = vadd.f32 0.0, %v6307
  %v6309 = vpop.f32.mrb[0].mxu0
  %6310 = vmatprep.mubr.f32.mxu0 0.0
  %6311 = vmatmul.mubr.f32.gmra.mrb[0].mxu0 %v5972
  %v6312 = vpop.f32.mrb[0].mxu0
  %v6313 = vadd.f32 0.0, %v6312
  %v6314 = vpop.f32.mrb[0].mxu0
  %6315 = vmatprep.mubr.f32.mxu0 0.0
  %6316 = vmatmul.mubr.f32.gmra.mrb[0].mxu0 %v5975
  %v6317 = vpop.f32.mrb[0].mxu0
  %v6318 = vadd.f32 0.0, %v6317
  %v6319 = vpop.f32.mrb[0].mxu0
  %6320 = vmatprep.mubr.f32.mxu0 0.0
  %6321 = vmatmul.mubr.f32.gmra.mrb[0].mxu0 %v5978
  %v6322 = vpop.f32.mrb[0].mxu0
  %v6323 = vadd.f32 0.0, %v6322
  %v6324 = vpop.f32.mrb[0].mxu0
  %6325 = vmatprep.mubr.f32.mxu0 0.0
  %6326 = vmatmul.mubr.f32.gmra.mrb[0].mxu0 %v5981
  %v6327 = vpop.f32.mrb[0].mxu0
  %v6328 = vadd.f32 0.0, %v6327
  %v6329 = vpop.f32.mrb[0].mxu0
  %6330 = vmatprep.mubr.f32.mxu0 0.0
  %6331 = vmatmul.mubr.f32.gmra.mrb[0].mxu0 %v5984
  %v6332 = vpop.f32.mrb[0].mxu0
  %v6333 = vadd.f32 0.0, %v6332
  %v6334 = vpop.f32.mrb[0].mxu0
  %6335 = vmatprep.mubr.f32.mxu0 0.0
  %6336 = vmatmul.mubr.f32.gmra.mrb[0].mxu0 %v5987
  %v6337 = vpop.f32.mrb[0].mxu0
  %v6338 = vadd.f32 0.0, %v6337
  %v6339 = vpop.f32.mrb[0].mxu0
  %6340 = vmatprep.mubr.f32.mxu0 0.0
  %6341 = vmatmul.mubr.f32.gmra.mrb[0].mxu0 %v5990
  %v6342 = vpop.f32.mrb[0].mxu0
  %v6343 = vadd.f32 0.0, %v6342
  %v6344 = vpop.f32.mrb[0].mxu0
  %6345 = vmatprep.mubr.f32.mxu0 0.0
  %6346 = vmatmul.mubr.f32.gmra.mrb[0].mxu0 %v5993
  %v6347 = vpop.f32.mrb[0].mxu0
  %v6348 = vadd.f32 0.0, %v6347
  %v6349 = vpop.f32.mrb[0].mxu0
  %6350 = vmatprep.mubr.f32.mxu0 0.0
  %6351 = vmatmul.mubr.f32.gmra.mrb[0].mxu0 %v5996
  %v6352 = vpop.f32.mrb[0].mxu0
  %v6353 = vadd.f32 0.0, %v6352
  %v6354 = vpop.f32.mrb[0].mxu0
  %6355 = vmatprep.mubr.f32.mxu0 0.0
  %6356 = vmatmul.mubr.f32.gmra.mrb[0].mxu0 %v5999
  %v6357 = vpop.f32.mrb[0].mxu0
  %v6358 = vadd.f32 0.0, %v6357
  %v6359 = vpop.f32.mrb[0].mxu0
  %6360 = vmatprep.mubr.f32.mxu0 0.0
  %6361 = vmatmul.mubr.f32.gmra.mrb[0].mxu0 %v6002
  %v6362 = vpop.f32.mrb[0].mxu0
  %v6363 = vadd.f32 0.0, %v6362
  %v6364 = vpop.f32.mrb[0].mxu0
  %6365 = vmatprep.mubr.f32.mxu0 0.0
  %6366 = vmatmul.mubr.f32.gmra.mrb[0].mxu0 %v6005
  %v6367 = vpop.f32.mrb[0].mxu0
  %v6368 = vadd.f32 0.0, %v6367
  %v6369 = vpop.f32.mrb[0].mxu0
  %6370 = vmatprep.mubr.f32.mxu0 0.0
  %6371 = vmatmul.mubr.f32.gmra.mrb[0].mxu0 %v6008
  %v6372 = vpop.f32.mrb[0].mxu0
  %v6373 = vadd.f32 0.0, %v6372
  %v6374 = vpop.f32.mrb[0].mxu0
  %6375 = vmatprep.mubr.f32.mxu0 0.0
  %6376 = vmatmul.mubr.f32.gmra.mrb[0].mxu0 %v6011
  %v6377 = vpop.f32.mrb[0].mxu0
  %v6378 = vadd.f32 0.0, %v6377
  %v6379 = vpop.f32.mrb[0].mxu0
  %6380 = vmatprep.mubr.f32.mxu0 0.0
  %6381 = vmatmul.mubr.f32.gmra.mrb[0].mxu0 %v6014
  %v6382 = vpop.f32.mrb[0].mxu0
  %v6383 = vadd.f32 0.0, %v6382
  %v6384 = vpop.f32.mrb[0].mxu0
  %6385 = vmatprep.mubr.f32.mxu0 0.0
  %6386 = vmatmul.mubr.f32.gmra.mrb[0].mxu0 %v6017
  %v6387 = vpop.f32.mrb[0].mxu0
  %v6388 = vadd.f32 0.0, %v6387
  %v6389 = vpop.f32.mrb[0].mxu0
  %6390 = vmatprep.mubr.f32.mxu0 0.0
  %6391 = vmatmul.mubr.f32.gmra.mrb[0].mxu0 %v6020
  %v6392 = vpop.f32.mrb[0].mxu0
  %v6393 = vadd.f32 0.0, %v6392
  %v6394 = vpop.f32.mrb[0].mxu0
  %6395 = vmatprep.mubr.f32.mxu0 0.0
  %6396 = vmatmul.mubr.f32.gmra.mrb[0].mxu0 %v6023
  %v6397 = vpop.f32.mrb[0].mxu0
  %v6398 = vadd.f32 0.0, %v6397
  %v6399 = vpop.f32.mrb[0].mxu0
  %6400 = vmatprep.mubr.f32.mxu0 0.0
  %6401 = vmatmul.mubr.f32.gmra.mrb[0].mxu0 %v6026
  %v6402 = vpop.f32.mrb[0].mxu0
  %v6403 = vadd.f32 0.0, %v6402
  %v6404 = vpop.f32.mrb[0].mxu0
  %6405 = vmatprep.mubr.f32.mxu0 0.0
  %6406 = vmatmul.mubr.f32.gmra.mrb[0].mxu0 %v6029
  %v6407 = vpop.f32.mrb[0].mxu0
  %v6408 = vadd.f32 0.0, %v6407
  %v6409 = vpop.f32.mrb[0].mxu0
  %6410 = vmatprep.mubr.f32.mxu0 0.0
  %6411 = vmatmul.mubr.f32.gmra.mrb[0].mxu0 %v6032
  %v6412 = vpop.f32.mrb[0].mxu0
  %v6413 = vadd.f32 0.0, %v6412
  %v6414 = vpop.f32.mrb[0].mxu0
  %6415 = vmatprep.mubr.f32.mxu0 0.0
  %6416 = vmatmul.mubr.f32.gmra.mrb[0].mxu0 %v6035
  %v6417 = vpop.f32.mrb[0].mxu0
  %v6418 = vadd.f32 0.0, %v6417
  %v6419 = vpop.f32.mrb[0].mxu0
  %6420 = vmatprep.mubr.f32.mxu0 0.0
  %6421 = vmatmul.mubr.f32.gmra.mrb[0].mxu0 %v6038
  %v6422 = vpop.f32.mrb[0].mxu0
  %v6423 = vadd.f32 0.0, %v6422
  %v6424 = vpop.f32.mrb[0].mxu0
  %6425 = vmatprep.mubr.f32.mxu0 0.0
  %6426 = vmatmul.mubr.f32.gmra.mrb[0].mxu0 %v6041
  %v6427 = vpop.f32.mrb[0].mxu0
  %v6428 = vadd.f32 0.0, %v6427
  %v6429 = vpop.f32.mrb[0].mxu0
  %6430 = vdwg.mxu0
  %v6431 = vadd.f32 %v5721, %v6113
  %v6432 = vadd.f32 %v5722, %v6118
  %v6433 = vadd.f32 %v5723, %v6123
  %v6434 = vadd.f32 %v5724, %v6128
  %v6435 = vadd.f32 %v5725, %v6133
  %v6436 = vadd.f32 %v5726, %v6138
  %v6437 = vadd.f32 %v5727, %v6143
  %v6438 = vadd.f32 %v5728, %v6148
  %v6439 = vadd.f32 %v5729, %v6153
  %v6440 = vadd.f32 %v5730, %v6158
  %v6441 = vadd.f32 %v5731, %v6163
  %v6442 = vadd.f32 %v5732, %v6168
  %v6443 = vadd.f32 %v5733, %v6173
  %v6444 = vadd.f32 %v5734, %v6178
  %v6445 = vadd.f32 %v5735, %v6183
  %v6446 = vadd.f32 %v5736, %v6188
  %v6447 = vadd.f32 %v5737, %v6193
  %v6448 = vadd.f32 %v5738, %v6198
  %v6449 = vadd.f32 %v5739, %v6203
  %v6450 = vadd.f32 %v5740, %v6208
  %v6451 = vadd.f32 %v5741, %v6213
  %v6452 = vadd.f32 %v5742, %v6218
  %v6453 = vadd.f32 %v5743, %v6223
  %v6454 = vadd.f32 %v5744, %v6228
  %v6455 = vadd.f32 %v5745, %v6233
  %v6456 = vadd.f32 %v5746, %v6238
  %v6457 = vadd.f32 %v5747, %v6243
  %v6458 = vadd.f32 %v5748, %v6248
  %v6459 = vadd.f32 %v5749, %v6253
  %v6460 = vadd.f32 %v5750, %v6258
  %v6461 = vadd.f32 %v5751, %v6263
  %v6462 = vadd.f32 %v5752, %v6268
  %v6463 = vadd.f32 %v5753, %v6273
  %v6464 = vadd.f32 %v5754, %v6278
  %v6465 = vadd.f32 %v5755, %v6283
  %v6466 = vadd.f32 %v5756, %v6288
  %v6467 = vadd.f32 %v5757, %v6293
  %v6468 = vadd.f32 %v5758, %v6298
  %v6469 = vadd.f32 %v5759, %v6303
  %v6470 = vadd.f32 %v5760, %v6308
  %v6471 = vadd.f32 %v5761, %v6313
  %v6472 = vadd.f32 %v5762, %v6318
  %v6473 = vadd.f32 %v5763, %v6323
  %v6474 = vadd.f32 %v5764, %v6328
  %v6475 = vadd.f32 %v5765, %v6333
  %v6476 = vadd.f32 %v5766, %v6338
  %v6477 = vadd.f32 %v5767, %v6343
  %v6478 = vadd.f32 %v5768, %v6348
  %v6479 = vadd.f32 %v5769, %v6353
  %v6480 = vadd.f32 %v5770, %v6358
  %v6481 = vadd.f32 %v5771, %v6363
  %v6482 = vadd.f32 %v5772, %v6368
  %v6483 = vadd.f32 %v5773, %v6373
  %v6484 = vadd.f32 %v5774, %v6378
  %v6485 = vadd.f32 %v5775, %v6383
  %v6486 = vadd.f32 %v5776, %v6388
  %v6487 = vadd.f32 %v5777, %v6393
  %v6488 = vadd.f32 %v5778, %v6398
  %v6489 = vadd.f32 %v5779, %v6403
  %v6490 = vadd.f32 %v5780, %v6408
  %v6491 = vadd.f32 %v5781, %v6413
  %v6492 = vadd.f32 %v5782, %v6418
  %v6493 = vadd.f32 %v5783, %v6423
  %v6494 = vadd.f32 %v5784, %v6428
  %v6495 = vmax.f32 %v6431, 0.0
  %v6496 = vmax.f32 %v6432, 0.0
  %v6497 = vmax.f32 %v6433, 0.0
  %v6498 = vmax.f32 %v6434, 0.0
  %v6499 = vmax.f32 %v6435, 0.0
  %v6500 = vmax.f32 %v6436, 0.0
  %v6501 = vmax.f32 %v6437, 0.0
  %v6502 = vmax.f32 %v6438, 0.0
  %v6503 = vmax.f32 %v6439, 0.0
  %v6504 = vmax.f32 %v6440, 0.0
  %v6505 = vmax.f32 %v6441, 0.0
  %v6506 = vmax.f32 %v6442, 0.0
  %v6507 = vmax.f32 %v6443, 0.0
  %v6508 = vmax.f32 %v6444, 0.0
  %v6509 = vmax.f32 %v6445, 0.0
  %v6510 = vmax.f32 %v6446, 0.0
  %v6511 = vmax.f32 %v6447, 0.0
  %v6512 = vmax.f32 %v6448, 0.0
  %v6513 = vmax.f32 %v6449, 0.0
  %v6514 = vmax.f32 %v6450, 0.0
  %v6515 = vmax.f32 %v6451, 0.0
  %v6516 = vmax.f32 %v6452, 0.0
  %v6517 = vmax.f32 %v6453, 0.0
  %v6518 = vmax.f32 %v6454, 0.0
  %v6519 = vmax.f32 %v6455, 0.0
  %v6520 = vmax.f32 %v6456, 0.0
  %v6521 = vmax.f32 %v6457, 0.0
  %v6522 = vmax.f32 %v6458, 0.0
  %v6523 = vmax.f32 %v6459, 0.0
  %v6524 = vmax.f32 %v6460, 0.0
  %v6525 = vmax.f32 %v6461, 0.0
  %v6526 = vmax.f32 %v6462, 0.0
  %v6527 = vmax.f32 %v6463, 0.0
  %v6528 = vmax.f32 %v6464, 0.0
  %v6529 = vmax.f32 %v6465, 0.0
  %v6530 = vmax.f32 %v6466, 0.0
  %v6531 = vmax.f32 %v6467, 0.0
  %v6532 = vmax.f32 %v6468, 0.0
  %v6533 = vmax.f32 %v6469, 0.0
  %v6534 = vmax.f32 %v6470, 0.0
  %v6535 = vmax.f32 %v6471, 0.0
  %v6536 = vmax.f32 %v6472, 0.0
  %v6537 = vmax.f32 %v6473, 0.0
  %v6538 = vmax.f32 %v6474, 0.0
  %v6539 = vmax.f32 %v6475, 0.0
  %v6540 = vmax.f32 %v6476, 0.0
  %v6541 = vmax.f32 %v6477, 0.0
  %v6542 = vmax.f32 %v6478, 0.0
  %v6543 = vmax.f32 %v6479, 0.0
  %v6544 = vmax.f32 %v6480, 0.0
  %v6545 = vmax.f32 %v6481, 0.0
  %v6546 = vmax.f32 %v6482, 0.0
  %v6547 = vmax.f32 %v6483, 0.0
  %v6548 = vmax.f32 %v6484, 0.0
  %v6549 = vmax.f32 %v6485, 0.0
  %v6550 = vmax.f32 %v6486, 0.0
  %v6551 = vmax.f32 %v6487, 0.0
  %v6552 = vmax.f32 %v6488, 0.0
  %v6553 = vmax.f32 %v6489, 0.0
  %v6554 = vmax.f32 %v6490, 0.0
  %v6555 = vmax.f32 %v6491, 0.0
  %v6556 = vmax.f32 %v6492, 0.0
  %v6557 = vmax.f32 %v6493, 0.0
  %v6558 = vmax.f32 %v6494, 0.0
  %vm6559 = vcmask 64512
  %6560 = vst.msk [vmem:[#allocation3] sm:$0xff] %vm6559, 0.0
  %6561 = vst.msk [vmem:[#allocation3 + $0x8] sm:$0xff] %vm6559, 0.0
  %6562 = vst.msk [vmem:[#allocation3 + $0x10] sm:$0xff] %vm6559, 0.0
  %6563 = vst.msk [vmem:[#allocation3 + $0x18] sm:$0xff] %vm6559, 0.0
  %6564 = vst.msk [vmem:[#allocation3 + $0x240] sm:$0xff] %vm6559, 0.0
  %6565 = vst.msk [vmem:[#allocation3 + $0x248] sm:$0xff] %vm6559, 0.0
  %6566 = vst.msk [vmem:[#allocation3 + $0x250] sm:$0xff] %vm6559, 0.0
  %6567 = vst.msk [vmem:[#allocation3 + $0x258] sm:$0xff] %vm6559, 0.0
  %s6568 = scalar_lea.vmem [#allocation3], 544
  %6569 = vst.msk [vmem:[%s6568] sm:$0xff] %vm6559, 0.0
  %6570 = vst.msk [vmem:[%s6568 + $0x8] sm:$0xff] %vm6559, 0.0
  %6571 = vst.msk [vmem:[%s6568 + $0x10] sm:$0xff] %vm6559, 0.0
  %6572 = vst.msk [vmem:[%s6568 + $0x18] sm:$0xff] %vm6559, 0.0
  %6573 = vst.msk [vmem:[%s6568 + $0x240] sm:$0xff] %vm6559, 0.0
  %6574 = vst.msk [vmem:[%s6568 + $0x248] sm:$0xff] %vm6559, 0.0
  %6575 = vst.msk [vmem:[%s6568 + $0x250] sm:$0xff] %vm6559, 0.0
  %6576 = vst.msk [vmem:[%s6568 + $0x258] sm:$0xff] %vm6559, 0.0
  %s6577 = scalar_lea.vmem [#allocation3], 32
  %vm6578 = vcmask 57344
  %6579 = vst.msk [vmem:[%s6577 + $0x7] sm:$0x1] %vm6578, 0.0
  %6580 = vst.msk [vmem:[%s6577 + $0x27] sm:$0x1] %vm6578, 0.0
  %6581 = vst.msk [vmem:[%s6577 + $0x47] sm:$0x1] %vm6578, 0.0
  %6582 = vst.msk [vmem:[%s6577 + $0x67] sm:$0x1] %vm6578, 0.0
  %6583 = vst.msk [vmem:[%s6577 + $0x87] sm:$0x1] %vm6578, 0.0
  %6584 = vst.msk [vmem:[%s6577 + $0xa7] sm:$0x1] %vm6578, 0.0
  %6585 = vst.msk [vmem:[%s6577 + $0xc7] sm:$0x1] %vm6578, 0.0
  %6586 = vst.msk [vmem:[%s6577 + $0xe7] sm:$0x1] %vm6578, 0.0
  %6587 = vst.msk [vmem:[%s6577 + $0x107] sm:$0x1] %vm6578, 0.0
  %6588 = vst.msk [vmem:[%s6577 + $0x127] sm:$0x1] %vm6578, 0.0
  %6589 = vst.msk [vmem:[%s6577 + $0x147] sm:$0x1] %vm6578, 0.0
  %6590 = vst.msk [vmem:[%s6577 + $0x167] sm:$0x1] %vm6578, 0.0
  %6591 = vst.msk [vmem:[%s6577 + $0x187] sm:$0x1] %vm6578, 0.0
  %6592 = vst.msk [vmem:[%s6577 + $0x1a7] sm:$0x1] %vm6578, 0.0
  %6593 = vst.msk [vmem:[%s6577 + $0x1c7] sm:$0x1] %vm6578, 0.0
  %6594 = vst.msk [vmem:[%s6577 + $0x1e7] sm:$0x1] %vm6578, 0.0
  %6595 = vst.msk [vmem:[%s6577 + $0x247] sm:$0x1] %vm6578, 0.0
  %6596 = vst.msk [vmem:[%s6577 + $0x267] sm:$0x1] %vm6578, 0.0
  %6597 = vst.msk [vmem:[%s6577 + $0x287] sm:$0x1] %vm6578, 0.0
  %6598 = vst.msk [vmem:[%s6577 + $0x2a7] sm:$0x1] %vm6578, 0.0
  %6599 = vst.msk [vmem:[%s6577 + $0x2c7] sm:$0x1] %vm6578, 0.0
  %6600 = vst.msk [vmem:[%s6577 + $0x2e7] sm:$0x1] %vm6578, 0.0
  %6601 = vst.msk [vmem:[%s6577 + $0x307] sm:$0x1] %vm6578, 0.0
  %6602 = vst.msk [vmem:[%s6577 + $0x327] sm:$0x1] %vm6578, 0.0
  %6603 = vst.msk [vmem:[%s6577 + $0x347] sm:$0x1] %vm6578, 0.0
  %6604 = vst.msk [vmem:[%s6577 + $0x367] sm:$0x1] %vm6578, 0.0
  %6605 = vst.msk [vmem:[%s6577 + $0x387] sm:$0x1] %vm6578, 0.0
  %6606 = vst.msk [vmem:[%s6577 + $0x3a7] sm:$0x1] %vm6578, 0.0
  %6607 = vst.msk [vmem:[%s6577 + $0x3c7] sm:$0x1] %vm6578, 0.0
  %6608 = vst.msk [vmem:[%s6577 + $0x3e7] sm:$0x1] %vm6578, 0.0
  %6609 = vst.msk [vmem:[%s6577 + $0x407] sm:$0x1] %vm6578, 0.0
  %6610 = vst.msk [vmem:[%s6577 + $0x427] sm:$0x1] %vm6578, 0.0
  %6611 = vst.msk [vmem:[%s6577 + $0x18] sm:$0x1] %vm6578, 0.0
  %6612 = vst.msk [vmem:[%s6577 + $0x38] sm:$0x1] %vm6578, 0.0
  %6613 = vst.msk [vmem:[%s6577 + $0x58] sm:$0x1] %vm6578, 0.0
  %6614 = vst.msk [vmem:[%s6577 + $0x78] sm:$0x1] %vm6578, 0.0
  %6615 = vst.msk [vmem:[%s6577 + $0x98] sm:$0x1] %vm6578, 0.0
  %6616 = vst.msk [vmem:[%s6577 + $0xb8] sm:$0x1] %vm6578, 0.0
  %6617 = vst.msk [vmem:[%s6577 + $0xd8] sm:$0x1] %vm6578, 0.0
  %6618 = vst.msk [vmem:[%s6577 + $0xf8] sm:$0x1] %vm6578, 0.0
  %6619 = vst.msk [vmem:[%s6577 + $0x118] sm:$0x1] %vm6578, 0.0
  %6620 = vst.msk [vmem:[%s6577 + $0x138] sm:$0x1] %vm6578, 0.0
  %6621 = vst.msk [vmem:[%s6577 + $0x158] sm:$0x1] %vm6578, 0.0
  %6622 = vst.msk [vmem:[%s6577 + $0x178] sm:$0x1] %vm6578, 0.0
  %6623 = vst.msk [vmem:[%s6577 + $0x198] sm:$0x1] %vm6578, 0.0
  %6624 = vst.msk [vmem:[%s6577 + $0x1b8] sm:$0x1] %vm6578, 0.0
  %6625 = vst.msk [vmem:[%s6577 + $0x1d8] sm:$0x1] %vm6578, 0.0
  %6626 = vst.msk [vmem:[%s6577 + $0x1f8] sm:$0x1] %vm6578, 0.0
  %6627 = vst.msk [vmem:[%s6577 + $0x258] sm:$0x1] %vm6578, 0.0
  %6628 = vst.msk [vmem:[%s6577 + $0x278] sm:$0x1] %vm6578, 0.0
  %6629 = vst.msk [vmem:[%s6577 + $0x298] sm:$0x1] %vm6578, 0.0
  %6630 = vst.msk [vmem:[%s6577 + $0x2b8] sm:$0x1] %vm6578, 0.0
  %6631 = vst.msk [vmem:[%s6577 + $0x2d8] sm:$0x1] %vm6578, 0.0
  %6632 = vst.msk [vmem:[%s6577 + $0x2f8] sm:$0x1] %vm6578, 0.0
  %6633 = vst.msk [vmem:[%s6577 + $0x318] sm:$0x1] %vm6578, 0.0
  %6634 = vst.msk [vmem:[%s6577 + $0x338] sm:$0x1] %vm6578, 0.0
  %6635 = vst.msk [vmem:[%s6577 + $0x358] sm:$0x1] %vm6578, 0.0
  %6636 = vst.msk [vmem:[%s6577 + $0x378] sm:$0x1] %vm6578, 0.0
  %6637 = vst.msk [vmem:[%s6577 + $0x398] sm:$0x1] %vm6578, 0.0
  %6638 = vst.msk [vmem:[%s6577 + $0x3b8] sm:$0x1] %vm6578, 0.0
  %6639 = vst.msk [vmem:[%s6577 + $0x3d8] sm:$0x1] %vm6578, 0.0
  %6640 = vst.msk [vmem:[%s6577 + $0x3f8] sm:$0x1] %vm6578, 0.0
  %6641 = vst.msk [vmem:[%s6577 + $0x418] sm:$0x1] %vm6578, 0.0
  %6642 = vst.msk [vmem:[%s6577 + $0x438] sm:$0x1] %vm6578, 0.0
  %6643 = vst.msk [vmem:[%s6577 + $0x8] sm:$0xff] %vm6559, %v6495
  %6644 = vst.msk [vmem:[%s6577 + $0x10] sm:$0xff] %vm6559, %v6496
  %6645 = vst.msk [vmem:[%s6577 + $0x28] sm:$0xff] %vm6559, %v6497
  %6646 = vst.msk [vmem:[%s6577 + $0x30] sm:$0xff] %vm6559, %v6498
  %6647 = vst.msk [vmem:[%s6577 + $0x48] sm:$0xff] %vm6559, %v6499
  %6648 = vst.msk [vmem:[%s6577 + $0x50] sm:$0xff] %vm6559, %v6500
  %6649 = vst.msk [vmem:[%s6577 + $0x68] sm:$0xff] %vm6559, %v6501
  %6650 = vst.msk [vmem:[%s6577 + $0x70] sm:$0xff] %vm6559, %v6502
  %6651 = vst.msk [vmem:[%s6577 + $0x88] sm:$0xff] %vm6559, %v6503
  %6652 = vst.msk [vmem:[%s6577 + $0x90] sm:$0xff] %vm6559, %v6504
  %6653 = vst.msk [vmem:[%s6577 + $0xa8] sm:$0xff] %vm6559, %v6505
  %6654 = vst.msk [vmem:[%s6577 + $0xb0] sm:$0xff] %vm6559, %v6506
  %6655 = vst.msk [vmem:[%s6577 + $0xc8] sm:$0xff] %vm6559, %v6507
  %6656 = vst.msk [vmem:[%s6577 + $0xd0] sm:$0xff] %vm6559, %v6508
  %6657 = vst.msk [vmem:[%s6577 + $0xe8] sm:$0xff] %vm6559, %v6509
  %6658 = vst.msk [vmem:[%s6577 + $0xf0] sm:$0xff] %vm6559, %v6510
  %6659 = vst.msk [vmem:[%s6577 + $0x108] sm:$0xff] %vm6559, %v6511
  %6660 = vst.msk [vmem:[%s6577 + $0x110] sm:$0xff] %vm6559, %v6512
  %6661 = vst.msk [vmem:[%s6577 + $0x128] sm:$0xff] %vm6559, %v6513
  %6662 = vst.msk [vmem:[%s6577 + $0x130] sm:$0xff] %vm6559, %v6514
  %6663 = vst.msk [vmem:[%s6577 + $0x148] sm:$0xff] %vm6559, %v6515
  %6664 = vst.msk [vmem:[%s6577 + $0x150] sm:$0xff] %vm6559, %v6516
  %6665 = vst.msk [vmem:[%s6577 + $0x168] sm:$0xff] %vm6559, %v6517
  %6666 = vst.msk [vmem:[%s6577 + $0x170] sm:$0xff] %vm6559, %v6518
  %6667 = vst.msk [vmem:[%s6577 + $0x188] sm:$0xff] %vm6559, %v6519
  %6668 = vst.msk [vmem:[%s6577 + $0x190] sm:$0xff] %vm6559, %v6520
  %6669 = vst.msk [vmem:[%s6577 + $0x1a8] sm:$0xff] %vm6559, %v6521
  %6670 = vst.msk [vmem:[%s6577 + $0x1b0] sm:$0xff] %vm6559, %v6522
  %6671 = vst.msk [vmem:[%s6577 + $0x1c8] sm:$0xff] %vm6559, %v6523
  %6672 = vst.msk [vmem:[%s6577 + $0x1d0] sm:$0xff] %vm6559, %v6524
  %6673 = vst.msk [vmem:[%s6577 + $0x1e8] sm:$0xff] %vm6559, %v6525
  %6674 = vst.msk [vmem:[%s6577 + $0x1f0] sm:$0xff] %vm6559, %v6526
  %6675 = vst.msk [vmem:[%s6577 + $0x248] sm:$0xff] %vm6559, %v6527
  %6676 = vst.msk [vmem:[%s6577 + $0x250] sm:$0xff] %vm6559, %v6528
  %6677 = vst.msk [vmem:[%s6577 + $0x268] sm:$0xff] %vm6559, %v6529
  %6678 = vst.msk [vmem:[%s6577 + $0x270] sm:$0xff] %vm6559, %v6530
  %6679 = vst.msk [vmem:[%s6577 + $0x288] sm:$0xff] %vm6559, %v6531
  %6680 = vst.msk [vmem:[%s6577 + $0x290] sm:$0xff] %vm6559, %v6532
  %6681 = vst.msk [vmem:[%s6577 + $0x2a8] sm:$0xff] %vm6559, %v6533
  %6682 = vst.msk [vmem:[%s6577 + $0x2b0] sm:$0xff] %vm6559, %v6534
  %6683 = vst.msk [vmem:[%s6577 + $0x2c8] sm:$0xff] %vm6559, %v6535
  %6684 = vst.msk [vmem:[%s6577 + $0x2d0] sm:$0xff] %vm6559, %v6536
  %6685 = vst.msk [vmem:[%s6577 + $0x2e8] sm:$0xff] %vm6559, %v6537
  %6686 = vst.msk [vmem:[%s6577 + $0x2f0] sm:$0xff] %vm6559, %v6538
  %6687 = vst.msk [vmem:[%s6577 + $0x308] sm:$0xff] %vm6559, %v6539
  %6688 = vst.msk [vmem:[%s6577 + $0x310] sm:$0xff] %vm6559, %v6540
  %6689 = vst.msk [vmem:[%s6577 + $0x328] sm:$0xff] %vm6559, %v6541
  %6690 = vst.msk [vmem:[%s6577 + $0x330] sm:$0xff] %vm6559, %v6542
  %6691 = vst.msk [vmem:[%s6577 + $0x348] sm:$0xff] %vm6559, %v6543
  %6692 = vst.msk [vmem:[%s6577 + $0x350] sm:$0xff] %vm6559, %v6544
  %6693 = vst.msk [vmem:[%s6577 + $0x368] sm:$0xff] %vm6559, %v6545
  %6694 = vst.msk [vmem:[%s6577 + $0x370] sm:$0xff] %vm6559, %v6546
  %6695 = vst.msk [vmem:[%s6577 + $0x388] sm:$0xff] %vm6559, %v6547
  %6696 = vst.msk [vmem:[%s6577 + $0x390] sm:$0xff] %vm6559, %v6548
  %6697 = vst.msk [vmem:[%s6577 + $0x3a8] sm:$0xff] %vm6559, %v6549
  %6698 = vst.msk [vmem:[%s6577 + $0x3b0] sm:$0xff] %vm6559, %v6550
  %6699 = vst.msk [vmem:[%s6577 + $0x3c8] sm:$0xff] %vm6559, %v6551
  %6700 = vst.msk [vmem:[%s6577 + $0x3d0] sm:$0xff] %vm6559, %v6552
  %6701 = vst.msk [vmem:[%s6577 + $0x3e8] sm:$0xff] %vm6559, %v6553
  %6702 = vst.msk [vmem:[%s6577 + $0x3f0] sm:$0xff] %vm6559, %v6554
  %6703 = vst.msk [vmem:[%s6577 + $0x408] sm:$0xff] %vm6559, %v6555
  %6704 = vst.msk [vmem:[%s6577 + $0x410] sm:$0xff] %vm6559, %v6556
  %6705 = vst.msk [vmem:[%s6577 + $0x428] sm:$0xff] %vm6559, %v6557
  %6706 = vst.msk [vmem:[%s6577 + $0x430] sm:$0xff] %vm6559, %v6558
  %v6707 = vld [vmem:[#allocation3 + $0x7] sm:$0xff]
  %v6708 = vld [vmem:[#allocation3 + $0xf] sm:$0xff]
  %v6709 = vld [vmem:[#allocation3 + $0x27] sm:$0xff]
  %v6710 = vld [vmem:[#allocation3 + $0x2f] sm:$0xff]
  %v6711 = vld [vmem:[#allocation3 + $0x47] sm:$0xff]
  %v6712 = vld [vmem:[#allocation3 + $0x4f] sm:$0xff]
  %v6713 = vld [vmem:[#allocation3 + $0x67] sm:$0xff]
  %v6714 = vld [vmem:[#allocation3 + $0x6f] sm:$0xff]
  %v6715 = vld [vmem:[#allocation3 + $0x87] sm:$0xff]
  %v6716 = vld [vmem:[#allocation3 + $0x8f] sm:$0xff]
  %v6717 = vld [vmem:[#allocation3 + $0xa7] sm:$0xff]
  %v6718 = vld [vmem:[#allocation3 + $0xaf] sm:$0xff]
  %v6719 = vld [vmem:[#allocation3 + $0xc7] sm:$0xff]
  %v6720 = vld [vmem:[#allocation3 + $0xcf] sm:$0xff]
  %v6721 = vld [vmem:[#allocation3 + $0xe7] sm:$0xff]
  %v6722 = vld [vmem:[#allocation3 + $0xef] sm:$0xff]
  %v6723 = vld [vmem:[#allocation3 + $0x107] sm:$0xff]
  %v6724 = vld [vmem:[#allocation3 + $0x10f] sm:$0xff]
  %v6725 = vld [vmem:[#allocation3 + $0x127] sm:$0xff]
  %v6726 = vld [vmem:[#allocation3 + $0x12f] sm:$0xff]
  %v6727 = vld [vmem:[#allocation3 + $0x147] sm:$0xff]
  %v6728 = vld [vmem:[#allocation3 + $0x14f] sm:$0xff]
  %v6729 = vld [vmem:[#allocation3 + $0x167] sm:$0xff]
  %v6730 = vld [vmem:[#allocation3 + $0x16f] sm:$0xff]
  %v6731 = vld [vmem:[#allocation3 + $0x187] sm:$0xff]
  %v6732 = vld [vmem:[#allocation3 + $0x18f] sm:$0xff]
  %v6733 = vld [vmem:[#allocation3 + $0x1a7] sm:$0xff]
  %v6734 = vld [vmem:[#allocation3 + $0x1af] sm:$0xff]
  %v6735 = vld [vmem:[#allocation3 + $0x1c7] sm:$0xff]
  %v6736 = vld [vmem:[#allocation3 + $0x1cf] sm:$0xff]
  %v6737 = vld [vmem:[#allocation3 + $0x1e7] sm:$0xff]
  %v6738 = vld [vmem:[#allocation3 + $0x1ef] sm:$0xff]
  %v6739 = vld [vmem:[#allocation3 + $0x247] sm:$0xff]
  %v6740 = vld [vmem:[#allocation3 + $0x24f] sm:$0xff]
  %v6741 = vld [vmem:[#allocation3 + $0x267] sm:$0xff]
  %v6742 = vld [vmem:[#allocation3 + $0x26f] sm:$0xff]
  %v6743 = vld [vmem:[#allocation3 + $0x287] sm:$0xff]
  %v6744 = vld [vmem:[#allocation3 + $0x28f] sm:$0xff]
  %v6745 = vld [vmem:[#allocation3 + $0x2a7] sm:$0xff]
  %v6746 = vld [vmem:[#allocation3 + $0x2af] sm:$0xff]
  %v6747 = vld [vmem:[#allocation3 + $0x2c7] sm:$0xff]
  %v6748 = vld [vmem:[#allocation3 + $0x2cf] sm:$0xff]
  %v6749 = vld [vmem:[#allocation3 + $0x2e7] sm:$0xff]
  %v6750 = vld [vmem:[#allocation3 + $0x2ef] sm:$0xff]
  %v6751 = vld [vmem:[#allocation3 + $0x307] sm:$0xff]
  %v6752 = vld [vmem:[#allocation3 + $0x30f] sm:$0xff]
  %v6753 = vld [vmem:[#allocation3 + $0x327] sm:$0xff]
  %v6754 = vld [vmem:[#allocation3 + $0x32f] sm:$0xff]
  %v6755 = vld [vmem:[#allocation3 + $0x347] sm:$0xff]
  %v6756 = vld [vmem:[#allocation3 + $0x34f] sm:$0xff]
  %v6757 = vld [vmem:[#allocation3 + $0x367] sm:$0xff]
  %v6758 = vld [vmem:[#allocation3 + $0x36f] sm:$0xff]
  %v6759 = vld [vmem:[#allocation3 + $0x387] sm:$0xff]
  %v6760 = vld [vmem:[#allocation3 + $0x38f] sm:$0xff]
  %v6761 = vld [vmem:[#allocation3 + $0x3a7] sm:$0xff]
  %v6762 = vld [vmem:[#allocation3 + $0x3af] sm:$0xff]
  %v6763 = vld [vmem:[#allocation3 + $0x3c7] sm:$0xff]
  %v6764 = vld [vmem:[#allocation3 + $0x3cf] sm:$0xff]
  %v6765 = vld [vmem:[#allocation3 + $0x3e7] sm:$0xff]
  %v6766 = vld [vmem:[#allocation3 + $0x3ef] sm:$0xff]
  %v6767 = vld [vmem:[#allocation3 + $0x407] sm:$0xff]
  %v6768 = vld [vmem:[#allocation3 + $0x40f] sm:$0xff]
  %v6769 = vld [vmem:[#allocation3 + $0x427] sm:$0xff]
  %v6770 = vld [vmem:[#allocation3 + $0x42f] sm:$0xff]
  %v6771 = vld [vmem:[%s2] sm:$0xff]
  %v6772 = vld [vmem:[#allocation3 + $0x8] sm:$0xff]
  %v6773 = vld [vmem:[#allocation3 + $0x10] sm:$0xff]
  %v6774 = vld [vmem:[#allocation3 + $0x28] sm:$0xff]
  %v6775 = vld [vmem:[#allocation3 + $0x30] sm:$0xff]
  %v6776 = vld [vmem:[#allocation3 + $0x48] sm:$0xff]
  %v6777 = vld [vmem:[#allocation3 + $0x50] sm:$0xff]
  %v6778 = vld [vmem:[#allocation3 + $0x68] sm:$0xff]
  %v6779 = vld [vmem:[#allocation3 + $0x70] sm:$0xff]
  %v6780 = vld [vmem:[#allocation3 + $0x88] sm:$0xff]
  %v6781 = vld [vmem:[#allocation3 + $0x90] sm:$0xff]
  %v6782 = vld [vmem:[#allocation3 + $0xa8] sm:$0xff]
  %v6783 = vld [vmem:[#allocation3 + $0xb0] sm:$0xff]
  %v6784 = vld [vmem:[#allocation3 + $0xc8] sm:$0xff]
  %v6785 = vld [vmem:[#allocation3 + $0xd0] sm:$0xff]
  %v6786 = vld [vmem:[#allocation3 + $0xe8] sm:$0xff]
  %v6787 = vld [vmem:[#allocation3 + $0xf0] sm:$0xff]
  %v6788 = vld [vmem:[#allocation3 + $0x108] sm:$0xff]
  %v6789 = vld [vmem:[#allocation3 + $0x110] sm:$0xff]
  %v6790 = vld [vmem:[#allocation3 + $0x128] sm:$0xff]
  %v6791 = vld [vmem:[#allocation3 + $0x130] sm:$0xff]
  %v6792 = vld [vmem:[#allocation3 + $0x148] sm:$0xff]
  %v6793 = vld [vmem:[#allocation3 + $0x150] sm:$0xff]
  %v6794 = vld [vmem:[#allocation3 + $0x168] sm:$0xff]
  %v6795 = vld [vmem:[#allocation3 + $0x170] sm:$0xff]
  %v6796 = vld [vmem:[#allocation3 + $0x188] sm:$0xff]
  %v6797 = vld [vmem:[#allocation3 + $0x190] sm:$0xff]
  %v6798 = vld [vmem:[#allocation3 + $0x1a8] sm:$0xff]
  %v6799 = vld [vmem:[#allocation3 + $0x1b0] sm:$0xff]
  %v6800 = vld [vmem:[#allocation3 + $0x1c8] sm:$0xff]
  %v6801 = vld [vmem:[#allocation3 + $0x1d0] sm:$0xff]
  %v6802 = vld [vmem:[#allocation3 + $0x1e8] sm:$0xff]
  %v6803 = vld [vmem:[#allocation3 + $0x1f0] sm:$0xff]
  %v6804 = vld [vmem:[#allocation3 + $0x248] sm:$0xff]
  %v6805 = vld [vmem:[#allocation3 + $0x250] sm:$0xff]
  %v6806 = vld [vmem:[#allocation3 + $0x268] sm:$0xff]
  %v6807 = vld [vmem:[#allocation3 + $0x270] sm:$0xff]
  %v6808 = vld [vmem:[#allocation3 + $0x288] sm:$0xff]
  %v6809 = vld [vmem:[#allocation3 + $0x290] sm:$0xff]
  %v6810 = vld [vmem:[#allocation3 + $0x2a8] sm:$0xff]
  %v6811 = vld [vmem:[#allocation3 + $0x2b0] sm:$0xff]
  %v6812 = vld [vmem:[#allocation3 + $0x2c8] sm:$0xff]
  %v6813 = vld [vmem:[#allocation3 + $0x2d0] sm:$0xff]
  %v6814 = vld [vmem:[#allocation3 + $0x2e8] sm:$0xff]
  %v6815 = vld [vmem:[#allocation3 + $0x2f0] sm:$0xff]
  %v6816 = vld [vmem:[#allocation3 + $0x308] sm:$0xff]
  %v6817 = vld [vmem:[#allocation3 + $0x310] sm:$0xff]
  %v6818 = vld [vmem:[#allocation3 + $0x328] sm:$0xff]
  %v6819 = vld [vmem:[#allocation3 + $0x330] sm:$0xff]
  %v6820 = vld [vmem:[#allocation3 + $0x348] sm:$0xff]
  %v6821 = vld [vmem:[#allocation3 + $0x350] sm:$0xff]
  %v6822 = vld [vmem:[#allocation3 + $0x368] sm:$0xff]
  %v6823 = vld [vmem:[#allocation3 + $0x370] sm:$0xff]
  %v6824 = vld [vmem:[#allocation3 + $0x388] sm:$0xff]
  %v6825 = vld [vmem:[#allocation3 + $0x390] sm:$0xff]
  %v6826 = vld [vmem:[#allocation3 + $0x3a8] sm:$0xff]
  %v6827 = vld [vmem:[#allocation3 + $0x3b0] sm:$0xff]
  %v6828 = vld [vmem:[#allocation3 + $0x3c8] sm:$0xff]
  %v6829 = vld [vmem:[#allocation3 + $0x3d0] sm:$0xff]
  %v6830 = vld [vmem:[#allocation3 + $0x3e8] sm:$0xff]
  %v6831 = vld [vmem:[#allocation3 + $0x3f0] sm:$0xff]
  %v6832 = vld [vmem:[#allocation3 + $0x408] sm:$0xff]
  %v6833 = vld [vmem:[#allocation3 + $0x410] sm:$0xff]
  %v6834 = vld [vmem:[#allocation3 + $0x428] sm:$0xff]
  %v6835 = vld [vmem:[#allocation3 + $0x430] sm:$0xff]
  %s6836 = scalar_lea.vmem %s2, 8
  %v6837 = vld [vmem:[%s6836] sm:$0xff]
  %v6839 = vsel %vm6559, %v6772, 0
  %v6842 = vsel %vm6559, %v6773, 0
  %v6845 = vsel %vm6559, %v6774, 0
  %v6848 = vsel %vm6559, %v6775, 0
  %v6851 = vsel %vm6559, %v6776, 0
  %v6854 = vsel %vm6559, %v6777, 0
  %v6857 = vsel %vm6559, %v6778, 0
  %v6860 = vsel %vm6559, %v6779, 0
  %v6863 = vsel %vm6559, %v6780, 0
  %v6866 = vsel %vm6559, %v6781, 0
  %v6869 = vsel %vm6559, %v6782, 0
  %v6872 = vsel %vm6559, %v6783, 0
  %v6875 = vsel %vm6559, %v6784, 0
  %v6878 = vsel %vm6559, %v6785, 0
  %v6881 = vsel %vm6559, %v6786, 0
  %v6884 = vsel %vm6559, %v6787, 0
  %v6887 = vsel %vm6559, %v6788, 0
  %v6890 = vsel %vm6559, %v6789, 0
  %v6893 = vsel %vm6559, %v6790, 0
  %v6896 = vsel %vm6559, %v6791, 0
  %v6899 = vsel %vm6559, %v6792, 0
  %v6902 = vsel %vm6559, %v6793, 0
  %v6905 = vsel %vm6559, %v6794, 0
  %v6908 = vsel %vm6559, %v6795, 0
  %v6911 = vsel %vm6559, %v6796, 0
  %v6914 = vsel %vm6559, %v6797, 0
  %v6917 = vsel %vm6559, %v6798, 0
  %v6920 = vsel %vm6559, %v6799, 0
  %v6923 = vsel %vm6559, %v6800, 0
  %v6926 = vsel %vm6559, %v6801, 0
  %v6929 = vsel %vm6559, %v6802, 0
  %v6932 = vsel %vm6559, %v6803, 0
  %v6935 = vsel %vm6559, %v6804, 0
  %v6938 = vsel %vm6559, %v6805, 0
  %v6941 = vsel %vm6559, %v6806, 0
  %v6944 = vsel %vm6559, %v6807, 0
  %v6947 = vsel %vm6559, %v6808, 0
  %v6950 = vsel %vm6559, %v6809, 0
  %v6953 = vsel %vm6559, %v6810, 0
  %v6956 = vsel %vm6559, %v6811, 0
  %v6959 = vsel %vm6559, %v6812, 0
  %v6962 = vsel %vm6559, %v6813, 0
  %v6965 = vsel %vm6559, %v6814, 0
  %v6968 = vsel %vm6559, %v6815, 0
  %v6971 = vsel %vm6559, %v6816, 0
  %v6974 = vsel %vm6559, %v6817, 0
  %v6977 = vsel %vm6559, %v6818, 0
  %v6980 = vsel %vm6559, %v6819, 0
  %v6983 = vsel %vm6559, %v6820, 0
  %v6986 = vsel %vm6559, %v6821, 0
  %v6989 = vsel %vm6559, %v6822, 0
  %v6992 = vsel %vm6559, %v6823, 0
  %v6995 = vsel %vm6559, %v6824, 0
  %v6998 = vsel %vm6559, %v6825, 0
  %v7001 = vsel %vm6559, %v6826, 0
  %v7004 = vsel %vm6559, %v6827, 0
  %v7007 = vsel %vm6559, %v6828, 0
  %v7010 = vsel %vm6559, %v6829, 0
  %v7013 = vsel %vm6559, %v6830, 0
  %v7016 = vsel %vm6559, %v6831, 0
  %v7019 = vsel %vm6559, %v6832, 0
  %v7022 = vsel %vm6559, %v6833, 0
  %v7025 = vsel %vm6559, %v6834, 0
  %v7028 = vsel %vm6559, %v6835, 0
  %7030 = vmatprep.subr.mxu0 0.0
  %7031 = vmatpush1.msra.mxu0 %v6837
  %7032 = vmatprep.subr.mxu0 0.0
  %7033 = vmatpush1.msra.mxu0 0.0
  %7034 = vmatprep.subr.mxu0 0.0
  %7035 = vmatpush1.msra.mxu0 0.0
  %7036 = vmatprep.subr.mxu0 0.0
  %7037 = vmatpush1.msra.mxu0 0.0
  %7038 = vmatprep.subr.mxu0 0.0
  %7039 = vmatpush1.msra.mxu0 0.0
  %7040 = vmatprep.subr.mxu0 0.0
  %7041 = vmatpush1.msra.mxu0 0.0
  %7042 = vmatprep.subr.mxu0 0.0
  %7043 = vmatpush1.msra.mxu0 0.0
  %7044 = vmatprep.subr.mxu0 0.0
  %7045 = vmatpush1.msra.mxu0 0.0
  %7046 = vmatprep.subr.mxu0 0.0
  %7047 = vmatpush1.msra.mxu0 0.0
  %7048 = vmatprep.subr.mxu0 0.0
  %7049 = vmatpush1.msra.mxu0 0.0
  %7050 = vmatprep.subr.mxu0 0.0
  %7051 = vmatpush1.msra.mxu0 0.0
  %7052 = vmatprep.subr.mxu0 0.0
  %7053 = vmatpush1.msra.mxu0 0.0
  %7054 = vmatprep.subr.mxu0 0.0
  %7055 = vmatpush1.msra.mxu0 0.0
  %7056 = vmatprep.subr.mxu0 0.0
  %7057 = vmatpush1.msra.mxu0 0.0
  %7058 = vmatprep.subr.mxu0 0.0
  %7059 = vmatpush1.msra.mxu0 0.0
  %7060 = vmatprep.subr.mxu0 0.0
  %7061 = vmatpush1.msra.mxu0 0.0
  %7062 = vmatprep.subr.mxu0 0.0
  %7063 = vmatpush1.msra.mxu0 0.0
  %7064 = vmatprep.subr.mxu0 0.0
  %7065 = vmatpush1.msra.mxu0 0.0
  %7066 = vmatprep.subr.mxu0 0.0
  %7067 = vmatpush1.msra.mxu0 0.0
  %7068 = vmatprep.subr.mxu0 0.0
  %7069 = vmatpush1.msra.mxu0 0.0
  %7070 = vmatprep.subr.mxu0 0.0
  %7071 = vmatpush1.msra.mxu0 0.0
  %7072 = vmatprep.subr.mxu0 0.0
  %7073 = vmatpush1.msra.mxu0 0.0
  %7074 = vmatprep.subr.mxu0 0.0
  %7075 = vmatpush1.msra.mxu0 0.0
  %7076 = vmatprep.subr.mxu0 0.0
  %7077 = vmatpush1.msra.mxu0 0.0
  %7078 = vmatprep.subr.mxu0 0.0
  %7079 = vmatpush1.msra.mxu0 0.0
  %7080 = vmatprep.subr.mxu0 0.0
  %7081 = vmatpush1.msra.mxu0 0.0
  %7082 = vmatprep.subr.mxu0 0.0
  %7083 = vmatpush1.msra.mxu0 0.0
  %7084 = vmatprep.subr.mxu0 0.0
  %7085 = vmatpush1.msra.mxu0 0.0
  %7086 = vmatprep.subr.mxu0 0.0
  %7087 = vmatpush1.msra.mxu0 0.0
  %7088 = vmatprep.subr.mxu0 0.0
  %7089 = vmatpush1.msra.mxu0 0.0
  %7090 = vmatprep.subr.mxu0 0.0
  %7091 = vmatpush1.msra.mxu0 0.0
  %7092 = vmatprep.subr.mxu0 0.0
  %7093 = vmatpush1.msra.mxu0 0.0
  %7094 = vmatprep.mubr.f32.mxu0 0.0
  %7095 = vmatmul.mubr.f32.gmra.mrb[0].mxu0 %v6839
  %v7096 = vpop.f32.mrb[0].mxu0
  %v7097 = vadd.f32 0.0, %v7096
  %v7098 = vpop.f32.mrb[0].mxu0
  %7099 = vmatprep.mubr.f32.mxu0 0.0
  %7100 = vmatmul.mubr.f32.gmra.mrb[0].mxu0 %v6842
  %v7101 = vpop.f32.mrb[0].mxu0
  %v7102 = vadd.f32 0.0, %v7101
  %v7103 = vpop.f32.mrb[0].mxu0
  %7104 = vmatprep.mubr.f32.mxu0 0.0
  %7105 = vmatmul.mubr.f32.gmra.mrb[0].mxu0 %v6845
  %v7106 = vpop.f32.mrb[0].mxu0
  %v7107 = vadd.f32 0.0, %v7106
  %v7108 = vpop.f32.mrb[0].mxu0
  %7109 = vmatprep.mubr.f32.mxu0 0.0
  %7110 = vmatmul.mubr.f32.gmra.mrb[0].mxu0 %v6848
  %v7111 = vpop.f32.mrb[0].mxu0
  %v7112 = vadd.f32 0.0, %v7111
  %v7113 = vpop.f32.mrb[0].mxu0
  %7114 = vmatprep.mubr.f32.mxu0 0.0
  %7115 = vmatmul.mubr.f32.gmra.mrb[0].mxu0 %v6851
  %v7116 = vpop.f32.mrb[0].mxu0
  %v7117 = vadd.f32 0.0, %v7116
  %v7118 = vpop.f32.mrb[0].mxu0
  %7119 = vmatprep.mubr.f32.mxu0 0.0
  %7120 = vmatmul.mubr.f32.gmra.mrb[0].mxu0 %v6854
  %v7121 = vpop.f32.mrb[0].mxu0
  %v7122 = vadd.f32 0.0, %v7121
  %v7123 = vpop.f32.mrb[0].mxu0
  %7124 = vmatprep.mubr.f32.mxu0 0.0
  %7125 = vmatmul.mubr.f32.gmra.mrb[0].mxu0 %v6857
  %v7126 = vpop.f32.mrb[0].mxu0
  %v7127 = vadd.f32 0.0, %v7126
  %v7128 = vpop.f32.mrb[0].mxu0
  %7129 = vmatprep.mubr.f32.mxu0 0.0
  %7130 = vmatmul.mubr.f32.gmra.mrb[0].mxu0 %v6860
  %v7131 = vpop.f32.mrb[0].mxu0
  %v7132 = vadd.f32 0.0, %v7131
  %v7133 = vpop.f32.mrb[0].mxu0
  %7134 = vmatprep.mubr.f32.mxu0 0.0
  %7135 = vmatmul.mubr.f32.gmra.mrb[0].mxu0 %v6863
  %v7136 = vpop.f32.mrb[0].mxu0
  %v7137 = vadd.f32 0.0, %v7136
  %v7138 = vpop.f32.mrb[0].mxu0
  %7139 = vmatprep.mubr.f32.mxu0 0.0
  %7140 = vmatmul.mubr.f32.gmra.mrb[0].mxu0 %v6866
  %v7141 = vpop.f32.mrb[0].mxu0
  %v7142 = vadd.f32 0.0, %v7141
  %v7143 = vpop.f32.mrb[0].mxu0
  %7144 = vmatprep.mubr.f32.mxu0 0.0
  %7145 = vmatmul.mubr.f32.gmra.mrb[0].mxu0 %v6869
  %v7146 = vpop.f32.mrb[0].mxu0
  %v7147 = vadd.f32 0.0, %v7146
  %v7148 = vpop.f32.mrb[0].mxu0
  %7149 = vmatprep.mubr.f32.mxu0 0.0
  %7150 = vmatmul.mubr.f32.gmra.mrb[0].mxu0 %v6872
  %v7151 = vpop.f32.mrb[0].mxu0
  %v7152 = vadd.f32 0.0, %v7151
  %v7153 = vpop.f32.mrb[0].mxu0
  %7154 = vmatprep.mubr.f32.mxu0 0.0
  %7155 = vmatmul.mubr.f32.gmra.mrb[0].mxu0 %v6875
  %v7156 = vpop.f32.mrb[0].mxu0
  %v7157 = vadd.f32 0.0, %v7156
  %v7158 = vpop.f32.mrb[0].mxu0
  %7159 = vmatprep.mubr.f32.mxu0 0.0
  %7160 = vmatmul.mubr.f32.gmra.mrb[0].mxu0 %v6878
  %v7161 = vpop.f32.mrb[0].mxu0
  %v7162 = vadd.f32 0.0, %v7161
  %v7163 = vpop.f32.mrb[0].mxu0
  %7164 = vmatprep.mubr.f32.mxu0 0.0
  %7165 = vmatmul.mubr.f32.gmra.mrb[0].mxu0 %v6881
  %v7166 = vpop.f32.mrb[0].mxu0
  %v7167 = vadd.f32 0.0, %v7166
  %v7168 = vpop.f32.mrb[0].mxu0
  %7169 = vmatprep.mubr.f32.mxu0 0.0
  %7170 = vmatmul.mubr.f32.gmra.mrb[0].mxu0 %v6884
  %v7171 = vpop.f32.mrb[0].mxu0
  %v7172 = vadd.f32 0.0, %v7171
  %v7173 = vpop.f32.mrb[0].mxu0
  %7174 = vmatprep.mubr.f32.mxu0 0.0
  %7175 = vmatmul.mubr.f32.gmra.mrb[0].mxu0 %v6887
  %v7176 = vpop.f32.mrb[0].mxu0
  %v7177 = vadd.f32 0.0, %v7176
  %v7178 = vpop.f32.mrb[0].mxu0
  %7179 = vmatprep.mubr.f32.mxu0 0.0
  %7180 = vmatmul.mubr.f32.gmra.mrb[0].mxu0 %v6890
  %v7181 = vpop.f32.mrb[0].mxu0
  %v7182 = vadd.f32 0.0, %v7181
  %v7183 = vpop.f32.mrb[0].mxu0
  %7184 = vmatprep.mubr.f32.mxu0 0.0
  %7185 = vmatmul.mubr.f32.gmra.mrb[0].mxu0 %v6893
  %v7186 = vpop.f32.mrb[0].mxu0
  %v7187 = vadd.f32 0.0, %v7186
  %v7188 = vpop.f32.mrb[0].mxu0
  %7189 = vmatprep.mubr.f32.mxu0 0.0
  %7190 = vmatmul.mubr.f32.gmra.mrb[0].mxu0 %v6896
  %v7191 = vpop.f32.mrb[0].mxu0
  %v7192 = vadd.f32 0.0, %v7191
  %v7193 = vpop.f32.mrb[0].mxu0
  %7194 = vmatprep.mubr.f32.mxu0 0.0
  %7195 = vmatmul.mubr.f32.gmra.mrb[0].mxu0 %v6899
  %v7196 = vpop.f32.mrb[0].mxu0
  %v7197 = vadd.f32 0.0, %v7196
  %v7198 = vpop.f32.mrb[0].mxu0
  %7199 = vmatprep.mubr.f32.mxu0 0.0
  %7200 = vmatmul.mubr.f32.gmra.mrb[0].mxu0 %v6902
  %v7201 = vpop.f32.mrb[0].mxu0
  %v7202 = vadd.f32 0.0, %v7201
  %v7203 = vpop.f32.mrb[0].mxu0
  %7204 = vmatprep.mubr.f32.mxu0 0.0
  %7205 = vmatmul.mubr.f32.gmra.mrb[0].mxu0 %v6905
  %v7206 = vpop.f32.mrb[0].mxu0
  %v7207 = vadd.f32 0.0, %v7206
  %v7208 = vpop.f32.mrb[0].mxu0
  %7209 = vmatprep.mubr.f32.mxu0 0.0
  %7210 = vmatmul.mubr.f32.gmra.mrb[0].mxu0 %v6908
  %v7211 = vpop.f32.mrb[0].mxu0
  %v7212 = vadd.f32 0.0, %v7211
  %v7213 = vpop.f32.mrb[0].mxu0
  %7214 = vmatprep.mubr.f32.mxu0 0.0
  %7215 = vmatmul.mubr.f32.gmra.mrb[0].mxu0 %v6911
  %v7216 = vpop.f32.mrb[0].mxu0
  %v7217 = vadd.f32 0.0, %v7216
  %v7218 = vpop.f32.mrb[0].mxu0
  %7219 = vmatprep.mubr.f32.mxu0 0.0
  %7220 = vmatmul.mubr.f32.gmra.mrb[0].mxu0 %v6914
  %v7221 = vpop.f32.mrb[0].mxu0
  %v7222 = vadd.f32 0.0, %v7221
  %v7223 = vpop.f32.mrb[0].mxu0
  %7224 = vmatprep.mubr.f32.mxu0 0.0
  %7225 = vmatmul.mubr.f32.gmra.mrb[0].mxu0 %v6917
  %v7226 = vpop.f32.mrb[0].mxu0
  %v7227 = vadd.f32 0.0, %v7226
  %v7228 = vpop.f32.mrb[0].mxu0
  %7229 = vmatprep.mubr.f32.mxu0 0.0
  %7230 = vmatmul.mubr.f32.gmra.mrb[0].mxu0 %v6920
  %v7231 = vpop.f32.mrb[0].mxu0
  %v7232 = vadd.f32 0.0, %v7231
  %v7233 = vpop.f32.mrb[0].mxu0
  %7234 = vmatprep.mubr.f32.mxu0 0.0
  %7235 = vmatmul.mubr.f32.gmra.mrb[0].mxu0 %v6923
  %v7236 = vpop.f32.mrb[0].mxu0
  %v7237 = vadd.f32 0.0, %v7236
  %v7238 = vpop.f32.mrb[0].mxu0
  %7239 = vmatprep.mubr.f32.mxu0 0.0
  %7240 = vmatmul.mubr.f32.gmra.mrb[0].mxu0 %v6926
  %v7241 = vpop.f32.mrb[0].mxu0
  %v7242 = vadd.f32 0.0, %v7241
  %v7243 = vpop.f32.mrb[0].mxu0
  %7244 = vmatprep.mubr.f32.mxu0 0.0
  %7245 = vmatmul.mubr.f32.gmra.mrb[0].mxu0 %v6929
  %v7246 = vpop.f32.mrb[0].mxu0
  %v7247 = vadd.f32 0.0, %v7246
  %v7248 = vpop.f32.mrb[0].mxu0
  %7249 = vmatprep.mubr.f32.mxu0 0.0
  %7250 = vmatmul.mubr.f32.gmra.mrb[0].mxu0 %v6932
  %v7251 = vpop.f32.mrb[0].mxu0
  %v7252 = vadd.f32 0.0, %v7251
  %v7253 = vpop.f32.mrb[0].mxu0
  %7254 = vmatprep.mubr.f32.mxu0 0.0
  %7255 = vmatmul.mubr.f32.gmra.mrb[0].mxu0 %v6935
  %v7256 = vpop.f32.mrb[0].mxu0
  %v7257 = vadd.f32 0.0, %v7256
  %v7258 = vpop.f32.mrb[0].mxu0
  %7259 = vmatprep.mubr.f32.mxu0 0.0
  %7260 = vmatmul.mubr.f32.gmra.mrb[0].mxu0 %v6938
  %v7261 = vpop.f32.mrb[0].mxu0
  %v7262 = vadd.f32 0.0, %v7261
  %v7263 = vpop.f32.mrb[0].mxu0
  %7264 = vmatprep.mubr.f32.mxu0 0.0
  %7265 = vmatmul.mubr.f32.gmra.mrb[0].mxu0 %v6941
  %v7266 = vpop.f32.mrb[0].mxu0
  %v7267 = vadd.f32 0.0, %v7266
  %v7268 = vpop.f32.mrb[0].mxu0
  %7269 = vmatprep.mubr.f32.mxu0 0.0
  %7270 = vmatmul.mubr.f32.gmra.mrb[0].mxu0 %v6944
  %v7271 = vpop.f32.mrb[0].mxu0
  %v7272 = vadd.f32 0.0, %v7271
  %v7273 = vpop.f32.mrb[0].mxu0
  %7274 = vmatprep.mubr.f32.mxu0 0.0
  %7275 = vmatmul.mubr.f32.gmra.mrb[0].mxu0 %v6947
  %v7276 = vpop.f32.mrb[0].mxu0
  %v7277 = vadd.f32 0.0, %v7276
  %v7278 = vpop.f32.mrb[0].mxu0
  %7279 = vmatprep.mubr.f32.mxu0 0.0
  %7280 = vmatmul.mubr.f32.gmra.mrb[0].mxu0 %v6950
  %v7281 = vpop.f32.mrb[0].mxu0
  %v7282 = vadd.f32 0.0, %v7281
  %v7283 = vpop.f32.mrb[0].mxu0
  %7284 = vmatprep.mubr.f32.mxu0 0.0
  %7285 = vmatmul.mubr.f32.gmra.mrb[0].mxu0 %v6953
  %v7286 = vpop.f32.mrb[0].mxu0
  %v7287 = vadd.f32 0.0, %v7286
  %v7288 = vpop.f32.mrb[0].mxu0
  %7289 = vmatprep.mubr.f32.mxu0 0.0
  %7290 = vmatmul.mubr.f32.gmra.mrb[0].mxu0 %v6956
  %v7291 = vpop.f32.mrb[0].mxu0
  %v7292 = vadd.f32 0.0, %v7291
  %v7293 = vpop.f32.mrb[0].mxu0
  %7294 = vmatprep.mubr.f32.mxu0 0.0
  %7295 = vmatmul.mubr.f32.gmra.mrb[0].mxu0 %v6959
  %v7296 = vpop.f32.mrb[0].mxu0
  %v7297 = vadd.f32 0.0, %v7296
  %v7298 = vpop.f32.mrb[0].mxu0
  %7299 = vmatprep.mubr.f32.mxu0 0.0
  %7300 = vmatmul.mubr.f32.gmra.mrb[0].mxu0 %v6962
  %v7301 = vpop.f32.mrb[0].mxu0
  %v7302 = vadd.f32 0.0, %v7301
  %v7303 = vpop.f32.mrb[0].mxu0
  %7304 = vmatprep.mubr.f32.mxu0 0.0
  %7305 = vmatmul.mubr.f32.gmra.mrb[0].mxu0 %v6965
  %v7306 = vpop.f32.mrb[0].mxu0
  %v7307 = vadd.f32 0.0, %v7306
  %v7308 = vpop.f32.mrb[0].mxu0
  %7309 = vmatprep.mubr.f32.mxu0 0.0
  %7310 = vmatmul.mubr.f32.gmra.mrb[0].mxu0 %v6968
  %v7311 = vpop.f32.mrb[0].mxu0
  %v7312 = vadd.f32 0.0, %v7311
  %v7313 = vpop.f32.mrb[0].mxu0
  %7314 = vmatprep.mubr.f32.mxu0 0.0
  %7315 = vmatmul.mubr.f32.gmra.mrb[0].mxu0 %v6971
  %v7316 = vpop.f32.mrb[0].mxu0
  %v7317 = vadd.f32 0.0, %v7316
  %v7318 = vpop.f32.mrb[0].mxu0
  %7319 = vmatprep.mubr.f32.mxu0 0.0
  %7320 = vmatmul.mubr.f32.gmra.mrb[0].mxu0 %v6974
  %v7321 = vpop.f32.mrb[0].mxu0
  %v7322 = vadd.f32 0.0, %v7321
  %v7323 = vpop.f32.mrb[0].mxu0
  %7324 = vmatprep.mubr.f32.mxu0 0.0
  %7325 = vmatmul.mubr.f32.gmra.mrb[0].mxu0 %v6977
  %v7326 = vpop.f32.mrb[0].mxu0
  %v7327 = vadd.f32 0.0, %v7326
  %v7328 = vpop.f32.mrb[0].mxu0
  %7329 = vmatprep.mubr.f32.mxu0 0.0
  %7330 = vmatmul.mubr.f32.gmra.mrb[0].mxu0 %v6980
  %v7331 = vpop.f32.mrb[0].mxu0
  %v7332 = vadd.f32 0.0, %v7331
  %v7333 = vpop.f32.mrb[0].mxu0
  %7334 = vmatprep.mubr.f32.mxu0 0.0
  %7335 = vmatmul.mubr.f32.gmra.mrb[0].mxu0 %v6983
  %v7336 = vpop.f32.mrb[0].mxu0
  %v7337 = vadd.f32 0.0, %v7336
  %v7338 = vpop.f32.mrb[0].mxu0
  %7339 = vmatprep.mubr.f32.mxu0 0.0
  %7340 = vmatmul.mubr.f32.gmra.mrb[0].mxu0 %v6986
  %v7341 = vpop.f32.mrb[0].mxu0
  %v7342 = vadd.f32 0.0, %v7341
  %v7343 = vpop.f32.mrb[0].mxu0
  %7344 = vmatprep.mubr.f32.mxu0 0.0
  %7345 = vmatmul.mubr.f32.gmra.mrb[0].mxu0 %v6989
  %v7346 = vpop.f32.mrb[0].mxu0
  %v7347 = vadd.f32 0.0, %v7346
  %v7348 = vpop.f32.mrb[0].mxu0
  %7349 = vmatprep.mubr.f32.mxu0 0.0
  %7350 = vmatmul.mubr.f32.gmra.mrb[0].mxu0 %v6992
  %v7351 = vpop.f32.mrb[0].mxu0
  %v7352 = vadd.f32 0.0, %v7351
  %v7353 = vpop.f32.mrb[0].mxu0
  %7354 = vmatprep.mubr.f32.mxu0 0.0
  %7355 = vmatmul.mubr.f32.gmra.mrb[0].mxu0 %v6995
  %v7356 = vpop.f32.mrb[0].mxu0
  %v7357 = vadd.f32 0.0, %v7356
  %v7358 = vpop.f32.mrb[0].mxu0
  %7359 = vmatprep.mubr.f32.mxu0 0.0
  %7360 = vmatmul.mubr.f32.gmra.mrb[0].mxu0 %v6998
  %v7361 = vpop.f32.mrb[0].mxu0
  %v7362 = vadd.f32 0.0, %v7361
  %v7363 = vpop.f32.mrb[0].mxu0
  %7364 = vmatprep.mubr.f32.mxu0 0.0
  %7365 = vmatmul.mubr.f32.gmra.mrb[0].mxu0 %v7001
  %v7366 = vpop.f32.mrb[0].mxu0
  %v7367 = vadd.f32 0.0, %v7366
  %v7368 = vpop.f32.mrb[0].mxu0
  %7369 = vmatprep.mubr.f32.mxu0 0.0
  %7370 = vmatmul.mubr.f32.gmra.mrb[0].mxu0 %v7004
  %v7371 = vpop.f32.mrb[0].mxu0
  %v7372 = vadd.f32 0.0, %v7371
  %v7373 = vpop.f32.mrb[0].mxu0
  %7374 = vmatprep.mubr.f32.mxu0 0.0
  %7375 = vmatmul.mubr.f32.gmra.mrb[0].mxu0 %v7007
  %v7376 = vpop.f32.mrb[0].mxu0
  %v7377 = vadd.f32 0.0, %v7376
  %v7378 = vpop.f32.mrb[0].mxu0
  %7379 = vmatprep.mubr.f32.mxu0 0.0
  %7380 = vmatmul.mubr.f32.gmra.mrb[0].mxu0 %v7010
  %v7381 = vpop.f32.mrb[0].mxu0
  %v7382 = vadd.f32 0.0, %v7381
  %v7383 = vpop.f32.mrb[0].mxu0
  %7384 = vmatprep.mubr.f32.mxu0 0.0
  %7385 = vmatmul.mubr.f32.gmra.mrb[0].mxu0 %v7013
  %v7386 = vpop.f32.mrb[0].mxu0
  %v7387 = vadd.f32 0.0, %v7386
  %v7388 = vpop.f32.mrb[0].mxu0
  %7389 = vmatprep.mubr.f32.mxu0 0.0
  %7390 = vmatmul.mubr.f32.gmra.mrb[0].mxu0 %v7016
  %v7391 = vpop.f32.mrb[0].mxu0
  %v7392 = vadd.f32 0.0, %v7391
  %v7393 = vpop.f32.mrb[0].mxu0
  %7394 = vmatprep.mubr.f32.mxu0 0.0
  %7395 = vmatmul.mubr.f32.gmra.mrb[0].mxu0 %v7019
  %v7396 = vpop.f32.mrb[0].mxu0
  %v7397 = vadd.f32 0.0, %v7396
  %v7398 = vpop.f32.mrb[0].mxu0
  %7399 = vmatprep.mubr.f32.mxu0 0.0
  %7400 = vmatmul.mubr.f32.gmra.mrb[0].mxu0 %v7022
  %v7401 = vpop.f32.mrb[0].mxu0
  %v7402 = vadd.f32 0.0, %v7401
  %v7403 = vpop.f32.mrb[0].mxu0
  %7404 = vmatprep.mubr.f32.mxu0 0.0
  %7405 = vmatmul.mubr.f32.gmra.mrb[0].mxu0 %v7025
  %v7406 = vpop.f32.mrb[0].mxu0
  %v7407 = vadd.f32 0.0, %v7406
  %v7408 = vpop.f32.mrb[0].mxu0
  %7409 = vmatprep.mubr.f32.mxu0 0.0
  %7410 = vmatmul.mubr.f32.gmra.mrb[0].mxu0 %v7028
  %v7411 = vpop.f32.mrb[0].mxu0
  %v7412 = vadd.f32 0.0, %v7411
  %v7413 = vpop.f32.mrb[0].mxu0
  %7414 = vdwg.mxu0
  %v7416 = vsel %vm6559, %v6707, 0
  %v7419 = vsel %vm6559, %v6708, 0
  %v7422 = vsel %vm6559, %v6709, 0
  %v7425 = vsel %vm6559, %v6710, 0
  %v7428 = vsel %vm6559, %v6711, 0
  %v7431 = vsel %vm6559, %v6712, 0
  %v7434 = vsel %vm6559, %v6713, 0
  %v7437 = vsel %vm6559, %v6714, 0
  %v7440 = vsel %vm6559, %v6715, 0
  %v7443 = vsel %vm6559, %v6716, 0
  %v7446 = vsel %vm6559, %v6717, 0
  %v7449 = vsel %vm6559, %v6718, 0
  %v7452 = vsel %vm6559, %v6719, 0
  %v7455 = vsel %vm6559, %v6720, 0
  %v7458 = vsel %vm6559, %v6721, 0
  %v7461 = vsel %vm6559, %v6722, 0
  %v7464 = vsel %vm6559, %v6723, 0
  %v7467 = vsel %vm6559, %v6724, 0
  %v7470 = vsel %vm6559, %v6725, 0
  %v7473 = vsel %vm6559, %v6726, 0
  %v7476 = vsel %vm6559, %v6727, 0
  %v7479 = vsel %vm6559, %v6728, 0
  %v7482 = vsel %vm6559, %v6729, 0
  %v7485 = vsel %vm6559, %v6730, 0
  %v7488 = vsel %vm6559, %v6731, 0
  %v7491 = vsel %vm6559, %v6732, 0
  %v7494 = vsel %vm6559, %v6733, 0
  %v7497 = vsel %vm6559, %v6734, 0
  %v7500 = vsel %vm6559, %v6735, 0
  %v7503 = vsel %vm6559, %v6736, 0
  %v7506 = vsel %vm6559, %v6737, 0
  %v7509 = vsel %vm6559, %v6738, 0
  %v7512 = vsel %vm6559, %v6739, 0
  %v7515 = vsel %vm6559, %v6740, 0
  %v7518 = vsel %vm6559, %v6741, 0
  %v7521 = vsel %vm6559, %v6742, 0
  %v7524 = vsel %vm6559, %v6743, 0
  %v7527 = vsel %vm6559, %v6744, 0
  %v7530 = vsel %vm6559, %v6745, 0
  %v7533 = vsel %vm6559, %v6746, 0
  %v7536 = vsel %vm6559, %v6747, 0
  %v7539 = vsel %vm6559, %v6748, 0
  %v7542 = vsel %vm6559, %v6749, 0
  %v7545 = vsel %vm6559, %v6750, 0
  %v7548 = vsel %vm6559, %v6751, 0
  %v7551 = vsel %vm6559, %v6752, 0
  %v7554 = vsel %vm6559, %v6753, 0
  %v7557 = vsel %vm6559, %v6754, 0
  %v7560 = vsel %vm6559, %v6755, 0
  %v7563 = vsel %vm6559, %v6756, 0
  %v7566 = vsel %vm6559, %v6757, 0
  %v7569 = vsel %vm6559, %v6758, 0
  %v7572 = vsel %vm6559, %v6759, 0
  %v7575 = vsel %vm6559, %v6760, 0
  %v7578 = vsel %vm6559, %v6761, 0
  %v7581 = vsel %vm6559, %v6762, 0
  %v7584 = vsel %vm6559, %v6763, 0
  %v7587 = vsel %vm6559, %v6764, 0
  %v7590 = vsel %vm6559, %v6765, 0
  %v7593 = vsel %vm6559, %v6766, 0
  %v7596 = vsel %vm6559, %v6767, 0
  %v7599 = vsel %vm6559, %v6768, 0
  %v7602 = vsel %vm6559, %v6769, 0
  %v7605 = vsel %vm6559, %v6770, 0
  %7607 = vmatprep.subr.mxu0 0.0
  %7608 = vmatpush1.msra.mxu0 %v6771
  %7609 = vmatprep.subr.mxu0 0.0
  %7610 = vmatpush1.msra.mxu0 0.0
  %7611 = vmatprep.subr.mxu0 0.0
  %7612 = vmatpush1.msra.mxu0 0.0
  %7613 = vmatprep.subr.mxu0 0.0
  %7614 = vmatpush1.msra.mxu0 0.0
  %7615 = vmatprep.subr.mxu0 0.0
  %7616 = vmatpush1.msra.mxu0 0.0
  %7617 = vmatprep.subr.mxu0 0.0
  %7618 = vmatpush1.msra.mxu0 0.0
  %7619 = vmatprep.subr.mxu0 0.0
  %7620 = vmatpush1.msra.mxu0 0.0
  %7621 = vmatprep.subr.mxu0 0.0
  %7622 = vmatpush1.msra.mxu0 0.0
  %7623 = vmatprep.subr.mxu0 0.0
  %7624 = vmatpush1.msra.mxu0 0.0
  %7625 = vmatprep.subr.mxu0 0.0
  %7626 = vmatpush1.msra.mxu0 0.0
  %7627 = vmatprep.subr.mxu0 0.0
  %7628 = vmatpush1.msra.mxu0 0.0
  %7629 = vmatprep.subr.mxu0 0.0
  %7630 = vmatpush1.msra.mxu0 0.0
  %7631 = vmatprep.subr.mxu0 0.0
  %7632 = vmatpush1.msra.mxu0 0.0
  %7633 = vmatprep.subr.mxu0 0.0
  %7634 = vmatpush1.msra.mxu0 0.0
  %7635 = vmatprep.subr.mxu0 0.0
  %7636 = vmatpush1.msra.mxu0 0.0
  %7637 = vmatprep.subr.mxu0 0.0
  %7638 = vmatpush1.msra.mxu0 0.0
  %7639 = vmatprep.subr.mxu0 0.0
  %7640 = vmatpush1.msra.mxu0 0.0
  %7641 = vmatprep.subr.mxu0 0.0
  %7642 = vmatpush1.msra.mxu0 0.0
  %7643 = vmatprep.subr.mxu0 0.0
  %7644 = vmatpush1.msra.mxu0 0.0
  %7645 = vmatprep.subr.mxu0 0.0
  %7646 = vmatpush1.msra.mxu0 0.0
  %7647 = vmatprep.subr.mxu0 0.0
  %7648 = vmatpush1.msra.mxu0 0.0
  %7649 = vmatprep.subr.mxu0 0.0
  %7650 = vmatpush1.msra.mxu0 0.0
  %7651 = vmatprep.subr.mxu0 0.0
  %7652 = vmatpush1.msra.mxu0 0.0
  %7653 = vmatprep.subr.mxu0 0.0
  %7654 = vmatpush1.msra.mxu0 0.0
  %7655 = vmatprep.subr.mxu0 0.0
  %7656 = vmatpush1.msra.mxu0 0.0
  %7657 = vmatprep.subr.mxu0 0.0
  %7658 = vmatpush1.msra.mxu0 0.0
  %7659 = vmatprep.subr.mxu0 0.0
  %7660 = vmatpush1.msra.mxu0 0.0
  %7661 = vmatprep.subr.mxu0 0.0
  %7662 = vmatpush1.msra.mxu0 0.0
  %7663 = vmatprep.subr.mxu0 0.0
  %7664 = vmatpush1.msra.mxu0 0.0
  %7665 = vmatprep.subr.mxu0 0.0
  %7666 = vmatpush1.msra.mxu0 0.0
  %7667 = vmatprep.subr.mxu0 0.0
  %7668 = vmatpush1.msra.mxu0 0.0
  %7669 = vmatprep.subr.mxu0 0.0
  %7670 = vmatpush1.msra.mxu0 0.0
  %7671 = vmatprep.mubr.f32.mxu0 0.0
  %7672 = vmatmul.mubr.f32.gmra.mrb[0].mxu0 %v7416
  %v7673 = vpop.f32.mrb[0].mxu0
  %v7674 = vadd.f32 %v7097, %v7673
  %v7675 = vpop.f32.mrb[0].mxu0
  %7676 = vmatprep.mubr.f32.mxu0 0.0
  %7677 = vmatmul.mubr.f32.gmra.mrb[0].mxu0 %v7419
  %v7678 = vpop.f32.mrb[0].mxu0
  %v7679 = vadd.f32 %v7102, %v7678
  %v7680 = vpop.f32.mrb[0].mxu0
  %7681 = vmatprep.mubr.f32.mxu0 0.0
  %7682 = vmatmul.mubr.f32.gmra.mrb[0].mxu0 %v7422
  %v7683 = vpop.f32.mrb[0].mxu0
  %v7684 = vadd.f32 %v7107, %v7683
  %v7685 = vpop.f32.mrb[0].mxu0
  %7686 = vmatprep.mubr.f32.mxu0 0.0
  %7687 = vmatmul.mubr.f32.gmra.mrb[0].mxu0 %v7425
  %v7688 = vpop.f32.mrb[0].mxu0
  %v7689 = vadd.f32 %v7112, %v7688
  %v7690 = vpop.f32.mrb[0].mxu0
  %7691 = vmatprep.mubr.f32.mxu0 0.0
  %7692 = vmatmul.mubr.f32.gmra.mrb[0].mxu0 %v7428
  %v7693 = vpop.f32.mrb[0].mxu0
  %v7694 = vadd.f32 %v7117, %v7693
  %v7695 = vpop.f32.mrb[0].mxu0
  %7696 = vmatprep.mubr.f32.mxu0 0.0
  %7697 = vmatmul.mubr.f32.gmra.mrb[0].mxu0 %v7431
  %v7698 = vpop.f32.mrb[0].mxu0
  %v7699 = vadd.f32 %v7122, %v7698
  %v7700 = vpop.f32.mrb[0].mxu0
  %7701 = vmatprep.mubr.f32.mxu0 0.0
  %7702 = vmatmul.mubr.f32.gmra.mrb[0].mxu0 %v7434
  %v7703 = vpop.f32.mrb[0].mxu0
  %v7704 = vadd.f32 %v7127, %v7703
  %v7705 = vpop.f32.mrb[0].mxu0
  %7706 = vmatprep.mubr.f32.mxu0 0.0
  %7707 = vmatmul.mubr.f32.gmra.mrb[0].mxu0 %v7437
  %v7708 = vpop.f32.mrb[0].mxu0
  %v7709 = vadd.f32 %v7132, %v7708
  %v7710 = vpop.f32.mrb[0].mxu0
  %7711 = vmatprep.mubr.f32.mxu0 0.0
  %7712 = vmatmul.mubr.f32.gmra.mrb[0].mxu0 %v7440
  %v7713 = vpop.f32.mrb[0].mxu0
  %v7714 = vadd.f32 %v7137, %v7713
  %v7715 = vpop.f32.mrb[0].mxu0
  %7716 = vmatprep.mubr.f32.mxu0 0.0
  %7717 = vmatmul.mubr.f32.gmra.mrb[0].mxu0 %v7443
  %v7718 = vpop.f32.mrb[0].mxu0
  %v7719 = vadd.f32 %v7142, %v7718
  %v7720 = vpop.f32.mrb[0].mxu0
  %7721 = vmatprep.mubr.f32.mxu0 0.0
  %7722 = vmatmul.mubr.f32.gmra.mrb[0].mxu0 %v7446
  %v7723 = vpop.f32.mrb[0].mxu0
  %v7724 = vadd.f32 %v7147, %v7723
  %v7725 = vpop.f32.mrb[0].mxu0
  %7726 = vmatprep.mubr.f32.mxu0 0.0
  %7727 = vmatmul.mubr.f32.gmra.mrb[0].mxu0 %v7449
  %v7728 = vpop.f32.mrb[0].mxu0
  %v7729 = vadd.f32 %v7152, %v7728
  %v7730 = vpop.f32.mrb[0].mxu0
  %7731 = vmatprep.mubr.f32.mxu0 0.0
  %7732 = vmatmul.mubr.f32.gmra.mrb[0].mxu0 %v7452
  %v7733 = vpop.f32.mrb[0].mxu0
  %v7734 = vadd.f32 %v7157, %v7733
  %v7735 = vpop.f32.mrb[0].mxu0
  %7736 = vmatprep.mubr.f32.mxu0 0.0
  %7737 = vmatmul.mubr.f32.gmra.mrb[0].mxu0 %v7455
  %v7738 = vpop.f32.mrb[0].mxu0
  %v7739 = vadd.f32 %v7162, %v7738
  %v7740 = vpop.f32.mrb[0].mxu0
  %7741 = vmatprep.mubr.f32.mxu0 0.0
  %7742 = vmatmul.mubr.f32.gmra.mrb[0].mxu0 %v7458
  %v7743 = vpop.f32.mrb[0].mxu0
  %v7744 = vadd.f32 %v7167, %v7743
  %v7745 = vpop.f32.mrb[0].mxu0
  %7746 = vmatprep.mubr.f32.mxu0 0.0
  %7747 = vmatmul.mubr.f32.gmra.mrb[0].mxu0 %v7461
  %v7748 = vpop.f32.mrb[0].mxu0
  %v7749 = vadd.f32 %v7172, %v7748
  %v7750 = vpop.f32.mrb[0].mxu0
  %7751 = vmatprep.mubr.f32.mxu0 0.0
  %7752 = vmatmul.mubr.f32.gmra.mrb[0].mxu0 %v7464
  %v7753 = vpop.f32.mrb[0].mxu0
  %v7754 = vadd.f32 %v7177, %v7753
  %v7755 = vpop.f32.mrb[0].mxu0
  %7756 = vmatprep.mubr.f32.mxu0 0.0
  %7757 = vmatmul.mubr.f32.gmra.mrb[0].mxu0 %v7467
  %v7758 = vpop.f32.mrb[0].mxu0
  %v7759 = vadd.f32 %v7182, %v7758
  %v7760 = vpop.f32.mrb[0].mxu0
  %7761 = vmatprep.mubr.f32.mxu0 0.0
  %7762 = vmatmul.mubr.f32.gmra.mrb[0].mxu0 %v7470
  %v7763 = vpop.f32.mrb[0].mxu0
  %v7764 = vadd.f32 %v7187, %v7763
  %v7765 = vpop.f32.mrb[0].mxu0
  %7766 = vmatprep.mubr.f32.mxu0 0.0
  %7767 = vmatmul.mubr.f32.gmra.mrb[0].mxu0 %v7473
  %v7768 = vpop.f32.mrb[0].mxu0
  %v7769 = vadd.f32 %v7192, %v7768
  %v7770 = vpop.f32.mrb[0].mxu0
  %7771 = vmatprep.mubr.f32.mxu0 0.0
  %7772 = vmatmul.mubr.f32.gmra.mrb[0].mxu0 %v7476
  %v7773 = vpop.f32.mrb[0].mxu0
  %v7774 = vadd.f32 %v7197, %v7773
  %v7775 = vpop.f32.mrb[0].mxu0
  %7776 = vmatprep.mubr.f32.mxu0 0.0
  %7777 = vmatmul.mubr.f32.gmra.mrb[0].mxu0 %v7479
  %v7778 = vpop.f32.mrb[0].mxu0
  %v7779 = vadd.f32 %v7202, %v7778
  %v7780 = vpop.f32.mrb[0].mxu0
  %7781 = vmatprep.mubr.f32.mxu0 0.0
  %7782 = vmatmul.mubr.f32.gmra.mrb[0].mxu0 %v7482
  %v7783 = vpop.f32.mrb[0].mxu0
  %v7784 = vadd.f32 %v7207, %v7783
  %v7785 = vpop.f32.mrb[0].mxu0
  %7786 = vmatprep.mubr.f32.mxu0 0.0
  %7787 = vmatmul.mubr.f32.gmra.mrb[0].mxu0 %v7485
  %v7788 = vpop.f32.mrb[0].mxu0
  %v7789 = vadd.f32 %v7212, %v7788
  %v7790 = vpop.f32.mrb[0].mxu0
  %7791 = vmatprep.mubr.f32.mxu0 0.0
  %7792 = vmatmul.mubr.f32.gmra.mrb[0].mxu0 %v7488
  %v7793 = vpop.f32.mrb[0].mxu0
  %v7794 = vadd.f32 %v7217, %v7793
  %v7795 = vpop.f32.mrb[0].mxu0
  %7796 = vmatprep.mubr.f32.mxu0 0.0
  %7797 = vmatmul.mubr.f32.gmra.mrb[0].mxu0 %v7491
  %v7798 = vpop.f32.mrb[0].mxu0
  %v7799 = vadd.f32 %v7222, %v7798
  %v7800 = vpop.f32.mrb[0].mxu0
  %7801 = vmatprep.mubr.f32.mxu0 0.0
  %7802 = vmatmul.mubr.f32.gmra.mrb[0].mxu0 %v7494
  %v7803 = vpop.f32.mrb[0].mxu0
  %v7804 = vadd.f32 %v7227, %v7803
  %v7805 = vpop.f32.mrb[0].mxu0
  %7806 = vmatprep.mubr.f32.mxu0 0.0
  %7807 = vmatmul.mubr.f32.gmra.mrb[0].mxu0 %v7497
  %v7808 = vpop.f32.mrb[0].mxu0
  %v7809 = vadd.f32 %v7232, %v7808
  %v7810 = vpop.f32.mrb[0].mxu0
  %7811 = vmatprep.mubr.f32.mxu0 0.0
  %7812 = vmatmul.mubr.f32.gmra.mrb[0].mxu0 %v7500
  %v7813 = vpop.f32.mrb[0].mxu0
  %v7814 = vadd.f32 %v7237, %v7813
  %v7815 = vpop.f32.mrb[0].mxu0
  %7816 = vmatprep.mubr.f32.mxu0 0.0
  %7817 = vmatmul.mubr.f32.gmra.mrb[0].mxu0 %v7503
  %v7818 = vpop.f32.mrb[0].mxu0
  %v7819 = vadd.f32 %v7242, %v7818
  %v7820 = vpop.f32.mrb[0].mxu0
  %7821 = vmatprep.mubr.f32.mxu0 0.0
  %7822 = vmatmul.mubr.f32.gmra.mrb[0].mxu0 %v7506
  %v7823 = vpop.f32.mrb[0].mxu0
  %v7824 = vadd.f32 %v7247, %v7823
  %v7825 = vpop.f32.mrb[0].mxu0
  %7826 = vmatprep.mubr.f32.mxu0 0.0
  %7827 = vmatmul.mubr.f32.gmra.mrb[0].mxu0 %v7509
  %v7828 = vpop.f32.mrb[0].mxu0
  %v7829 = vadd.f32 %v7252, %v7828
  %v7830 = vpop.f32.mrb[0].mxu0
  %7831 = vmatprep.mubr.f32.mxu0 0.0
  %7832 = vmatmul.mubr.f32.gmra.mrb[0].mxu0 %v7512
  %v7833 = vpop.f32.mrb[0].mxu0
  %v7834 = vadd.f32 %v7257, %v7833
  %v7835 = vpop.f32.mrb[0].mxu0
  %7836 = vmatprep.mubr.f32.mxu0 0.0
  %7837 = vmatmul.mubr.f32.gmra.mrb[0].mxu0 %v7515
  %v7838 = vpop.f32.mrb[0].mxu0
  %v7839 = vadd.f32 %v7262, %v7838
  %v7840 = vpop.f32.mrb[0].mxu0
  %7841 = vmatprep.mubr.f32.mxu0 0.0
  %7842 = vmatmul.mubr.f32.gmra.mrb[0].mxu0 %v7518
  %v7843 = vpop.f32.mrb[0].mxu0
  %v7844 = vadd.f32 %v7267, %v7843
  %v7845 = vpop.f32.mrb[0].mxu0
  %7846 = vmatprep.mubr.f32.mxu0 0.0
  %7847 = vmatmul.mubr.f32.gmra.mrb[0].mxu0 %v7521
  %v7848 = vpop.f32.mrb[0].mxu0
  %v7849 = vadd.f32 %v7272, %v7848
  %v7850 = vpop.f32.mrb[0].mxu0
  %7851 = vmatprep.mubr.f32.mxu0 0.0
  %7852 = vmatmul.mubr.f32.gmra.mrb[0].mxu0 %v7524
  %v7853 = vpop.f32.mrb[0].mxu0
  %v7854 = vadd.f32 %v7277, %v7853
  %v7855 = vpop.f32.mrb[0].mxu0
  %7856 = vmatprep.mubr.f32.mxu0 0.0
  %7857 = vmatmul.mubr.f32.gmra.mrb[0].mxu0 %v7527
  %v7858 = vpop.f32.mrb[0].mxu0
  %v7859 = vadd.f32 %v7282, %v7858
  %v7860 = vpop.f32.mrb[0].mxu0
  %7861 = vmatprep.mubr.f32.mxu0 0.0
  %7862 = vmatmul.mubr.f32.gmra.mrb[0].mxu0 %v7530
  %v7863 = vpop.f32.mrb[0].mxu0
  %v7864 = vadd.f32 %v7287, %v7863
  %v7865 = vpop.f32.mrb[0].mxu0
  %7866 = vmatprep.mubr.f32.mxu0 0.0
  %7867 = vmatmul.mubr.f32.gmra.mrb[0].mxu0 %v7533
  %v7868 = vpop.f32.mrb[0].mxu0
  %v7869 = vadd.f32 %v7292, %v7868
  %v7870 = vpop.f32.mrb[0].mxu0
  %7871 = vmatprep.mubr.f32.mxu0 0.0
  %7872 = vmatmul.mubr.f32.gmra.mrb[0].mxu0 %v7536
  %v7873 = vpop.f32.mrb[0].mxu0
  %v7874 = vadd.f32 %v7297, %v7873
  %v7875 = vpop.f32.mrb[0].mxu0
  %7876 = vmatprep.mubr.f32.mxu0 0.0
  %7877 = vmatmul.mubr.f32.gmra.mrb[0].mxu0 %v7539
  %v7878 = vpop.f32.mrb[0].mxu0
  %v7879 = vadd.f32 %v7302, %v7878
  %v7880 = vpop.f32.mrb[0].mxu0
  %7881 = vmatprep.mubr.f32.mxu0 0.0
  %7882 = vmatmul.mubr.f32.gmra.mrb[0].mxu0 %v7542
  %v7883 = vpop.f32.mrb[0].mxu0
  %v7884 = vadd.f32 %v7307, %v7883
  %v7885 = vpop.f32.mrb[0].mxu0
  %7886 = vmatprep.mubr.f32.mxu0 0.0
  %7887 = vmatmul.mubr.f32.gmra.mrb[0].mxu0 %v7545
  %v7888 = vpop.f32.mrb[0].mxu0
  %v7889 = vadd.f32 %v7312, %v7888
  %v7890 = vpop.f32.mrb[0].mxu0
  %7891 = vmatprep.mubr.f32.mxu0 0.0
  %7892 = vmatmul.mubr.f32.gmra.mrb[0].mxu0 %v7548
  %v7893 = vpop.f32.mrb[0].mxu0
  %v7894 = vadd.f32 %v7317, %v7893
  %v7895 = vpop.f32.mrb[0].mxu0
  %7896 = vmatprep.mubr.f32.mxu0 0.0
  %7897 = vmatmul.mubr.f32.gmra.mrb[0].mxu0 %v7551
  %v7898 = vpop.f32.mrb[0].mxu0
  %v7899 = vadd.f32 %v7322, %v7898
  %v7900 = vpop.f32.mrb[0].mxu0
  %7901 = vmatprep.mubr.f32.mxu0 0.0
  %7902 = vmatmul.mubr.f32.gmra.mrb[0].mxu0 %v7554
  %v7903 = vpop.f32.mrb[0].mxu0
  %v7904 = vadd.f32 %v7327, %v7903
  %v7905 = vpop.f32.mrb[0].mxu0
  %7906 = vmatprep.mubr.f32.mxu0 0.0
  %7907 = vmatmul.mubr.f32.gmra.mrb[0].mxu0 %v7557
  %v7908 = vpop.f32.mrb[0].mxu0
  %v7909 = vadd.f32 %v7332, %v7908
  %v7910 = vpop.f32.mrb[0].mxu0
  %7911 = vmatprep.mubr.f32.mxu0 0.0
  %7912 = vmatmul.mubr.f32.gmra.mrb[0].mxu0 %v7560
  %v7913 = vpop.f32.mrb[0].mxu0
  %v7914 = vadd.f32 %v7337, %v7913
  %v7915 = vpop.f32.mrb[0].mxu0
  %7916 = vmatprep.mubr.f32.mxu0 0.0
  %7917 = vmatmul.mubr.f32.gmra.mrb[0].mxu0 %v7563
  %v7918 = vpop.f32.mrb[0].mxu0
  %v7919 = vadd.f32 %v7342, %v7918
  %v7920 = vpop.f32.mrb[0].mxu0
  %7921 = vmatprep.mubr.f32.mxu0 0.0
  %7922 = vmatmul.mubr.f32.gmra.mrb[0].mxu0 %v7566
  %v7923 = vpop.f32.mrb[0].mxu0
  %v7924 = vadd.f32 %v7347, %v7923
  %v7925 = vpop.f32.mrb[0].mxu0
  %7926 = vmatprep.mubr.f32.mxu0 0.0
  %7927 = vmatmul.mubr.f32.gmra.mrb[0].mxu0 %v7569
  %v7928 = vpop.f32.mrb[0].mxu0
  %v7929 = vadd.f32 %v7352, %v7928
  %v7930 = vpop.f32.mrb[0].mxu0
  %7931 = vmatprep.mubr.f32.mxu0 0.0
  %7932 = vmatmul.mubr.f32.gmra.mrb[0].mxu0 %v7572
  %v7933 = vpop.f32.mrb[0].mxu0
  %v7934 = vadd.f32 %v7357, %v7933
  %v7935 = vpop.f32.mrb[0].mxu0
  %7936 = vmatprep.mubr.f32.mxu0 0.0
  %7937 = vmatmul.mubr.f32.gmra.mrb[0].mxu0 %v7575
  %v7938 = vpop.f32.mrb[0].mxu0
  %v7939 = vadd.f32 %v7362, %v7938
  %v7940 = vpop.f32.mrb[0].mxu0
  %7941 = vmatprep.mubr.f32.mxu0 0.0
  %7942 = vmatmul.mubr.f32.gmra.mrb[0].mxu0 %v7578
  %v7943 = vpop.f32.mrb[0].mxu0
  %v7944 = vadd.f32 %v7367, %v7943
  %v7945 = vpop.f32.mrb[0].mxu0
  %7946 = vmatprep.mubr.f32.mxu0 0.0
  %7947 = vmatmul.mubr.f32.gmra.mrb[0].mxu0 %v7581
  %v7948 = vpop.f32.mrb[0].mxu0
  %v7949 = vadd.f32 %v7372, %v7948
  %v7950 = vpop.f32.mrb[0].mxu0
  %7951 = vmatprep.mubr.f32.mxu0 0.0
  %7952 = vmatmul.mubr.f32.gmra.mrb[0].mxu0 %v7584
  %v7953 = vpop.f32.mrb[0].mxu0
  %v7954 = vadd.f32 %v7377, %v7953
  %v7955 = vpop.f32.mrb[0].mxu0
  %7956 = vmatprep.mubr.f32.mxu0 0.0
  %7957 = vmatmul.mubr.f32.gmra.mrb[0].mxu0 %v7587
  %v7958 = vpop.f32.mrb[0].mxu0
  %v7959 = vadd.f32 %v7382, %v7958
  %v7960 = vpop.f32.mrb[0].mxu0
  %7961 = vmatprep.mubr.f32.mxu0 0.0
  %7962 = vmatmul.mubr.f32.gmra.mrb[0].mxu0 %v7590
  %v7963 = vpop.f32.mrb[0].mxu0
  %v7964 = vadd.f32 %v7387, %v7963
  %v7965 = vpop.f32.mrb[0].mxu0
  %7966 = vmatprep.mubr.f32.mxu0 0.0
  %7967 = vmatmul.mubr.f32.gmra.mrb[0].mxu0 %v7593
  %v7968 = vpop.f32.mrb[0].mxu0
  %v7969 = vadd.f32 %v7392, %v7968
  %v7970 = vpop.f32.mrb[0].mxu0
  %7971 = vmatprep.mubr.f32.mxu0 0.0
  %7972 = vmatmul.mubr.f32.gmra.mrb[0].mxu0 %v7596
  %v7973 = vpop.f32.mrb[0].mxu0
  %v7974 = vadd.f32 %v7397, %v7973
  %v7975 = vpop.f32.mrb[0].mxu0
  %7976 = vmatprep.mubr.f32.mxu0 0.0
  %7977 = vmatmul.mubr.f32.gmra.mrb[0].mxu0 %v7599
  %v7978 = vpop.f32.mrb[0].mxu0
  %v7979 = vadd.f32 %v7402, %v7978
  %v7980 = vpop.f32.mrb[0].mxu0
  %7981 = vmatprep.mubr.f32.mxu0 0.0
  %7982 = vmatmul.mubr.f32.gmra.mrb[0].mxu0 %v7602
  %v7983 = vpop.f32.mrb[0].mxu0
  %v7984 = vadd.f32 %v7407, %v7983
  %v7985 = vpop.f32.mrb[0].mxu0
  %7986 = vmatprep.mubr.f32.mxu0 0.0
  %7987 = vmatmul.mubr.f32.gmra.mrb[0].mxu0 %v7605
  %v7988 = vpop.f32.mrb[0].mxu0
  %v7989 = vadd.f32 %v7412, %v7988
  %v7990 = vpop.f32.mrb[0].mxu0
  %7991 = vdwg.mxu0
  %v7992 = vld [vmem:[#allocation3 + $0x9] sm:$0xff]
  %v7993 = vld [vmem:[#allocation3 + $0x11] sm:$0xff]
  %v7994 = vld [vmem:[#allocation3 + $0x29] sm:$0xff]
  %v7995 = vld [vmem:[#allocation3 + $0x31] sm:$0xff]
  %v7996 = vld [vmem:[#allocation3 + $0x49] sm:$0xff]
  %v7997 = vld [vmem:[#allocation3 + $0x51] sm:$0xff]
  %v7998 = vld [vmem:[#allocation3 + $0x69] sm:$0xff]
  %v7999 = vld [vmem:[#allocation3 + $0x71] sm:$0xff]
  %v8000 = vld [vmem:[#allocation3 + $0x89] sm:$0xff]
  %v8001 = vld [vmem:[#allocation3 + $0x91] sm:$0xff]
  %v8002 = vld [vmem:[#allocation3 + $0xa9] sm:$0xff]
  %v8003 = vld [vmem:[#allocation3 + $0xb1] sm:$0xff]
  %v8004 = vld [vmem:[#allocation3 + $0xc9] sm:$0xff]
  %v8005 = vld [vmem:[#allocation3 + $0xd1] sm:$0xff]
  %v8006 = vld [vmem:[#allocation3 + $0xe9] sm:$0xff]
  %v8007 = vld [vmem:[#allocation3 + $0xf1] sm:$0xff]
  %v8008 = vld [vmem:[#allocation3 + $0x109] sm:$0xff]
  %v8009 = vld [vmem:[#allocation3 + $0x111] sm:$0xff]
  %v8010 = vld [vmem:[#allocation3 + $0x129] sm:$0xff]
  %v8011 = vld [vmem:[#allocation3 + $0x131] sm:$0xff]
  %v8012 = vld [vmem:[#allocation3 + $0x149] sm:$0xff]
  %v8013 = vld [vmem:[#allocation3 + $0x151] sm:$0xff]
  %v8014 = vld [vmem:[#allocation3 + $0x169] sm:$0xff]
  %v8015 = vld [vmem:[#allocation3 + $0x171] sm:$0xff]
  %v8016 = vld [vmem:[#allocation3 + $0x189] sm:$0xff]
  %v8017 = vld [vmem:[#allocation3 + $0x191] sm:$0xff]
  %v8018 = vld [vmem:[#allocation3 + $0x1a9] sm:$0xff]
  %v8019 = vld [vmem:[#allocation3 + $0x1b1] sm:$0xff]
  %v8020 = vld [vmem:[#allocation3 + $0x1c9] sm:$0xff]
  %v8021 = vld [vmem:[#allocation3 + $0x1d1] sm:$0xff]
  %v8022 = vld [vmem:[#allocation3 + $0x1e9] sm:$0xff]
  %v8023 = vld [vmem:[#allocation3 + $0x1f1] sm:$0xff]
  %v8024 = vld [vmem:[#allocation3 + $0x249] sm:$0xff]
  %v8025 = vld [vmem:[#allocation3 + $0x251] sm:$0xff]
  %v8026 = vld [vmem:[#allocation3 + $0x269] sm:$0xff]
  %v8027 = vld [vmem:[#allocation3 + $0x271] sm:$0xff]
  %v8028 = vld [vmem:[#allocation3 + $0x289] sm:$0xff]
  %v8029 = vld [vmem:[#allocation3 + $0x291] sm:$0xff]
  %v8030 = vld [vmem:[#allocation3 + $0x2a9] sm:$0xff]
  %v8031 = vld [vmem:[#allocation3 + $0x2b1] sm:$0xff]
  %v8032 = vld [vmem:[#allocation3 + $0x2c9] sm:$0xff]
  %v8033 = vld [vmem:[#allocation3 + $0x2d1] sm:$0xff]
  %v8034 = vld [vmem:[#allocation3 + $0x2e9] sm:$0xff]
  %v8035 = vld [vmem:[#allocation3 + $0x2f1] sm:$0xff]
  %v8036 = vld [vmem:[#allocation3 + $0x309] sm:$0xff]
  %v8037 = vld [vmem:[#allocation3 + $0x311] sm:$0xff]
  %v8038 = vld [vmem:[#allocation3 + $0x329] sm:$0xff]
  %v8039 = vld [vmem:[#allocation3 + $0x331] sm:$0xff]
  %v8040 = vld [vmem:[#allocation3 + $0x349] sm:$0xff]
  %v8041 = vld [vmem:[#allocation3 + $0x351] sm:$0xff]
  %v8042 = vld [vmem:[#allocation3 + $0x369] sm:$0xff]
  %v8043 = vld [vmem:[#allocation3 + $0x371] sm:$0xff]
  %v8044 = vld [vmem:[#allocation3 + $0x389] sm:$0xff]
  %v8045 = vld [vmem:[#allocation3 + $0x391] sm:$0xff]
  %v8046 = vld [vmem:[#allocation3 + $0x3a9] sm:$0xff]
  %v8047 = vld [vmem:[#allocation3 + $0x3b1] sm:$0xff]
  %v8048 = vld [vmem:[#allocation3 + $0x3c9] sm:$0xff]
  %v8049 = vld [vmem:[#allocation3 + $0x3d1] sm:$0xff]
  %v8050 = vld [vmem:[#allocation3 + $0x3e9] sm:$0xff]
  %v8051 = vld [vmem:[#allocation3 + $0x3f1] sm:$0xff]
  %v8052 = vld [vmem:[#allocation3 + $0x409] sm:$0xff]
  %v8053 = vld [vmem:[#allocation3 + $0x411] sm:$0xff]
  %v8054 = vld [vmem:[#allocation3 + $0x429] sm:$0xff]
  %v8055 = vld [vmem:[#allocation3 + $0x431] sm:$0xff]
  %s8056 = scalar_lea.vmem %s2, 16
  %v8057 = vld [vmem:[%s8056] sm:$0xff]
  %v8059 = vsel %vm6559, %v7992, 0
  %v8062 = vsel %vm6559, %v7993, 0
  %v8065 = vsel %vm6559, %v7994, 0
  %v8068 = vsel %vm6559, %v7995, 0
  %v8071 = vsel %vm6559, %v7996, 0
  %v8074 = vsel %vm6559, %v7997, 0
  %v8077 = vsel %vm6559, %v7998, 0
  %v8080 = vsel %vm6559, %v7999, 0
  %v8083 = vsel %vm6559, %v8000, 0
  %v8086 = vsel %vm6559, %v8001, 0
  %v8089 = vsel %vm6559, %v8002, 0
  %v8092 = vsel %vm6559, %v8003, 0
  %v8095 = vsel %vm6559, %v8004, 0
  %v8098 = vsel %vm6559, %v8005, 0
  %v8101 = vsel %vm6559, %v8006, 0
  %v8104 = vsel %vm6559, %v8007, 0
  %v8107 = vsel %vm6559, %v8008, 0
  %v8110 = vsel %vm6559, %v8009, 0
  %v8113 = vsel %vm6559, %v8010, 0
  %v8116 = vsel %vm6559, %v8011, 0
  %v8119 = vsel %vm6559, %v8012, 0
  %v8122 = vsel %vm6559, %v8013, 0
  %v8125 = vsel %vm6559, %v8014, 0
  %v8128 = vsel %vm6559, %v8015, 0
  %v8131 = vsel %vm6559, %v8016, 0
  %v8134 = vsel %vm6559, %v8017, 0
  %v8137 = vsel %vm6559, %v8018, 0
  %v8140 = vsel %vm6559, %v8019, 0
  %v8143 = vsel %vm6559, %v8020, 0
  %v8146 = vsel %vm6559, %v8021, 0
  %v8149 = vsel %vm6559, %v8022, 0
  %v8152 = vsel %vm6559, %v8023, 0
  %v8155 = vsel %vm6559, %v8024, 0
  %v8158 = vsel %vm6559, %v8025, 0
  %v8161 = vsel %vm6559, %v8026, 0
  %v8164 = vsel %vm6559, %v8027, 0
  %v8167 = vsel %vm6559, %v8028, 0
  %v8170 = vsel %vm6559, %v8029, 0
  %v8173 = vsel %vm6559, %v8030, 0
  %v8176 = vsel %vm6559, %v8031, 0
  %v8179 = vsel %vm6559, %v8032, 0
  %v8182 = vsel %vm6559, %v8033, 0
  %v8185 = vsel %vm6559, %v8034, 0
  %v8188 = vsel %vm6559, %v8035, 0
  %v8191 = vsel %vm6559, %v8036, 0
  %v8194 = vsel %vm6559, %v8037, 0
  %v8197 = vsel %vm6559, %v8038, 0
  %v8200 = vsel %vm6559, %v8039, 0
  %v8203 = vsel %vm6559, %v8040, 0
  %v8206 = vsel %vm6559, %v8041, 0
  %v8209 = vsel %vm6559, %v8042, 0
  %v8212 = vsel %vm6559, %v8043, 0
  %v8215 = vsel %vm6559, %v8044, 0
  %v8218 = vsel %vm6559, %v8045, 0
  %v8221 = vsel %vm6559, %v8046, 0
  %v8224 = vsel %vm6559, %v8047, 0
  %v8227 = vsel %vm6559, %v8048, 0
  %v8230 = vsel %vm6559, %v8049, 0
  %v8233 = vsel %vm6559, %v8050, 0
  %v8236 = vsel %vm6559, %v8051, 0
  %v8239 = vsel %vm6559, %v8052, 0
  %v8242 = vsel %vm6559, %v8053, 0
  %v8245 = vsel %vm6559, %v8054, 0
  %v8248 = vsel %vm6559, %v8055, 0
  %8250 = vmatprep.subr.mxu0 0.0
  %8251 = vmatpush1.msra.mxu0 %v8057
  %8252 = vmatprep.subr.mxu0 0.0
  %8253 = vmatpush1.msra.mxu0 0.0
  %8254 = vmatprep.subr.mxu0 0.0
  %8255 = vmatpush1.msra.mxu0 0.0
  %8256 = vmatprep.subr.mxu0 0.0
  %8257 = vmatpush1.msra.mxu0 0.0
  %8258 = vmatprep.subr.mxu0 0.0
  %8259 = vmatpush1.msra.mxu0 0.0
  %8260 = vmatprep.subr.mxu0 0.0
  %8261 = vmatpush1.msra.mxu0 0.0
  %8262 = vmatprep.subr.mxu0 0.0
  %8263 = vmatpush1.msra.mxu0 0.0
  %8264 = vmatprep.subr.mxu0 0.0
  %8265 = vmatpush1.msra.mxu0 0.0
  %8266 = vmatprep.subr.mxu0 0.0
  %8267 = vmatpush1.msra.mxu0 0.0
  %8268 = vmatprep.subr.mxu0 0.0
  %8269 = vmatpush1.msra.mxu0 0.0
  %8270 = vmatprep.subr.mxu0 0.0
  %8271 = vmatpush1.msra.mxu0 0.0
  %8272 = vmatprep.subr.mxu0 0.0
  %8273 = vmatpush1.msra.mxu0 0.0
  %8274 = vmatprep.subr.mxu0 0.0
  %8275 = vmatpush1.msra.mxu0 0.0
  %8276 = vmatprep.subr.mxu0 0.0
  %8277 = vmatpush1.msra.mxu0 0.0
  %8278 = vmatprep.subr.mxu0 0.0
  %8279 = vmatpush1.msra.mxu0 0.0
  %8280 = vmatprep.subr.mxu0 0.0
  %8281 = vmatpush1.msra.mxu0 0.0
  %8282 = vmatprep.subr.mxu0 0.0
  %8283 = vmatpush1.msra.mxu0 0.0
  %8284 = vmatprep.subr.mxu0 0.0
  %8285 = vmatpush1.msra.mxu0 0.0
  %8286 = vmatprep.subr.mxu0 0.0
  %8287 = vmatpush1.msra.mxu0 0.0
  %8288 = vmatprep.subr.mxu0 0.0
  %8289 = vmatpush1.msra.mxu0 0.0
  %8290 = vmatprep.subr.mxu0 0.0
  %8291 = vmatpush1.msra.mxu0 0.0
  %8292 = vmatprep.subr.mxu0 0.0
  %8293 = vmatpush1.msra.mxu0 0.0
  %8294 = vmatprep.subr.mxu0 0.0
  %8295 = vmatpush1.msra.mxu0 0.0
  %8296 = vmatprep.subr.mxu0 0.0
  %8297 = vmatpush1.msra.mxu0 0.0
  %8298 = vmatprep.subr.mxu0 0.0
  %8299 = vmatpush1.msra.mxu0 0.0
  %8300 = vmatprep.subr.mxu0 0.0
  %8301 = vmatpush1.msra.mxu0 0.0
  %8302 = vmatprep.subr.mxu0 0.0
  %8303 = vmatpush1.msra.mxu0 0.0
  %8304 = vmatprep.subr.mxu0 0.0
  %8305 = vmatpush1.msra.mxu0 0.0
  %8306 = vmatprep.subr.mxu0 0.0
  %8307 = vmatpush1.msra.mxu0 0.0
  %8308 = vmatprep.subr.mxu0 0.0
  %8309 = vmatpush1.msra.mxu0 0.0
  %8310 = vmatprep.subr.mxu0 0.0
  %8311 = vmatpush1.msra.mxu0 0.0
  %8312 = vmatprep.subr.mxu0 0.0
  %8313 = vmatpush1.msra.mxu0 0.0
  %8314 = vmatprep.mubr.f32.mxu0 0.0
  %8315 = vmatmul.mubr.f32.gmra.mrb[0].mxu0 %v8059
  %v8316 = vpop.f32.mrb[0].mxu0
  %v8317 = vadd.f32 0.0, %v8316
  %v8318 = vpop.f32.mrb[0].mxu0
  %8319 = vmatprep.mubr.f32.mxu0 0.0
  %8320 = vmatmul.mubr.f32.gmra.mrb[0].mxu0 %v8062
  %v8321 = vpop.f32.mrb[0].mxu0
  %v8322 = vadd.f32 0.0, %v8321
  %v8323 = vpop.f32.mrb[0].mxu0
  %8324 = vmatprep.mubr.f32.mxu0 0.0
  %8325 = vmatmul.mubr.f32.gmra.mrb[0].mxu0 %v8065
  %v8326 = vpop.f32.mrb[0].mxu0
  %v8327 = vadd.f32 0.0, %v8326
  %v8328 = vpop.f32.mrb[0].mxu0
  %8329 = vmatprep.mubr.f32.mxu0 0.0
  %8330 = vmatmul.mubr.f32.gmra.mrb[0].mxu0 %v8068
  %v8331 = vpop.f32.mrb[0].mxu0
  %v8332 = vadd.f32 0.0, %v8331
  %v8333 = vpop.f32.mrb[0].mxu0
  %8334 = vmatprep.mubr.f32.mxu0 0.0
  %8335 = vmatmul.mubr.f32.gmra.mrb[0].mxu0 %v8071
  %v8336 = vpop.f32.mrb[0].mxu0
  %v8337 = vadd.f32 0.0, %v8336
  %v8338 = vpop.f32.mrb[0].mxu0
  %8339 = vmatprep.mubr.f32.mxu0 0.0
  %8340 = vmatmul.mubr.f32.gmra.mrb[0].mxu0 %v8074
  %v8341 = vpop.f32.mrb[0].mxu0
  %v8342 = vadd.f32 0.0, %v8341
  %v8343 = vpop.f32.mrb[0].mxu0
  %8344 = vmatprep.mubr.f32.mxu0 0.0
  %8345 = vmatmul.mubr.f32.gmra.mrb[0].mxu0 %v8077
  %v8346 = vpop.f32.mrb[0].mxu0
  %v8347 = vadd.f32 0.0, %v8346
  %v8348 = vpop.f32.mrb[0].mxu0
  %8349 = vmatprep.mubr.f32.mxu0 0.0
  %8350 = vmatmul.mubr.f32.gmra.mrb[0].mxu0 %v8080
  %v8351 = vpop.f32.mrb[0].mxu0
  %v8352 = vadd.f32 0.0, %v8351
  %v8353 = vpop.f32.mrb[0].mxu0
  %8354 = vmatprep.mubr.f32.mxu0 0.0
  %8355 = vmatmul.mubr.f32.gmra.mrb[0].mxu0 %v8083
  %v8356 = vpop.f32.mrb[0].mxu0
  %v8357 = vadd.f32 0.0, %v8356
  %v8358 = vpop.f32.mrb[0].mxu0
  %8359 = vmatprep.mubr.f32.mxu0 0.0
  %8360 = vmatmul.mubr.f32.gmra.mrb[0].mxu0 %v8086
  %v8361 = vpop.f32.mrb[0].mxu0
  %v8362 = vadd.f32 0.0, %v8361
  %v8363 = vpop.f32.mrb[0].mxu0
  %8364 = vmatprep.mubr.f32.mxu0 0.0
  %8365 = vmatmul.mubr.f32.gmra.mrb[0].mxu0 %v8089
  %v8366 = vpop.f32.mrb[0].mxu0
  %v8367 = vadd.f32 0.0, %v8366
  %v8368 = vpop.f32.mrb[0].mxu0
  %8369 = vmatprep.mubr.f32.mxu0 0.0
  %8370 = vmatmul.mubr.f32.gmra.mrb[0].mxu0 %v8092
  %v8371 = vpop.f32.mrb[0].mxu0
  %v8372 = vadd.f32 0.0, %v8371
  %v8373 = vpop.f32.mrb[0].mxu0
  %8374 = vmatprep.mubr.f32.mxu0 0.0
  %8375 = vmatmul.mubr.f32.gmra.mrb[0].mxu0 %v8095
  %v8376 = vpop.f32.mrb[0].mxu0
  %v8377 = vadd.f32 0.0, %v8376
  %v8378 = vpop.f32.mrb[0].mxu0
  %8379 = vmatprep.mubr.f32.mxu0 0.0
  %8380 = vmatmul.mubr.f32.gmra.mrb[0].mxu0 %v8098
  %v8381 = vpop.f32.mrb[0].mxu0
  %v8382 = vadd.f32 0.0, %v8381
  %v8383 = vpop.f32.mrb[0].mxu0
  %8384 = vmatprep.mubr.f32.mxu0 0.0
  %8385 = vmatmul.mubr.f32.gmra.mrb[0].mxu0 %v8101
  %v8386 = vpop.f32.mrb[0].mxu0
  %v8387 = vadd.f32 0.0, %v8386
  %v8388 = vpop.f32.mrb[0].mxu0
  %8389 = vmatprep.mubr.f32.mxu0 0.0
  %8390 = vmatmul.mubr.f32.gmra.mrb[0].mxu0 %v8104
  %v8391 = vpop.f32.mrb[0].mxu0
  %v8392 = vadd.f32 0.0, %v8391
  %v8393 = vpop.f32.mrb[0].mxu0
  %8394 = vmatprep.mubr.f32.mxu0 0.0
  %8395 = vmatmul.mubr.f32.gmra.mrb[0].mxu0 %v8107
  %v8396 = vpop.f32.mrb[0].mxu0
  %v8397 = vadd.f32 0.0, %v8396
  %v8398 = vpop.f32.mrb[0].mxu0
  %8399 = vmatprep.mubr.f32.mxu0 0.0
  %8400 = vmatmul.mubr.f32.gmra.mrb[0].mxu0 %v8110
  %v8401 = vpop.f32.mrb[0].mxu0
  %v8402 = vadd.f32 0.0, %v8401
  %v8403 = vpop.f32.mrb[0].mxu0
  %8404 = vmatprep.mubr.f32.mxu0 0.0
  %8405 = vmatmul.mubr.f32.gmra.mrb[0].mxu0 %v8113
  %v8406 = vpop.f32.mrb[0].mxu0
  %v8407 = vadd.f32 0.0, %v8406
  %v8408 = vpop.f32.mrb[0].mxu0
  %8409 = vmatprep.mubr.f32.mxu0 0.0
  %8410 = vmatmul.mubr.f32.gmra.mrb[0].mxu0 %v8116
  %v8411 = vpop.f32.mrb[0].mxu0
  %v8412 = vadd.f32 0.0, %v8411
  %v8413 = vpop.f32.mrb[0].mxu0
  %8414 = vmatprep.mubr.f32.mxu0 0.0
  %8415 = vmatmul.mubr.f32.gmra.mrb[0].mxu0 %v8119
  %v8416 = vpop.f32.mrb[0].mxu0
  %v8417 = vadd.f32 0.0, %v8416
  %v8418 = vpop.f32.mrb[0].mxu0
  %8419 = vmatprep.mubr.f32.mxu0 0.0
  %8420 = vmatmul.mubr.f32.gmra.mrb[0].mxu0 %v8122
  %v8421 = vpop.f32.mrb[0].mxu0
  %v8422 = vadd.f32 0.0, %v8421
  %v8423 = vpop.f32.mrb[0].mxu0
  %8424 = vmatprep.mubr.f32.mxu0 0.0
  %8425 = vmatmul.mubr.f32.gmra.mrb[0].mxu0 %v8125
  %v8426 = vpop.f32.mrb[0].mxu0
  %v8427 = vadd.f32 0.0, %v8426
  %v8428 = vpop.f32.mrb[0].mxu0
  %8429 = vmatprep.mubr.f32.mxu0 0.0
  %8430 = vmatmul.mubr.f32.gmra.mrb[0].mxu0 %v8128
  %v8431 = vpop.f32.mrb[0].mxu0
  %v8432 = vadd.f32 0.0, %v8431
  %v8433 = vpop.f32.mrb[0].mxu0
  %8434 = vmatprep.mubr.f32.mxu0 0.0
  %8435 = vmatmul.mubr.f32.gmra.mrb[0].mxu0 %v8131
  %v8436 = vpop.f32.mrb[0].mxu0
  %v8437 = vadd.f32 0.0, %v8436
  %v8438 = vpop.f32.mrb[0].mxu0
  %8439 = vmatprep.mubr.f32.mxu0 0.0
  %8440 = vmatmul.mubr.f32.gmra.mrb[0].mxu0 %v8134
  %v8441 = vpop.f32.mrb[0].mxu0
  %v8442 = vadd.f32 0.0, %v8441
  %v8443 = vpop.f32.mrb[0].mxu0
  %8444 = vmatprep.mubr.f32.mxu0 0.0
  %8445 = vmatmul.mubr.f32.gmra.mrb[0].mxu0 %v8137
  %v8446 = vpop.f32.mrb[0].mxu0
  %v8447 = vadd.f32 0.0, %v8446
  %v8448 = vpop.f32.mrb[0].mxu0
  %8449 = vmatprep.mubr.f32.mxu0 0.0
  %8450 = vmatmul.mubr.f32.gmra.mrb[0].mxu0 %v8140
  %v8451 = vpop.f32.mrb[0].mxu0
  %v8452 = vadd.f32 0.0, %v8451
  %v8453 = vpop.f32.mrb[0].mxu0
  %8454 = vmatprep.mubr.f32.mxu0 0.0
  %8455 = vmatmul.mubr.f32.gmra.mrb[0].mxu0 %v8143
  %v8456 = vpop.f32.mrb[0].mxu0
  %v8457 = vadd.f32 0.0, %v8456
  %v8458 = vpop.f32.mrb[0].mxu0
  %8459 = vmatprep.mubr.f32.mxu0 0.0
  %8460 = vmatmul.mubr.f32.gmra.mrb[0].mxu0 %v8146
  %v8461 = vpop.f32.mrb[0].mxu0
  %v8462 = vadd.f32 0.0, %v8461
  %v8463 = vpop.f32.mrb[0].mxu0
  %8464 = vmatprep.mubr.f32.mxu0 0.0
  %8465 = vmatmul.mubr.f32.gmra.mrb[0].mxu0 %v8149
  %v8466 = vpop.f32.mrb[0].mxu0
  %v8467 = vadd.f32 0.0, %v8466
  %v8468 = vpop.f32.mrb[0].mxu0
  %8469 = vmatprep.mubr.f32.mxu0 0.0
  %8470 = vmatmul.mubr.f32.gmra.mrb[0].mxu0 %v8152
  %v8471 = vpop.f32.mrb[0].mxu0
  %v8472 = vadd.f32 0.0, %v8471
  %v8473 = vpop.f32.mrb[0].mxu0
  %8474 = vmatprep.mubr.f32.mxu0 0.0
  %8475 = vmatmul.mubr.f32.gmra.mrb[0].mxu0 %v8155
  %v8476 = vpop.f32.mrb[0].mxu0
  %v8477 = vadd.f32 0.0, %v8476
  %v8478 = vpop.f32.mrb[0].mxu0
  %8479 = vmatprep.mubr.f32.mxu0 0.0
  %8480 = vmatmul.mubr.f32.gmra.mrb[0].mxu0 %v8158
  %v8481 = vpop.f32.mrb[0].mxu0
  %v8482 = vadd.f32 0.0, %v8481
  %v8483 = vpop.f32.mrb[0].mxu0
  %8484 = vmatprep.mubr.f32.mxu0 0.0
  %8485 = vmatmul.mubr.f32.gmra.mrb[0].mxu0 %v8161
  %v8486 = vpop.f32.mrb[0].mxu0
  %v8487 = vadd.f32 0.0, %v8486
  %v8488 = vpop.f32.mrb[0].mxu0
  %8489 = vmatprep.mubr.f32.mxu0 0.0
  %8490 = vmatmul.mubr.f32.gmra.mrb[0].mxu0 %v8164
  %v8491 = vpop.f32.mrb[0].mxu0
  %v8492 = vadd.f32 0.0, %v8491
  %v8493 = vpop.f32.mrb[0].mxu0
  %8494 = vmatprep.mubr.f32.mxu0 0.0
  %8495 = vmatmul.mubr.f32.gmra.mrb[0].mxu0 %v8167
  %v8496 = vpop.f32.mrb[0].mxu0
  %v8497 = vadd.f32 0.0, %v8496
  %v8498 = vpop.f32.mrb[0].mxu0
  %8499 = vmatprep.mubr.f32.mxu0 0.0
  %8500 = vmatmul.mubr.f32.gmra.mrb[0].mxu0 %v8170
  %v8501 = vpop.f32.mrb[0].mxu0
  %v8502 = vadd.f32 0.0, %v8501
  %v8503 = vpop.f32.mrb[0].mxu0
  %8504 = vmatprep.mubr.f32.mxu0 0.0
  %8505 = vmatmul.mubr.f32.gmra.mrb[0].mxu0 %v8173
  %v8506 = vpop.f32.mrb[0].mxu0
  %v8507 = vadd.f32 0.0, %v8506
  %v8508 = vpop.f32.mrb[0].mxu0
  %8509 = vmatprep.mubr.f32.mxu0 0.0
  %8510 = vmatmul.mubr.f32.gmra.mrb[0].mxu0 %v8176
  %v8511 = vpop.f32.mrb[0].mxu0
  %v8512 = vadd.f32 0.0, %v8511
  %v8513 = vpop.f32.mrb[0].mxu0
  %8514 = vmatprep.mubr.f32.mxu0 0.0
  %8515 = vmatmul.mubr.f32.gmra.mrb[0].mxu0 %v8179
  %v8516 = vpop.f32.mrb[0].mxu0
  %v8517 = vadd.f32 0.0, %v8516
  %v8518 = vpop.f32.mrb[0].mxu0
  %8519 = vmatprep.mubr.f32.mxu0 0.0
  %8520 = vmatmul.mubr.f32.gmra.mrb[0].mxu0 %v8182
  %v8521 = vpop.f32.mrb[0].mxu0
  %v8522 = vadd.f32 0.0, %v8521
  %v8523 = vpop.f32.mrb[0].mxu0
  %8524 = vmatprep.mubr.f32.mxu0 0.0
  %8525 = vmatmul.mubr.f32.gmra.mrb[0].mxu0 %v8185
  %v8526 = vpop.f32.mrb[0].mxu0
  %v8527 = vadd.f32 0.0, %v8526
  %v8528 = vpop.f32.mrb[0].mxu0
  %8529 = vmatprep.mubr.f32.mxu0 0.0
  %8530 = vmatmul.mubr.f32.gmra.mrb[0].mxu0 %v8188
  %v8531 = vpop.f32.mrb[0].mxu0
  %v8532 = vadd.f32 0.0, %v8531
  %v8533 = vpop.f32.mrb[0].mxu0
  %8534 = vmatprep.mubr.f32.mxu0 0.0
  %8535 = vmatmul.mubr.f32.gmra.mrb[0].mxu0 %v8191
  %v8536 = vpop.f32.mrb[0].mxu0
  %v8537 = vadd.f32 0.0, %v8536
  %v8538 = vpop.f32.mrb[0].mxu0
  %8539 = vmatprep.mubr.f32.mxu0 0.0
  %8540 = vmatmul.mubr.f32.gmra.mrb[0].mxu0 %v8194
  %v8541 = vpop.f32.mrb[0].mxu0
  %v8542 = vadd.f32 0.0, %v8541
  %v8543 = vpop.f32.mrb[0].mxu0
  %8544 = vmatprep.mubr.f32.mxu0 0.0
  %8545 = vmatmul.mubr.f32.gmra.mrb[0].mxu0 %v8197
  %v8546 = vpop.f32.mrb[0].mxu0
  %v8547 = vadd.f32 0.0, %v8546
  %v8548 = vpop.f32.mrb[0].mxu0
  %8549 = vmatprep.mubr.f32.mxu0 0.0
  %8550 = vmatmul.mubr.f32.gmra.mrb[0].mxu0 %v8200
  %v8551 = vpop.f32.mrb[0].mxu0
  %v8552 = vadd.f32 0.0, %v8551
  %v8553 = vpop.f32.mrb[0].mxu0
  %8554 = vmatprep.mubr.f32.mxu0 0.0
  %8555 = vmatmul.mubr.f32.gmra.mrb[0].mxu0 %v8203
  %v8556 = vpop.f32.mrb[0].mxu0
  %v8557 = vadd.f32 0.0, %v8556
  %v8558 = vpop.f32.mrb[0].mxu0
  %8559 = vmatprep.mubr.f32.mxu0 0.0
  %8560 = vmatmul.mubr.f32.gmra.mrb[0].mxu0 %v8206
  %v8561 = vpop.f32.mrb[0].mxu0
  %v8562 = vadd.f32 0.0, %v8561
  %v8563 = vpop.f32.mrb[0].mxu0
  %8564 = vmatprep.mubr.f32.mxu0 0.0
  %8565 = vmatmul.mubr.f32.gmra.mrb[0].mxu0 %v8209
  %v8566 = vpop.f32.mrb[0].mxu0
  %v8567 = vadd.f32 0.0, %v8566
  %v8568 = vpop.f32.mrb[0].mxu0
  %8569 = vmatprep.mubr.f32.mxu0 0.0
  %8570 = vmatmul.mubr.f32.gmra.mrb[0].mxu0 %v8212
  %v8571 = vpop.f32.mrb[0].mxu0
  %v8572 = vadd.f32 0.0, %v8571
  %v8573 = vpop.f32.mrb[0].mxu0
  %8574 = vmatprep.mubr.f32.mxu0 0.0
  %8575 = vmatmul.mubr.f32.gmra.mrb[0].mxu0 %v8215
  %v8576 = vpop.f32.mrb[0].mxu0
  %v8577 = vadd.f32 0.0, %v8576
  %v8578 = vpop.f32.mrb[0].mxu0
  %8579 = vmatprep.mubr.f32.mxu0 0.0
  %8580 = vmatmul.mubr.f32.gmra.mrb[0].mxu0 %v8218
  %v8581 = vpop.f32.mrb[0].mxu0
  %v8582 = vadd.f32 0.0, %v8581
  %v8583 = vpop.f32.mrb[0].mxu0
  %8584 = vmatprep.mubr.f32.mxu0 0.0
  %8585 = vmatmul.mubr.f32.gmra.mrb[0].mxu0 %v8221
  %v8586 = vpop.f32.mrb[0].mxu0
  %v8587 = vadd.f32 0.0, %v8586
  %v8588 = vpop.f32.mrb[0].mxu0
  %8589 = vmatprep.mubr.f32.mxu0 0.0
  %8590 = vmatmul.mubr.f32.gmra.mrb[0].mxu0 %v8224
  %v8591 = vpop.f32.mrb[0].mxu0
  %v8592 = vadd.f32 0.0, %v8591
  %v8593 = vpop.f32.mrb[0].mxu0
  %8594 = vmatprep.mubr.f32.mxu0 0.0
  %8595 = vmatmul.mubr.f32.gmra.mrb[0].mxu0 %v8227
  %v8596 = vpop.f32.mrb[0].mxu0
  %v8597 = vadd.f32 0.0, %v8596
  %v8598 = vpop.f32.mrb[0].mxu0
  %8599 = vmatprep.mubr.f32.mxu0 0.0
  %8600 = vmatmul.mubr.f32.gmra.mrb[0].mxu0 %v8230
  %v8601 = vpop.f32.mrb[0].mxu0
  %v8602 = vadd.f32 0.0, %v8601
  %v8603 = vpop.f32.mrb[0].mxu0
  %8604 = vmatprep.mubr.f32.mxu0 0.0
  %8605 = vmatmul.mubr.f32.gmra.mrb[0].mxu0 %v8233
  %v8606 = vpop.f32.mrb[0].mxu0
  %v8607 = vadd.f32 0.0, %v8606
  %v8608 = vpop.f32.mrb[0].mxu0
  %8609 = vmatprep.mubr.f32.mxu0 0.0
  %8610 = vmatmul.mubr.f32.gmra.mrb[0].mxu0 %v8236
  %v8611 = vpop.f32.mrb[0].mxu0
  %v8612 = vadd.f32 0.0, %v8611
  %v8613 = vpop.f32.mrb[0].mxu0
  %8614 = vmatprep.mubr.f32.mxu0 0.0
  %8615 = vmatmul.mubr.f32.gmra.mrb[0].mxu0 %v8239
  %v8616 = vpop.f32.mrb[0].mxu0
  %v8617 = vadd.f32 0.0, %v8616
  %v8618 = vpop.f32.mrb[0].mxu0
  %8619 = vmatprep.mubr.f32.mxu0 0.0
  %8620 = vmatmul.mubr.f32.gmra.mrb[0].mxu0 %v8242
  %v8621 = vpop.f32.mrb[0].mxu0
  %v8622 = vadd.f32 0.0, %v8621
  %v8623 = vpop.f32.mrb[0].mxu0
  %8624 = vmatprep.mubr.f32.mxu0 0.0
  %8625 = vmatmul.mubr.f32.gmra.mrb[0].mxu0 %v8245
  %v8626 = vpop.f32.mrb[0].mxu0
  %v8627 = vadd.f32 0.0, %v8626
  %v8628 = vpop.f32.mrb[0].mxu0
  %8629 = vmatprep.mubr.f32.mxu0 0.0
  %8630 = vmatmul.mubr.f32.gmra.mrb[0].mxu0 %v8248
  %v8631 = vpop.f32.mrb[0].mxu0
  %v8632 = vadd.f32 0.0, %v8631
  %v8633 = vpop.f32.mrb[0].mxu0
  %8634 = vdwg.mxu0
  %v8635 = vadd.f32 %v7674, %v8317
  %v8636 = vadd.f32 %v7679, %v8322
  %v8637 = vadd.f32 %v7684, %v8327
  %v8638 = vadd.f32 %v7689, %v8332
  %v8639 = vadd.f32 %v7694, %v8337
  %v8640 = vadd.f32 %v7699, %v8342
  %v8641 = vadd.f32 %v7704, %v8347
  %v8642 = vadd.f32 %v7709, %v8352
  %v8643 = vadd.f32 %v7714, %v8357
  %v8644 = vadd.f32 %v7719, %v8362
  %v8645 = vadd.f32 %v7724, %v8367
  %v8646 = vadd.f32 %v7729, %v8372
  %v8647 = vadd.f32 %v7734, %v8377
  %v8648 = vadd.f32 %v7739, %v8382
  %v8649 = vadd.f32 %v7744, %v8387
  %v8650 = vadd.f32 %v7749, %v8392
  %v8651 = vadd.f32 %v7754, %v8397
  %v8652 = vadd.f32 %v7759, %v8402
  %v8653 = vadd.f32 %v7764, %v8407
  %v8654 = vadd.f32 %v7769, %v8412
  %v8655 = vadd.f32 %v7774, %v8417
  %v8656 = vadd.f32 %v7779, %v8422
  %v8657 = vadd.f32 %v7784, %v8427
  %v8658 = vadd.f32 %v7789, %v8432
  %v8659 = vadd.f32 %v7794, %v8437
  %v8660 = vadd.f32 %v7799, %v8442
  %v8661 = vadd.f32 %v7804, %v8447
  %v8662 = vadd.f32 %v7809, %v8452
  %v8663 = vadd.f32 %v7814, %v8457
  %v8664 = vadd.f32 %v7819, %v8462
  %v8665 = vadd.f32 %v7824, %v8467
  %v8666 = vadd.f32 %v7829, %v8472
  %v8667 = vadd.f32 %v7834, %v8477
  %v8668 = vadd.f32 %v7839, %v8482
  %v8669 = vadd.f32 %v7844, %v8487
  %v8670 = vadd.f32 %v7849, %v8492
  %v8671 = vadd.f32 %v7854, %v8497
  %v8672 = vadd.f32 %v7859, %v8502
  %v8673 = vadd.f32 %v7864, %v8507
  %v8674 = vadd.f32 %v7869, %v8512
  %v8675 = vadd.f32 %v7874, %v8517
  %v8676 = vadd.f32 %v7879, %v8522
  %v8677 = vadd.f32 %v7884, %v8527
  %v8678 = vadd.f32 %v7889, %v8532
  %v8679 = vadd.f32 %v7894, %v8537
  %v8680 = vadd.f32 %v7899, %v8542
  %v8681 = vadd.f32 %v7904, %v8547
  %v8682 = vadd.f32 %v7909, %v8552
  %v8683 = vadd.f32 %v7914, %v8557
  %v8684 = vadd.f32 %v7919, %v8562
  %v8685 = vadd.f32 %v7924, %v8567
  %v8686 = vadd.f32 %v7929, %v8572
  %v8687 = vadd.f32 %v7934, %v8577
  %v8688 = vadd.f32 %v7939, %v8582
  %v8689 = vadd.f32 %v7944, %v8587
  %v8690 = vadd.f32 %v7949, %v8592
  %v8691 = vadd.f32 %v7954, %v8597
  %v8692 = vadd.f32 %v7959, %v8602
  %v8693 = vadd.f32 %v7964, %v8607
  %v8694 = vadd.f32 %v7969, %v8612
  %v8695 = vadd.f32 %v7974, %v8617
  %v8696 = vadd.f32 %v7979, %v8622
  %v8697 = vadd.f32 %v7984, %v8627
  %v8698 = vadd.f32 %v7989, %v8632
  %v8699 = vld [vmem:[%s6577 + $0x7] sm:$0xff]
  %v8700 = vld [vmem:[%s6577 + $0xf] sm:$0xff]
  %v8701 = vld [vmem:[%s6577 + $0x27] sm:$0xff]
  %v8702 = vld [vmem:[%s6577 + $0x2f] sm:$0xff]
  %v8703 = vld [vmem:[%s6577 + $0x47] sm:$0xff]
  %v8704 = vld [vmem:[%s6577 + $0x4f] sm:$0xff]
  %v8705 = vld [vmem:[%s6577 + $0x67] sm:$0xff]
  %v8706 = vld [vmem:[%s6577 + $0x6f] sm:$0xff]
  %v8707 = vld [vmem:[%s6577 + $0x87] sm:$0xff]
  %v8708 = vld [vmem:[%s6577 + $0x8f] sm:$0xff]
  %v8709 = vld [vmem:[%s6577 + $0xa7] sm:$0xff]
  %v8710 = vld [vmem:[%s6577 + $0xaf] sm:$0xff]
  %v8711 = vld [vmem:[%s6577 + $0xc7] sm:$0xff]
  %v8712 = vld [vmem:[%s6577 + $0xcf] sm:$0xff]
  %v8713 = vld [vmem:[%s6577 + $0xe7] sm:$0xff]
  %v8714 = vld [vmem:[%s6577 + $0xef] sm:$0xff]
  %v8715 = vld [vmem:[%s6577 + $0x107] sm:$0xff]
  %v8716 = vld [vmem:[%s6577 + $0x10f] sm:$0xff]
  %v8717 = vld [vmem:[%s6577 + $0x127] sm:$0xff]
  %v8718 = vld [vmem:[%s6577 + $0x12f] sm:$0xff]
  %v8719 = vld [vmem:[%s6577 + $0x147] sm:$0xff]
  %v8720 = vld [vmem:[%s6577 + $0x14f] sm:$0xff]
  %v8721 = vld [vmem:[%s6577 + $0x167] sm:$0xff]
  %v8722 = vld [vmem:[%s6577 + $0x16f] sm:$0xff]
  %v8723 = vld [vmem:[%s6577 + $0x187] sm:$0xff]
  %v8724 = vld [vmem:[%s6577 + $0x18f] sm:$0xff]
  %v8725 = vld [vmem:[%s6577 + $0x1a7] sm:$0xff]
  %v8726 = vld [vmem:[%s6577 + $0x1af] sm:$0xff]
  %v8727 = vld [vmem:[%s6577 + $0x1c7] sm:$0xff]
  %v8728 = vld [vmem:[%s6577 + $0x1cf] sm:$0xff]
  %v8729 = vld [vmem:[%s6577 + $0x1e7] sm:$0xff]
  %v8730 = vld [vmem:[%s6577 + $0x1ef] sm:$0xff]
  %v8731 = vld [vmem:[%s6577 + $0x247] sm:$0xff]
  %v8732 = vld [vmem:[%s6577 + $0x24f] sm:$0xff]
  %v8733 = vld [vmem:[%s6577 + $0x267] sm:$0xff]
  %v8734 = vld [vmem:[%s6577 + $0x26f] sm:$0xff]
  %v8735 = vld [vmem:[%s6577 + $0x287] sm:$0xff]
  %v8736 = vld [vmem:[%s6577 + $0x28f] sm:$0xff]
  %v8737 = vld [vmem:[%s6577 + $0x2a7] sm:$0xff]
  %v8738 = vld [vmem:[%s6577 + $0x2af] sm:$0xff]
  %v8739 = vld [vmem:[%s6577 + $0x2c7] sm:$0xff]
  %v8740 = vld [vmem:[%s6577 + $0x2cf] sm:$0xff]
  %v8741 = vld [vmem:[%s6577 + $0x2e7] sm:$0xff]
  %v8742 = vld [vmem:[%s6577 + $0x2ef] sm:$0xff]
  %v8743 = vld [vmem:[%s6577 + $0x307] sm:$0xff]
  %v8744 = vld [vmem:[%s6577 + $0x30f] sm:$0xff]
  %v8745 = vld [vmem:[%s6577 + $0x327] sm:$0xff]
  %v8746 = vld [vmem:[%s6577 + $0x32f] sm:$0xff]
  %v8747 = vld [vmem:[%s6577 + $0x347] sm:$0xff]
  %v8748 = vld [vmem:[%s6577 + $0x34f] sm:$0xff]
  %v8749 = vld [vmem:[%s6577 + $0x367] sm:$0xff]
  %v8750 = vld [vmem:[%s6577 + $0x36f] sm:$0xff]
  %v8751 = vld [vmem:[%s6577 + $0x387] sm:$0xff]
  %v8752 = vld [vmem:[%s6577 + $0x38f] sm:$0xff]
  %v8753 = vld [vmem:[%s6577 + $0x3a7] sm:$0xff]
  %v8754 = vld [vmem:[%s6577 + $0x3af] sm:$0xff]
  %v8755 = vld [vmem:[%s6577 + $0x3c7] sm:$0xff]
  %v8756 = vld [vmem:[%s6577 + $0x3cf] sm:$0xff]
  %v8757 = vld [vmem:[%s6577 + $0x3e7] sm:$0xff]
  %v8758 = vld [vmem:[%s6577 + $0x3ef] sm:$0xff]
  %v8759 = vld [vmem:[%s6577 + $0x407] sm:$0xff]
  %v8760 = vld [vmem:[%s6577 + $0x40f] sm:$0xff]
  %v8761 = vld [vmem:[%s6577 + $0x427] sm:$0xff]
  %v8762 = vld [vmem:[%s6577 + $0x42f] sm:$0xff]
  %s8763 = scalar_lea.vmem %s2, 24
  %v8764 = vld [vmem:[%s8763] sm:$0xff]
  %v8766 = vsel %vm6559, %v8699, 0
  %v8769 = vsel %vm6559, %v8700, 0
  %v8772 = vsel %vm6559, %v8701, 0
  %v8775 = vsel %vm6559, %v8702, 0
  %v8778 = vsel %vm6559, %v8703, 0
  %v8781 = vsel %vm6559, %v8704, 0
  %v8784 = vsel %vm6559, %v8705, 0
  %v8787 = vsel %vm6559, %v8706, 0
  %v8790 = vsel %vm6559, %v8707, 0
  %v8793 = vsel %vm6559, %v8708, 0
  %v8796 = vsel %vm6559, %v8709, 0
  %v8799 = vsel %vm6559, %v8710, 0
  %v8802 = vsel %vm6559, %v8711, 0
  %v8805 = vsel %vm6559, %v8712, 0
  %v8808 = vsel %vm6559, %v8713, 0
  %v8811 = vsel %vm6559, %v8714, 0
  %v8814 = vsel %vm6559, %v8715, 0
  %v8817 = vsel %vm6559, %v8716, 0
  %v8820 = vsel %vm6559, %v8717, 0
  %v8823 = vsel %vm6559, %v8718, 0
  %v8826 = vsel %vm6559, %v8719, 0
  %v8829 = vsel %vm6559, %v8720, 0
  %v8832 = vsel %vm6559, %v8721, 0
  %v8835 = vsel %vm6559, %v8722, 0
  %v8838 = vsel %vm6559, %v8723, 0
  %v8841 = vsel %vm6559, %v8724, 0
  %v8844 = vsel %vm6559, %v8725, 0
  %v8847 = vsel %vm6559, %v8726, 0
  %v8850 = vsel %vm6559, %v8727, 0
  %v8853 = vsel %vm6559, %v8728, 0
  %v8856 = vsel %vm6559, %v8729, 0
  %v8859 = vsel %vm6559, %v8730, 0
  %v8862 = vsel %vm6559, %v8731, 0
  %v8865 = vsel %vm6559, %v8732, 0
  %v8868 = vsel %vm6559, %v8733, 0
  %v8871 = vsel %vm6559, %v8734, 0
  %v8874 = vsel %vm6559, %v8735, 0
  %v8877 = vsel %vm6559, %v8736, 0
  %v8880 = vsel %vm6559, %v8737, 0
  %v8883 = vsel %vm6559, %v8738, 0
  %v8886 = vsel %vm6559, %v8739, 0
  %v8889 = vsel %vm6559, %v8740, 0
  %v8892 = vsel %vm6559, %v8741, 0
  %v8895 = vsel %vm6559, %v8742, 0
  %v8898 = vsel %vm6559, %v8743, 0
  %v8901 = vsel %vm6559, %v8744, 0
  %v8904 = vsel %vm6559, %v8745, 0
  %v8907 = vsel %vm6559, %v8746, 0
  %v8910 = vsel %vm6559, %v8747, 0
  %v8913 = vsel %vm6559, %v8748, 0
  %v8916 = vsel %vm6559, %v8749, 0
  %v8919 = vsel %vm6559, %v8750, 0
  %v8922 = vsel %vm6559, %v8751, 0
  %v8925 = vsel %vm6559, %v8752, 0
  %v8928 = vsel %vm6559, %v8753, 0
  %v8931 = vsel %vm6559, %v8754, 0
  %v8934 = vsel %vm6559, %v8755, 0
  %v8937 = vsel %vm6559, %v8756, 0
  %v8940 = vsel %vm6559, %v8757, 0
  %v8943 = vsel %vm6559, %v8758, 0
  %v8946 = vsel %vm6559, %v8759, 0
  %v8949 = vsel %vm6559, %v8760, 0
  %v8952 = vsel %vm6559, %v8761, 0
  %v8955 = vsel %vm6559, %v8762, 0
  %8957 = vmatprep.subr.mxu0 0.0
  %8958 = vmatpush1.msra.mxu0 %v8764
  %8959 = vmatprep.subr.mxu0 0.0
  %8960 = vmatpush1.msra.mxu0 0.0
  %8961 = vmatprep.subr.mxu0 0.0
  %8962 = vmatpush1.msra.mxu0 0.0
  %8963 = vmatprep.subr.mxu0 0.0
  %8964 = vmatpush1.msra.mxu0 0.0
  %8965 = vmatprep.subr.mxu0 0.0
  %8966 = vmatpush1.msra.mxu0 0.0
  %8967 = vmatprep.subr.mxu0 0.0
  %8968 = vmatpush1.msra.mxu0 0.0
  %8969 = vmatprep.subr.mxu0 0.0
  %8970 = vmatpush1.msra.mxu0 0.0
  %8971 = vmatprep.subr.mxu0 0.0
  %8972 = vmatpush1.msra.mxu0 0.0
  %8973 = vmatprep.subr.mxu0 0.0
  %8974 = vmatpush1.msra.mxu0 0.0
  %8975 = vmatprep.subr.mxu0 0.0
  %8976 = vmatpush1.msra.mxu0 0.0
  %8977 = vmatprep.subr.mxu0 0.0
  %8978 = vmatpush1.msra.mxu0 0.0
  %8979 = vmatprep.subr.mxu0 0.0
  %8980 = vmatpush1.msra.mxu0 0.0
  %8981 = vmatprep.subr.mxu0 0.0
  %8982 = vmatpush1.msra.mxu0 0.0
  %8983 = vmatprep.subr.mxu0 0.0
  %8984 = vmatpush1.msra.mxu0 0.0
  %8985 = vmatprep.subr.mxu0 0.0
  %8986 = vmatpush1.msra.mxu0 0.0
  %8987 = vmatprep.subr.mxu0 0.0
  %8988 = vmatpush1.msra.mxu0 0.0
  %8989 = vmatprep.subr.mxu0 0.0
  %8990 = vmatpush1.msra.mxu0 0.0
  %8991 = vmatprep.subr.mxu0 0.0
  %8992 = vmatpush1.msra.mxu0 0.0
  %8993 = vmatprep.subr.mxu0 0.0
  %8994 = vmatpush1.msra.mxu0 0.0
  %8995 = vmatprep.subr.mxu0 0.0
  %8996 = vmatpush1.msra.mxu0 0.0
  %8997 = vmatprep.subr.mxu0 0.0
  %8998 = vmatpush1.msra.mxu0 0.0
  %8999 = vmatprep.subr.mxu0 0.0
  %9000 = vmatpush1.msra.mxu0 0.0
  %9001 = vmatprep.subr.mxu0 0.0
  %9002 = vmatpush1.msra.mxu0 0.0
  %9003 = vmatprep.subr.mxu0 0.0
  %9004 = vmatpush1.msra.mxu0 0.0
  %9005 = vmatprep.subr.mxu0 0.0
  %9006 = vmatpush1.msra.mxu0 0.0
  %9007 = vmatprep.subr.mxu0 0.0
  %9008 = vmatpush1.msra.mxu0 0.0
  %9009 = vmatprep.subr.mxu0 0.0
  %9010 = vmatpush1.msra.mxu0 0.0
  %9011 = vmatprep.subr.mxu0 0.0
  %9012 = vmatpush1.msra.mxu0 0.0
  %9013 = vmatprep.subr.mxu0 0.0
  %9014 = vmatpush1.msra.mxu0 0.0
  %9015 = vmatprep.subr.mxu0 0.0
  %9016 = vmatpush1.msra.mxu0 0.0
  %9017 = vmatprep.subr.mxu0 0.0
  %9018 = vmatpush1.msra.mxu0 0.0
  %9019 = vmatprep.subr.mxu0 0.0
  %9020 = vmatpush1.msra.mxu0 0.0
  %9021 = vmatprep.mubr.f32.mxu0 0.0
  %9022 = vmatmul.mubr.f32.gmra.mrb[0].mxu0 %v8766
  %v9023 = vpop.f32.mrb[0].mxu0
  %v9024 = vadd.f32 0.0, %v9023
  %v9025 = vpop.f32.mrb[0].mxu0
  %9026 = vmatprep.mubr.f32.mxu0 0.0
  %9027 = vmatmul.mubr.f32.gmra.mrb[0].mxu0 %v8769
  %v9028 = vpop.f32.mrb[0].mxu0
  %v9029 = vadd.f32 0.0, %v9028
  %v9030 = vpop.f32.mrb[0].mxu0
  %9031 = vmatprep.mubr.f32.mxu0 0.0
  %9032 = vmatmul.mubr.f32.gmra.mrb[0].mxu0 %v8772
  %v9033 = vpop.f32.mrb[0].mxu0
  %v9034 = vadd.f32 0.0, %v9033
  %v9035 = vpop.f32.mrb[0].mxu0
  %9036 = vmatprep.mubr.f32.mxu0 0.0
  %9037 = vmatmul.mubr.f32.gmra.mrb[0].mxu0 %v8775
  %v9038 = vpop.f32.mrb[0].mxu0
  %v9039 = vadd.f32 0.0, %v9038
  %v9040 = vpop.f32.mrb[0].mxu0
  %9041 = vmatprep.mubr.f32.mxu0 0.0
  %9042 = vmatmul.mubr.f32.gmra.mrb[0].mxu0 %v8778
  %v9043 = vpop.f32.mrb[0].mxu0
  %v9044 = vadd.f32 0.0, %v9043
  %v9045 = vpop.f32.mrb[0].mxu0
  %9046 = vmatprep.mubr.f32.mxu0 0.0
  %9047 = vmatmul.mubr.f32.gmra.mrb[0].mxu0 %v8781
  %v9048 = vpop.f32.mrb[0].mxu0
  %v9049 = vadd.f32 0.0, %v9048
  %v9050 = vpop.f32.mrb[0].mxu0
  %9051 = vmatprep.mubr.f32.mxu0 0.0
  %9052 = vmatmul.mubr.f32.gmra.mrb[0].mxu0 %v8784
  %v9053 = vpop.f32.mrb[0].mxu0
  %v9054 = vadd.f32 0.0, %v9053
  %v9055 = vpop.f32.mrb[0].mxu0
  %9056 = vmatprep.mubr.f32.mxu0 0.0
  %9057 = vmatmul.mubr.f32.gmra.mrb[0].mxu0 %v8787
  %v9058 = vpop.f32.mrb[0].mxu0
  %v9059 = vadd.f32 0.0, %v9058
  %v9060 = vpop.f32.mrb[0].mxu0
  %9061 = vmatprep.mubr.f32.mxu0 0.0
  %9062 = vmatmul.mubr.f32.gmra.mrb[0].mxu0 %v8790
  %v9063 = vpop.f32.mrb[0].mxu0
  %v9064 = vadd.f32 0.0, %v9063
  %v9065 = vpop.f32.mrb[0].mxu0
  %9066 = vmatprep.mubr.f32.mxu0 0.0
  %9067 = vmatmul.mubr.f32.gmra.mrb[0].mxu0 %v8793
  %v9068 = vpop.f32.mrb[0].mxu0
  %v9069 = vadd.f32 0.0, %v9068
  %v9070 = vpop.f32.mrb[0].mxu0
  %9071 = vmatprep.mubr.f32.mxu0 0.0
  %9072 = vmatmul.mubr.f32.gmra.mrb[0].mxu0 %v8796
  %v9073 = vpop.f32.mrb[0].mxu0
  %v9074 = vadd.f32 0.0, %v9073
  %v9075 = vpop.f32.mrb[0].mxu0
  %9076 = vmatprep.mubr.f32.mxu0 0.0
  %9077 = vmatmul.mubr.f32.gmra.mrb[0].mxu0 %v8799
  %v9078 = vpop.f32.mrb[0].mxu0
  %v9079 = vadd.f32 0.0, %v9078
  %v9080 = vpop.f32.mrb[0].mxu0
  %9081 = vmatprep.mubr.f32.mxu0 0.0
  %9082 = vmatmul.mubr.f32.gmra.mrb[0].mxu0 %v8802
  %v9083 = vpop.f32.mrb[0].mxu0
  %v9084 = vadd.f32 0.0, %v9083
  %v9085 = vpop.f32.mrb[0].mxu0
  %9086 = vmatprep.mubr.f32.mxu0 0.0
  %9087 = vmatmul.mubr.f32.gmra.mrb[0].mxu0 %v8805
  %v9088 = vpop.f32.mrb[0].mxu0
  %v9089 = vadd.f32 0.0, %v9088
  %v9090 = vpop.f32.mrb[0].mxu0
  %9091 = vmatprep.mubr.f32.mxu0 0.0
  %9092 = vmatmul.mubr.f32.gmra.mrb[0].mxu0 %v8808
  %v9093 = vpop.f32.mrb[0].mxu0
  %v9094 = vadd.f32 0.0, %v9093
  %v9095 = vpop.f32.mrb[0].mxu0
  %9096 = vmatprep.mubr.f32.mxu0 0.0
  %9097 = vmatmul.mubr.f32.gmra.mrb[0].mxu0 %v8811
  %v9098 = vpop.f32.mrb[0].mxu0
  %v9099 = vadd.f32 0.0, %v9098
  %v9100 = vpop.f32.mrb[0].mxu0
  %9101 = vmatprep.mubr.f32.mxu0 0.0
  %9102 = vmatmul.mubr.f32.gmra.mrb[0].mxu0 %v8814
  %v9103 = vpop.f32.mrb[0].mxu0
  %v9104 = vadd.f32 0.0, %v9103
  %v9105 = vpop.f32.mrb[0].mxu0
  %9106 = vmatprep.mubr.f32.mxu0 0.0
  %9107 = vmatmul.mubr.f32.gmra.mrb[0].mxu0 %v8817
  %v9108 = vpop.f32.mrb[0].mxu0
  %v9109 = vadd.f32 0.0, %v9108
  %v9110 = vpop.f32.mrb[0].mxu0
  %9111 = vmatprep.mubr.f32.mxu0 0.0
  %9112 = vmatmul.mubr.f32.gmra.mrb[0].mxu0 %v8820
  %v9113 = vpop.f32.mrb[0].mxu0
  %v9114 = vadd.f32 0.0, %v9113
  %v9115 = vpop.f32.mrb[0].mxu0
  %9116 = vmatprep.mubr.f32.mxu0 0.0
  %9117 = vmatmul.mubr.f32.gmra.mrb[0].mxu0 %v8823
  %v9118 = vpop.f32.mrb[0].mxu0
  %v9119 = vadd.f32 0.0, %v9118
  %v9120 = vpop.f32.mrb[0].mxu0
  %9121 = vmatprep.mubr.f32.mxu0 0.0
  %9122 = vmatmul.mubr.f32.gmra.mrb[0].mxu0 %v8826
  %v9123 = vpop.f32.mrb[0].mxu0
  %v9124 = vadd.f32 0.0, %v9123
  %v9125 = vpop.f32.mrb[0].mxu0
  %9126 = vmatprep.mubr.f32.mxu0 0.0
  %9127 = vmatmul.mubr.f32.gmra.mrb[0].mxu0 %v8829
  %v9128 = vpop.f32.mrb[0].mxu0
  %v9129 = vadd.f32 0.0, %v9128
  %v9130 = vpop.f32.mrb[0].mxu0
  %9131 = vmatprep.mubr.f32.mxu0 0.0
  %9132 = vmatmul.mubr.f32.gmra.mrb[0].mxu0 %v8832
  %v9133 = vpop.f32.mrb[0].mxu0
  %v9134 = vadd.f32 0.0, %v9133
  %v9135 = vpop.f32.mrb[0].mxu0
  %9136 = vmatprep.mubr.f32.mxu0 0.0
  %9137 = vmatmul.mubr.f32.gmra.mrb[0].mxu0 %v8835
  %v9138 = vpop.f32.mrb[0].mxu0
  %v9139 = vadd.f32 0.0, %v9138
  %v9140 = vpop.f32.mrb[0].mxu0
  %9141 = vmatprep.mubr.f32.mxu0 0.0
  %9142 = vmatmul.mubr.f32.gmra.mrb[0].mxu0 %v8838
  %v9143 = vpop.f32.mrb[0].mxu0
  %v9144 = vadd.f32 0.0, %v9143
  %v9145 = vpop.f32.mrb[0].mxu0
  %9146 = vmatprep.mubr.f32.mxu0 0.0
  %9147 = vmatmul.mubr.f32.gmra.mrb[0].mxu0 %v8841
  %v9148 = vpop.f32.mrb[0].mxu0
  %v9149 = vadd.f32 0.0, %v9148
  %v9150 = vpop.f32.mrb[0].mxu0
  %9151 = vmatprep.mubr.f32.mxu0 0.0
  %9152 = vmatmul.mubr.f32.gmra.mrb[0].mxu0 %v8844
  %v9153 = vpop.f32.mrb[0].mxu0
  %v9154 = vadd.f32 0.0, %v9153
  %v9155 = vpop.f32.mrb[0].mxu0
  %9156 = vmatprep.mubr.f32.mxu0 0.0
  %9157 = vmatmul.mubr.f32.gmra.mrb[0].mxu0 %v8847
  %v9158 = vpop.f32.mrb[0].mxu0
  %v9159 = vadd.f32 0.0, %v9158
  %v9160 = vpop.f32.mrb[0].mxu0
  %9161 = vmatprep.mubr.f32.mxu0 0.0
  %9162 = vmatmul.mubr.f32.gmra.mrb[0].mxu0 %v8850
  %v9163 = vpop.f32.mrb[0].mxu0
  %v9164 = vadd.f32 0.0, %v9163
  %v9165 = vpop.f32.mrb[0].mxu0
  %9166 = vmatprep.mubr.f32.mxu0 0.0
  %9167 = vmatmul.mubr.f32.gmra.mrb[0].mxu0 %v8853
  %v9168 = vpop.f32.mrb[0].mxu0
  %v9169 = vadd.f32 0.0, %v9168
  %v9170 = vpop.f32.mrb[0].mxu0
  %9171 = vmatprep.mubr.f32.mxu0 0.0
  %9172 = vmatmul.mubr.f32.gmra.mrb[0].mxu0 %v8856
  %v9173 = vpop.f32.mrb[0].mxu0
  %v9174 = vadd.f32 0.0, %v9173
  %v9175 = vpop.f32.mrb[0].mxu0
  %9176 = vmatprep.mubr.f32.mxu0 0.0
  %9177 = vmatmul.mubr.f32.gmra.mrb[0].mxu0 %v8859
  %v9178 = vpop.f32.mrb[0].mxu0
  %v9179 = vadd.f32 0.0, %v9178
  %v9180 = vpop.f32.mrb[0].mxu0
  %9181 = vmatprep.mubr.f32.mxu0 0.0
  %9182 = vmatmul.mubr.f32.gmra.mrb[0].mxu0 %v8862
  %v9183 = vpop.f32.mrb[0].mxu0
  %v9184 = vadd.f32 0.0, %v9183
  %v9185 = vpop.f32.mrb[0].mxu0
  %9186 = vmatprep.mubr.f32.mxu0 0.0
  %9187 = vmatmul.mubr.f32.gmra.mrb[0].mxu0 %v8865
  %v9188 = vpop.f32.mrb[0].mxu0
  %v9189 = vadd.f32 0.0, %v9188
  %v9190 = vpop.f32.mrb[0].mxu0
  %9191 = vmatprep.mubr.f32.mxu0 0.0
  %9192 = vmatmul.mubr.f32.gmra.mrb[0].mxu0 %v8868
  %v9193 = vpop.f32.mrb[0].mxu0
  %v9194 = vadd.f32 0.0, %v9193
  %v9195 = vpop.f32.mrb[0].mxu0
  %9196 = vmatprep.mubr.f32.mxu0 0.0
  %9197 = vmatmul.mubr.f32.gmra.mrb[0].mxu0 %v8871
  %v9198 = vpop.f32.mrb[0].mxu0
  %v9199 = vadd.f32 0.0, %v9198
  %v9200 = vpop.f32.mrb[0].mxu0
  %9201 = vmatprep.mubr.f32.mxu0 0.0
  %9202 = vmatmul.mubr.f32.gmra.mrb[0].mxu0 %v8874
  %v9203 = vpop.f32.mrb[0].mxu0
  %v9204 = vadd.f32 0.0, %v9203
  %v9205 = vpop.f32.mrb[0].mxu0
  %9206 = vmatprep.mubr.f32.mxu0 0.0
  %9207 = vmatmul.mubr.f32.gmra.mrb[0].mxu0 %v8877
  %v9208 = vpop.f32.mrb[0].mxu0
  %v9209 = vadd.f32 0.0, %v9208
  %v9210 = vpop.f32.mrb[0].mxu0
  %9211 = vmatprep.mubr.f32.mxu0 0.0
  %9212 = vmatmul.mubr.f32.gmra.mrb[0].mxu0 %v8880
  %v9213 = vpop.f32.mrb[0].mxu0
  %v9214 = vadd.f32 0.0, %v9213
  %v9215 = vpop.f32.mrb[0].mxu0
  %9216 = vmatprep.mubr.f32.mxu0 0.0
  %9217 = vmatmul.mubr.f32.gmra.mrb[0].mxu0 %v8883
  %v9218 = vpop.f32.mrb[0].mxu0
  %v9219 = vadd.f32 0.0, %v9218
  %v9220 = vpop.f32.mrb[0].mxu0
  %9221 = vmatprep.mubr.f32.mxu0 0.0
  %9222 = vmatmul.mubr.f32.gmra.mrb[0].mxu0 %v8886
  %v9223 = vpop.f32.mrb[0].mxu0
  %v9224 = vadd.f32 0.0, %v9223
  %v9225 = vpop.f32.mrb[0].mxu0
  %9226 = vmatprep.mubr.f32.mxu0 0.0
  %9227 = vmatmul.mubr.f32.gmra.mrb[0].mxu0 %v8889
  %v9228 = vpop.f32.mrb[0].mxu0
  %v9229 = vadd.f32 0.0, %v9228
  %v9230 = vpop.f32.mrb[0].mxu0
  %9231 = vmatprep.mubr.f32.mxu0 0.0
  %9232 = vmatmul.mubr.f32.gmra.mrb[0].mxu0 %v8892
  %v9233 = vpop.f32.mrb[0].mxu0
  %v9234 = vadd.f32 0.0, %v9233
  %v9235 = vpop.f32.mrb[0].mxu0
  %9236 = vmatprep.mubr.f32.mxu0 0.0
  %9237 = vmatmul.mubr.f32.gmra.mrb[0].mxu0 %v8895
  %v9238 = vpop.f32.mrb[0].mxu0
  %v9239 = vadd.f32 0.0, %v9238
  %v9240 = vpop.f32.mrb[0].mxu0
  %9241 = vmatprep.mubr.f32.mxu0 0.0
  %9242 = vmatmul.mubr.f32.gmra.mrb[0].mxu0 %v8898
  %v9243 = vpop.f32.mrb[0].mxu0
  %v9244 = vadd.f32 0.0, %v9243
  %v9245 = vpop.f32.mrb[0].mxu0
  %9246 = vmatprep.mubr.f32.mxu0 0.0
  %9247 = vmatmul.mubr.f32.gmra.mrb[0].mxu0 %v8901
  %v9248 = vpop.f32.mrb[0].mxu0
  %v9249 = vadd.f32 0.0, %v9248
  %v9250 = vpop.f32.mrb[0].mxu0
  %9251 = vmatprep.mubr.f32.mxu0 0.0
  %9252 = vmatmul.mubr.f32.gmra.mrb[0].mxu0 %v8904
  %v9253 = vpop.f32.mrb[0].mxu0
  %v9254 = vadd.f32 0.0, %v9253
  %v9255 = vpop.f32.mrb[0].mxu0
  %9256 = vmatprep.mubr.f32.mxu0 0.0
  %9257 = vmatmul.mubr.f32.gmra.mrb[0].mxu0 %v8907
  %v9258 = vpop.f32.mrb[0].mxu0
  %v9259 = vadd.f32 0.0, %v9258
  %v9260 = vpop.f32.mrb[0].mxu0
  %9261 = vmatprep.mubr.f32.mxu0 0.0
  %9262 = vmatmul.mubr.f32.gmra.mrb[0].mxu0 %v8910
  %v9263 = vpop.f32.mrb[0].mxu0
  %v9264 = vadd.f32 0.0, %v9263
  %v9265 = vpop.f32.mrb[0].mxu0
  %9266 = vmatprep.mubr.f32.mxu0 0.0
  %9267 = vmatmul.mubr.f32.gmra.mrb[0].mxu0 %v8913
  %v9268 = vpop.f32.mrb[0].mxu0
  %v9269 = vadd.f32 0.0, %v9268
  %v9270 = vpop.f32.mrb[0].mxu0
  %9271 = vmatprep.mubr.f32.mxu0 0.0
  %9272 = vmatmul.mubr.f32.gmra.mrb[0].mxu0 %v8916
  %v9273 = vpop.f32.mrb[0].mxu0
  %v9274 = vadd.f32 0.0, %v9273
  %v9275 = vpop.f32.mrb[0].mxu0
  %9276 = vmatprep.mubr.f32.mxu0 0.0
  %9277 = vmatmul.mubr.f32.gmra.mrb[0].mxu0 %v8919
  %v9278 = vpop.f32.mrb[0].mxu0
  %v9279 = vadd.f32 0.0, %v9278
  %v9280 = vpop.f32.mrb[0].mxu0
  %9281 = vmatprep.mubr.f32.mxu0 0.0
  %9282 = vmatmul.mubr.f32.gmra.mrb[0].mxu0 %v8922
  %v9283 = vpop.f32.mrb[0].mxu0
  %v9284 = vadd.f32 0.0, %v9283
  %v9285 = vpop.f32.mrb[0].mxu0
  %9286 = vmatprep.mubr.f32.mxu0 0.0
  %9287 = vmatmul.mubr.f32.gmra.mrb[0].mxu0 %v8925
  %v9288 = vpop.f32.mrb[0].mxu0
  %v9289 = vadd.f32 0.0, %v9288
  %v9290 = vpop.f32.mrb[0].mxu0
  %9291 = vmatprep.mubr.f32.mxu0 0.0
  %9292 = vmatmul.mubr.f32.gmra.mrb[0].mxu0 %v8928
  %v9293 = vpop.f32.mrb[0].mxu0
  %v9294 = vadd.f32 0.0, %v9293
  %v9295 = vpop.f32.mrb[0].mxu0
  %9296 = vmatprep.mubr.f32.mxu0 0.0
  %9297 = vmatmul.mubr.f32.gmra.mrb[0].mxu0 %v8931
  %v9298 = vpop.f32.mrb[0].mxu0
  %v9299 = vadd.f32 0.0, %v9298
  %v9300 = vpop.f32.mrb[0].mxu0
  %9301 = vmatprep.mubr.f32.mxu0 0.0
  %9302 = vmatmul.mubr.f32.gmra.mrb[0].mxu0 %v8934
  %v9303 = vpop.f32.mrb[0].mxu0
  %v9304 = vadd.f32 0.0, %v9303
  %v9305 = vpop.f32.mrb[0].mxu0
  %9306 = vmatprep.mubr.f32.mxu0 0.0
  %9307 = vmatmul.mubr.f32.gmra.mrb[0].mxu0 %v8937
  %v9308 = vpop.f32.mrb[0].mxu0
  %v9309 = vadd.f32 0.0, %v9308
  %v9310 = vpop.f32.mrb[0].mxu0
  %9311 = vmatprep.mubr.f32.mxu0 0.0
  %9312 = vmatmul.mubr.f32.gmra.mrb[0].mxu0 %v8940
  %v9313 = vpop.f32.mrb[0].mxu0
  %v9314 = vadd.f32 0.0, %v9313
  %v9315 = vpop.f32.mrb[0].mxu0
  %9316 = vmatprep.mubr.f32.mxu0 0.0
  %9317 = vmatmul.mubr.f32.gmra.mrb[0].mxu0 %v8943
  %v9318 = vpop.f32.mrb[0].mxu0
  %v9319 = vadd.f32 0.0, %v9318
  %v9320 = vpop.f32.mrb[0].mxu0
  %9321 = vmatprep.mubr.f32.mxu0 0.0
  %9322 = vmatmul.mubr.f32.gmra.mrb[0].mxu0 %v8946
  %v9323 = vpop.f32.mrb[0].mxu0
  %v9324 = vadd.f32 0.0, %v9323
  %v9325 = vpop.f32.mrb[0].mxu0
  %9326 = vmatprep.mubr.f32.mxu0 0.0
  %9327 = vmatmul.mubr.f32.gmra.mrb[0].mxu0 %v8949
  %v9328 = vpop.f32.mrb[0].mxu0
  %v9329 = vadd.f32 0.0, %v9328
  %v9330 = vpop.f32.mrb[0].mxu0
  %9331 = vmatprep.mubr.f32.mxu0 0.0
  %9332 = vmatmul.mubr.f32.gmra.mrb[0].mxu0 %v8952
  %v9333 = vpop.f32.mrb[0].mxu0
  %v9334 = vadd.f32 0.0, %v9333
  %v9335 = vpop.f32.mrb[0].mxu0
  %9336 = vmatprep.mubr.f32.mxu0 0.0
  %9337 = vmatmul.mubr.f32.gmra.mrb[0].mxu0 %v8955
  %v9338 = vpop.f32.mrb[0].mxu0
  %v9339 = vadd.f32 0.0, %v9338
  %v9340 = vpop.f32.mrb[0].mxu0
  %9341 = vdwg.mxu0
  %v9342 = vadd.f32 %v8635, %v9024
  %v9343 = vadd.f32 %v8636, %v9029
  %v9344 = vadd.f32 %v8637, %v9034
  %v9345 = vadd.f32 %v8638, %v9039
  %v9346 = vadd.f32 %v8639, %v9044
  %v9347 = vadd.f32 %v8640, %v9049
  %v9348 = vadd.f32 %v8641, %v9054
  %v9349 = vadd.f32 %v8642, %v9059
  %v9350 = vadd.f32 %v8643, %v9064
  %v9351 = vadd.f32 %v8644, %v9069
  %v9352 = vadd.f32 %v8645, %v9074
  %v9353 = vadd.f32 %v8646, %v9079
  %v9354 = vadd.f32 %v8647, %v9084
  %v9355 = vadd.f32 %v8648, %v9089
  %v9356 = vadd.f32 %v8649, %v9094
  %v9357 = vadd.f32 %v8650, %v9099
  %v9358 = vadd.f32 %v8651, %v9104
  %v9359 = vadd.f32 %v8652, %v9109
  %v9360 = vadd.f32 %v8653, %v9114
  %v9361 = vadd.f32 %v8654, %v9119
  %v9362 = vadd.f32 %v8655, %v9124
  %v9363 = vadd.f32 %v8656, %v9129
  %v9364 = vadd.f32 %v8657, %v9134
  %v9365 = vadd.f32 %v8658, %v9139
  %v9366 = vadd.f32 %v8659, %v9144
  %v9367 = vadd.f32 %v8660, %v9149
  %v9368 = vadd.f32 %v8661, %v9154
  %v9369 = vadd.f32 %v8662, %v9159
  %v9370 = vadd.f32 %v8663, %v9164
  %v9371 = vadd.f32 %v8664, %v9169
  %v9372 = vadd.f32 %v8665, %v9174
  %v9373 = vadd.f32 %v8666, %v9179
  %v9374 = vadd.f32 %v8667, %v9184
  %v9375 = vadd.f32 %v8668, %v9189
  %v9376 = vadd.f32 %v8669, %v9194
  %v9377 = vadd.f32 %v8670, %v9199
  %v9378 = vadd.f32 %v8671, %v9204
  %v9379 = vadd.f32 %v8672, %v9209
  %v9380 = vadd.f32 %v8673, %v9214
  %v9381 = vadd.f32 %v8674, %v9219
  %v9382 = vadd.f32 %v8675, %v9224
  %v9383 = vadd.f32 %v8676, %v9229
  %v9384 = vadd.f32 %v8677, %v9234
  %v9385 = vadd.f32 %v8678, %v9239
  %v9386 = vadd.f32 %v8679, %v9244
  %v9387 = vadd.f32 %v8680, %v9249
  %v9388 = vadd.f32 %v8681, %v9254
  %v9389 = vadd.f32 %v8682, %v9259
  %v9390 = vadd.f32 %v8683, %v9264
  %v9391 = vadd.f32 %v8684, %v9269
  %v9392 = vadd.f32 %v8685, %v9274
  %v9393 = vadd.f32 %v8686, %v9279
  %v9394 = vadd.f32 %v8687, %v9284
  %v9395 = vadd.f32 %v8688, %v9289
  %v9396 = vadd.f32 %v8689, %v9294
  %v9397 = vadd.f32 %v8690, %v9299
  %v9398 = vadd.f32 %v8691, %v9304
  %v9399 = vadd.f32 %v8692, %v9309
  %v9400 = vadd.f32 %v8693, %v9314
  %v9401 = vadd.f32 %v8694, %v9319
  %v9402 = vadd.f32 %v8695, %v9324
  %v9403 = vadd.f32 %v8696, %v9329
  %v9404 = vadd.f32 %v8697, %v9334
  %v9405 = vadd.f32 %v8698, %v9339
  %v9406 = vld [vmem:[%s6577 + $0x8] sm:$0xff]
  %v9407 = vld [vmem:[%s6577 + $0x10] sm:$0xff]
  %v9408 = vld [vmem:[%s6577 + $0x28] sm:$0xff]
  %v9409 = vld [vmem:[%s6577 + $0x30] sm:$0xff]
  %v9410 = vld [vmem:[%s6577 + $0x48] sm:$0xff]
  %v9411 = vld [vmem:[%s6577 + $0x50] sm:$0xff]
  %v9412 = vld [vmem:[%s6577 + $0x68] sm:$0xff]
  %v9413 = vld [vmem:[%s6577 + $0x70] sm:$0xff]
  %v9414 = vld [vmem:[%s6577 + $0x88] sm:$0xff]
  %v9415 = vld [vmem:[%s6577 + $0x90] sm:$0xff]
  %v9416 = vld [vmem:[%s6577 + $0xa8] sm:$0xff]
  %v9417 = vld [vmem:[%s6577 + $0xb0] sm:$0xff]
  %v9418 = vld [vmem:[%s6577 + $0xc8] sm:$0xff]
  %v9419 = vld [vmem:[%s6577 + $0xd0] sm:$0xff]
  %v9420 = vld [vmem:[%s6577 + $0xe8] sm:$0xff]
  %v9421 = vld [vmem:[%s6577 + $0xf0] sm:$0xff]
  %v9422 = vld [vmem:[%s6577 + $0x108] sm:$0xff]
  %v9423 = vld [vmem:[%s6577 + $0x110] sm:$0xff]
  %v9424 = vld [vmem:[%s6577 + $0x128] sm:$0xff]
  %v9425 = vld [vmem:[%s6577 + $0x130] sm:$0xff]
  %v9426 = vld [vmem:[%s6577 + $0x148] sm:$0xff]
  %v9427 = vld [vmem:[%s6577 + $0x150] sm:$0xff]
  %v9428 = vld [vmem:[%s6577 + $0x168] sm:$0xff]
  %v9429 = vld [vmem:[%s6577 + $0x170] sm:$0xff]
  %v9430 = vld [vmem:[%s6577 + $0x188] sm:$0xff]
  %v9431 = vld [vmem:[%s6577 + $0x190] sm:$0xff]
  %v9432 = vld [vmem:[%s6577 + $0x1a8] sm:$0xff]
  %v9433 = vld [vmem:[%s6577 + $0x1b0] sm:$0xff]
  %v9434 = vld [vmem:[%s6577 + $0x1c8] sm:$0xff]
  %v9435 = vld [vmem:[%s6577 + $0x1d0] sm:$0xff]
  %v9436 = vld [vmem:[%s6577 + $0x1e8] sm:$0xff]
  %v9437 = vld [vmem:[%s6577 + $0x1f0] sm:$0xff]
  %v9438 = vld [vmem:[%s6577 + $0x248] sm:$0xff]
  %v9439 = vld [vmem:[%s6577 + $0x250] sm:$0xff]
  %v9440 = vld [vmem:[%s6577 + $0x268] sm:$0xff]
  %v9441 = vld [vmem:[%s6577 + $0x270] sm:$0xff]
  %v9442 = vld [vmem:[%s6577 + $0x288] sm:$0xff]
  %v9443 = vld [vmem:[%s6577 + $0x290] sm:$0xff]
  %v9444 = vld [vmem:[%s6577 + $0x2a8] sm:$0xff]
  %v9445 = vld [vmem:[%s6577 + $0x2b0] sm:$0xff]
  %v9446 = vld [vmem:[%s6577 + $0x2c8] sm:$0xff]
  %v9447 = vld [vmem:[%s6577 + $0x2d0] sm:$0xff]
  %v9448 = vld [vmem:[%s6577 + $0x2e8] sm:$0xff]
  %v9449 = vld [vmem:[%s6577 + $0x2f0] sm:$0xff]
  %v9450 = vld [vmem:[%s6577 + $0x308] sm:$0xff]
  %v9451 = vld [vmem:[%s6577 + $0x310] sm:$0xff]
  %v9452 = vld [vmem:[%s6577 + $0x328] sm:$0xff]
  %v9453 = vld [vmem:[%s6577 + $0x330] sm:$0xff]
  %v9454 = vld [vmem:[%s6577 + $0x348] sm:$0xff]
  %v9455 = vld [vmem:[%s6577 + $0x350] sm:$0xff]
  %v9456 = vld [vmem:[%s6577 + $0x368] sm:$0xff]
  %v9457 = vld [vmem:[%s6577 + $0x370] sm:$0xff]
  %v9458 = vld [vmem:[%s6577 + $0x388] sm:$0xff]
  %v9459 = vld [vmem:[%s6577 + $0x390] sm:$0xff]
  %v9460 = vld [vmem:[%s6577 + $0x3a8] sm:$0xff]
  %v9461 = vld [vmem:[%s6577 + $0x3b0] sm:$0xff]
  %v9462 = vld [vmem:[%s6577 + $0x3c8] sm:$0xff]
  %v9463 = vld [vmem:[%s6577 + $0x3d0] sm:$0xff]
  %v9464 = vld [vmem:[%s6577 + $0x3e8] sm:$0xff]
  %v9465 = vld [vmem:[%s6577 + $0x3f0] sm:$0xff]
  %v9466 = vld [vmem:[%s6577 + $0x408] sm:$0xff]
  %v9467 = vld [vmem:[%s6577 + $0x410] sm:$0xff]
  %v9468 = vld [vmem:[%s6577 + $0x428] sm:$0xff]
  %v9469 = vld [vmem:[%s6577 + $0x430] sm:$0xff]
  %s9470 = scalar_lea.vmem %s2, 32
  %v9471 = vld [vmem:[%s9470] sm:$0xff]
  %v9473 = vsel %vm6559, %v9406, 0
  %v9476 = vsel %vm6559, %v9407, 0
  %v9479 = vsel %vm6559, %v9408, 0
  %v9482 = vsel %vm6559, %v9409, 0
  %v9485 = vsel %vm6559, %v9410, 0
  %v9488 = vsel %vm6559, %v9411, 0
  %v9491 = vsel %vm6559, %v9412, 0
  %v9494 = vsel %vm6559, %v9413, 0
  %v9497 = vsel %vm6559, %v9414, 0
  %v9500 = vsel %vm6559, %v9415, 0
  %v9503 = vsel %vm6559, %v9416, 0
  %v9506 = vsel %vm6559, %v9417, 0
  %v9509 = vsel %vm6559, %v9418, 0
  %v9512 = vsel %vm6559, %v9419, 0
  %v9515 = vsel %vm6559, %v9420, 0
  %v9518 = vsel %vm6559, %v9421, 0
  %v9521 = vsel %vm6559, %v9422, 0
  %v9524 = vsel %vm6559, %v9423, 0
  %v9527 = vsel %vm6559, %v9424, 0
  %v9530 = vsel %vm6559, %v9425, 0
  %v9533 = vsel %vm6559, %v9426, 0
  %v9536 = vsel %vm6559, %v9427, 0
  %v9539 = vsel %vm6559, %v9428, 0
  %v9542 = vsel %vm6559, %v9429, 0
  %v9545 = vsel %vm6559, %v9430, 0
  %v9548 = vsel %vm6559, %v9431, 0
  %v9551 = vsel %vm6559, %v9432, 0
  %v9554 = vsel %vm6559, %v9433, 0
  %v9557 = vsel %vm6559, %v9434, 0
  %v9560 = vsel %vm6559, %v9435, 0
  %v9563 = vsel %vm6559, %v9436, 0
  %v9566 = vsel %vm6559, %v9437, 0
  %v9569 = vsel %vm6559, %v9438, 0
  %v9572 = vsel %vm6559, %v9439, 0
  %v9575 = vsel %vm6559, %v9440, 0
  %v9578 = vsel %vm6559, %v9441, 0
  %v9581 = vsel %vm6559, %v9442, 0
  %v9584 = vsel %vm6559, %v9443, 0
  %v9587 = vsel %vm6559, %v9444, 0
  %v9590 = vsel %vm6559, %v9445, 0
  %v9593 = vsel %vm6559, %v9446, 0
  %v9596 = vsel %vm6559, %v9447, 0
  %v9599 = vsel %vm6559, %v9448, 0
  %v9602 = vsel %vm6559, %v9449, 0
  %v9605 = vsel %vm6559, %v9450, 0
  %v9608 = vsel %vm6559, %v9451, 0
  %v9611 = vsel %vm6559, %v9452, 0
  %v9614 = vsel %vm6559, %v9453, 0
  %v9617 = vsel %vm6559, %v9454, 0
  %v9620 = vsel %vm6559, %v9455, 0
  %v9623 = vsel %vm6559, %v9456, 0
  %v9626 = vsel %vm6559, %v9457, 0
  %v9629 = vsel %vm6559, %v9458, 0
  %v9632 = vsel %vm6559, %v9459, 0
  %v9635 = vsel %vm6559, %v9460, 0
  %v9638 = vsel %vm6559, %v9461, 0
  %v9641 = vsel %vm6559, %v9462, 0
  %v9644 = vsel %vm6559, %v9463, 0
  %v9647 = vsel %vm6559, %v9464, 0
  %v9650 = vsel %vm6559, %v9465, 0
  %v9653 = vsel %vm6559, %v9466, 0
  %v9656 = vsel %vm6559, %v9467, 0
  %v9659 = vsel %vm6559, %v9468, 0
  %v9662 = vsel %vm6559, %v9469, 0
  %9664 = vmatprep.subr.mxu0 0.0
  %9665 = vmatpush1.msra.mxu0 %v9471
  %9666 = vmatprep.subr.mxu0 0.0
  %9667 = vmatpush1.msra.mxu0 0.0
  %9668 = vmatprep.subr.mxu0 0.0
  %9669 = vmatpush1.msra.mxu0 0.0
  %9670 = vmatprep.subr.mxu0 0.0
  %9671 = vmatpush1.msra.mxu0 0.0
  %9672 = vmatprep.subr.mxu0 0.0
  %9673 = vmatpush1.msra.mxu0 0.0
  %9674 = vmatprep.subr.mxu0 0.0
  %9675 = vmatpush1.msra.mxu0 0.0
  %9676 = vmatprep.subr.mxu0 0.0
  %9677 = vmatpush1.msra.mxu0 0.0
  %9678 = vmatprep.subr.mxu0 0.0
  %9679 = vmatpush1.msra.mxu0 0.0
  %9680 = vmatprep.subr.mxu0 0.0
  %9681 = vmatpush1.msra.mxu0 0.0
  %9682 = vmatprep.subr.mxu0 0.0
  %9683 = vmatpush1.msra.mxu0 0.0
  %9684 = vmatprep.subr.mxu0 0.0
  %9685 = vmatpush1.msra.mxu0 0.0
  %9686 = vmatprep.subr.mxu0 0.0
  %9687 = vmatpush1.msra.mxu0 0.0
  %9688 = vmatprep.subr.mxu0 0.0
  %9689 = vmatpush1.msra.mxu0 0.0
  %9690 = vmatprep.subr.mxu0 0.0
  %9691 = vmatpush1.msra.mxu0 0.0
  %9692 = vmatprep.subr.mxu0 0.0
  %9693 = vmatpush1.msra.mxu0 0.0
  %9694 = vmatprep.subr.mxu0 0.0
  %9695 = vmatpush1.msra.mxu0 0.0
  %9696 = vmatprep.subr.mxu0 0.0
  %9697 = vmatpush1.msra.mxu0 0.0
  %9698 = vmatprep.subr.mxu0 0.0
  %9699 = vmatpush1.msra.mxu0 0.0
  %9700 = vmatprep.subr.mxu0 0.0
  %9701 = vmatpush1.msra.mxu0 0.0
  %9702 = vmatprep.subr.mxu0 0.0
  %9703 = vmatpush1.msra.mxu0 0.0
  %9704 = vmatprep.subr.mxu0 0.0
  %9705 = vmatpush1.msra.mxu0 0.0
  %9706 = vmatprep.subr.mxu0 0.0
  %9707 = vmatpush1.msra.mxu0 0.0
  %9708 = vmatprep.subr.mxu0 0.0
  %9709 = vmatpush1.msra.mxu0 0.0
  %9710 = vmatprep.subr.mxu0 0.0
  %9711 = vmatpush1.msra.mxu0 0.0
  %9712 = vmatprep.subr.mxu0 0.0
  %9713 = vmatpush1.msra.mxu0 0.0
  %9714 = vmatprep.subr.mxu0 0.0
  %9715 = vmatpush1.msra.mxu0 0.0
  %9716 = vmatprep.subr.mxu0 0.0
  %9717 = vmatpush1.msra.mxu0 0.0
  %9718 = vmatprep.subr.mxu0 0.0
  %9719 = vmatpush1.msra.mxu0 0.0
  %9720 = vmatprep.subr.mxu0 0.0
  %9721 = vmatpush1.msra.mxu0 0.0
  %9722 = vmatprep.subr.mxu0 0.0
  %9723 = vmatpush1.msra.mxu0 0.0
  %9724 = vmatprep.subr.mxu0 0.0
  %9725 = vmatpush1.msra.mxu0 0.0
  %9726 = vmatprep.subr.mxu0 0.0
  %9727 = vmatpush1.msra.mxu0 0.0
  %9728 = vmatprep.mubr.f32.mxu0 0.0
  %9729 = vmatmul.mubr.f32.gmra.mrb[0].mxu0 %v9473
  %v9730 = vpop.f32.mrb[0].mxu0
  %v9731 = vadd.f32 0.0, %v9730
  %v9732 = vpop.f32.mrb[0].mxu0
  %9733 = vmatprep.mubr.f32.mxu0 0.0
  %9734 = vmatmul.mubr.f32.gmra.mrb[0].mxu0 %v9476
  %v9735 = vpop.f32.mrb[0].mxu0
  %v9736 = vadd.f32 0.0, %v9735
  %v9737 = vpop.f32.mrb[0].mxu0
  %9738 = vmatprep.mubr.f32.mxu0 0.0
  %9739 = vmatmul.mubr.f32.gmra.mrb[0].mxu0 %v9479
  %v9740 = vpop.f32.mrb[0].mxu0
  %v9741 = vadd.f32 0.0, %v9740
  %v9742 = vpop.f32.mrb[0].mxu0
  %9743 = vmatprep.mubr.f32.mxu0 0.0
  %9744 = vmatmul.mubr.f32.gmra.mrb[0].mxu0 %v9482
  %v9745 = vpop.f32.mrb[0].mxu0
  %v9746 = vadd.f32 0.0, %v9745
  %v9747 = vpop.f32.mrb[0].mxu0
  %9748 = vmatprep.mubr.f32.mxu0 0.0
  %9749 = vmatmul.mubr.f32.gmra.mrb[0].mxu0 %v9485
  %v9750 = vpop.f32.mrb[0].mxu0
  %v9751 = vadd.f32 0.0, %v9750
  %v9752 = vpop.f32.mrb[0].mxu0
  %9753 = vmatprep.mubr.f32.mxu0 0.0
  %9754 = vmatmul.mubr.f32.gmra.mrb[0].mxu0 %v9488
  %v9755 = vpop.f32.mrb[0].mxu0
  %v9756 = vadd.f32 0.0, %v9755
  %v9757 = vpop.f32.mrb[0].mxu0
  %9758 = vmatprep.mubr.f32.mxu0 0.0
  %9759 = vmatmul.mubr.f32.gmra.mrb[0].mxu0 %v9491
  %v9760 = vpop.f32.mrb[0].mxu0
  %v9761 = vadd.f32 0.0, %v9760
  %v9762 = vpop.f32.mrb[0].mxu0
  %9763 = vmatprep.mubr.f32.mxu0 0.0
  %9764 = vmatmul.mubr.f32.gmra.mrb[0].mxu0 %v9494
  %v9765 = vpop.f32.mrb[0].mxu0
  %v9766 = vadd.f32 0.0, %v9765
  %v9767 = vpop.f32.mrb[0].mxu0
  %9768 = vmatprep.mubr.f32.mxu0 0.0
  %9769 = vmatmul.mubr.f32.gmra.mrb[0].mxu0 %v9497
  %v9770 = vpop.f32.mrb[0].mxu0
  %v9771 = vadd.f32 0.0, %v9770
  %v9772 = vpop.f32.mrb[0].mxu0
  %9773 = vmatprep.mubr.f32.mxu0 0.0
  %9774 = vmatmul.mubr.f32.gmra.mrb[0].mxu0 %v9500
  %v9775 = vpop.f32.mrb[0].mxu0
  %v9776 = vadd.f32 0.0, %v9775
  %v9777 = vpop.f32.mrb[0].mxu0
  %9778 = vmatprep.mubr.f32.mxu0 0.0
  %9779 = vmatmul.mubr.f32.gmra.mrb[0].mxu0 %v9503
  %v9780 = vpop.f32.mrb[0].mxu0
  %v9781 = vadd.f32 0.0, %v9780
  %v9782 = vpop.f32.mrb[0].mxu0
  %9783 = vmatprep.mubr.f32.mxu0 0.0
  %9784 = vmatmul.mubr.f32.gmra.mrb[0].mxu0 %v9506
  %v9785 = vpop.f32.mrb[0].mxu0
  %v9786 = vadd.f32 0.0, %v9785
  %v9787 = vpop.f32.mrb[0].mxu0
  %9788 = vmatprep.mubr.f32.mxu0 0.0
  %9789 = vmatmul.mubr.f32.gmra.mrb[0].mxu0 %v9509
  %v9790 = vpop.f32.mrb[0].mxu0
  %v9791 = vadd.f32 0.0, %v9790
  %v9792 = vpop.f32.mrb[0].mxu0
  %9793 = vmatprep.mubr.f32.mxu0 0.0
  %9794 = vmatmul.mubr.f32.gmra.mrb[0].mxu0 %v9512
  %v9795 = vpop.f32.mrb[0].mxu0
  %v9796 = vadd.f32 0.0, %v9795
  %v9797 = vpop.f32.mrb[0].mxu0
  %9798 = vmatprep.mubr.f32.mxu0 0.0
  %9799 = vmatmul.mubr.f32.gmra.mrb[0].mxu0 %v9515
  %v9800 = vpop.f32.mrb[0].mxu0
  %v9801 = vadd.f32 0.0, %v9800
  %v9802 = vpop.f32.mrb[0].mxu0
  %9803 = vmatprep.mubr.f32.mxu0 0.0
  %9804 = vmatmul.mubr.f32.gmra.mrb[0].mxu0 %v9518
  %v9805 = vpop.f32.mrb[0].mxu0
  %v9806 = vadd.f32 0.0, %v9805
  %v9807 = vpop.f32.mrb[0].mxu0
  %9808 = vmatprep.mubr.f32.mxu0 0.0
  %9809 = vmatmul.mubr.f32.gmra.mrb[0].mxu0 %v9521
  %v9810 = vpop.f32.mrb[0].mxu0
  %v9811 = vadd.f32 0.0, %v9810
  %v9812 = vpop.f32.mrb[0].mxu0
  %9813 = vmatprep.mubr.f32.mxu0 0.0
  %9814 = vmatmul.mubr.f32.gmra.mrb[0].mxu0 %v9524
  %v9815 = vpop.f32.mrb[0].mxu0
  %v9816 = vadd.f32 0.0, %v9815
  %v9817 = vpop.f32.mrb[0].mxu0
  %9818 = vmatprep.mubr.f32.mxu0 0.0
  %9819 = vmatmul.mubr.f32.gmra.mrb[0].mxu0 %v9527
  %v9820 = vpop.f32.mrb[0].mxu0
  %v9821 = vadd.f32 0.0, %v9820
  %v9822 = vpop.f32.mrb[0].mxu0
  %9823 = vmatprep.mubr.f32.mxu0 0.0
  %9824 = vmatmul.mubr.f32.gmra.mrb[0].mxu0 %v9530
  %v9825 = vpop.f32.mrb[0].mxu0
  %v9826 = vadd.f32 0.0, %v9825
  %v9827 = vpop.f32.mrb[0].mxu0
  %9828 = vmatprep.mubr.f32.mxu0 0.0
  %9829 = vmatmul.mubr.f32.gmra.mrb[0].mxu0 %v9533
  %v9830 = vpop.f32.mrb[0].mxu0
  %v9831 = vadd.f32 0.0, %v9830
  %v9832 = vpop.f32.mrb[0].mxu0
  %9833 = vmatprep.mubr.f32.mxu0 0.0
  %9834 = vmatmul.mubr.f32.gmra.mrb[0].mxu0 %v9536
  %v9835 = vpop.f32.mrb[0].mxu0
  %v9836 = vadd.f32 0.0, %v9835
  %v9837 = vpop.f32.mrb[0].mxu0
  %9838 = vmatprep.mubr.f32.mxu0 0.0
  %9839 = vmatmul.mubr.f32.gmra.mrb[0].mxu0 %v9539
  %v9840 = vpop.f32.mrb[0].mxu0
  %v9841 = vadd.f32 0.0, %v9840
  %v9842 = vpop.f32.mrb[0].mxu0
  %9843 = vmatprep.mubr.f32.mxu0 0.0
  %9844 = vmatmul.mubr.f32.gmra.mrb[0].mxu0 %v9542
  %v9845 = vpop.f32.mrb[0].mxu0
  %v9846 = vadd.f32 0.0, %v9845
  %v9847 = vpop.f32.mrb[0].mxu0
  %9848 = vmatprep.mubr.f32.mxu0 0.0
  %9849 = vmatmul.mubr.f32.gmra.mrb[0].mxu0 %v9545
  %v9850 = vpop.f32.mrb[0].mxu0
  %v9851 = vadd.f32 0.0, %v9850
  %v9852 = vpop.f32.mrb[0].mxu0
  %9853 = vmatprep.mubr.f32.mxu0 0.0
  %9854 = vmatmul.mubr.f32.gmra.mrb[0].mxu0 %v9548
  %v9855 = vpop.f32.mrb[0].mxu0
  %v9856 = vadd.f32 0.0, %v9855
  %v9857 = vpop.f32.mrb[0].mxu0
  %9858 = vmatprep.mubr.f32.mxu0 0.0
  %9859 = vmatmul.mubr.f32.gmra.mrb[0].mxu0 %v9551
  %v9860 = vpop.f32.mrb[0].mxu0
  %v9861 = vadd.f32 0.0, %v9860
  %v9862 = vpop.f32.mrb[0].mxu0
  %9863 = vmatprep.mubr.f32.mxu0 0.0
  %9864 = vmatmul.mubr.f32.gmra.mrb[0].mxu0 %v9554
  %v9865 = vpop.f32.mrb[0].mxu0
  %v9866 = vadd.f32 0.0, %v9865
  %v9867 = vpop.f32.mrb[0].mxu0
  %9868 = vmatprep.mubr.f32.mxu0 0.0
  %9869 = vmatmul.mubr.f32.gmra.mrb[0].mxu0 %v9557
  %v9870 = vpop.f32.mrb[0].mxu0
  %v9871 = vadd.f32 0.0, %v9870
  %v9872 = vpop.f32.mrb[0].mxu0
  %9873 = vmatprep.mubr.f32.mxu0 0.0
  %9874 = vmatmul.mubr.f32.gmra.mrb[0].mxu0 %v9560
  %v9875 = vpop.f32.mrb[0].mxu0
  %v9876 = vadd.f32 0.0, %v9875
  %v9877 = vpop.f32.mrb[0].mxu0
  %9878 = vmatprep.mubr.f32.mxu0 0.0
  %9879 = vmatmul.mubr.f32.gmra.mrb[0].mxu0 %v9563
  %v9880 = vpop.f32.mrb[0].mxu0
  %v9881 = vadd.f32 0.0, %v9880
  %v9882 = vpop.f32.mrb[0].mxu0
  %9883 = vmatprep.mubr.f32.mxu0 0.0
  %9884 = vmatmul.mubr.f32.gmra.mrb[0].mxu0 %v9566
  %v9885 = vpop.f32.mrb[0].mxu0
  %v9886 = vadd.f32 0.0, %v9885
  %v9887 = vpop.f32.mrb[0].mxu0
  %9888 = vmatprep.mubr.f32.mxu0 0.0
  %9889 = vmatmul.mubr.f32.gmra.mrb[0].mxu0 %v9569
  %v9890 = vpop.f32.mrb[0].mxu0
  %v9891 = vadd.f32 0.0, %v9890
  %v9892 = vpop.f32.mrb[0].mxu0
  %9893 = vmatprep.mubr.f32.mxu0 0.0
  %9894 = vmatmul.mubr.f32.gmra.mrb[0].mxu0 %v9572
  %v9895 = vpop.f32.mrb[0].mxu0
  %v9896 = vadd.f32 0.0, %v9895
  %v9897 = vpop.f32.mrb[0].mxu0
  %9898 = vmatprep.mubr.f32.mxu0 0.0
  %9899 = vmatmul.mubr.f32.gmra.mrb[0].mxu0 %v9575
  %v9900 = vpop.f32.mrb[0].mxu0
  %v9901 = vadd.f32 0.0, %v9900
  %v9902 = vpop.f32.mrb[0].mxu0
  %9903 = vmatprep.mubr.f32.mxu0 0.0
  %9904 = vmatmul.mubr.f32.gmra.mrb[0].mxu0 %v9578
  %v9905 = vpop.f32.mrb[0].mxu0
  %v9906 = vadd.f32 0.0, %v9905
  %v9907 = vpop.f32.mrb[0].mxu0
  %9908 = vmatprep.mubr.f32.mxu0 0.0
  %9909 = vmatmul.mubr.f32.gmra.mrb[0].mxu0 %v9581
  %v9910 = vpop.f32.mrb[0].mxu0
  %v9911 = vadd.f32 0.0, %v9910
  %v9912 = vpop.f32.mrb[0].mxu0
  %9913 = vmatprep.mubr.f32.mxu0 0.0
  %9914 = vmatmul.mubr.f32.gmra.mrb[0].mxu0 %v9584
  %v9915 = vpop.f32.mrb[0].mxu0
  %v9916 = vadd.f32 0.0, %v9915
  %v9917 = vpop.f32.mrb[0].mxu0
  %9918 = vmatprep.mubr.f32.mxu0 0.0
  %9919 = vmatmul.mubr.f32.gmra.mrb[0].mxu0 %v9587
  %v9920 = vpop.f32.mrb[0].mxu0
  %v9921 = vadd.f32 0.0, %v9920
  %v9922 = vpop.f32.mrb[0].mxu0
  %9923 = vmatprep.mubr.f32.mxu0 0.0
  %9924 = vmatmul.mubr.f32.gmra.mrb[0].mxu0 %v9590
  %v9925 = vpop.f32.mrb[0].mxu0
  %v9926 = vadd.f32 0.0, %v9925
  %v9927 = vpop.f32.mrb[0].mxu0
  %9928 = vmatprep.mubr.f32.mxu0 0.0
  %9929 = vmatmul.mubr.f32.gmra.mrb[0].mxu0 %v9593
  %v9930 = vpop.f32.mrb[0].mxu0
  %v9931 = vadd.f32 0.0, %v9930
  %v9932 = vpop.f32.mrb[0].mxu0
  %9933 = vmatprep.mubr.f32.mxu0 0.0
  %9934 = vmatmul.mubr.f32.gmra.mrb[0].mxu0 %v9596
  %v9935 = vpop.f32.mrb[0].mxu0
  %v9936 = vadd.f32 0.0, %v9935
  %v9937 = vpop.f32.mrb[0].mxu0
  %9938 = vmatprep.mubr.f32.mxu0 0.0
  %9939 = vmatmul.mubr.f32.gmra.mrb[0].mxu0 %v9599
  %v9940 = vpop.f32.mrb[0].mxu0
  %v9941 = vadd.f32 0.0, %v9940
  %v9942 = vpop.f32.mrb[0].mxu0
  %9943 = vmatprep.mubr.f32.mxu0 0.0
  %9944 = vmatmul.mubr.f32.gmra.mrb[0].mxu0 %v9602
  %v9945 = vpop.f32.mrb[0].mxu0
  %v9946 = vadd.f32 0.0, %v9945
  %v9947 = vpop.f32.mrb[0].mxu0
  %9948 = vmatprep.mubr.f32.mxu0 0.0
  %9949 = vmatmul.mubr.f32.gmra.mrb[0].mxu0 %v9605
  %v9950 = vpop.f32.mrb[0].mxu0
  %v9951 = vadd.f32 0.0, %v9950
  %v9952 = vpop.f32.mrb[0].mxu0
  %9953 = vmatprep.mubr.f32.mxu0 0.0
  %9954 = vmatmul.mubr.f32.gmra.mrb[0].mxu0 %v9608
  %v9955 = vpop.f32.mrb[0].mxu0
  %v9956 = vadd.f32 0.0, %v9955
  %v9957 = vpop.f32.mrb[0].mxu0
  %9958 = vmatprep.mubr.f32.mxu0 0.0
  %9959 = vmatmul.mubr.f32.gmra.mrb[0].mxu0 %v9611
  %v9960 = vpop.f32.mrb[0].mxu0
  %v9961 = vadd.f32 0.0, %v9960
  %v9962 = vpop.f32.mrb[0].mxu0
  %9963 = vmatprep.mubr.f32.mxu0 0.0
  %9964 = vmatmul.mubr.f32.gmra.mrb[0].mxu0 %v9614
  %v9965 = vpop.f32.mrb[0].mxu0
  %v9966 = vadd.f32 0.0, %v9965
  %v9967 = vpop.f32.mrb[0].mxu0
  %9968 = vmatprep.mubr.f32.mxu0 0.0
  %9969 = vmatmul.mubr.f32.gmra.mrb[0].mxu0 %v9617
  %v9970 = vpop.f32.mrb[0].mxu0
  %v9971 = vadd.f32 0.0, %v9970
  %v9972 = vpop.f32.mrb[0].mxu0
  %9973 = vmatprep.mubr.f32.mxu0 0.0
  %9974 = vmatmul.mubr.f32.gmra.mrb[0].mxu0 %v9620
  %v9975 = vpop.f32.mrb[0].mxu0
  %v9976 = vadd.f32 0.0, %v9975
  %v9977 = vpop.f32.mrb[0].mxu0
  %9978 = vmatprep.mubr.f32.mxu0 0.0
  %9979 = vmatmul.mubr.f32.gmra.mrb[0].mxu0 %v9623
  %v9980 = vpop.f32.mrb[0].mxu0
  %v9981 = vadd.f32 0.0, %v9980
  %v9982 = vpop.f32.mrb[0].mxu0
  %9983 = vmatprep.mubr.f32.mxu0 0.0
  %9984 = vmatmul.mubr.f32.gmra.mrb[0].mxu0 %v9626
  %v9985 = vpop.f32.mrb[0].mxu0
  %v9986 = vadd.f32 0.0, %v9985
  %v9987 = vpop.f32.mrb[0].mxu0
  %9988 = vmatprep.mubr.f32.mxu0 0.0
  %9989 = vmatmul.mubr.f32.gmra.mrb[0].mxu0 %v9629
  %v9990 = vpop.f32.mrb[0].mxu0
  %v9991 = vadd.f32 0.0, %v9990
  %v9992 = vpop.f32.mrb[0].mxu0
  %9993 = vmatprep.mubr.f32.mxu0 0.0
  %9994 = vmatmul.mubr.f32.gmra.mrb[0].mxu0 %v9632
  %v9995 = vpop.f32.mrb[0].mxu0
  %v9996 = vadd.f32 0.0, %v9995
  %v9997 = vpop.f32.mrb[0].mxu0
  %9998 = vmatprep.mubr.f32.mxu0 0.0
  %9999 = vmatmul.mubr.f32.gmra.mrb[0].mxu0 %v9635
  %v10000 = vpop.f32.mrb[0].mxu0
  %v10001 = vadd.f32 0.0, %v10000
  %v10002 = vpop.f32.mrb[0].mxu0
  %10003 = vmatprep.mubr.f32.mxu0 0.0
  %10004 = vmatmul.mubr.f32.gmra.mrb[0].mxu0 %v9638
  %v10005 = vpop.f32.mrb[0].mxu0
  %v10006 = vadd.f32 0.0, %v10005
  %v10007 = vpop.f32.mrb[0].mxu0
  %10008 = vmatprep.mubr.f32.mxu0 0.0
  %10009 = vmatmul.mubr.f32.gmra.mrb[0].mxu0 %v9641
  %v10010 = vpop.f32.mrb[0].mxu0
  %v10011 = vadd.f32 0.0, %v10010
  %v10012 = vpop.f32.mrb[0].mxu0
  %10013 = vmatprep.mubr.f32.mxu0 0.0
  %10014 = vmatmul.mubr.f32.gmra.mrb[0].mxu0 %v9644
  %v10015 = vpop.f32.mrb[0].mxu0
  %v10016 = vadd.f32 0.0, %v10015
  %v10017 = vpop.f32.mrb[0].mxu0
  %10018 = vmatprep.mubr.f32.mxu0 0.0
  %10019 = vmatmul.mubr.f32.gmra.mrb[0].mxu0 %v9647
  %v10020 = vpop.f32.mrb[0].mxu0
  %v10021 = vadd.f32 0.0, %v10020
  %v10022 = vpop.f32.mrb[0].mxu0
  %10023 = vmatprep.mubr.f32.mxu0 0.0
  %10024 = vmatmul.mubr.f32.gmra.mrb[0].mxu0 %v9650
  %v10025 = vpop.f32.mrb[0].mxu0
  %v10026 = vadd.f32 0.0, %v10025
  %v10027 = vpop.f32.mrb[0].mxu0
  %10028 = vmatprep.mubr.f32.mxu0 0.0
  %10029 = vmatmul.mubr.f32.gmra.mrb[0].mxu0 %v9653
  %v10030 = vpop.f32.mrb[0].mxu0
  %v10031 = vadd.f32 0.0, %v10030
  %v10032 = vpop.f32.mrb[0].mxu0
  %10033 = vmatprep.mubr.f32.mxu0 0.0
  %10034 = vmatmul.mubr.f32.gmra.mrb[0].mxu0 %v9656
  %v10035 = vpop.f32.mrb[0].mxu0
  %v10036 = vadd.f32 0.0, %v10035
  %v10037 = vpop.f32.mrb[0].mxu0
  %10038 = vmatprep.mubr.f32.mxu0 0.0
  %10039 = vmatmul.mubr.f32.gmra.mrb[0].mxu0 %v9659
  %v10040 = vpop.f32.mrb[0].mxu0
  %v10041 = vadd.f32 0.0, %v10040
  %v10042 = vpop.f32.mrb[0].mxu0
  %10043 = vmatprep.mubr.f32.mxu0 0.0
  %10044 = vmatmul.mubr.f32.gmra.mrb[0].mxu0 %v9662
  %v10045 = vpop.f32.mrb[0].mxu0
  %v10046 = vadd.f32 0.0, %v10045
  %v10047 = vpop.f32.mrb[0].mxu0
  %10048 = vdwg.mxu0
  %v10049 = vadd.f32 %v9342, %v9731
  %v10050 = vadd.f32 %v9343, %v9736
  %v10051 = vadd.f32 %v9344, %v9741
  %v10052 = vadd.f32 %v9345, %v9746
  %v10053 = vadd.f32 %v9346, %v9751
  %v10054 = vadd.f32 %v9347, %v9756
  %v10055 = vadd.f32 %v9348, %v9761
  %v10056 = vadd.f32 %v9349, %v9766
  %v10057 = vadd.f32 %v9350, %v9771
  %v10058 = vadd.f32 %v9351, %v9776
  %v10059 = vadd.f32 %v9352, %v9781
  %v10060 = vadd.f32 %v9353, %v9786
  %v10061 = vadd.f32 %v9354, %v9791
  %v10062 = vadd.f32 %v9355, %v9796
  %v10063 = vadd.f32 %v9356, %v9801
  %v10064 = vadd.f32 %v9357, %v9806
  %v10065 = vadd.f32 %v9358, %v9811
  %v10066 = vadd.f32 %v9359, %v9816
  %v10067 = vadd.f32 %v9360, %v9821
  %v10068 = vadd.f32 %v9361, %v9826
  %v10069 = vadd.f32 %v9362, %v9831
  %v10070 = vadd.f32 %v9363, %v9836
  %v10071 = vadd.f32 %v9364, %v9841
  %v10072 = vadd.f32 %v9365, %v9846
  %v10073 = vadd.f32 %v9366, %v9851
  %v10074 = vadd.f32 %v9367, %v9856
  %v10075 = vadd.f32 %v9368, %v9861
  %v10076 = vadd.f32 %v9369, %v9866
  %v10077 = vadd.f32 %v9370, %v9871
  %v10078 = vadd.f32 %v9371, %v9876
  %v10079 = vadd.f32 %v9372, %v9881
  %v10080 = vadd.f32 %v9373, %v9886
  %v10081 = vadd.f32 %v9374, %v9891
  %v10082 = vadd.f32 %v9375, %v9896
  %v10083 = vadd.f32 %v9376, %v9901
  %v10084 = vadd.f32 %v9377, %v9906
  %v10085 = vadd.f32 %v9378, %v9911
  %v10086 = vadd.f32 %v9379, %v9916
  %v10087 = vadd.f32 %v9380, %v9921
  %v10088 = vadd.f32 %v9381, %v9926
  %v10089 = vadd.f32 %v9382, %v9931
  %v10090 = vadd.f32 %v9383, %v9936
  %v10091 = vadd.f32 %v9384, %v9941
  %v10092 = vadd.f32 %v9385, %v9946
  %v10093 = vadd.f32 %v9386, %v9951
  %v10094 = vadd.f32 %v9387, %v9956
  %v10095 = vadd.f32 %v9388, %v9961
  %v10096 = vadd.f32 %v9389, %v9966
  %v10097 = vadd.f32 %v9390, %v9971
  %v10098 = vadd.f32 %v9391, %v9976
  %v10099 = vadd.f32 %v9392, %v9981
  %v10100 = vadd.f32 %v9393, %v9986
  %v10101 = vadd.f32 %v9394, %v9991
  %v10102 = vadd.f32 %v9395, %v9996
  %v10103 = vadd.f32 %v9396, %v10001
  %v10104 = vadd.f32 %v9397, %v10006
  %v10105 = vadd.f32 %v9398, %v10011
  %v10106 = vadd.f32 %v9399, %v10016
  %v10107 = vadd.f32 %v9400, %v10021
  %v10108 = vadd.f32 %v9401, %v10026
  %v10109 = vadd.f32 %v9402, %v10031
  %v10110 = vadd.f32 %v9403, %v10036
  %v10111 = vadd.f32 %v9404, %v10041
  %v10112 = vadd.f32 %v9405, %v10046
  %v10113 = vld [vmem:[%s6577 + $0x9] sm:$0xff]
  %v10114 = vld [vmem:[%s6577 + $0x11] sm:$0xff]
  %v10115 = vld [vmem:[%s6577 + $0x29] sm:$0xff]
  %v10116 = vld [vmem:[%s6577 + $0x31] sm:$0xff]
  %v10117 = vld [vmem:[%s6577 + $0x49] sm:$0xff]
  %v10118 = vld [vmem:[%s6577 + $0x51] sm:$0xff]
  %v10119 = vld [vmem:[%s6577 + $0x69] sm:$0xff]
  %v10120 = vld [vmem:[%s6577 + $0x71] sm:$0xff]
  %v10121 = vld [vmem:[%s6577 + $0x89] sm:$0xff]
  %v10122 = vld [vmem:[%s6577 + $0x91] sm:$0xff]
  %v10123 = vld [vmem:[%s6577 + $0xa9] sm:$0xff]
  %v10124 = vld [vmem:[%s6577 + $0xb1] sm:$0xff]
  %v10125 = vld [vmem:[%s6577 + $0xc9] sm:$0xff]
  %v10126 = vld [vmem:[%s6577 + $0xd1] sm:$0xff]
  %v10127 = vld [vmem:[%s6577 + $0xe9] sm:$0xff]
  %v10128 = vld [vmem:[%s6577 + $0xf1] sm:$0xff]
  %v10129 = vld [vmem:[%s6577 + $0x109] sm:$0xff]
  %v10130 = vld [vmem:[%s6577 + $0x111] sm:$0xff]
  %v10131 = vld [vmem:[%s6577 + $0x129] sm:$0xff]
  %v10132 = vld [vmem:[%s6577 + $0x131] sm:$0xff]
  %v10133 = vld [vmem:[%s6577 + $0x149] sm:$0xff]
  %v10134 = vld [vmem:[%s6577 + $0x151] sm:$0xff]
  %v10135 = vld [vmem:[%s6577 + $0x169] sm:$0xff]
  %v10136 = vld [vmem:[%s6577 + $0x171] sm:$0xff]
  %v10137 = vld [vmem:[%s6577 + $0x189] sm:$0xff]
  %v10138 = vld [vmem:[%s6577 + $0x191] sm:$0xff]
  %v10139 = vld [vmem:[%s6577 + $0x1a9] sm:$0xff]
  %v10140 = vld [vmem:[%s6577 + $0x1b1] sm:$0xff]
  %v10141 = vld [vmem:[%s6577 + $0x1c9] sm:$0xff]
  %v10142 = vld [vmem:[%s6577 + $0x1d1] sm:$0xff]
  %v10143 = vld [vmem:[%s6577 + $0x1e9] sm:$0xff]
  %v10144 = vld [vmem:[%s6577 + $0x1f1] sm:$0xff]
  %v10145 = vld [vmem:[%s6577 + $0x249] sm:$0xff]
  %v10146 = vld [vmem:[%s6577 + $0x251] sm:$0xff]
  %v10147 = vld [vmem:[%s6577 + $0x269] sm:$0xff]
  %v10148 = vld [vmem:[%s6577 + $0x271] sm:$0xff]
  %v10149 = vld [vmem:[%s6577 + $0x289] sm:$0xff]
  %v10150 = vld [vmem:[%s6577 + $0x291] sm:$0xff]
  %v10151 = vld [vmem:[%s6577 + $0x2a9] sm:$0xff]
  %v10152 = vld [vmem:[%s6577 + $0x2b1] sm:$0xff]
  %v10153 = vld [vmem:[%s6577 + $0x2c9] sm:$0xff]
  %v10154 = vld [vmem:[%s6577 + $0x2d1] sm:$0xff]
  %v10155 = vld [vmem:[%s6577 + $0x2e9] sm:$0xff]
  %v10156 = vld [vmem:[%s6577 + $0x2f1] sm:$0xff]
  %v10157 = vld [vmem:[%s6577 + $0x309] sm:$0xff]
  %v10158 = vld [vmem:[%s6577 + $0x311] sm:$0xff]
  %v10159 = vld [vmem:[%s6577 + $0x329] sm:$0xff]
  %v10160 = vld [vmem:[%s6577 + $0x331] sm:$0xff]
  %v10161 = vld [vmem:[%s6577 + $0x349] sm:$0xff]
  %v10162 = vld [vmem:[%s6577 + $0x351] sm:$0xff]
  %v10163 = vld [vmem:[%s6577 + $0x369] sm:$0xff]
  %v10164 = vld [vmem:[%s6577 + $0x371] sm:$0xff]
  %v10165 = vld [vmem:[%s6577 + $0x389] sm:$0xff]
  %v10166 = vld [vmem:[%s6577 + $0x391] sm:$0xff]
  %v10167 = vld [vmem:[%s6577 + $0x3a9] sm:$0xff]
  %v10168 = vld [vmem:[%s6577 + $0x3b1] sm:$0xff]
  %v10169 = vld [vmem:[%s6577 + $0x3c9] sm:$0xff]
  %v10170 = vld [vmem:[%s6577 + $0x3d1] sm:$0xff]
  %v10171 = vld [vmem:[%s6577 + $0x3e9] sm:$0xff]
  %v10172 = vld [vmem:[%s6577 + $0x3f1] sm:$0xff]
  %v10173 = vld [vmem:[%s6577 + $0x409] sm:$0xff]
  %v10174 = vld [vmem:[%s6577 + $0x411] sm:$0xff]
  %v10175 = vld [vmem:[%s6577 + $0x429] sm:$0xff]
  %v10176 = vld [vmem:[%s6577 + $0x431] sm:$0xff]
  %s10177 = scalar_lea.vmem %s2, 40
  %v10178 = vld [vmem:[%s10177] sm:$0xff]
  %v10180 = vsel %vm6559, %v10113, 0
  %v10183 = vsel %vm6559, %v10114, 0
  %v10186 = vsel %vm6559, %v10115, 0
  %v10189 = vsel %vm6559, %v10116, 0
  %v10192 = vsel %vm6559, %v10117, 0
  %v10195 = vsel %vm6559, %v10118, 0
  %v10198 = vsel %vm6559, %v10119, 0
  %v10201 = vsel %vm6559, %v10120, 0
  %v10204 = vsel %vm6559, %v10121, 0
  %v10207 = vsel %vm6559, %v10122, 0
  %v10210 = vsel %vm6559, %v10123, 0
  %v10213 = vsel %vm6559, %v10124, 0
  %v10216 = vsel %vm6559, %v10125, 0
  %v10219 = vsel %vm6559, %v10126, 0
  %v10222 = vsel %vm6559, %v10127, 0
  %v10225 = vsel %vm6559, %v10128, 0
  %v10228 = vsel %vm6559, %v10129, 0
  %v10231 = vsel %vm6559, %v10130, 0
  %v10234 = vsel %vm6559, %v10131, 0
  %v10237 = vsel %vm6559, %v10132, 0
  %v10240 = vsel %vm6559, %v10133, 0
  %v10243 = vsel %vm6559, %v10134, 0
  %v10246 = vsel %vm6559, %v10135, 0
  %v10249 = vsel %vm6559, %v10136, 0
  %v10252 = vsel %vm6559, %v10137, 0
  %v10255 = vsel %vm6559, %v10138, 0
  %v10258 = vsel %vm6559, %v10139, 0
  %v10261 = vsel %vm6559, %v10140, 0
  %v10264 = vsel %vm6559, %v10141, 0
  %v10267 = vsel %vm6559, %v10142, 0
  %v10270 = vsel %vm6559, %v10143, 0
  %v10273 = vsel %vm6559, %v10144, 0
  %v10276 = vsel %vm6559, %v10145, 0
  %v10279 = vsel %vm6559, %v10146, 0
  %v10282 = vsel %vm6559, %v10147, 0
  %v10285 = vsel %vm6559, %v10148, 0
  %v10288 = vsel %vm6559, %v10149, 0
  %v10291 = vsel %vm6559, %v10150, 0
  %v10294 = vsel %vm6559, %v10151, 0
  %v10297 = vsel %vm6559, %v10152, 0
  %v10300 = vsel %vm6559, %v10153, 0
  %v10303 = vsel %vm6559, %v10154, 0
  %v10306 = vsel %vm6559, %v10155, 0
  %v10309 = vsel %vm6559, %v10156, 0
  %v10312 = vsel %vm6559, %v10157, 0
  %v10315 = vsel %vm6559, %v10158, 0
  %v10318 = vsel %vm6559, %v10159, 0
  %v10321 = vsel %vm6559, %v10160, 0
  %v10324 = vsel %vm6559, %v10161, 0
  %v10327 = vsel %vm6559, %v10162, 0
  %v10330 = vsel %vm6559, %v10163, 0
  %v10333 = vsel %vm6559, %v10164, 0
  %v10336 = vsel %vm6559, %v10165, 0
  %v10339 = vsel %vm6559, %v10166, 0
  %v10342 = vsel %vm6559, %v10167, 0
  %v10345 = vsel %vm6559, %v10168, 0
  %v10348 = vsel %vm6559, %v10169, 0
  %v10351 = vsel %vm6559, %v10170, 0
  %v10354 = vsel %vm6559, %v10171, 0
  %v10357 = vsel %vm6559, %v10172, 0
  %v10360 = vsel %vm6559, %v10173, 0
  %v10363 = vsel %vm6559, %v10174, 0
  %v10366 = vsel %vm6559, %v10175, 0
  %v10369 = vsel %vm6559, %v10176, 0
  %10371 = vmatprep.subr.mxu0 0.0
  %10372 = vmatpush1.msra.mxu0 %v10178
  %10373 = vmatprep.subr.mxu0 0.0
  %10374 = vmatpush1.msra.mxu0 0.0
  %10375 = vmatprep.subr.mxu0 0.0
  %10376 = vmatpush1.msra.mxu0 0.0
  %10377 = vmatprep.subr.mxu0 0.0
  %10378 = vmatpush1.msra.mxu0 0.0
  %10379 = vmatprep.subr.mxu0 0.0
  %10380 = vmatpush1.msra.mxu0 0.0
  %10381 = vmatprep.subr.mxu0 0.0
  %10382 = vmatpush1.msra.mxu0 0.0
  %10383 = vmatprep.subr.mxu0 0.0
  %10384 = vmatpush1.msra.mxu0 0.0
  %10385 = vmatprep.subr.mxu0 0.0
  %10386 = vmatpush1.msra.mxu0 0.0
  %10387 = vmatprep.subr.mxu0 0.0
  %10388 = vmatpush1.msra.mxu0 0.0
  %10389 = vmatprep.subr.mxu0 0.0
  %10390 = vmatpush1.msra.mxu0 0.0
  %10391 = vmatprep.subr.mxu0 0.0
  %10392 = vmatpush1.msra.mxu0 0.0
  %10393 = vmatprep.subr.mxu0 0.0
  %10394 = vmatpush1.msra.mxu0 0.0
  %10395 = vmatprep.subr.mxu0 0.0
  %10396 = vmatpush1.msra.mxu0 0.0
  %10397 = vmatprep.subr.mxu0 0.0
  %10398 = vmatpush1.msra.mxu0 0.0
  %10399 = vmatprep.subr.mxu0 0.0
  %10400 = vmatpush1.msra.mxu0 0.0
  %10401 = vmatprep.subr.mxu0 0.0
  %10402 = vmatpush1.msra.mxu0 0.0
  %10403 = vmatprep.subr.mxu0 0.0
  %10404 = vmatpush1.msra.mxu0 0.0
  %10405 = vmatprep.subr.mxu0 0.0
  %10406 = vmatpush1.msra.mxu0 0.0
  %10407 = vmatprep.subr.mxu0 0.0
  %10408 = vmatpush1.msra.mxu0 0.0
  %10409 = vmatprep.subr.mxu0 0.0
  %10410 = vmatpush1.msra.mxu0 0.0
  %10411 = vmatprep.subr.mxu0 0.0
  %10412 = vmatpush1.msra.mxu0 0.0
  %10413 = vmatprep.subr.mxu0 0.0
  %10414 = vmatpush1.msra.mxu0 0.0
  %10415 = vmatprep.subr.mxu0 0.0
  %10416 = vmatpush1.msra.mxu0 0.0
  %10417 = vmatprep.subr.mxu0 0.0
  %10418 = vmatpush1.msra.mxu0 0.0
  %10419 = vmatprep.subr.mxu0 0.0
  %10420 = vmatpush1.msra.mxu0 0.0
  %10421 = vmatprep.subr.mxu0 0.0
  %10422 = vmatpush1.msra.mxu0 0.0
  %10423 = vmatprep.subr.mxu0 0.0
  %10424 = vmatpush1.msra.mxu0 0.0
  %10425 = vmatprep.subr.mxu0 0.0
  %10426 = vmatpush1.msra.mxu0 0.0
  %10427 = vmatprep.subr.mxu0 0.0
  %10428 = vmatpush1.msra.mxu0 0.0
  %10429 = vmatprep.subr.mxu0 0.0
  %10430 = vmatpush1.msra.mxu0 0.0
  %10431 = vmatprep.subr.mxu0 0.0
  %10432 = vmatpush1.msra.mxu0 0.0
  %10433 = vmatprep.subr.mxu0 0.0
  %10434 = vmatpush1.msra.mxu0 0.0
  %10435 = vmatprep.mubr.f32.mxu0 0.0
  %10436 = vmatmul.mubr.f32.gmra.mrb[0].mxu0 %v10180
  %v10437 = vpop.f32.mrb[0].mxu0
  %v10438 = vadd.f32 0.0, %v10437
  %v10439 = vpop.f32.mrb[0].mxu0
  %10440 = vmatprep.mubr.f32.mxu0 0.0
  %10441 = vmatmul.mubr.f32.gmra.mrb[0].mxu0 %v10183
  %v10442 = vpop.f32.mrb[0].mxu0
  %v10443 = vadd.f32 0.0, %v10442
  %v10444 = vpop.f32.mrb[0].mxu0
  %10445 = vmatprep.mubr.f32.mxu0 0.0
  %10446 = vmatmul.mubr.f32.gmra.mrb[0].mxu0 %v10186
  %v10447 = vpop.f32.mrb[0].mxu0
  %v10448 = vadd.f32 0.0, %v10447
  %v10449 = vpop.f32.mrb[0].mxu0
  %10450 = vmatprep.mubr.f32.mxu0 0.0
  %10451 = vmatmul.mubr.f32.gmra.mrb[0].mxu0 %v10189
  %v10452 = vpop.f32.mrb[0].mxu0
  %v10453 = vadd.f32 0.0, %v10452
  %v10454 = vpop.f32.mrb[0].mxu0
  %10455 = vmatprep.mubr.f32.mxu0 0.0
  %10456 = vmatmul.mubr.f32.gmra.mrb[0].mxu0 %v10192
  %v10457 = vpop.f32.mrb[0].mxu0
  %v10458 = vadd.f32 0.0, %v10457
  %v10459 = vpop.f32.mrb[0].mxu0
  %10460 = vmatprep.mubr.f32.mxu0 0.0
  %10461 = vmatmul.mubr.f32.gmra.mrb[0].mxu0 %v10195
  %v10462 = vpop.f32.mrb[0].mxu0
  %v10463 = vadd.f32 0.0, %v10462
  %v10464 = vpop.f32.mrb[0].mxu0
  %10465 = vmatprep.mubr.f32.mxu0 0.0
  %10466 = vmatmul.mubr.f32.gmra.mrb[0].mxu0 %v10198
  %v10467 = vpop.f32.mrb[0].mxu0
  %v10468 = vadd.f32 0.0, %v10467
  %v10469 = vpop.f32.mrb[0].mxu0
  %10470 = vmatprep.mubr.f32.mxu0 0.0
  %10471 = vmatmul.mubr.f32.gmra.mrb[0].mxu0 %v10201
  %v10472 = vpop.f32.mrb[0].mxu0
  %v10473 = vadd.f32 0.0, %v10472
  %v10474 = vpop.f32.mrb[0].mxu0
  %10475 = vmatprep.mubr.f32.mxu0 0.0
  %10476 = vmatmul.mubr.f32.gmra.mrb[0].mxu0 %v10204
  %v10477 = vpop.f32.mrb[0].mxu0
  %v10478 = vadd.f32 0.0, %v10477
  %v10479 = vpop.f32.mrb[0].mxu0
  %10480 = vmatprep.mubr.f32.mxu0 0.0
  %10481 = vmatmul.mubr.f32.gmra.mrb[0].mxu0 %v10207
  %v10482 = vpop.f32.mrb[0].mxu0
  %v10483 = vadd.f32 0.0, %v10482
  %v10484 = vpop.f32.mrb[0].mxu0
  %10485 = vmatprep.mubr.f32.mxu0 0.0
  %10486 = vmatmul.mubr.f32.gmra.mrb[0].mxu0 %v10210
  %v10487 = vpop.f32.mrb[0].mxu0
  %v10488 = vadd.f32 0.0, %v10487
  %v10489 = vpop.f32.mrb[0].mxu0
  %10490 = vmatprep.mubr.f32.mxu0 0.0
  %10491 = vmatmul.mubr.f32.gmra.mrb[0].mxu0 %v10213
  %v10492 = vpop.f32.mrb[0].mxu0
  %v10493 = vadd.f32 0.0, %v10492
  %v10494 = vpop.f32.mrb[0].mxu0
  %10495 = vmatprep.mubr.f32.mxu0 0.0
  %10496 = vmatmul.mubr.f32.gmra.mrb[0].mxu0 %v10216
  %v10497 = vpop.f32.mrb[0].mxu0
  %v10498 = vadd.f32 0.0, %v10497
  %v10499 = vpop.f32.mrb[0].mxu0
  %10500 = vmatprep.mubr.f32.mxu0 0.0
  %10501 = vmatmul.mubr.f32.gmra.mrb[0].mxu0 %v10219
  %v10502 = vpop.f32.mrb[0].mxu0
  %v10503 = vadd.f32 0.0, %v10502
  %v10504 = vpop.f32.mrb[0].mxu0
  %10505 = vmatprep.mubr.f32.mxu0 0.0
  %10506 = vmatmul.mubr.f32.gmra.mrb[0].mxu0 %v10222
  %v10507 = vpop.f32.mrb[0].mxu0
  %v10508 = vadd.f32 0.0, %v10507
  %v10509 = vpop.f32.mrb[0].mxu0
  %10510 = vmatprep.mubr.f32.mxu0 0.0
  %10511 = vmatmul.mubr.f32.gmra.mrb[0].mxu0 %v10225
  %v10512 = vpop.f32.mrb[0].mxu0
  %v10513 = vadd.f32 0.0, %v10512
  %v10514 = vpop.f32.mrb[0].mxu0
  %10515 = vmatprep.mubr.f32.mxu0 0.0
  %10516 = vmatmul.mubr.f32.gmra.mrb[0].mxu0 %v10228
  %v10517 = vpop.f32.mrb[0].mxu0
  %v10518 = vadd.f32 0.0, %v10517
  %v10519 = vpop.f32.mrb[0].mxu0
  %10520 = vmatprep.mubr.f32.mxu0 0.0
  %10521 = vmatmul.mubr.f32.gmra.mrb[0].mxu0 %v10231
  %v10522 = vpop.f32.mrb[0].mxu0
  %v10523 = vadd.f32 0.0, %v10522
  %v10524 = vpop.f32.mrb[0].mxu0
  %10525 = vmatprep.mubr.f32.mxu0 0.0
  %10526 = vmatmul.mubr.f32.gmra.mrb[0].mxu0 %v10234
  %v10527 = vpop.f32.mrb[0].mxu0
  %v10528 = vadd.f32 0.0, %v10527
  %v10529 = vpop.f32.mrb[0].mxu0
  %10530 = vmatprep.mubr.f32.mxu0 0.0
  %10531 = vmatmul.mubr.f32.gmra.mrb[0].mxu0 %v10237
  %v10532 = vpop.f32.mrb[0].mxu0
  %v10533 = vadd.f32 0.0, %v10532
  %v10534 = vpop.f32.mrb[0].mxu0
  %10535 = vmatprep.mubr.f32.mxu0 0.0
  %10536 = vmatmul.mubr.f32.gmra.mrb[0].mxu0 %v10240
  %v10537 = vpop.f32.mrb[0].mxu0
  %v10538 = vadd.f32 0.0, %v10537
  %v10539 = vpop.f32.mrb[0].mxu0
  %10540 = vmatprep.mubr.f32.mxu0 0.0
  %10541 = vmatmul.mubr.f32.gmra.mrb[0].mxu0 %v10243
  %v10542 = vpop.f32.mrb[0].mxu0
  %v10543 = vadd.f32 0.0, %v10542
  %v10544 = vpop.f32.mrb[0].mxu0
  %10545 = vmatprep.mubr.f32.mxu0 0.0
  %10546 = vmatmul.mubr.f32.gmra.mrb[0].mxu0 %v10246
  %v10547 = vpop.f32.mrb[0].mxu0
  %v10548 = vadd.f32 0.0, %v10547
  %v10549 = vpop.f32.mrb[0].mxu0
  %10550 = vmatprep.mubr.f32.mxu0 0.0
  %10551 = vmatmul.mubr.f32.gmra.mrb[0].mxu0 %v10249
  %v10552 = vpop.f32.mrb[0].mxu0
  %v10553 = vadd.f32 0.0, %v10552
  %v10554 = vpop.f32.mrb[0].mxu0
  %10555 = vmatprep.mubr.f32.mxu0 0.0
  %10556 = vmatmul.mubr.f32.gmra.mrb[0].mxu0 %v10252
  %v10557 = vpop.f32.mrb[0].mxu0
  %v10558 = vadd.f32 0.0, %v10557
  %v10559 = vpop.f32.mrb[0].mxu0
  %10560 = vmatprep.mubr.f32.mxu0 0.0
  %10561 = vmatmul.mubr.f32.gmra.mrb[0].mxu0 %v10255
  %v10562 = vpop.f32.mrb[0].mxu0
  %v10563 = vadd.f32 0.0, %v10562
  %v10564 = vpop.f32.mrb[0].mxu0
  %10565 = vmatprep.mubr.f32.mxu0 0.0
  %10566 = vmatmul.mubr.f32.gmra.mrb[0].mxu0 %v10258
  %v10567 = vpop.f32.mrb[0].mxu0
  %v10568 = vadd.f32 0.0, %v10567
  %v10569 = vpop.f32.mrb[0].mxu0
  %10570 = vmatprep.mubr.f32.mxu0 0.0
  %10571 = vmatmul.mubr.f32.gmra.mrb[0].mxu0 %v10261
  %v10572 = vpop.f32.mrb[0].mxu0
  %v10573 = vadd.f32 0.0, %v10572
  %v10574 = vpop.f32.mrb[0].mxu0
  %10575 = vmatprep.mubr.f32.mxu0 0.0
  %10576 = vmatmul.mubr.f32.gmra.mrb[0].mxu0 %v10264
  %v10577 = vpop.f32.mrb[0].mxu0
  %v10578 = vadd.f32 0.0, %v10577
  %v10579 = vpop.f32.mrb[0].mxu0
  %10580 = vmatprep.mubr.f32.mxu0 0.0
  %10581 = vmatmul.mubr.f32.gmra.mrb[0].mxu0 %v10267
  %v10582 = vpop.f32.mrb[0].mxu0
  %v10583 = vadd.f32 0.0, %v10582
  %v10584 = vpop.f32.mrb[0].mxu0
  %10585 = vmatprep.mubr.f32.mxu0 0.0
  %10586 = vmatmul.mubr.f32.gmra.mrb[0].mxu0 %v10270
  %v10587 = vpop.f32.mrb[0].mxu0
  %v10588 = vadd.f32 0.0, %v10587
  %v10589 = vpop.f32.mrb[0].mxu0
  %10590 = vmatprep.mubr.f32.mxu0 0.0
  %10591 = vmatmul.mubr.f32.gmra.mrb[0].mxu0 %v10273
  %v10592 = vpop.f32.mrb[0].mxu0
  %v10593 = vadd.f32 0.0, %v10592
  %v10594 = vpop.f32.mrb[0].mxu0
  %10595 = vmatprep.mubr.f32.mxu0 0.0
  %10596 = vmatmul.mubr.f32.gmra.mrb[0].mxu0 %v10276
  %v10597 = vpop.f32.mrb[0].mxu0
  %v10598 = vadd.f32 0.0, %v10597
  %v10599 = vpop.f32.mrb[0].mxu0
  %10600 = vmatprep.mubr.f32.mxu0 0.0
  %10601 = vmatmul.mubr.f32.gmra.mrb[0].mxu0 %v10279
  %v10602 = vpop.f32.mrb[0].mxu0
  %v10603 = vadd.f32 0.0, %v10602
  %v10604 = vpop.f32.mrb[0].mxu0
  %10605 = vmatprep.mubr.f32.mxu0 0.0
  %10606 = vmatmul.mubr.f32.gmra.mrb[0].mxu0 %v10282
  %v10607 = vpop.f32.mrb[0].mxu0
  %v10608 = vadd.f32 0.0, %v10607
  %v10609 = vpop.f32.mrb[0].mxu0
  %10610 = vmatprep.mubr.f32.mxu0 0.0
  %10611 = vmatmul.mubr.f32.gmra.mrb[0].mxu0 %v10285
  %v10612 = vpop.f32.mrb[0].mxu0
  %v10613 = vadd.f32 0.0, %v10612
  %v10614 = vpop.f32.mrb[0].mxu0
  %10615 = vmatprep.mubr.f32.mxu0 0.0
  %10616 = vmatmul.mubr.f32.gmra.mrb[0].mxu0 %v10288
  %v10617 = vpop.f32.mrb[0].mxu0
  %v10618 = vadd.f32 0.0, %v10617
  %v10619 = vpop.f32.mrb[0].mxu0
  %10620 = vmatprep.mubr.f32.mxu0 0.0
  %10621 = vmatmul.mubr.f32.gmra.mrb[0].mxu0 %v10291
  %v10622 = vpop.f32.mrb[0].mxu0
  %v10623 = vadd.f32 0.0, %v10622
  %v10624 = vpop.f32.mrb[0].mxu0
  %10625 = vmatprep.mubr.f32.mxu0 0.0
  %10626 = vmatmul.mubr.f32.gmra.mrb[0].mxu0 %v10294
  %v10627 = vpop.f32.mrb[0].mxu0
  %v10628 = vadd.f32 0.0, %v10627
  %v10629 = vpop.f32.mrb[0].mxu0
  %10630 = vmatprep.mubr.f32.mxu0 0.0
  %10631 = vmatmul.mubr.f32.gmra.mrb[0].mxu0 %v10297
  %v10632 = vpop.f32.mrb[0].mxu0
  %v10633 = vadd.f32 0.0, %v10632
  %v10634 = vpop.f32.mrb[0].mxu0
  %10635 = vmatprep.mubr.f32.mxu0 0.0
  %10636 = vmatmul.mubr.f32.gmra.mrb[0].mxu0 %v10300
  %v10637 = vpop.f32.mrb[0].mxu0
  %v10638 = vadd.f32 0.0, %v10637
  %v10639 = vpop.f32.mrb[0].mxu0
  %10640 = vmatprep.mubr.f32.mxu0 0.0
  %10641 = vmatmul.mubr.f32.gmra.mrb[0].mxu0 %v10303
  %v10642 = vpop.f32.mrb[0].mxu0
  %v10643 = vadd.f32 0.0, %v10642
  %v10644 = vpop.f32.mrb[0].mxu0
  %10645 = vmatprep.mubr.f32.mxu0 0.0
  %10646 = vmatmul.mubr.f32.gmra.mrb[0].mxu0 %v10306
  %v10647 = vpop.f32.mrb[0].mxu0
  %v10648 = vadd.f32 0.0, %v10647
  %v10649 = vpop.f32.mrb[0].mxu0
  %10650 = vmatprep.mubr.f32.mxu0 0.0
  %10651 = vmatmul.mubr.f32.gmra.mrb[0].mxu0 %v10309
  %v10652 = vpop.f32.mrb[0].mxu0
  %v10653 = vadd.f32 0.0, %v10652
  %v10654 = vpop.f32.mrb[0].mxu0
  %10655 = vmatprep.mubr.f32.mxu0 0.0
  %10656 = vmatmul.mubr.f32.gmra.mrb[0].mxu0 %v10312
  %v10657 = vpop.f32.mrb[0].mxu0
  %v10658 = vadd.f32 0.0, %v10657
  %v10659 = vpop.f32.mrb[0].mxu0
  %10660 = vmatprep.mubr.f32.mxu0 0.0
  %10661 = vmatmul.mubr.f32.gmra.mrb[0].mxu0 %v10315
  %v10662 = vpop.f32.mrb[0].mxu0
  %v10663 = vadd.f32 0.0, %v10662
  %v10664 = vpop.f32.mrb[0].mxu0
  %10665 = vmatprep.mubr.f32.mxu0 0.0
  %10666 = vmatmul.mubr.f32.gmra.mrb[0].mxu0 %v10318
  %v10667 = vpop.f32.mrb[0].mxu0
  %v10668 = vadd.f32 0.0, %v10667
  %v10669 = vpop.f32.mrb[0].mxu0
  %10670 = vmatprep.mubr.f32.mxu0 0.0
  %10671 = vmatmul.mubr.f32.gmra.mrb[0].mxu0 %v10321
  %v10672 = vpop.f32.mrb[0].mxu0
  %v10673 = vadd.f32 0.0, %v10672
  %v10674 = vpop.f32.mrb[0].mxu0
  %10675 = vmatprep.mubr.f32.mxu0 0.0
  %10676 = vmatmul.mubr.f32.gmra.mrb[0].mxu0 %v10324
  %v10677 = vpop.f32.mrb[0].mxu0
  %v10678 = vadd.f32 0.0, %v10677
  %v10679 = vpop.f32.mrb[0].mxu0
  %10680 = vmatprep.mubr.f32.mxu0 0.0
  %10681 = vmatmul.mubr.f32.gmra.mrb[0].mxu0 %v10327
  %v10682 = vpop.f32.mrb[0].mxu0
  %v10683 = vadd.f32 0.0, %v10682
  %v10684 = vpop.f32.mrb[0].mxu0
  %10685 = vmatprep.mubr.f32.mxu0 0.0
  %10686 = vmatmul.mubr.f32.gmra.mrb[0].mxu0 %v10330
  %v10687 = vpop.f32.mrb[0].mxu0
  %v10688 = vadd.f32 0.0, %v10687
  %v10689 = vpop.f32.mrb[0].mxu0
  %10690 = vmatprep.mubr.f32.mxu0 0.0
  %10691 = vmatmul.mubr.f32.gmra.mrb[0].mxu0 %v10333
  %v10692 = vpop.f32.mrb[0].mxu0
  %v10693 = vadd.f32 0.0, %v10692
  %v10694 = vpop.f32.mrb[0].mxu0
  %10695 = vmatprep.mubr.f32.mxu0 0.0
  %10696 = vmatmul.mubr.f32.gmra.mrb[0].mxu0 %v10336
  %v10697 = vpop.f32.mrb[0].mxu0
  %v10698 = vadd.f32 0.0, %v10697
  %v10699 = vpop.f32.mrb[0].mxu0
  %10700 = vmatprep.mubr.f32.mxu0 0.0
  %10701 = vmatmul.mubr.f32.gmra.mrb[0].mxu0 %v10339
  %v10702 = vpop.f32.mrb[0].mxu0
  %v10703 = vadd.f32 0.0, %v10702
  %v10704 = vpop.f32.mrb[0].mxu0
  %10705 = vmatprep.mubr.f32.mxu0 0.0
  %10706 = vmatmul.mubr.f32.gmra.mrb[0].mxu0 %v10342
  %v10707 = vpop.f32.mrb[0].mxu0
  %v10708 = vadd.f32 0.0, %v10707
  %v10709 = vpop.f32.mrb[0].mxu0
  %10710 = vmatprep.mubr.f32.mxu0 0.0
  %10711 = vmatmul.mubr.f32.gmra.mrb[0].mxu0 %v10345
  %v10712 = vpop.f32.mrb[0].mxu0
  %v10713 = vadd.f32 0.0, %v10712
  %v10714 = vpop.f32.mrb[0].mxu0
  %10715 = vmatprep.mubr.f32.mxu0 0.0
  %10716 = vmatmul.mubr.f32.gmra.mrb[0].mxu0 %v10348
  %v10717 = vpop.f32.mrb[0].mxu0
  %v10718 = vadd.f32 0.0, %v10717
  %v10719 = vpop.f32.mrb[0].mxu0
  %10720 = vmatprep.mubr.f32.mxu0 0.0
  %10721 = vmatmul.mubr.f32.gmra.mrb[0].mxu0 %v10351
  %v10722 = vpop.f32.mrb[0].mxu0
  %v10723 = vadd.f32 0.0, %v10722
  %v10724 = vpop.f32.mrb[0].mxu0
  %10725 = vmatprep.mubr.f32.mxu0 0.0
  %10726 = vmatmul.mubr.f32.gmra.mrb[0].mxu0 %v10354
  %v10727 = vpop.f32.mrb[0].mxu0
  %v10728 = vadd.f32 0.0, %v10727
  %v10729 = vpop.f32.mrb[0].mxu0
  %10730 = vmatprep.mubr.f32.mxu0 0.0
  %10731 = vmatmul.mubr.f32.gmra.mrb[0].mxu0 %v10357
  %v10732 = vpop.f32.mrb[0].mxu0
  %v10733 = vadd.f32 0.0, %v10732
  %v10734 = vpop.f32.mrb[0].mxu0
  %10735 = vmatprep.mubr.f32.mxu0 0.0
  %10736 = vmatmul.mubr.f32.gmra.mrb[0].mxu0 %v10360
  %v10737 = vpop.f32.mrb[0].mxu0
  %v10738 = vadd.f32 0.0, %v10737
  %v10739 = vpop.f32.mrb[0].mxu0
  %10740 = vmatprep.mubr.f32.mxu0 0.0
  %10741 = vmatmul.mubr.f32.gmra.mrb[0].mxu0 %v10363
  %v10742 = vpop.f32.mrb[0].mxu0
  %v10743 = vadd.f32 0.0, %v10742
  %v10744 = vpop.f32.mrb[0].mxu0
  %10745 = vmatprep.mubr.f32.mxu0 0.0
  %10746 = vmatmul.mubr.f32.gmra.mrb[0].mxu0 %v10366
  %v10747 = vpop.f32.mrb[0].mxu0
  %v10748 = vadd.f32 0.0, %v10747
  %v10749 = vpop.f32.mrb[0].mxu0
  %10750 = vmatprep.mubr.f32.mxu0 0.0
  %10751 = vmatmul.mubr.f32.gmra.mrb[0].mxu0 %v10369
  %v10752 = vpop.f32.mrb[0].mxu0
  %v10753 = vadd.f32 0.0, %v10752
  %v10754 = vpop.f32.mrb[0].mxu0
  %10755 = vdwg.mxu0
  %v10756 = vadd.f32 %v10049, %v10438
  %v10757 = vadd.f32 %v10050, %v10443
  %v10758 = vadd.f32 %v10051, %v10448
  %v10759 = vadd.f32 %v10052, %v10453
  %v10760 = vadd.f32 %v10053, %v10458
  %v10761 = vadd.f32 %v10054, %v10463
  %v10762 = vadd.f32 %v10055, %v10468
  %v10763 = vadd.f32 %v10056, %v10473
  %v10764 = vadd.f32 %v10057, %v10478
  %v10765 = vadd.f32 %v10058, %v10483
  %v10766 = vadd.f32 %v10059, %v10488
  %v10767 = vadd.f32 %v10060, %v10493
  %v10768 = vadd.f32 %v10061, %v10498
  %v10769 = vadd.f32 %v10062, %v10503
  %v10770 = vadd.f32 %v10063, %v10508
  %v10771 = vadd.f32 %v10064, %v10513
  %v10772 = vadd.f32 %v10065, %v10518
  %v10773 = vadd.f32 %v10066, %v10523
  %v10774 = vadd.f32 %v10067, %v10528
  %v10775 = vadd.f32 %v10068, %v10533
  %v10776 = vadd.f32 %v10069, %v10538
  %v10777 = vadd.f32 %v10070, %v10543
  %v10778 = vadd.f32 %v10071, %v10548
  %v10779 = vadd.f32 %v10072, %v10553
  %v10780 = vadd.f32 %v10073, %v10558
  %v10781 = vadd.f32 %v10074, %v10563
  %v10782 = vadd.f32 %v10075, %v10568
  %v10783 = vadd.f32 %v10076, %v10573
  %v10784 = vadd.f32 %v10077, %v10578
  %v10785 = vadd.f32 %v10078, %v10583
  %v10786 = vadd.f32 %v10079, %v10588
  %v10787 = vadd.f32 %v10080, %v10593
  %v10788 = vadd.f32 %v10081, %v10598
  %v10789 = vadd.f32 %v10082, %v10603
  %v10790 = vadd.f32 %v10083, %v10608
  %v10791 = vadd.f32 %v10084, %v10613
  %v10792 = vadd.f32 %v10085, %v10618
  %v10793 = vadd.f32 %v10086, %v10623
  %v10794 = vadd.f32 %v10087, %v10628
  %v10795 = vadd.f32 %v10088, %v10633
  %v10796 = vadd.f32 %v10089, %v10638
  %v10797 = vadd.f32 %v10090, %v10643
  %v10798 = vadd.f32 %v10091, %v10648
  %v10799 = vadd.f32 %v10092, %v10653
  %v10800 = vadd.f32 %v10093, %v10658
  %v10801 = vadd.f32 %v10094, %v10663
  %v10802 = vadd.f32 %v10095, %v10668
  %v10803 = vadd.f32 %v10096, %v10673
  %v10804 = vadd.f32 %v10097, %v10678
  %v10805 = vadd.f32 %v10098, %v10683
  %v10806 = vadd.f32 %v10099, %v10688
  %v10807 = vadd.f32 %v10100, %v10693
  %v10808 = vadd.f32 %v10101, %v10698
  %v10809 = vadd.f32 %v10102, %v10703
  %v10810 = vadd.f32 %v10103, %v10708
  %v10811 = vadd.f32 %v10104, %v10713
  %v10812 = vadd.f32 %v10105, %v10718
  %v10813 = vadd.f32 %v10106, %v10723
  %v10814 = vadd.f32 %v10107, %v10728
  %v10815 = vadd.f32 %v10108, %v10733
  %v10816 = vadd.f32 %v10109, %v10738
  %v10817 = vadd.f32 %v10110, %v10743
  %v10818 = vadd.f32 %v10111, %v10748
  %v10819 = vadd.f32 %v10112, %v10753
  %s10820 = scalar_lea.vmem [#allocation3], 64
  %v10821 = vld [vmem:[%s10820 + $0x7] sm:$0xff]
  %v10822 = vld [vmem:[%s10820 + $0xf] sm:$0xff]
  %v10823 = vld [vmem:[%s10820 + $0x27] sm:$0xff]
  %v10824 = vld [vmem:[%s10820 + $0x2f] sm:$0xff]
  %v10825 = vld [vmem:[%s10820 + $0x47] sm:$0xff]
  %v10826 = vld [vmem:[%s10820 + $0x4f] sm:$0xff]
  %v10827 = vld [vmem:[%s10820 + $0x67] sm:$0xff]
  %v10828 = vld [vmem:[%s10820 + $0x6f] sm:$0xff]
  %v10829 = vld [vmem:[%s10820 + $0x87] sm:$0xff]
  %v10830 = vld [vmem:[%s10820 + $0x8f] sm:$0xff]
  %v10831 = vld [vmem:[%s10820 + $0xa7] sm:$0xff]
  %v10832 = vld [vmem:[%s10820 + $0xaf] sm:$0xff]
  %v10833 = vld [vmem:[%s10820 + $0xc7] sm:$0xff]
  %v10834 = vld [vmem:[%s10820 + $0xcf] sm:$0xff]
  %v10835 = vld [vmem:[%s10820 + $0xe7] sm:$0xff]
  %v10836 = vld [vmem:[%s10820 + $0xef] sm:$0xff]
  %v10837 = vld [vmem:[%s10820 + $0x107] sm:$0xff]
  %v10838 = vld [vmem:[%s10820 + $0x10f] sm:$0xff]
  %v10839 = vld [vmem:[%s10820 + $0x127] sm:$0xff]
  %v10840 = vld [vmem:[%s10820 + $0x12f] sm:$0xff]
  %v10841 = vld [vmem:[%s10820 + $0x147] sm:$0xff]
  %v10842 = vld [vmem:[%s10820 + $0x14f] sm:$0xff]
  %v10843 = vld [vmem:[%s10820 + $0x167] sm:$0xff]
  %v10844 = vld [vmem:[%s10820 + $0x16f] sm:$0xff]
  %v10845 = vld [vmem:[%s10820 + $0x187] sm:$0xff]
  %v10846 = vld [vmem:[%s10820 + $0x18f] sm:$0xff]
  %v10847 = vld [vmem:[%s10820 + $0x1a7] sm:$0xff]
  %v10848 = vld [vmem:[%s10820 + $0x1af] sm:$0xff]
  %v10849 = vld [vmem:[%s10820 + $0x1c7] sm:$0xff]
  %v10850 = vld [vmem:[%s10820 + $0x1cf] sm:$0xff]
  %v10851 = vld [vmem:[%s10820 + $0x1e7] sm:$0xff]
  %v10852 = vld [vmem:[%s10820 + $0x1ef] sm:$0xff]
  %v10853 = vld [vmem:[%s10820 + $0x247] sm:$0xff]
  %v10854 = vld [vmem:[%s10820 + $0x24f] sm:$0xff]
  %v10855 = vld [vmem:[%s10820 + $0x267] sm:$0xff]
  %v10856 = vld [vmem:[%s10820 + $0x26f] sm:$0xff]
  %v10857 = vld [vmem:[%s10820 + $0x287] sm:$0xff]
  %v10858 = vld [vmem:[%s10820 + $0x28f] sm:$0xff]
  %v10859 = vld [vmem:[%s10820 + $0x2a7] sm:$0xff]
  %v10860 = vld [vmem:[%s10820 + $0x2af] sm:$0xff]
  %v10861 = vld [vmem:[%s10820 + $0x2c7] sm:$0xff]
  %v10862 = vld [vmem:[%s10820 + $0x2cf] sm:$0xff]
  %v10863 = vld [vmem:[%s10820 + $0x2e7] sm:$0xff]
  %v10864 = vld [vmem:[%s10820 + $0x2ef] sm:$0xff]
  %v10865 = vld [vmem:[%s10820 + $0x307] sm:$0xff]
  %v10866 = vld [vmem:[%s10820 + $0x30f] sm:$0xff]
  %v10867 = vld [vmem:[%s10820 + $0x327] sm:$0xff]
  %v10868 = vld [vmem:[%s10820 + $0x32f] sm:$0xff]
  %v10869 = vld [vmem:[%s10820 + $0x347] sm:$0xff]
  %v10870 = vld [vmem:[%s10820 + $0x34f] sm:$0xff]
  %v10871 = vld [vmem:[%s10820 + $0x367] sm:$0xff]
  %v10872 = vld [vmem:[%s10820 + $0x36f] sm:$0xff]
  %v10873 = vld [vmem:[%s10820 + $0x387] sm:$0xff]
  %v10874 = vld [vmem:[%s10820 + $0x38f] sm:$0xff]
  %v10875 = vld [vmem:[%s10820 + $0x3a7] sm:$0xff]
  %v10876 = vld [vmem:[%s10820 + $0x3af] sm:$0xff]
  %v10877 = vld [vmem:[%s10820 + $0x3c7] sm:$0xff]
  %v10878 = vld [vmem:[%s10820 + $0x3cf] sm:$0xff]
  %v10879 = vld [vmem:[%s10820 + $0x3e7] sm:$0xff]
  %v10880 = vld [vmem:[%s10820 + $0x3ef] sm:$0xff]
  %v10881 = vld [vmem:[%s10820 + $0x407] sm:$0xff]
  %v10882 = vld [vmem:[%s10820 + $0x40f] sm:$0xff]
  %v10883 = vld [vmem:[%s10820 + $0x427] sm:$0xff]
  %v10884 = vld [vmem:[%s10820 + $0x42f] sm:$0xff]
  %s10885 = scalar_lea.vmem %s2, 48
  %v10886 = vld [vmem:[%s10885] sm:$0xff]
  %v10888 = vsel %vm6559, %v10821, 0
  %v10891 = vsel %vm6559, %v10822, 0
  %v10894 = vsel %vm6559, %v10823, 0
  %v10897 = vsel %vm6559, %v10824, 0
  %v10900 = vsel %vm6559, %v10825, 0
  %v10903 = vsel %vm6559, %v10826, 0
  %v10906 = vsel %vm6559, %v10827, 0
  %v10909 = vsel %vm6559, %v10828, 0
  %v10912 = vsel %vm6559, %v10829, 0
  %v10915 = vsel %vm6559, %v10830, 0
  %v10918 = vsel %vm6559, %v10831, 0
  %v10921 = vsel %vm6559, %v10832, 0
  %v10924 = vsel %vm6559, %v10833, 0
  %v10927 = vsel %vm6559, %v10834, 0
  %v10930 = vsel %vm6559, %v10835, 0
  %v10933 = vsel %vm6559, %v10836, 0
  %v10936 = vsel %vm6559, %v10837, 0
  %v10939 = vsel %vm6559, %v10838, 0
  %v10942 = vsel %vm6559, %v10839, 0
  %v10945 = vsel %vm6559, %v10840, 0
  %v10948 = vsel %vm6559, %v10841, 0
  %v10951 = vsel %vm6559, %v10842, 0
  %v10954 = vsel %vm6559, %v10843, 0
  %v10957 = vsel %vm6559, %v10844, 0
  %v10960 = vsel %vm6559, %v10845, 0
  %v10963 = vsel %vm6559, %v10846, 0
  %v10966 = vsel %vm6559, %v10847, 0
  %v10969 = vsel %vm6559, %v10848, 0
  %v10972 = vsel %vm6559, %v10849, 0
  %v10975 = vsel %vm6559, %v10850, 0
  %v10978 = vsel %vm6559, %v10851, 0
  %v10981 = vsel %vm6559, %v10852, 0
  %v10984 = vsel %vm6559, %v10853, 0
  %v10987 = vsel %vm6559, %v10854, 0
  %v10990 = vsel %vm6559, %v10855, 0
  %v10993 = vsel %vm6559, %v10856, 0
  %v10996 = vsel %vm6559, %v10857, 0
  %v10999 = vsel %vm6559, %v10858, 0
  %v11002 = vsel %vm6559, %v10859, 0
  %v11005 = vsel %vm6559, %v10860, 0
  %v11008 = vsel %vm6559, %v10861, 0
  %v11011 = vsel %vm6559, %v10862, 0
  %v11014 = vsel %vm6559, %v10863, 0
  %v11017 = vsel %vm6559, %v10864, 0
  %v11020 = vsel %vm6559, %v10865, 0
  %v11023 = vsel %vm6559, %v10866, 0
  %v11026 = vsel %vm6559, %v10867, 0
  %v11029 = vsel %vm6559, %v10868, 0
  %v11032 = vsel %vm6559, %v10869, 0
  %v11035 = vsel %vm6559, %v10870, 0
  %v11038 = vsel %vm6559, %v10871, 0
  %v11041 = vsel %vm6559, %v10872, 0
  %v11044 = vsel %vm6559, %v10873, 0
  %v11047 = vsel %vm6559, %v10874, 0
  %v11050 = vsel %vm6559, %v10875, 0
  %v11053 = vsel %vm6559, %v10876, 0
  %v11056 = vsel %vm6559, %v10877, 0
  %v11059 = vsel %vm6559, %v10878, 0
  %v11062 = vsel %vm6559, %v10879, 0
  %v11065 = vsel %vm6559, %v10880, 0
  %v11068 = vsel %vm6559, %v10881, 0
  %v11071 = vsel %vm6559, %v10882, 0
  %v11074 = vsel %vm6559, %v10883, 0
  %v11077 = vsel %vm6559, %v10884, 0
  %11079 = vmatprep.subr.mxu0 0.0
  %11080 = vmatpush1.msra.mxu0 %v10886
  %11081 = vmatprep.subr.mxu0 0.0
  %11082 = vmatpush1.msra.mxu0 0.0
  %11083 = vmatprep.subr.mxu0 0.0
  %11084 = vmatpush1.msra.mxu0 0.0
  %11085 = vmatprep.subr.mxu0 0.0
  %11086 = vmatpush1.msra.mxu0 0.0
  %11087 = vmatprep.subr.mxu0 0.0
  %11088 = vmatpush1.msra.mxu0 0.0
  %11089 = vmatprep.subr.mxu0 0.0
  %11090 = vmatpush1.msra.mxu0 0.0
  %11091 = vmatprep.subr.mxu0 0.0
  %11092 = vmatpush1.msra.mxu0 0.0
  %11093 = vmatprep.subr.mxu0 0.0
  %11094 = vmatpush1.msra.mxu0 0.0
  %11095 = vmatprep.subr.mxu0 0.0
  %11096 = vmatpush1.msra.mxu0 0.0
  %11097 = vmatprep.subr.mxu0 0.0
  %11098 = vmatpush1.msra.mxu0 0.0
  %11099 = vmatprep.subr.mxu0 0.0
  %11100 = vmatpush1.msra.mxu0 0.0
  %11101 = vmatprep.subr.mxu0 0.0
  %11102 = vmatpush1.msra.mxu0 0.0
  %11103 = vmatprep.subr.mxu0 0.0
  %11104 = vmatpush1.msra.mxu0 0.0
  %11105 = vmatprep.subr.mxu0 0.0
  %11106 = vmatpush1.msra.mxu0 0.0
  %11107 = vmatprep.subr.mxu0 0.0
  %11108 = vmatpush1.msra.mxu0 0.0
  %11109 = vmatprep.subr.mxu0 0.0
  %11110 = vmatpush1.msra.mxu0 0.0
  %11111 = vmatprep.subr.mxu0 0.0
  %11112 = vmatpush1.msra.mxu0 0.0
  %11113 = vmatprep.subr.mxu0 0.0
  %11114 = vmatpush1.msra.mxu0 0.0
  %11115 = vmatprep.subr.mxu0 0.0
  %11116 = vmatpush1.msra.mxu0 0.0
  %11117 = vmatprep.subr.mxu0 0.0
  %11118 = vmatpush1.msra.mxu0 0.0
  %11119 = vmatprep.subr.mxu0 0.0
  %11120 = vmatpush1.msra.mxu0 0.0
  %11121 = vmatprep.subr.mxu0 0.0
  %11122 = vmatpush1.msra.mxu0 0.0
  %11123 = vmatprep.subr.mxu0 0.0
  %11124 = vmatpush1.msra.mxu0 0.0
  %11125 = vmatprep.subr.mxu0 0.0
  %11126 = vmatpush1.msra.mxu0 0.0
  %11127 = vmatprep.subr.mxu0 0.0
  %11128 = vmatpush1.msra.mxu0 0.0
  %11129 = vmatprep.subr.mxu0 0.0
  %11130 = vmatpush1.msra.mxu0 0.0
  %11131 = vmatprep.subr.mxu0 0.0
  %11132 = vmatpush1.msra.mxu0 0.0
  %11133 = vmatprep.subr.mxu0 0.0
  %11134 = vmatpush1.msra.mxu0 0.0
  %11135 = vmatprep.subr.mxu0 0.0
  %11136 = vmatpush1.msra.mxu0 0.0
  %11137 = vmatprep.subr.mxu0 0.0
  %11138 = vmatpush1.msra.mxu0 0.0
  %11139 = vmatprep.subr.mxu0 0.0
  %11140 = vmatpush1.msra.mxu0 0.0
  %11141 = vmatprep.subr.mxu0 0.0
  %11142 = vmatpush1.msra.mxu0 0.0
  %11143 = vmatprep.mubr.f32.mxu0 0.0
  %11144 = vmatmul.mubr.f32.gmra.mrb[0].mxu0 %v10888
  %v11145 = vpop.f32.mrb[0].mxu0
  %v11146 = vadd.f32 0.0, %v11145
  %v11147 = vpop.f32.mrb[0].mxu0
  %11148 = vmatprep.mubr.f32.mxu0 0.0
  %11149 = vmatmul.mubr.f32.gmra.mrb[0].mxu0 %v10891
  %v11150 = vpop.f32.mrb[0].mxu0
  %v11151 = vadd.f32 0.0, %v11150
  %v11152 = vpop.f32.mrb[0].mxu0
  %11153 = vmatprep.mubr.f32.mxu0 0.0
  %11154 = vmatmul.mubr.f32.gmra.mrb[0].mxu0 %v10894
  %v11155 = vpop.f32.mrb[0].mxu0
  %v11156 = vadd.f32 0.0, %v11155
  %v11157 = vpop.f32.mrb[0].mxu0
  %11158 = vmatprep.mubr.f32.mxu0 0.0
  %11159 = vmatmul.mubr.f32.gmra.mrb[0].mxu0 %v10897
  %v11160 = vpop.f32.mrb[0].mxu0
  %v11161 = vadd.f32 0.0, %v11160
  %v11162 = vpop.f32.mrb[0].mxu0
  %11163 = vmatprep.mubr.f32.mxu0 0.0
  %11164 = vmatmul.mubr.f32.gmra.mrb[0].mxu0 %v10900
  %v11165 = vpop.f32.mrb[0].mxu0
  %v11166 = vadd.f32 0.0, %v11165
  %v11167 = vpop.f32.mrb[0].mxu0
  %11168 = vmatprep.mubr.f32.mxu0 0.0
  %11169 = vmatmul.mubr.f32.gmra.mrb[0].mxu0 %v10903
  %v11170 = vpop.f32.mrb[0].mxu0
  %v11171 = vadd.f32 0.0, %v11170
  %v11172 = vpop.f32.mrb[0].mxu0
  %11173 = vmatprep.mubr.f32.mxu0 0.0
  %11174 = vmatmul.mubr.f32.gmra.mrb[0].mxu0 %v10906
  %v11175 = vpop.f32.mrb[0].mxu0
  %v11176 = vadd.f32 0.0, %v11175
  %v11177 = vpop.f32.mrb[0].mxu0
  %11178 = vmatprep.mubr.f32.mxu0 0.0
  %11179 = vmatmul.mubr.f32.gmra.mrb[0].mxu0 %v10909
  %v11180 = vpop.f32.mrb[0].mxu0
  %v11181 = vadd.f32 0.0, %v11180
  %v11182 = vpop.f32.mrb[0].mxu0
  %11183 = vmatprep.mubr.f32.mxu0 0.0
  %11184 = vmatmul.mubr.f32.gmra.mrb[0].mxu0 %v10912
  %v11185 = vpop.f32.mrb[0].mxu0
  %v11186 = vadd.f32 0.0, %v11185
  %v11187 = vpop.f32.mrb[0].mxu0
  %11188 = vmatprep.mubr.f32.mxu0 0.0
  %11189 = vmatmul.mubr.f32.gmra.mrb[0].mxu0 %v10915
  %v11190 = vpop.f32.mrb[0].mxu0
  %v11191 = vadd.f32 0.0, %v11190
  %v11192 = vpop.f32.mrb[0].mxu0
  %11193 = vmatprep.mubr.f32.mxu0 0.0
  %11194 = vmatmul.mubr.f32.gmra.mrb[0].mxu0 %v10918
  %v11195 = vpop.f32.mrb[0].mxu0
  %v11196 = vadd.f32 0.0, %v11195
  %v11197 = vpop.f32.mrb[0].mxu0
  %11198 = vmatprep.mubr.f32.mxu0 0.0
  %11199 = vmatmul.mubr.f32.gmra.mrb[0].mxu0 %v10921
  %v11200 = vpop.f32.mrb[0].mxu0
  %v11201 = vadd.f32 0.0, %v11200
  %v11202 = vpop.f32.mrb[0].mxu0
  %11203 = vmatprep.mubr.f32.mxu0 0.0
  %11204 = vmatmul.mubr.f32.gmra.mrb[0].mxu0 %v10924
  %v11205 = vpop.f32.mrb[0].mxu0
  %v11206 = vadd.f32 0.0, %v11205
  %v11207 = vpop.f32.mrb[0].mxu0
  %11208 = vmatprep.mubr.f32.mxu0 0.0
  %11209 = vmatmul.mubr.f32.gmra.mrb[0].mxu0 %v10927
  %v11210 = vpop.f32.mrb[0].mxu0
  %v11211 = vadd.f32 0.0, %v11210
  %v11212 = vpop.f32.mrb[0].mxu0
  %11213 = vmatprep.mubr.f32.mxu0 0.0
  %11214 = vmatmul.mubr.f32.gmra.mrb[0].mxu0 %v10930
  %v11215 = vpop.f32.mrb[0].mxu0
  %v11216 = vadd.f32 0.0, %v11215
  %v11217 = vpop.f32.mrb[0].mxu0
  %11218 = vmatprep.mubr.f32.mxu0 0.0
  %11219 = vmatmul.mubr.f32.gmra.mrb[0].mxu0 %v10933
  %v11220 = vpop.f32.mrb[0].mxu0
  %v11221 = vadd.f32 0.0, %v11220
  %v11222 = vpop.f32.mrb[0].mxu0
  %11223 = vmatprep.mubr.f32.mxu0 0.0
  %11224 = vmatmul.mubr.f32.gmra.mrb[0].mxu0 %v10936
  %v11225 = vpop.f32.mrb[0].mxu0
  %v11226 = vadd.f32 0.0, %v11225
  %v11227 = vpop.f32.mrb[0].mxu0
  %11228 = vmatprep.mubr.f32.mxu0 0.0
  %11229 = vmatmul.mubr.f32.gmra.mrb[0].mxu0 %v10939
  %v11230 = vpop.f32.mrb[0].mxu0
  %v11231 = vadd.f32 0.0, %v11230
  %v11232 = vpop.f32.mrb[0].mxu0
  %11233 = vmatprep.mubr.f32.mxu0 0.0
  %11234 = vmatmul.mubr.f32.gmra.mrb[0].mxu0 %v10942
  %v11235 = vpop.f32.mrb[0].mxu0
  %v11236 = vadd.f32 0.0, %v11235
  %v11237 = vpop.f32.mrb[0].mxu0
  %11238 = vmatprep.mubr.f32.mxu0 0.0
  %11239 = vmatmul.mubr.f32.gmra.mrb[0].mxu0 %v10945
  %v11240 = vpop.f32.mrb[0].mxu0
  %v11241 = vadd.f32 0.0, %v11240
  %v11242 = vpop.f32.mrb[0].mxu0
  %11243 = vmatprep.mubr.f32.mxu0 0.0
  %11244 = vmatmul.mubr.f32.gmra.mrb[0].mxu0 %v10948
  %v11245 = vpop.f32.mrb[0].mxu0
  %v11246 = vadd.f32 0.0, %v11245
  %v11247 = vpop.f32.mrb[0].mxu0
  %11248 = vmatprep.mubr.f32.mxu0 0.0
  %11249 = vmatmul.mubr.f32.gmra.mrb[0].mxu0 %v10951
  %v11250 = vpop.f32.mrb[0].mxu0
  %v11251 = vadd.f32 0.0, %v11250
  %v11252 = vpop.f32.mrb[0].mxu0
  %11253 = vmatprep.mubr.f32.mxu0 0.0
  %11254 = vmatmul.mubr.f32.gmra.mrb[0].mxu0 %v10954
  %v11255 = vpop.f32.mrb[0].mxu0
  %v11256 = vadd.f32 0.0, %v11255
  %v11257 = vpop.f32.mrb[0].mxu0
  %11258 = vmatprep.mubr.f32.mxu0 0.0
  %11259 = vmatmul.mubr.f32.gmra.mrb[0].mxu0 %v10957
  %v11260 = vpop.f32.mrb[0].mxu0
  %v11261 = vadd.f32 0.0, %v11260
  %v11262 = vpop.f32.mrb[0].mxu0
  %11263 = vmatprep.mubr.f32.mxu0 0.0
  %11264 = vmatmul.mubr.f32.gmra.mrb[0].mxu0 %v10960
  %v11265 = vpop.f32.mrb[0].mxu0
  %v11266 = vadd.f32 0.0, %v11265
  %v11267 = vpop.f32.mrb[0].mxu0
  %11268 = vmatprep.mubr.f32.mxu0 0.0
  %11269 = vmatmul.mubr.f32.gmra.mrb[0].mxu0 %v10963
  %v11270 = vpop.f32.mrb[0].mxu0
  %v11271 = vadd.f32 0.0, %v11270
  %v11272 = vpop.f32.mrb[0].mxu0
  %11273 = vmatprep.mubr.f32.mxu0 0.0
  %11274 = vmatmul.mubr.f32.gmra.mrb[0].mxu0 %v10966
  %v11275 = vpop.f32.mrb[0].mxu0
  %v11276 = vadd.f32 0.0, %v11275
  %v11277 = vpop.f32.mrb[0].mxu0
  %11278 = vmatprep.mubr.f32.mxu0 0.0
  %11279 = vmatmul.mubr.f32.gmra.mrb[0].mxu0 %v10969
  %v11280 = vpop.f32.mrb[0].mxu0
  %v11281 = vadd.f32 0.0, %v11280
  %v11282 = vpop.f32.mrb[0].mxu0
  %11283 = vmatprep.mubr.f32.mxu0 0.0
  %11284 = vmatmul.mubr.f32.gmra.mrb[0].mxu0 %v10972
  %v11285 = vpop.f32.mrb[0].mxu0
  %v11286 = vadd.f32 0.0, %v11285
  %v11287 = vpop.f32.mrb[0].mxu0
  %11288 = vmatprep.mubr.f32.mxu0 0.0
  %11289 = vmatmul.mubr.f32.gmra.mrb[0].mxu0 %v10975
  %v11290 = vpop.f32.mrb[0].mxu0
  %v11291 = vadd.f32 0.0, %v11290
  %v11292 = vpop.f32.mrb[0].mxu0
  %11293 = vmatprep.mubr.f32.mxu0 0.0
  %11294 = vmatmul.mubr.f32.gmra.mrb[0].mxu0 %v10978
  %v11295 = vpop.f32.mrb[0].mxu0
  %v11296 = vadd.f32 0.0, %v11295
  %v11297 = vpop.f32.mrb[0].mxu0
  %11298 = vmatprep.mubr.f32.mxu0 0.0
  %11299 = vmatmul.mubr.f32.gmra.mrb[0].mxu0 %v10981
  %v11300 = vpop.f32.mrb[0].mxu0
  %v11301 = vadd.f32 0.0, %v11300
  %v11302 = vpop.f32.mrb[0].mxu0
  %11303 = vmatprep.mubr.f32.mxu0 0.0
  %11304 = vmatmul.mubr.f32.gmra.mrb[0].mxu0 %v10984
  %v11305 = vpop.f32.mrb[0].mxu0
  %v11306 = vadd.f32 0.0, %v11305
  %v11307 = vpop.f32.mrb[0].mxu0
  %11308 = vmatprep.mubr.f32.mxu0 0.0
  %11309 = vmatmul.mubr.f32.gmra.mrb[0].mxu0 %v10987
  %v11310 = vpop.f32.mrb[0].mxu0
  %v11311 = vadd.f32 0.0, %v11310
  %v11312 = vpop.f32.mrb[0].mxu0
  %11313 = vmatprep.mubr.f32.mxu0 0.0
  %11314 = vmatmul.mubr.f32.gmra.mrb[0].mxu0 %v10990
  %v11315 = vpop.f32.mrb[0].mxu0
  %v11316 = vadd.f32 0.0, %v11315
  %v11317 = vpop.f32.mrb[0].mxu0
  %11318 = vmatprep.mubr.f32.mxu0 0.0
  %11319 = vmatmul.mubr.f32.gmra.mrb[0].mxu0 %v10993
  %v11320 = vpop.f32.mrb[0].mxu0
  %v11321 = vadd.f32 0.0, %v11320
  %v11322 = vpop.f32.mrb[0].mxu0
  %11323 = vmatprep.mubr.f32.mxu0 0.0
  %11324 = vmatmul.mubr.f32.gmra.mrb[0].mxu0 %v10996
  %v11325 = vpop.f32.mrb[0].mxu0
  %v11326 = vadd.f32 0.0, %v11325
  %v11327 = vpop.f32.mrb[0].mxu0
  %11328 = vmatprep.mubr.f32.mxu0 0.0
  %11329 = vmatmul.mubr.f32.gmra.mrb[0].mxu0 %v10999
  %v11330 = vpop.f32.mrb[0].mxu0
  %v11331 = vadd.f32 0.0, %v11330
  %v11332 = vpop.f32.mrb[0].mxu0
  %11333 = vmatprep.mubr.f32.mxu0 0.0
  %11334 = vmatmul.mubr.f32.gmra.mrb[0].mxu0 %v11002
  %v11335 = vpop.f32.mrb[0].mxu0
  %v11336 = vadd.f32 0.0, %v11335
  %v11337 = vpop.f32.mrb[0].mxu0
  %11338 = vmatprep.mubr.f32.mxu0 0.0
  %11339 = vmatmul.mubr.f32.gmra.mrb[0].mxu0 %v11005
  %v11340 = vpop.f32.mrb[0].mxu0
  %v11341 = vadd.f32 0.0, %v11340
  %v11342 = vpop.f32.mrb[0].mxu0
  %11343 = vmatprep.mubr.f32.mxu0 0.0
  %11344 = vmatmul.mubr.f32.gmra.mrb[0].mxu0 %v11008
  %v11345 = vpop.f32.mrb[0].mxu0
  %v11346 = vadd.f32 0.0, %v11345
  %v11347 = vpop.f32.mrb[0].mxu0
  %11348 = vmatprep.mubr.f32.mxu0 0.0
  %11349 = vmatmul.mubr.f32.gmra.mrb[0].mxu0 %v11011
  %v11350 = vpop.f32.mrb[0].mxu0
  %v11351 = vadd.f32 0.0, %v11350
  %v11352 = vpop.f32.mrb[0].mxu0
  %11353 = vmatprep.mubr.f32.mxu0 0.0
  %11354 = vmatmul.mubr.f32.gmra.mrb[0].mxu0 %v11014
  %v11355 = vpop.f32.mrb[0].mxu0
  %v11356 = vadd.f32 0.0, %v11355
  %v11357 = vpop.f32.mrb[0].mxu0
  %11358 = vmatprep.mubr.f32.mxu0 0.0
  %11359 = vmatmul.mubr.f32.gmra.mrb[0].mxu0 %v11017
  %v11360 = vpop.f32.mrb[0].mxu0
  %v11361 = vadd.f32 0.0, %v11360
  %v11362 = vpop.f32.mrb[0].mxu0
  %11363 = vmatprep.mubr.f32.mxu0 0.0
  %11364 = vmatmul.mubr.f32.gmra.mrb[0].mxu0 %v11020
  %v11365 = vpop.f32.mrb[0].mxu0
  %v11366 = vadd.f32 0.0, %v11365
  %v11367 = vpop.f32.mrb[0].mxu0
  %11368 = vmatprep.mubr.f32.mxu0 0.0
  %11369 = vmatmul.mubr.f32.gmra.mrb[0].mxu0 %v11023
  %v11370 = vpop.f32.mrb[0].mxu0
  %v11371 = vadd.f32 0.0, %v11370
  %v11372 = vpop.f32.mrb[0].mxu0
  %11373 = vmatprep.mubr.f32.mxu0 0.0
  %11374 = vmatmul.mubr.f32.gmra.mrb[0].mxu0 %v11026
  %v11375 = vpop.f32.mrb[0].mxu0
  %v11376 = vadd.f32 0.0, %v11375
  %v11377 = vpop.f32.mrb[0].mxu0
  %11378 = vmatprep.mubr.f32.mxu0 0.0
  %11379 = vmatmul.mubr.f32.gmra.mrb[0].mxu0 %v11029
  %v11380 = vpop.f32.mrb[0].mxu0
  %v11381 = vadd.f32 0.0, %v11380
  %v11382 = vpop.f32.mrb[0].mxu0
  %11383 = vmatprep.mubr.f32.mxu0 0.0
  %11384 = vmatmul.mubr.f32.gmra.mrb[0].mxu0 %v11032
  %v11385 = vpop.f32.mrb[0].mxu0
  %v11386 = vadd.f32 0.0, %v11385
  %v11387 = vpop.f32.mrb[0].mxu0
  %11388 = vmatprep.mubr.f32.mxu0 0.0
  %11389 = vmatmul.mubr.f32.gmra.mrb[0].mxu0 %v11035
  %v11390 = vpop.f32.mrb[0].mxu0
  %v11391 = vadd.f32 0.0, %v11390
  %v11392 = vpop.f32.mrb[0].mxu0
  %11393 = vmatprep.mubr.f32.mxu0 0.0
  %11394 = vmatmul.mubr.f32.gmra.mrb[0].mxu0 %v11038
  %v11395 = vpop.f32.mrb[0].mxu0
  %v11396 = vadd.f32 0.0, %v11395
  %v11397 = vpop.f32.mrb[0].mxu0
  %11398 = vmatprep.mubr.f32.mxu0 0.0
  %11399 = vmatmul.mubr.f32.gmra.mrb[0].mxu0 %v11041
  %v11400 = vpop.f32.mrb[0].mxu0
  %v11401 = vadd.f32 0.0, %v11400
  %v11402 = vpop.f32.mrb[0].mxu0
  %11403 = vmatprep.mubr.f32.mxu0 0.0
  %11404 = vmatmul.mubr.f32.gmra.mrb[0].mxu0 %v11044
  %v11405 = vpop.f32.mrb[0].mxu0
  %v11406 = vadd.f32 0.0, %v11405
  %v11407 = vpop.f32.mrb[0].mxu0
  %11408 = vmatprep.mubr.f32.mxu0 0.0
  %11409 = vmatmul.mubr.f32.gmra.mrb[0].mxu0 %v11047
  %v11410 = vpop.f32.mrb[0].mxu0
  %v11411 = vadd.f32 0.0, %v11410
  %v11412 = vpop.f32.mrb[0].mxu0
  %11413 = vmatprep.mubr.f32.mxu0 0.0
  %11414 = vmatmul.mubr.f32.gmra.mrb[0].mxu0 %v11050
  %v11415 = vpop.f32.mrb[0].mxu0
  %v11416 = vadd.f32 0.0, %v11415
  %v11417 = vpop.f32.mrb[0].mxu0
  %11418 = vmatprep.mubr.f32.mxu0 0.0
  %11419 = vmatmul.mubr.f32.gmra.mrb[0].mxu0 %v11053
  %v11420 = vpop.f32.mrb[0].mxu0
  %v11421 = vadd.f32 0.0, %v11420
  %v11422 = vpop.f32.mrb[0].mxu0
  %11423 = vmatprep.mubr.f32.mxu0 0.0
  %11424 = vmatmul.mubr.f32.gmra.mrb[0].mxu0 %v11056
  %v11425 = vpop.f32.mrb[0].mxu0
  %v11426 = vadd.f32 0.0, %v11425
  %v11427 = vpop.f32.mrb[0].mxu0
  %11428 = vmatprep.mubr.f32.mxu0 0.0
  %11429 = vmatmul.mubr.f32.gmra.mrb[0].mxu0 %v11059
  %v11430 = vpop.f32.mrb[0].mxu0
  %v11431 = vadd.f32 0.0, %v11430
  %v11432 = vpop.f32.mrb[0].mxu0
  %11433 = vmatprep.mubr.f32.mxu0 0.0
  %11434 = vmatmul.mubr.f32.gmra.mrb[0].mxu0 %v11062
  %v11435 = vpop.f32.mrb[0].mxu0
  %v11436 = vadd.f32 0.0, %v11435
  %v11437 = vpop.f32.mrb[0].mxu0
  %11438 = vmatprep.mubr.f32.mxu0 0.0
  %11439 = vmatmul.mubr.f32.gmra.mrb[0].mxu0 %v11065
  %v11440 = vpop.f32.mrb[0].mxu0
  %v11441 = vadd.f32 0.0, %v11440
  %v11442 = vpop.f32.mrb[0].mxu0
  %11443 = vmatprep.mubr.f32.mxu0 0.0
  %11444 = vmatmul.mubr.f32.gmra.mrb[0].mxu0 %v11068
  %v11445 = vpop.f32.mrb[0].mxu0
  %v11446 = vadd.f32 0.0, %v11445
  %v11447 = vpop.f32.mrb[0].mxu0
  %11448 = vmatprep.mubr.f32.mxu0 0.0
  %11449 = vmatmul.mubr.f32.gmra.mrb[0].mxu0 %v11071
  %v11450 = vpop.f32.mrb[0].mxu0
  %v11451 = vadd.f32 0.0, %v11450
  %v11452 = vpop.f32.mrb[0].mxu0
  %11453 = vmatprep.mubr.f32.mxu0 0.0
  %11454 = vmatmul.mubr.f32.gmra.mrb[0].mxu0 %v11074
  %v11455 = vpop.f32.mrb[0].mxu0
  %v11456 = vadd.f32 0.0, %v11455
  %v11457 = vpop.f32.mrb[0].mxu0
  %11458 = vmatprep.mubr.f32.mxu0 0.0
  %11459 = vmatmul.mubr.f32.gmra.mrb[0].mxu0 %v11077
  %v11460 = vpop.f32.mrb[0].mxu0
  %v11461 = vadd.f32 0.0, %v11460
  %v11462 = vpop.f32.mrb[0].mxu0
  %11463 = vdwg.mxu0
  %v11464 = vadd.f32 %v10756, %v11146
  %v11465 = vadd.f32 %v10757, %v11151
  %v11466 = vadd.f32 %v10758, %v11156
  %v11467 = vadd.f32 %v10759, %v11161
  %v11468 = vadd.f32 %v10760, %v11166
  %v11469 = vadd.f32 %v10761, %v11171
  %v11470 = vadd.f32 %v10762, %v11176
  %v11471 = vadd.f32 %v10763, %v11181
  %v11472 = vadd.f32 %v10764, %v11186
  %v11473 = vadd.f32 %v10765, %v11191
  %v11474 = vadd.f32 %v10766, %v11196
  %v11475 = vadd.f32 %v10767, %v11201
  %v11476 = vadd.f32 %v10768, %v11206
  %v11477 = vadd.f32 %v10769, %v11211
  %v11478 = vadd.f32 %v10770, %v11216
  %v11479 = vadd.f32 %v10771, %v11221
  %v11480 = vadd.f32 %v10772, %v11226
  %v11481 = vadd.f32 %v10773, %v11231
  %v11482 = vadd.f32 %v10774, %v11236
  %v11483 = vadd.f32 %v10775, %v11241
  %v11484 = vadd.f32 %v10776, %v11246
  %v11485 = vadd.f32 %v10777, %v11251
  %v11486 = vadd.f32 %v10778, %v11256
  %v11487 = vadd.f32 %v10779, %v11261
  %v11488 = vadd.f32 %v10780, %v11266
  %v11489 = vadd.f32 %v10781, %v11271
  %v11490 = vadd.f32 %v10782, %v11276
  %v11491 = vadd.f32 %v10783, %v11281
  %v11492 = vadd.f32 %v10784, %v11286
  %v11493 = vadd.f32 %v10785, %v11291
  %v11494 = vadd.f32 %v10786, %v11296
  %v11495 = vadd.f32 %v10787, %v11301
  %v11496 = vadd.f32 %v10788, %v11306
  %v11497 = vadd.f32 %v10789, %v11311
  %v11498 = vadd.f32 %v10790, %v11316
  %v11499 = vadd.f32 %v10791, %v11321
  %v11500 = vadd.f32 %v10792, %v11326
  %v11501 = vadd.f32 %v10793, %v11331
  %v11502 = vadd.f32 %v10794, %v11336
  %v11503 = vadd.f32 %v10795, %v11341
  %v11504 = vadd.f32 %v10796, %v11346
  %v11505 = vadd.f32 %v10797, %v11351
  %v11506 = vadd.f32 %v10798, %v11356
  %v11507 = vadd.f32 %v10799, %v11361
  %v11508 = vadd.f32 %v10800, %v11366
  %v11509 = vadd.f32 %v10801, %v11371
  %v11510 = vadd.f32 %v10802, %v11376
  %v11511 = vadd.f32 %v10803, %v11381
  %v11512 = vadd.f32 %v10804, %v11386
  %v11513 = vadd.f32 %v10805, %v11391
  %v11514 = vadd.f32 %v10806, %v11396
  %v11515 = vadd.f32 %v10807, %v11401
  %v11516 = vadd.f32 %v10808, %v11406
  %v11517 = vadd.f32 %v10809, %v11411
  %v11518 = vadd.f32 %v10810, %v11416
  %v11519 = vadd.f32 %v10811, %v11421
  %v11520 = vadd.f32 %v10812, %v11426
  %v11521 = vadd.f32 %v10813, %v11431
  %v11522 = vadd.f32 %v10814, %v11436
  %v11523 = vadd.f32 %v10815, %v11441
  %v11524 = vadd.f32 %v10816, %v11446
  %v11525 = vadd.f32 %v10817, %v11451
  %v11526 = vadd.f32 %v10818, %v11456
  %v11527 = vadd.f32 %v10819, %v11461
  %v11528 = vld [vmem:[%s10820 + $0x8] sm:$0xff]
  %v11529 = vld [vmem:[%s10820 + $0x10] sm:$0xff]
  %v11530 = vld [vmem:[%s10820 + $0x28] sm:$0xff]
  %v11531 = vld [vmem:[%s10820 + $0x30] sm:$0xff]
  %v11532 = vld [vmem:[%s10820 + $0x48] sm:$0xff]
  %v11533 = vld [vmem:[%s10820 + $0x50] sm:$0xff]
  %v11534 = vld [vmem:[%s10820 + $0x68] sm:$0xff]
  %v11535 = vld [vmem:[%s10820 + $0x70] sm:$0xff]
  %v11536 = vld [vmem:[%s10820 + $0x88] sm:$0xff]
  %v11537 = vld [vmem:[%s10820 + $0x90] sm:$0xff]
  %v11538 = vld [vmem:[%s10820 + $0xa8] sm:$0xff]
  %v11539 = vld [vmem:[%s10820 + $0xb0] sm:$0xff]
  %v11540 = vld [vmem:[%s10820 + $0xc8] sm:$0xff]
  %v11541 = vld [vmem:[%s10820 + $0xd0] sm:$0xff]
  %v11542 = vld [vmem:[%s10820 + $0xe8] sm:$0xff]
  %v11543 = vld [vmem:[%s10820 + $0xf0] sm:$0xff]
  %v11544 = vld [vmem:[%s10820 + $0x108] sm:$0xff]
  %v11545 = vld [vmem:[%s10820 + $0x110] sm:$0xff]
  %v11546 = vld [vmem:[%s10820 + $0x128] sm:$0xff]
  %v11547 = vld [vmem:[%s10820 + $0x130] sm:$0xff]
  %v11548 = vld [vmem:[%s10820 + $0x148] sm:$0xff]
  %v11549 = vld [vmem:[%s10820 + $0x150] sm:$0xff]
  %v11550 = vld [vmem:[%s10820 + $0x168] sm:$0xff]
  %v11551 = vld [vmem:[%s10820 + $0x170] sm:$0xff]
  %v11552 = vld [vmem:[%s10820 + $0x188] sm:$0xff]
  %v11553 = vld [vmem:[%s10820 + $0x190] sm:$0xff]
  %v11554 = vld [vmem:[%s10820 + $0x1a8] sm:$0xff]
  %v11555 = vld [vmem:[%s10820 + $0x1b0] sm:$0xff]
  %v11556 = vld [vmem:[%s10820 + $0x1c8] sm:$0xff]
  %v11557 = vld [vmem:[%s10820 + $0x1d0] sm:$0xff]
  %v11558 = vld [vmem:[%s10820 + $0x1e8] sm:$0xff]
  %v11559 = vld [vmem:[%s10820 + $0x1f0] sm:$0xff]
  %v11560 = vld [vmem:[%s10820 + $0x248] sm:$0xff]
  %v11561 = vld [vmem:[%s10820 + $0x250] sm:$0xff]
  %v11562 = vld [vmem:[%s10820 + $0x268] sm:$0xff]
  %v11563 = vld [vmem:[%s10820 + $0x270] sm:$0xff]
  %v11564 = vld [vmem:[%s10820 + $0x288] sm:$0xff]
  %v11565 = vld [vmem:[%s10820 + $0x290] sm:$0xff]
  %v11566 = vld [vmem:[%s10820 + $0x2a8] sm:$0xff]
  %v11567 = vld [vmem:[%s10820 + $0x2b0] sm:$0xff]
  %v11568 = vld [vmem:[%s10820 + $0x2c8] sm:$0xff]
  %v11569 = vld [vmem:[%s10820 + $0x2d0] sm:$0xff]
  %v11570 = vld [vmem:[%s10820 + $0x2e8] sm:$0xff]
  %v11571 = vld [vmem:[%s10820 + $0x2f0] sm:$0xff]
  %v11572 = vld [vmem:[%s10820 + $0x308] sm:$0xff]
  %v11573 = vld [vmem:[%s10820 + $0x310] sm:$0xff]
  %v11574 = vld [vmem:[%s10820 + $0x328] sm:$0xff]
  %v11575 = vld [vmem:[%s10820 + $0x330] sm:$0xff]
  %v11576 = vld [vmem:[%s10820 + $0x348] sm:$0xff]
  %v11577 = vld [vmem:[%s10820 + $0x350] sm:$0xff]
  %v11578 = vld [vmem:[%s10820 + $0x368] sm:$0xff]
  %v11579 = vld [vmem:[%s10820 + $0x370] sm:$0xff]
  %v11580 = vld [vmem:[%s10820 + $0x388] sm:$0xff]
  %v11581 = vld [vmem:[%s10820 + $0x390] sm:$0xff]
  %v11582 = vld [vmem:[%s10820 + $0x3a8] sm:$0xff]
  %v11583 = vld [vmem:[%s10820 + $0x3b0] sm:$0xff]
  %v11584 = vld [vmem:[%s10820 + $0x3c8] sm:$0xff]
  %v11585 = vld [vmem:[%s10820 + $0x3d0] sm:$0xff]
  %v11586 = vld [vmem:[%s10820 + $0x3e8] sm:$0xff]
  %v11587 = vld [vmem:[%s10820 + $0x3f0] sm:$0xff]
  %v11588 = vld [vmem:[%s10820 + $0x408] sm:$0xff]
  %v11589 = vld [vmem:[%s10820 + $0x410] sm:$0xff]
  %v11590 = vld [vmem:[%s10820 + $0x428] sm:$0xff]
  %v11591 = vld [vmem:[%s10820 + $0x430] sm:$0xff]
  %s11592 = scalar_lea.vmem %s2, 56
  %v11593 = vld [vmem:[%s11592] sm:$0xff]
  %v11595 = vsel %vm6559, %v11528, 0
  %v11598 = vsel %vm6559, %v11529, 0
  %v11601 = vsel %vm6559, %v11530, 0
  %v11604 = vsel %vm6559, %v11531, 0
  %v11607 = vsel %vm6559, %v11532, 0
  %v11610 = vsel %vm6559, %v11533, 0
  %v11613 = vsel %vm6559, %v11534, 0
  %v11616 = vsel %vm6559, %v11535, 0
  %v11619 = vsel %vm6559, %v11536, 0
  %v11622 = vsel %vm6559, %v11537, 0
  %v11625 = vsel %vm6559, %v11538, 0
  %v11628 = vsel %vm6559, %v11539, 0
  %v11631 = vsel %vm6559, %v11540, 0
  %v11634 = vsel %vm6559, %v11541, 0
  %v11637 = vsel %vm6559, %v11542, 0
  %v11640 = vsel %vm6559, %v11543, 0
  %v11643 = vsel %vm6559, %v11544, 0
  %v11646 = vsel %vm6559, %v11545, 0
  %v11649 = vsel %vm6559, %v11546, 0
  %v11652 = vsel %vm6559, %v11547, 0
  %v11655 = vsel %vm6559, %v11548, 0
  %v11658 = vsel %vm6559, %v11549, 0
  %v11661 = vsel %vm6559, %v11550, 0
  %v11664 = vsel %vm6559, %v11551, 0
  %v11667 = vsel %vm6559, %v11552, 0
  %v11670 = vsel %vm6559, %v11553, 0
  %v11673 = vsel %vm6559, %v11554, 0
  %v11676 = vsel %vm6559, %v11555, 0
  %v11679 = vsel %vm6559, %v11556, 0
  %v11682 = vsel %vm6559, %v11557, 0
  %v11685 = vsel %vm6559, %v11558, 0
  %v11688 = vsel %vm6559, %v11559, 0
  %v11691 = vsel %vm6559, %v11560, 0
  %v11694 = vsel %vm6559, %v11561, 0
  %v11697 = vsel %vm6559, %v11562, 0
  %v11700 = vsel %vm6559, %v11563, 0
  %v11703 = vsel %vm6559, %v11564, 0
  %v11706 = vsel %vm6559, %v11565, 0
  %v11709 = vsel %vm6559, %v11566, 0
  %v11712 = vsel %vm6559, %v11567, 0
  %v11715 = vsel %vm6559, %v11568, 0
  %v11718 = vsel %vm6559, %v11569, 0
  %v11721 = vsel %vm6559, %v11570, 0
  %v11724 = vsel %vm6559, %v11571, 0
  %v11727 = vsel %vm6559, %v11572, 0
  %v11730 = vsel %vm6559, %v11573, 0
  %v11733 = vsel %vm6559, %v11574, 0
  %v11736 = vsel %vm6559, %v11575, 0
  %v11739 = vsel %vm6559, %v11576, 0
  %v11742 = vsel %vm6559, %v11577, 0
  %v11745 = vsel %vm6559, %v11578, 0
  %v11748 = vsel %vm6559, %v11579, 0
  %v11751 = vsel %vm6559, %v11580, 0
  %v11754 = vsel %vm6559, %v11581, 0
  %v11757 = vsel %vm6559, %v11582, 0
  %v11760 = vsel %vm6559, %v11583, 0
  %v11763 = vsel %vm6559, %v11584, 0
  %v11766 = vsel %vm6559, %v11585, 0
  %v11769 = vsel %vm6559, %v11586, 0
  %v11772 = vsel %vm6559, %v11587, 0
  %v11775 = vsel %vm6559, %v11588, 0
  %v11778 = vsel %vm6559, %v11589, 0
  %v11781 = vsel %vm6559, %v11590, 0
  %v11784 = vsel %vm6559, %v11591, 0
  %11786 = vmatprep.subr.mxu0 0.0
  %11787 = vmatpush1.msra.mxu0 %v11593
  %11788 = vmatprep.subr.mxu0 0.0
  %11789 = vmatpush1.msra.mxu0 0.0
  %11790 = vmatprep.subr.mxu0 0.0
  %11791 = vmatpush1.msra.mxu0 0.0
  %11792 = vmatprep.subr.mxu0 0.0
  %11793 = vmatpush1.msra.mxu0 0.0
  %11794 = vmatprep.subr.mxu0 0.0
  %11795 = vmatpush1.msra.mxu0 0.0
  %11796 = vmatprep.subr.mxu0 0.0
  %11797 = vmatpush1.msra.mxu0 0.0
  %11798 = vmatprep.subr.mxu0 0.0
  %11799 = vmatpush1.msra.mxu0 0.0
  %11800 = vmatprep.subr.mxu0 0.0
  %11801 = vmatpush1.msra.mxu0 0.0
  %11802 = vmatprep.subr.mxu0 0.0
  %11803 = vmatpush1.msra.mxu0 0.0
  %11804 = vmatprep.subr.mxu0 0.0
  %11805 = vmatpush1.msra.mxu0 0.0
  %11806 = vmatprep.subr.mxu0 0.0
  %11807 = vmatpush1.msra.mxu0 0.0
  %11808 = vmatprep.subr.mxu0 0.0
  %11809 = vmatpush1.msra.mxu0 0.0
  %11810 = vmatprep.subr.mxu0 0.0
  %11811 = vmatpush1.msra.mxu0 0.0
  %11812 = vmatprep.subr.mxu0 0.0
  %11813 = vmatpush1.msra.mxu0 0.0
  %11814 = vmatprep.subr.mxu0 0.0
  %11815 = vmatpush1.msra.mxu0 0.0
  %11816 = vmatprep.subr.mxu0 0.0
  %11817 = vmatpush1.msra.mxu0 0.0
  %11818 = vmatprep.subr.mxu0 0.0
  %11819 = vmatpush1.msra.mxu0 0.0
  %11820 = vmatprep.subr.mxu0 0.0
  %11821 = vmatpush1.msra.mxu0 0.0
  %11822 = vmatprep.subr.mxu0 0.0
  %11823 = vmatpush1.msra.mxu0 0.0
  %11824 = vmatprep.subr.mxu0 0.0
  %11825 = vmatpush1.msra.mxu0 0.0
  %11826 = vmatprep.subr.mxu0 0.0
  %11827 = vmatpush1.msra.mxu0 0.0
  %11828 = vmatprep.subr.mxu0 0.0
  %11829 = vmatpush1.msra.mxu0 0.0
  %11830 = vmatprep.subr.mxu0 0.0
  %11831 = vmatpush1.msra.mxu0 0.0
  %11832 = vmatprep.subr.mxu0 0.0
  %11833 = vmatpush1.msra.mxu0 0.0
  %11834 = vmatprep.subr.mxu0 0.0
  %11835 = vmatpush1.msra.mxu0 0.0
  %11836 = vmatprep.subr.mxu0 0.0
  %11837 = vmatpush1.msra.mxu0 0.0
  %11838 = vmatprep.subr.mxu0 0.0
  %11839 = vmatpush1.msra.mxu0 0.0
  %11840 = vmatprep.subr.mxu0 0.0
  %11841 = vmatpush1.msra.mxu0 0.0
  %11842 = vmatprep.subr.mxu0 0.0
  %11843 = vmatpush1.msra.mxu0 0.0
  %11844 = vmatprep.subr.mxu0 0.0
  %11845 = vmatpush1.msra.mxu0 0.0
  %11846 = vmatprep.subr.mxu0 0.0
  %11847 = vmatpush1.msra.mxu0 0.0
  %11848 = vmatprep.subr.mxu0 0.0
  %11849 = vmatpush1.msra.mxu0 0.0
  %11850 = vmatprep.mubr.f32.mxu0 0.0
  %11851 = vmatmul.mubr.f32.gmra.mrb[0].mxu0 %v11595
  %v11852 = vpop.f32.mrb[0].mxu0
  %v11853 = vadd.f32 0.0, %v11852
  %v11854 = vpop.f32.mrb[0].mxu0
  %11855 = vmatprep.mubr.f32.mxu0 0.0
  %11856 = vmatmul.mubr.f32.gmra.mrb[0].mxu0 %v11598
  %v11857 = vpop.f32.mrb[0].mxu0
  %v11858 = vadd.f32 0.0, %v11857
  %v11859 = vpop.f32.mrb[0].mxu0
  %11860 = vmatprep.mubr.f32.mxu0 0.0
  %11861 = vmatmul.mubr.f32.gmra.mrb[0].mxu0 %v11601
  %v11862 = vpop.f32.mrb[0].mxu0
  %v11863 = vadd.f32 0.0, %v11862
  %v11864 = vpop.f32.mrb[0].mxu0
  %11865 = vmatprep.mubr.f32.mxu0 0.0
  %11866 = vmatmul.mubr.f32.gmra.mrb[0].mxu0 %v11604
  %v11867 = vpop.f32.mrb[0].mxu0
  %v11868 = vadd.f32 0.0, %v11867
  %v11869 = vpop.f32.mrb[0].mxu0
  %11870 = vmatprep.mubr.f32.mxu0 0.0
  %11871 = vmatmul.mubr.f32.gmra.mrb[0].mxu0 %v11607
  %v11872 = vpop.f32.mrb[0].mxu0
  %v11873 = vadd.f32 0.0, %v11872
  %v11874 = vpop.f32.mrb[0].mxu0
  %11875 = vmatprep.mubr.f32.mxu0 0.0
  %11876 = vmatmul.mubr.f32.gmra.mrb[0].mxu0 %v11610
  %v11877 = vpop.f32.mrb[0].mxu0
  %v11878 = vadd.f32 0.0, %v11877
  %v11879 = vpop.f32.mrb[0].mxu0
  %11880 = vmatprep.mubr.f32.mxu0 0.0
  %11881 = vmatmul.mubr.f32.gmra.mrb[0].mxu0 %v11613
  %v11882 = vpop.f32.mrb[0].mxu0
  %v11883 = vadd.f32 0.0, %v11882
  %v11884 = vpop.f32.mrb[0].mxu0
  %11885 = vmatprep.mubr.f32.mxu0 0.0
  %11886 = vmatmul.mubr.f32.gmra.mrb[0].mxu0 %v11616
  %v11887 = vpop.f32.mrb[0].mxu0
  %v11888 = vadd.f32 0.0, %v11887
  %v11889 = vpop.f32.mrb[0].mxu0
  %11890 = vmatprep.mubr.f32.mxu0 0.0
  %11891 = vmatmul.mubr.f32.gmra.mrb[0].mxu0 %v11619
  %v11892 = vpop.f32.mrb[0].mxu0
  %v11893 = vadd.f32 0.0, %v11892
  %v11894 = vpop.f32.mrb[0].mxu0
  %11895 = vmatprep.mubr.f32.mxu0 0.0
  %11896 = vmatmul.mubr.f32.gmra.mrb[0].mxu0 %v11622
  %v11897 = vpop.f32.mrb[0].mxu0
  %v11898 = vadd.f32 0.0, %v11897
  %v11899 = vpop.f32.mrb[0].mxu0
  %11900 = vmatprep.mubr.f32.mxu0 0.0
  %11901 = vmatmul.mubr.f32.gmra.mrb[0].mxu0 %v11625
  %v11902 = vpop.f32.mrb[0].mxu0
  %v11903 = vadd.f32 0.0, %v11902
  %v11904 = vpop.f32.mrb[0].mxu0
  %11905 = vmatprep.mubr.f32.mxu0 0.0
  %11906 = vmatmul.mubr.f32.gmra.mrb[0].mxu0 %v11628
  %v11907 = vpop.f32.mrb[0].mxu0
  %v11908 = vadd.f32 0.0, %v11907
  %v11909 = vpop.f32.mrb[0].mxu0
  %11910 = vmatprep.mubr.f32.mxu0 0.0
  %11911 = vmatmul.mubr.f32.gmra.mrb[0].mxu0 %v11631
  %v11912 = vpop.f32.mrb[0].mxu0
  %v11913 = vadd.f32 0.0, %v11912
  %v11914 = vpop.f32.mrb[0].mxu0
  %11915 = vmatprep.mubr.f32.mxu0 0.0
  %11916 = vmatmul.mubr.f32.gmra.mrb[0].mxu0 %v11634
  %v11917 = vpop.f32.mrb[0].mxu0
  %v11918 = vadd.f32 0.0, %v11917
  %v11919 = vpop.f32.mrb[0].mxu0
  %11920 = vmatprep.mubr.f32.mxu0 0.0
  %11921 = vmatmul.mubr.f32.gmra.mrb[0].mxu0 %v11637
  %v11922 = vpop.f32.mrb[0].mxu0
  %v11923 = vadd.f32 0.0, %v11922
  %v11924 = vpop.f32.mrb[0].mxu0
  %11925 = vmatprep.mubr.f32.mxu0 0.0
  %11926 = vmatmul.mubr.f32.gmra.mrb[0].mxu0 %v11640
  %v11927 = vpop.f32.mrb[0].mxu0
  %v11928 = vadd.f32 0.0, %v11927
  %v11929 = vpop.f32.mrb[0].mxu0
  %11930 = vmatprep.mubr.f32.mxu0 0.0
  %11931 = vmatmul.mubr.f32.gmra.mrb[0].mxu0 %v11643
  %v11932 = vpop.f32.mrb[0].mxu0
  %v11933 = vadd.f32 0.0, %v11932
  %v11934 = vpop.f32.mrb[0].mxu0
  %11935 = vmatprep.mubr.f32.mxu0 0.0
  %11936 = vmatmul.mubr.f32.gmra.mrb[0].mxu0 %v11646
  %v11937 = vpop.f32.mrb[0].mxu0
  %v11938 = vadd.f32 0.0, %v11937
  %v11939 = vpop.f32.mrb[0].mxu0
  %11940 = vmatprep.mubr.f32.mxu0 0.0
  %11941 = vmatmul.mubr.f32.gmra.mrb[0].mxu0 %v11649
  %v11942 = vpop.f32.mrb[0].mxu0
  %v11943 = vadd.f32 0.0, %v11942
  %v11944 = vpop.f32.mrb[0].mxu0
  %11945 = vmatprep.mubr.f32.mxu0 0.0
  %11946 = vmatmul.mubr.f32.gmra.mrb[0].mxu0 %v11652
  %v11947 = vpop.f32.mrb[0].mxu0
  %v11948 = vadd.f32 0.0, %v11947
  %v11949 = vpop.f32.mrb[0].mxu0
  %11950 = vmatprep.mubr.f32.mxu0 0.0
  %11951 = vmatmul.mubr.f32.gmra.mrb[0].mxu0 %v11655
  %v11952 = vpop.f32.mrb[0].mxu0
  %v11953 = vadd.f32 0.0, %v11952
  %v11954 = vpop.f32.mrb[0].mxu0
  %11955 = vmatprep.mubr.f32.mxu0 0.0
  %11956 = vmatmul.mubr.f32.gmra.mrb[0].mxu0 %v11658
  %v11957 = vpop.f32.mrb[0].mxu0
  %v11958 = vadd.f32 0.0, %v11957
  %v11959 = vpop.f32.mrb[0].mxu0
  %11960 = vmatprep.mubr.f32.mxu0 0.0
  %11961 = vmatmul.mubr.f32.gmra.mrb[0].mxu0 %v11661
  %v11962 = vpop.f32.mrb[0].mxu0
  %v11963 = vadd.f32 0.0, %v11962
  %v11964 = vpop.f32.mrb[0].mxu0
  %11965 = vmatprep.mubr.f32.mxu0 0.0
  %11966 = vmatmul.mubr.f32.gmra.mrb[0].mxu0 %v11664
  %v11967 = vpop.f32.mrb[0].mxu0
  %v11968 = vadd.f32 0.0, %v11967
  %v11969 = vpop.f32.mrb[0].mxu0
  %11970 = vmatprep.mubr.f32.mxu0 0.0
  %11971 = vmatmul.mubr.f32.gmra.mrb[0].mxu0 %v11667
  %v11972 = vpop.f32.mrb[0].mxu0
  %v11973 = vadd.f32 0.0, %v11972
  %v11974 = vpop.f32.mrb[0].mxu0
  %11975 = vmatprep.mubr.f32.mxu0 0.0
  %11976 = vmatmul.mubr.f32.gmra.mrb[0].mxu0 %v11670
  %v11977 = vpop.f32.mrb[0].mxu0
  %v11978 = vadd.f32 0.0, %v11977
  %v11979 = vpop.f32.mrb[0].mxu0
  %11980 = vmatprep.mubr.f32.mxu0 0.0
  %11981 = vmatmul.mubr.f32.gmra.mrb[0].mxu0 %v11673
  %v11982 = vpop.f32.mrb[0].mxu0
  %v11983 = vadd.f32 0.0, %v11982
  %v11984 = vpop.f32.mrb[0].mxu0
  %11985 = vmatprep.mubr.f32.mxu0 0.0
  %11986 = vmatmul.mubr.f32.gmra.mrb[0].mxu0 %v11676
  %v11987 = vpop.f32.mrb[0].mxu0
  %v11988 = vadd.f32 0.0, %v11987
  %v11989 = vpop.f32.mrb[0].mxu0
  %11990 = vmatprep.mubr.f32.mxu0 0.0
  %11991 = vmatmul.mubr.f32.gmra.mrb[0].mxu0 %v11679
  %v11992 = vpop.f32.mrb[0].mxu0
  %v11993 = vadd.f32 0.0, %v11992
  %v11994 = vpop.f32.mrb[0].mxu0
  %11995 = vmatprep.mubr.f32.mxu0 0.0
  %11996 = vmatmul.mubr.f32.gmra.mrb[0].mxu0 %v11682
  %v11997 = vpop.f32.mrb[0].mxu0
  %v11998 = vadd.f32 0.0, %v11997
  %v11999 = vpop.f32.mrb[0].mxu0
  %12000 = vmatprep.mubr.f32.mxu0 0.0
  %12001 = vmatmul.mubr.f32.gmra.mrb[0].mxu0 %v11685
  %v12002 = vpop.f32.mrb[0].mxu0
  %v12003 = vadd.f32 0.0, %v12002
  %v12004 = vpop.f32.mrb[0].mxu0
  %12005 = vmatprep.mubr.f32.mxu0 0.0
  %12006 = vmatmul.mubr.f32.gmra.mrb[0].mxu0 %v11688
  %v12007 = vpop.f32.mrb[0].mxu0
  %v12008 = vadd.f32 0.0, %v12007
  %v12009 = vpop.f32.mrb[0].mxu0
  %12010 = vmatprep.mubr.f32.mxu0 0.0
  %12011 = vmatmul.mubr.f32.gmra.mrb[0].mxu0 %v11691
  %v12012 = vpop.f32.mrb[0].mxu0
  %v12013 = vadd.f32 0.0, %v12012
  %v12014 = vpop.f32.mrb[0].mxu0
  %12015 = vmatprep.mubr.f32.mxu0 0.0
  %12016 = vmatmul.mubr.f32.gmra.mrb[0].mxu0 %v11694
  %v12017 = vpop.f32.mrb[0].mxu0
  %v12018 = vadd.f32 0.0, %v12017
  %v12019 = vpop.f32.mrb[0].mxu0
  %12020 = vmatprep.mubr.f32.mxu0 0.0
  %12021 = vmatmul.mubr.f32.gmra.mrb[0].mxu0 %v11697
  %v12022 = vpop.f32.mrb[0].mxu0
  %v12023 = vadd.f32 0.0, %v12022
  %v12024 = vpop.f32.mrb[0].mxu0
  %12025 = vmatprep.mubr.f32.mxu0 0.0
  %12026 = vmatmul.mubr.f32.gmra.mrb[0].mxu0 %v11700
  %v12027 = vpop.f32.mrb[0].mxu0
  %v12028 = vadd.f32 0.0, %v12027
  %v12029 = vpop.f32.mrb[0].mxu0
  %12030 = vmatprep.mubr.f32.mxu0 0.0
  %12031 = vmatmul.mubr.f32.gmra.mrb[0].mxu0 %v11703
  %v12032 = vpop.f32.mrb[0].mxu0
  %v12033 = vadd.f32 0.0, %v12032
  %v12034 = vpop.f32.mrb[0].mxu0
  %12035 = vmatprep.mubr.f32.mxu0 0.0
  %12036 = vmatmul.mubr.f32.gmra.mrb[0].mxu0 %v11706
  %v12037 = vpop.f32.mrb[0].mxu0
  %v12038 = vadd.f32 0.0, %v12037
  %v12039 = vpop.f32.mrb[0].mxu0
  %12040 = vmatprep.mubr.f32.mxu0 0.0
  %12041 = vmatmul.mubr.f32.gmra.mrb[0].mxu0 %v11709
  %v12042 = vpop.f32.mrb[0].mxu0
  %v12043 = vadd.f32 0.0, %v12042
  %v12044 = vpop.f32.mrb[0].mxu0
  %12045 = vmatprep.mubr.f32.mxu0 0.0
  %12046 = vmatmul.mubr.f32.gmra.mrb[0].mxu0 %v11712
  %v12047 = vpop.f32.mrb[0].mxu0
  %v12048 = vadd.f32 0.0, %v12047
  %v12049 = vpop.f32.mrb[0].mxu0
  %12050 = vmatprep.mubr.f32.mxu0 0.0
  %12051 = vmatmul.mubr.f32.gmra.mrb[0].mxu0 %v11715
  %v12052 = vpop.f32.mrb[0].mxu0
  %v12053 = vadd.f32 0.0, %v12052
  %v12054 = vpop.f32.mrb[0].mxu0
  %12055 = vmatprep.mubr.f32.mxu0 0.0
  %12056 = vmatmul.mubr.f32.gmra.mrb[0].mxu0 %v11718
  %v12057 = vpop.f32.mrb[0].mxu0
  %v12058 = vadd.f32 0.0, %v12057
  %v12059 = vpop.f32.mrb[0].mxu0
  %12060 = vmatprep.mubr.f32.mxu0 0.0
  %12061 = vmatmul.mubr.f32.gmra.mrb[0].mxu0 %v11721
  %v12062 = vpop.f32.mrb[0].mxu0
  %v12063 = vadd.f32 0.0, %v12062
  %v12064 = vpop.f32.mrb[0].mxu0
  %12065 = vmatprep.mubr.f32.mxu0 0.0
  %12066 = vmatmul.mubr.f32.gmra.mrb[0].mxu0 %v11724
  %v12067 = vpop.f32.mrb[0].mxu0
  %v12068 = vadd.f32 0.0, %v12067
  %v12069 = vpop.f32.mrb[0].mxu0
  %12070 = vmatprep.mubr.f32.mxu0 0.0
  %12071 = vmatmul.mubr.f32.gmra.mrb[0].mxu0 %v11727
  %v12072 = vpop.f32.mrb[0].mxu0
  %v12073 = vadd.f32 0.0, %v12072
  %v12074 = vpop.f32.mrb[0].mxu0
  %12075 = vmatprep.mubr.f32.mxu0 0.0
  %12076 = vmatmul.mubr.f32.gmra.mrb[0].mxu0 %v11730
  %v12077 = vpop.f32.mrb[0].mxu0
  %v12078 = vadd.f32 0.0, %v12077
  %v12079 = vpop.f32.mrb[0].mxu0
  %12080 = vmatprep.mubr.f32.mxu0 0.0
  %12081 = vmatmul.mubr.f32.gmra.mrb[0].mxu0 %v11733
  %v12082 = vpop.f32.mrb[0].mxu0
  %v12083 = vadd.f32 0.0, %v12082
  %v12084 = vpop.f32.mrb[0].mxu0
  %12085 = vmatprep.mubr.f32.mxu0 0.0
  %12086 = vmatmul.mubr.f32.gmra.mrb[0].mxu0 %v11736
  %v12087 = vpop.f32.mrb[0].mxu0
  %v12088 = vadd.f32 0.0, %v12087
  %v12089 = vpop.f32.mrb[0].mxu0
  %12090 = vmatprep.mubr.f32.mxu0 0.0
  %12091 = vmatmul.mubr.f32.gmra.mrb[0].mxu0 %v11739
  %v12092 = vpop.f32.mrb[0].mxu0
  %v12093 = vadd.f32 0.0, %v12092
  %v12094 = vpop.f32.mrb[0].mxu0
  %12095 = vmatprep.mubr.f32.mxu0 0.0
  %12096 = vmatmul.mubr.f32.gmra.mrb[0].mxu0 %v11742
  %v12097 = vpop.f32.mrb[0].mxu0
  %v12098 = vadd.f32 0.0, %v12097
  %v12099 = vpop.f32.mrb[0].mxu0
  %12100 = vmatprep.mubr.f32.mxu0 0.0
  %12101 = vmatmul.mubr.f32.gmra.mrb[0].mxu0 %v11745
  %v12102 = vpop.f32.mrb[0].mxu0
  %v12103 = vadd.f32 0.0, %v12102
  %v12104 = vpop.f32.mrb[0].mxu0
  %12105 = vmatprep.mubr.f32.mxu0 0.0
  %12106 = vmatmul.mubr.f32.gmra.mrb[0].mxu0 %v11748
  %v12107 = vpop.f32.mrb[0].mxu0
  %v12108 = vadd.f32 0.0, %v12107
  %v12109 = vpop.f32.mrb[0].mxu0
  %12110 = vmatprep.mubr.f32.mxu0 0.0
  %12111 = vmatmul.mubr.f32.gmra.mrb[0].mxu0 %v11751
  %v12112 = vpop.f32.mrb[0].mxu0
  %v12113 = vadd.f32 0.0, %v12112
  %v12114 = vpop.f32.mrb[0].mxu0
  %12115 = vmatprep.mubr.f32.mxu0 0.0
  %12116 = vmatmul.mubr.f32.gmra.mrb[0].mxu0 %v11754
  %v12117 = vpop.f32.mrb[0].mxu0
  %v12118 = vadd.f32 0.0, %v12117
  %v12119 = vpop.f32.mrb[0].mxu0
  %12120 = vmatprep.mubr.f32.mxu0 0.0
  %12121 = vmatmul.mubr.f32.gmra.mrb[0].mxu0 %v11757
  %v12122 = vpop.f32.mrb[0].mxu0
  %v12123 = vadd.f32 0.0, %v12122
  %v12124 = vpop.f32.mrb[0].mxu0
  %12125 = vmatprep.mubr.f32.mxu0 0.0
  %12126 = vmatmul.mubr.f32.gmra.mrb[0].mxu0 %v11760
  %v12127 = vpop.f32.mrb[0].mxu0
  %v12128 = vadd.f32 0.0, %v12127
  %v12129 = vpop.f32.mrb[0].mxu0
  %12130 = vmatprep.mubr.f32.mxu0 0.0
  %12131 = vmatmul.mubr.f32.gmra.mrb[0].mxu0 %v11763
  %v12132 = vpop.f32.mrb[0].mxu0
  %v12133 = vadd.f32 0.0, %v12132
  %v12134 = vpop.f32.mrb[0].mxu0
  %12135 = vmatprep.mubr.f32.mxu0 0.0
  %12136 = vmatmul.mubr.f32.gmra.mrb[0].mxu0 %v11766
  %v12137 = vpop.f32.mrb[0].mxu0
  %v12138 = vadd.f32 0.0, %v12137
  %v12139 = vpop.f32.mrb[0].mxu0
  %12140 = vmatprep.mubr.f32.mxu0 0.0
  %12141 = vmatmul.mubr.f32.gmra.mrb[0].mxu0 %v11769
  %v12142 = vpop.f32.mrb[0].mxu0
  %v12143 = vadd.f32 0.0, %v12142
  %v12144 = vpop.f32.mrb[0].mxu0
  %12145 = vmatprep.mubr.f32.mxu0 0.0
  %12146 = vmatmul.mubr.f32.gmra.mrb[0].mxu0 %v11772
  %v12147 = vpop.f32.mrb[0].mxu0
  %v12148 = vadd.f32 0.0, %v12147
  %v12149 = vpop.f32.mrb[0].mxu0
  %12150 = vmatprep.mubr.f32.mxu0 0.0
  %12151 = vmatmul.mubr.f32.gmra.mrb[0].mxu0 %v11775
  %v12152 = vpop.f32.mrb[0].mxu0
  %v12153 = vadd.f32 0.0, %v12152
  %v12154 = vpop.f32.mrb[0].mxu0
  %12155 = vmatprep.mubr.f32.mxu0 0.0
  %12156 = vmatmul.mubr.f32.gmra.mrb[0].mxu0 %v11778
  %v12157 = vpop.f32.mrb[0].mxu0
  %v12158 = vadd.f32 0.0, %v12157
  %v12159 = vpop.f32.mrb[0].mxu0
  %12160 = vmatprep.mubr.f32.mxu0 0.0
  %12161 = vmatmul.mubr.f32.gmra.mrb[0].mxu0 %v11781
  %v12162 = vpop.f32.mrb[0].mxu0
  %v12163 = vadd.f32 0.0, %v12162
  %v12164 = vpop.f32.mrb[0].mxu0
  %12165 = vmatprep.mubr.f32.mxu0 0.0
  %12166 = vmatmul.mubr.f32.gmra.mrb[0].mxu0 %v11784
  %v12167 = vpop.f32.mrb[0].mxu0
  %v12168 = vadd.f32 0.0, %v12167
  %v12169 = vpop.f32.mrb[0].mxu0
  %12170 = vdwg.mxu0
  %v12171 = vadd.f32 %v11464, %v11853
  %v12172 = vadd.f32 %v11465, %v11858
  %v12173 = vadd.f32 %v11466, %v11863
  %v12174 = vadd.f32 %v11467, %v11868
  %v12175 = vadd.f32 %v11468, %v11873
  %v12176 = vadd.f32 %v11469, %v11878
  %v12177 = vadd.f32 %v11470, %v11883
  %v12178 = vadd.f32 %v11471, %v11888
  %v12179 = vadd.f32 %v11472, %v11893
  %v12180 = vadd.f32 %v11473, %v11898
  %v12181 = vadd.f32 %v11474, %v11903
  %v12182 = vadd.f32 %v11475, %v11908
  %v12183 = vadd.f32 %v11476, %v11913
  %v12184 = vadd.f32 %v11477, %v11918
  %v12185 = vadd.f32 %v11478, %v11923
  %v12186 = vadd.f32 %v11479, %v11928
  %v12187 = vadd.f32 %v11480, %v11933
  %v12188 = vadd.f32 %v11481, %v11938
  %v12189 = vadd.f32 %v11482, %v11943
  %v12190 = vadd.f32 %v11483, %v11948
  %v12191 = vadd.f32 %v11484, %v11953
  %v12192 = vadd.f32 %v11485, %v11958
  %v12193 = vadd.f32 %v11486, %v11963
  %v12194 = vadd.f32 %v11487, %v11968
  %v12195 = vadd.f32 %v11488, %v11973
  %v12196 = vadd.f32 %v11489, %v11978
  %v12197 = vadd.f32 %v11490, %v11983
  %v12198 = vadd.f32 %v11491, %v11988
  %v12199 = vadd.f32 %v11492, %v11993
  %v12200 = vadd.f32 %v11493, %v11998
  %v12201 = vadd.f32 %v11494, %v12003
  %v12202 = vadd.f32 %v11495, %v12008
  %v12203 = vadd.f32 %v11496, %v12013
  %v12204 = vadd.f32 %v11497, %v12018
  %v12205 = vadd.f32 %v11498, %v12023
  %v12206 = vadd.f32 %v11499, %v12028
  %v12207 = vadd.f32 %v11500, %v12033
  %v12208 = vadd.f32 %v11501, %v12038
  %v12209 = vadd.f32 %v11502, %v12043
  %v12210 = vadd.f32 %v11503, %v12048
  %v12211 = vadd.f32 %v11504, %v12053
  %v12212 = vadd.f32 %v11505, %v12058
  %v12213 = vadd.f32 %v11506, %v12063
  %v12214 = vadd.f32 %v11507, %v12068
  %v12215 = vadd.f32 %v11508, %v12073
  %v12216 = vadd.f32 %v11509, %v12078
  %v12217 = vadd.f32 %v11510, %v12083
  %v12218 = vadd.f32 %v11511, %v12088
  %v12219 = vadd.f32 %v11512, %v12093
  %v12220 = vadd.f32 %v11513, %v12098
  %v12221 = vadd.f32 %v11514, %v12103
  %v12222 = vadd.f32 %v11515, %v12108
  %v12223 = vadd.f32 %v11516, %v12113
  %v12224 = vadd.f32 %v11517, %v12118
  %v12225 = vadd.f32 %v11518, %v12123
  %v12226 = vadd.f32 %v11519, %v12128
  %v12227 = vadd.f32 %v11520, %v12133
  %v12228 = vadd.f32 %v11521, %v12138
  %v12229 = vadd.f32 %v11522, %v12143
  %v12230 = vadd.f32 %v11523, %v12148
  %v12231 = vadd.f32 %v11524, %v12153
  %v12232 = vadd.f32 %v11525, %v12158
  %v12233 = vadd.f32 %v11526, %v12163
  %v12234 = vadd.f32 %v11527, %v12168
  %v12235 = vld [vmem:[%s10820 + $0x9] sm:$0xff]
  %v12236 = vld [vmem:[%s10820 + $0x11] sm:$0xff]
  %v12237 = vld [vmem:[%s10820 + $0x29] sm:$0xff]
  %v12238 = vld [vmem:[%s10820 + $0x31] sm:$0xff]
  %v12239 = vld [vmem:[%s10820 + $0x49] sm:$0xff]
  %v12240 = vld [vmem:[%s10820 + $0x51] sm:$0xff]
  %v12241 = vld [vmem:[%s10820 + $0x69] sm:$0xff]
  %v12242 = vld [vmem:[%s10820 + $0x71] sm:$0xff]
  %v12243 = vld [vmem:[%s10820 + $0x89] sm:$0xff]
  %v12244 = vld [vmem:[%s10820 + $0x91] sm:$0xff]
  %v12245 = vld [vmem:[%s10820 + $0xa9] sm:$0xff]
  %v12246 = vld [vmem:[%s10820 + $0xb1] sm:$0xff]
  %v12247 = vld [vmem:[%s10820 + $0xc9] sm:$0xff]
  %v12248 = vld [vmem:[%s10820 + $0xd1] sm:$0xff]
  %v12249 = vld [vmem:[%s10820 + $0xe9] sm:$0xff]
  %v12250 = vld [vmem:[%s10820 + $0xf1] sm:$0xff]
  %v12251 = vld [vmem:[%s10820 + $0x109] sm:$0xff]
  %v12252 = vld [vmem:[%s10820 + $0x111] sm:$0xff]
  %v12253 = vld [vmem:[%s10820 + $0x129] sm:$0xff]
  %v12254 = vld [vmem:[%s10820 + $0x131] sm:$0xff]
  %v12255 = vld [vmem:[%s10820 + $0x149] sm:$0xff]
  %v12256 = vld [vmem:[%s10820 + $0x151] sm:$0xff]
  %v12257 = vld [vmem:[%s10820 + $0x169] sm:$0xff]
  %v12258 = vld [vmem:[%s10820 + $0x171] sm:$0xff]
  %v12259 = vld [vmem:[%s10820 + $0x189] sm:$0xff]
  %v12260 = vld [vmem:[%s10820 + $0x191] sm:$0xff]
  %v12261 = vld [vmem:[%s10820 + $0x1a9] sm:$0xff]
  %v12262 = vld [vmem:[%s10820 + $0x1b1] sm:$0xff]
  %v12263 = vld [vmem:[%s10820 + $0x1c9] sm:$0xff]
  %v12264 = vld [vmem:[%s10820 + $0x1d1] sm:$0xff]
  %v12265 = vld [vmem:[%s10820 + $0x1e9] sm:$0xff]
  %v12266 = vld [vmem:[%s10820 + $0x1f1] sm:$0xff]
  %v12267 = vld [vmem:[%s10820 + $0x249] sm:$0xff]
  %v12268 = vld [vmem:[%s10820 + $0x251] sm:$0xff]
  %v12269 = vld [vmem:[%s10820 + $0x269] sm:$0xff]
  %v12270 = vld [vmem:[%s10820 + $0x271] sm:$0xff]
  %v12271 = vld [vmem:[%s10820 + $0x289] sm:$0xff]
  %v12272 = vld [vmem:[%s10820 + $0x291] sm:$0xff]
  %v12273 = vld [vmem:[%s10820 + $0x2a9] sm:$0xff]
  %v12274 = vld [vmem:[%s10820 + $0x2b1] sm:$0xff]
  %v12275 = vld [vmem:[%s10820 + $0x2c9] sm:$0xff]
  %v12276 = vld [vmem:[%s10820 + $0x2d1] sm:$0xff]
  %v12277 = vld [vmem:[%s10820 + $0x2e9] sm:$0xff]
  %v12278 = vld [vmem:[%s10820 + $0x2f1] sm:$0xff]
  %v12279 = vld [vmem:[%s10820 + $0x309] sm:$0xff]
  %v12280 = vld [vmem:[%s10820 + $0x311] sm:$0xff]
  %v12281 = vld [vmem:[%s10820 + $0x329] sm:$0xff]
  %v12282 = vld [vmem:[%s10820 + $0x331] sm:$0xff]
  %v12283 = vld [vmem:[%s10820 + $0x349] sm:$0xff]
  %v12284 = vld [vmem:[%s10820 + $0x351] sm:$0xff]
  %v12285 = vld [vmem:[%s10820 + $0x369] sm:$0xff]
  %v12286 = vld [vmem:[%s10820 + $0x371] sm:$0xff]
  %v12287 = vld [vmem:[%s10820 + $0x389] sm:$0xff]
  %v12288 = vld [vmem:[%s10820 + $0x391] sm:$0xff]
  %v12289 = vld [vmem:[%s10820 + $0x3a9] sm:$0xff]
  %v12290 = vld [vmem:[%s10820 + $0x3b1] sm:$0xff]
  %v12291 = vld [vmem:[%s10820 + $0x3c9] sm:$0xff]
  %v12292 = vld [vmem:[%s10820 + $0x3d1] sm:$0xff]
  %v12293 = vld [vmem:[%s10820 + $0x3e9] sm:$0xff]
  %v12294 = vld [vmem:[%s10820 + $0x3f1] sm:$0xff]
  %v12295 = vld [vmem:[%s10820 + $0x409] sm:$0xff]
  %v12296 = vld [vmem:[%s10820 + $0x411] sm:$0xff]
  %v12297 = vld [vmem:[%s10820 + $0x429] sm:$0xff]
  %v12298 = vld [vmem:[%s10820 + $0x431] sm:$0xff]
  %s12299 = scalar_lea.vmem %s2, 64
  %v12300 = vld [vmem:[%s12299] sm:$0xff]
  %v12302 = vsel %vm6559, %v12235, 0
  %v12305 = vsel %vm6559, %v12236, 0
  %v12308 = vsel %vm6559, %v12237, 0
  %v12311 = vsel %vm6559, %v12238, 0
  %v12314 = vsel %vm6559, %v12239, 0
  %v12317 = vsel %vm6559, %v12240, 0
  %v12320 = vsel %vm6559, %v12241, 0
  %v12323 = vsel %vm6559, %v12242, 0
  %v12326 = vsel %vm6559, %v12243, 0
  %v12329 = vsel %vm6559, %v12244, 0
  %v12332 = vsel %vm6559, %v12245, 0
  %v12335 = vsel %vm6559, %v12246, 0
  %v12338 = vsel %vm6559, %v12247, 0
  %v12341 = vsel %vm6559, %v12248, 0
  %v12344 = vsel %vm6559, %v12249, 0
  %v12347 = vsel %vm6559, %v12250, 0
  %v12350 = vsel %vm6559, %v12251, 0
  %v12353 = vsel %vm6559, %v12252, 0
  %v12356 = vsel %vm6559, %v12253, 0
  %v12359 = vsel %vm6559, %v12254, 0
  %v12362 = vsel %vm6559, %v12255, 0
  %v12365 = vsel %vm6559, %v12256, 0
  %v12368 = vsel %vm6559, %v12257, 0
  %v12371 = vsel %vm6559, %v12258, 0
  %v12374 = vsel %vm6559, %v12259, 0
  %v12377 = vsel %vm6559, %v12260, 0
  %v12380 = vsel %vm6559, %v12261, 0
  %v12383 = vsel %vm6559, %v12262, 0
  %v12386 = vsel %vm6559, %v12263, 0
  %v12389 = vsel %vm6559, %v12264, 0
  %v12392 = vsel %vm6559, %v12265, 0
  %v12395 = vsel %vm6559, %v12266, 0
  %v12398 = vsel %vm6559, %v12267, 0
  %v12401 = vsel %vm6559, %v12268, 0
  %v12404 = vsel %vm6559, %v12269, 0
  %v12407 = vsel %vm6559, %v12270, 0
  %v12410 = vsel %vm6559, %v12271, 0
  %v12413 = vsel %vm6559, %v12272, 0
  %v12416 = vsel %vm6559, %v12273, 0
  %v12419 = vsel %vm6559, %v12274, 0
  %v12422 = vsel %vm6559, %v12275, 0
  %v12425 = vsel %vm6559, %v12276, 0
  %v12428 = vsel %vm6559, %v12277, 0
  %v12431 = vsel %vm6559, %v12278, 0
  %v12434 = vsel %vm6559, %v12279, 0
  %v12437 = vsel %vm6559, %v12280, 0
  %v12440 = vsel %vm6559, %v12281, 0
  %v12443 = vsel %vm6559, %v12282, 0
  %v12446 = vsel %vm6559, %v12283, 0
  %v12449 = vsel %vm6559, %v12284, 0
  %v12452 = vsel %vm6559, %v12285, 0
  %v12455 = vsel %vm6559, %v12286, 0
  %v12458 = vsel %vm6559, %v12287, 0
  %v12461 = vsel %vm6559, %v12288, 0
  %v12464 = vsel %vm6559, %v12289, 0
  %v12467 = vsel %vm6559, %v12290, 0
  %v12470 = vsel %vm6559, %v12291, 0
  %v12473 = vsel %vm6559, %v12292, 0
  %v12476 = vsel %vm6559, %v12293, 0
  %v12479 = vsel %vm6559, %v12294, 0
  %v12482 = vsel %vm6559, %v12295, 0
  %v12485 = vsel %vm6559, %v12296, 0
  %v12488 = vsel %vm6559, %v12297, 0
  %v12491 = vsel %vm6559, %v12298, 0
  %12493 = vmatprep.subr.mxu0 0.0
  %12494 = vmatpush1.msra.mxu0 %v12300
  %12495 = vmatprep.subr.mxu0 0.0
  %12496 = vmatpush1.msra.mxu0 0.0
  %12497 = vmatprep.subr.mxu0 0.0
  %12498 = vmatpush1.msra.mxu0 0.0
  %12499 = vmatprep.subr.mxu0 0.0
  %12500 = vmatpush1.msra.mxu0 0.0
  %12501 = vmatprep.subr.mxu0 0.0
  %12502 = vmatpush1.msra.mxu0 0.0
  %12503 = vmatprep.subr.mxu0 0.0
  %12504 = vmatpush1.msra.mxu0 0.0
  %12505 = vmatprep.subr.mxu0 0.0
  %12506 = vmatpush1.msra.mxu0 0.0
  %12507 = vmatprep.subr.mxu0 0.0
  %12508 = vmatpush1.msra.mxu0 0.0
  %12509 = vmatprep.subr.mxu0 0.0
  %12510 = vmatpush1.msra.mxu0 0.0
  %12511 = vmatprep.subr.mxu0 0.0
  %12512 = vmatpush1.msra.mxu0 0.0
  %12513 = vmatprep.subr.mxu0 0.0
  %12514 = vmatpush1.msra.mxu0 0.0
  %12515 = vmatprep.subr.mxu0 0.0
  %12516 = vmatpush1.msra.mxu0 0.0
  %12517 = vmatprep.subr.mxu0 0.0
  %12518 = vmatpush1.msra.mxu0 0.0
  %12519 = vmatprep.subr.mxu0 0.0
  %12520 = vmatpush1.msra.mxu0 0.0
  %12521 = vmatprep.subr.mxu0 0.0
  %12522 = vmatpush1.msra.mxu0 0.0
  %12523 = vmatprep.subr.mxu0 0.0
  %12524 = vmatpush1.msra.mxu0 0.0
  %12525 = vmatprep.subr.mxu0 0.0
  %12526 = vmatpush1.msra.mxu0 0.0
  %12527 = vmatprep.subr.mxu0 0.0
  %12528 = vmatpush1.msra.mxu0 0.0
  %12529 = vmatprep.subr.mxu0 0.0
  %12530 = vmatpush1.msra.mxu0 0.0
  %12531 = vmatprep.subr.mxu0 0.0
  %12532 = vmatpush1.msra.mxu0 0.0
  %12533 = vmatprep.subr.mxu0 0.0
  %12534 = vmatpush1.msra.mxu0 0.0
  %12535 = vmatprep.subr.mxu0 0.0
  %12536 = vmatpush1.msra.mxu0 0.0
  %12537 = vmatprep.subr.mxu0 0.0
  %12538 = vmatpush1.msra.mxu0 0.0
  %12539 = vmatprep.subr.mxu0 0.0
  %12540 = vmatpush1.msra.mxu0 0.0
  %12541 = vmatprep.subr.mxu0 0.0
  %12542 = vmatpush1.msra.mxu0 0.0
  %12543 = vmatprep.subr.mxu0 0.0
  %12544 = vmatpush1.msra.mxu0 0.0
  %12545 = vmatprep.subr.mxu0 0.0
  %12546 = vmatpush1.msra.mxu0 0.0
  %12547 = vmatprep.subr.mxu0 0.0
  %12548 = vmatpush1.msra.mxu0 0.0
  %12549 = vmatprep.subr.mxu0 0.0
  %12550 = vmatpush1.msra.mxu0 0.0
  %12551 = vmatprep.subr.mxu0 0.0
  %12552 = vmatpush1.msra.mxu0 0.0
  %12553 = vmatprep.subr.mxu0 0.0
  %12554 = vmatpush1.msra.mxu0 0.0
  %12555 = vmatprep.subr.mxu0 0.0
  %12556 = vmatpush1.msra.mxu0 0.0
  %12557 = vmatprep.mubr.f32.mxu0 0.0
  %12558 = vmatmul.mubr.f32.gmra.mrb[0].mxu0 %v12302
  %v12559 = vpop.f32.mrb[0].mxu0
  %v12560 = vadd.f32 0.0, %v12559
  %v12561 = vpop.f32.mrb[0].mxu0
  %12562 = vmatprep.mubr.f32.mxu0 0.0
  %12563 = vmatmul.mubr.f32.gmra.mrb[0].mxu0 %v12305
  %v12564 = vpop.f32.mrb[0].mxu0
  %v12565 = vadd.f32 0.0, %v12564
  %v12566 = vpop.f32.mrb[0].mxu0
  %12567 = vmatprep.mubr.f32.mxu0 0.0
  %12568 = vmatmul.mubr.f32.gmra.mrb[0].mxu0 %v12308
  %v12569 = vpop.f32.mrb[0].mxu0
  %v12570 = vadd.f32 0.0, %v12569
  %v12571 = vpop.f32.mrb[0].mxu0
  %12572 = vmatprep.mubr.f32.mxu0 0.0
  %12573 = vmatmul.mubr.f32.gmra.mrb[0].mxu0 %v12311
  %v12574 = vpop.f32.mrb[0].mxu0
  %v12575 = vadd.f32 0.0, %v12574
  %v12576 = vpop.f32.mrb[0].mxu0
  %12577 = vmatprep.mubr.f32.mxu0 0.0
  %12578 = vmatmul.mubr.f32.gmra.mrb[0].mxu0 %v12314
  %v12579 = vpop.f32.mrb[0].mxu0
  %v12580 = vadd.f32 0.0, %v12579
  %v12581 = vpop.f32.mrb[0].mxu0
  %12582 = vmatprep.mubr.f32.mxu0 0.0
  %12583 = vmatmul.mubr.f32.gmra.mrb[0].mxu0 %v12317
  %v12584 = vpop.f32.mrb[0].mxu0
  %v12585 = vadd.f32 0.0, %v12584
  %v12586 = vpop.f32.mrb[0].mxu0
  %12587 = vmatprep.mubr.f32.mxu0 0.0
  %12588 = vmatmul.mubr.f32.gmra.mrb[0].mxu0 %v12320
  %v12589 = vpop.f32.mrb[0].mxu0
  %v12590 = vadd.f32 0.0, %v12589
  %v12591 = vpop.f32.mrb[0].mxu0
  %12592 = vmatprep.mubr.f32.mxu0 0.0
  %12593 = vmatmul.mubr.f32.gmra.mrb[0].mxu0 %v12323
  %v12594 = vpop.f32.mrb[0].mxu0
  %v12595 = vadd.f32 0.0, %v12594
  %v12596 = vpop.f32.mrb[0].mxu0
  %12597 = vmatprep.mubr.f32.mxu0 0.0
  %12598 = vmatmul.mubr.f32.gmra.mrb[0].mxu0 %v12326
  %v12599 = vpop.f32.mrb[0].mxu0
  %v12600 = vadd.f32 0.0, %v12599
  %v12601 = vpop.f32.mrb[0].mxu0
  %12602 = vmatprep.mubr.f32.mxu0 0.0
  %12603 = vmatmul.mubr.f32.gmra.mrb[0].mxu0 %v12329
  %v12604 = vpop.f32.mrb[0].mxu0
  %v12605 = vadd.f32 0.0, %v12604
  %v12606 = vpop.f32.mrb[0].mxu0
  %12607 = vmatprep.mubr.f32.mxu0 0.0
  %12608 = vmatmul.mubr.f32.gmra.mrb[0].mxu0 %v12332
  %v12609 = vpop.f32.mrb[0].mxu0
  %v12610 = vadd.f32 0.0, %v12609
  %v12611 = vpop.f32.mrb[0].mxu0
  %12612 = vmatprep.mubr.f32.mxu0 0.0
  %12613 = vmatmul.mubr.f32.gmra.mrb[0].mxu0 %v12335
  %v12614 = vpop.f32.mrb[0].mxu0
  %v12615 = vadd.f32 0.0, %v12614
  %v12616 = vpop.f32.mrb[0].mxu0
  %12617 = vmatprep.mubr.f32.mxu0 0.0
  %12618 = vmatmul.mubr.f32.gmra.mrb[0].mxu0 %v12338
  %v12619 = vpop.f32.mrb[0].mxu0
  %v12620 = vadd.f32 0.0, %v12619
  %v12621 = vpop.f32.mrb[0].mxu0
  %12622 = vmatprep.mubr.f32.mxu0 0.0
  %12623 = vmatmul.mubr.f32.gmra.mrb[0].mxu0 %v12341
  %v12624 = vpop.f32.mrb[0].mxu0
  %v12625 = vadd.f32 0.0, %v12624
  %v12626 = vpop.f32.mrb[0].mxu0
  %12627 = vmatprep.mubr.f32.mxu0 0.0
  %12628 = vmatmul.mubr.f32.gmra.mrb[0].mxu0 %v12344
  %v12629 = vpop.f32.mrb[0].mxu0
  %v12630 = vadd.f32 0.0, %v12629
  %v12631 = vpop.f32.mrb[0].mxu0
  %12632 = vmatprep.mubr.f32.mxu0 0.0
  %12633 = vmatmul.mubr.f32.gmra.mrb[0].mxu0 %v12347
  %v12634 = vpop.f32.mrb[0].mxu0
  %v12635 = vadd.f32 0.0, %v12634
  %v12636 = vpop.f32.mrb[0].mxu0
  %12637 = vmatprep.mubr.f32.mxu0 0.0
  %12638 = vmatmul.mubr.f32.gmra.mrb[0].mxu0 %v12350
  %v12639 = vpop.f32.mrb[0].mxu0
  %v12640 = vadd.f32 0.0, %v12639
  %v12641 = vpop.f32.mrb[0].mxu0
  %12642 = vmatprep.mubr.f32.mxu0 0.0
  %12643 = vmatmul.mubr.f32.gmra.mrb[0].mxu0 %v12353
  %v12644 = vpop.f32.mrb[0].mxu0
  %v12645 = vadd.f32 0.0, %v12644
  %v12646 = vpop.f32.mrb[0].mxu0
  %12647 = vmatprep.mubr.f32.mxu0 0.0
  %12648 = vmatmul.mubr.f32.gmra.mrb[0].mxu0 %v12356
  %v12649 = vpop.f32.mrb[0].mxu0
  %v12650 = vadd.f32 0.0, %v12649
  %v12651 = vpop.f32.mrb[0].mxu0
  %12652 = vmatprep.mubr.f32.mxu0 0.0
  %12653 = vmatmul.mubr.f32.gmra.mrb[0].mxu0 %v12359
  %v12654 = vpop.f32.mrb[0].mxu0
  %v12655 = vadd.f32 0.0, %v12654
  %v12656 = vpop.f32.mrb[0].mxu0
  %12657 = vmatprep.mubr.f32.mxu0 0.0
  %12658 = vmatmul.mubr.f32.gmra.mrb[0].mxu0 %v12362
  %v12659 = vpop.f32.mrb[0].mxu0
  %v12660 = vadd.f32 0.0, %v12659
  %v12661 = vpop.f32.mrb[0].mxu0
  %12662 = vmatprep.mubr.f32.mxu0 0.0
  %12663 = vmatmul.mubr.f32.gmra.mrb[0].mxu0 %v12365
  %v12664 = vpop.f32.mrb[0].mxu0
  %v12665 = vadd.f32 0.0, %v12664
  %v12666 = vpop.f32.mrb[0].mxu0
  %12667 = vmatprep.mubr.f32.mxu0 0.0
  %12668 = vmatmul.mubr.f32.gmra.mrb[0].mxu0 %v12368
  %v12669 = vpop.f32.mrb[0].mxu0
  %v12670 = vadd.f32 0.0, %v12669
  %v12671 = vpop.f32.mrb[0].mxu0
  %12672 = vmatprep.mubr.f32.mxu0 0.0
  %12673 = vmatmul.mubr.f32.gmra.mrb[0].mxu0 %v12371
  %v12674 = vpop.f32.mrb[0].mxu0
  %v12675 = vadd.f32 0.0, %v12674
  %v12676 = vpop.f32.mrb[0].mxu0
  %12677 = vmatprep.mubr.f32.mxu0 0.0
  %12678 = vmatmul.mubr.f32.gmra.mrb[0].mxu0 %v12374
  %v12679 = vpop.f32.mrb[0].mxu0
  %v12680 = vadd.f32 0.0, %v12679
  %v12681 = vpop.f32.mrb[0].mxu0
  %12682 = vmatprep.mubr.f32.mxu0 0.0
  %12683 = vmatmul.mubr.f32.gmra.mrb[0].mxu0 %v12377
  %v12684 = vpop.f32.mrb[0].mxu0
  %v12685 = vadd.f32 0.0, %v12684
  %v12686 = vpop.f32.mrb[0].mxu0
  %12687 = vmatprep.mubr.f32.mxu0 0.0
  %12688 = vmatmul.mubr.f32.gmra.mrb[0].mxu0 %v12380
  %v12689 = vpop.f32.mrb[0].mxu0
  %v12690 = vadd.f32 0.0, %v12689
  %v12691 = vpop.f32.mrb[0].mxu0
  %12692 = vmatprep.mubr.f32.mxu0 0.0
  %12693 = vmatmul.mubr.f32.gmra.mrb[0].mxu0 %v12383
  %v12694 = vpop.f32.mrb[0].mxu0
  %v12695 = vadd.f32 0.0, %v12694
  %v12696 = vpop.f32.mrb[0].mxu0
  %12697 = vmatprep.mubr.f32.mxu0 0.0
  %12698 = vmatmul.mubr.f32.gmra.mrb[0].mxu0 %v12386
  %v12699 = vpop.f32.mrb[0].mxu0
  %v12700 = vadd.f32 0.0, %v12699
  %v12701 = vpop.f32.mrb[0].mxu0
  %12702 = vmatprep.mubr.f32.mxu0 0.0
  %12703 = vmatmul.mubr.f32.gmra.mrb[0].mxu0 %v12389
  %v12704 = vpop.f32.mrb[0].mxu0
  %v12705 = vadd.f32 0.0, %v12704
  %v12706 = vpop.f32.mrb[0].mxu0
  %12707 = vmatprep.mubr.f32.mxu0 0.0
  %12708 = vmatmul.mubr.f32.gmra.mrb[0].mxu0 %v12392
  %v12709 = vpop.f32.mrb[0].mxu0
  %v12710 = vadd.f32 0.0, %v12709
  %v12711 = vpop.f32.mrb[0].mxu0
  %12712 = vmatprep.mubr.f32.mxu0 0.0
  %12713 = vmatmul.mubr.f32.gmra.mrb[0].mxu0 %v12395
  %v12714 = vpop.f32.mrb[0].mxu0
  %v12715 = vadd.f32 0.0, %v12714
  %v12716 = vpop.f32.mrb[0].mxu0
  %12717 = vmatprep.mubr.f32.mxu0 0.0
  %12718 = vmatmul.mubr.f32.gmra.mrb[0].mxu0 %v12398
  %v12719 = vpop.f32.mrb[0].mxu0
  %v12720 = vadd.f32 0.0, %v12719
  %v12721 = vpop.f32.mrb[0].mxu0
  %12722 = vmatprep.mubr.f32.mxu0 0.0
  %12723 = vmatmul.mubr.f32.gmra.mrb[0].mxu0 %v12401
  %v12724 = vpop.f32.mrb[0].mxu0
  %v12725 = vadd.f32 0.0, %v12724
  %v12726 = vpop.f32.mrb[0].mxu0
  %12727 = vmatprep.mubr.f32.mxu0 0.0
  %12728 = vmatmul.mubr.f32.gmra.mrb[0].mxu0 %v12404
  %v12729 = vpop.f32.mrb[0].mxu0
  %v12730 = vadd.f32 0.0, %v12729
  %v12731 = vpop.f32.mrb[0].mxu0
  %12732 = vmatprep.mubr.f32.mxu0 0.0
  %12733 = vmatmul.mubr.f32.gmra.mrb[0].mxu0 %v12407
  %v12734 = vpop.f32.mrb[0].mxu0
  %v12735 = vadd.f32 0.0, %v12734
  %v12736 = vpop.f32.mrb[0].mxu0
  %12737 = vmatprep.mubr.f32.mxu0 0.0
  %12738 = vmatmul.mubr.f32.gmra.mrb[0].mxu0 %v12410
  %v12739 = vpop.f32.mrb[0].mxu0
  %v12740 = vadd.f32 0.0, %v12739
  %v12741 = vpop.f32.mrb[0].mxu0
  %12742 = vmatprep.mubr.f32.mxu0 0.0
  %12743 = vmatmul.mubr.f32.gmra.mrb[0].mxu0 %v12413
  %v12744 = vpop.f32.mrb[0].mxu0
  %v12745 = vadd.f32 0.0, %v12744
  %v12746 = vpop.f32.mrb[0].mxu0
  %12747 = vmatprep.mubr.f32.mxu0 0.0
  %12748 = vmatmul.mubr.f32.gmra.mrb[0].mxu0 %v12416
  %v12749 = vpop.f32.mrb[0].mxu0
  %v12750 = vadd.f32 0.0, %v12749
  %v12751 = vpop.f32.mrb[0].mxu0
  %12752 = vmatprep.mubr.f32.mxu0 0.0
  %12753 = vmatmul.mubr.f32.gmra.mrb[0].mxu0 %v12419
  %v12754 = vpop.f32.mrb[0].mxu0
  %v12755 = vadd.f32 0.0, %v12754
  %v12756 = vpop.f32.mrb[0].mxu0
  %12757 = vmatprep.mubr.f32.mxu0 0.0
  %12758 = vmatmul.mubr.f32.gmra.mrb[0].mxu0 %v12422
  %v12759 = vpop.f32.mrb[0].mxu0
  %v12760 = vadd.f32 0.0, %v12759
  %v12761 = vpop.f32.mrb[0].mxu0
  %12762 = vmatprep.mubr.f32.mxu0 0.0
  %12763 = vmatmul.mubr.f32.gmra.mrb[0].mxu0 %v12425
  %v12764 = vpop.f32.mrb[0].mxu0
  %v12765 = vadd.f32 0.0, %v12764
  %v12766 = vpop.f32.mrb[0].mxu0
  %12767 = vmatprep.mubr.f32.mxu0 0.0
  %12768 = vmatmul.mubr.f32.gmra.mrb[0].mxu0 %v12428
  %v12769 = vpop.f32.mrb[0].mxu0
  %v12770 = vadd.f32 0.0, %v12769
  %v12771 = vpop.f32.mrb[0].mxu0
  %12772 = vmatprep.mubr.f32.mxu0 0.0
  %12773 = vmatmul.mubr.f32.gmra.mrb[0].mxu0 %v12431
  %v12774 = vpop.f32.mrb[0].mxu0
  %v12775 = vadd.f32 0.0, %v12774
  %v12776 = vpop.f32.mrb[0].mxu0
  %12777 = vmatprep.mubr.f32.mxu0 0.0
  %12778 = vmatmul.mubr.f32.gmra.mrb[0].mxu0 %v12434
  %v12779 = vpop.f32.mrb[0].mxu0
  %v12780 = vadd.f32 0.0, %v12779
  %v12781 = vpop.f32.mrb[0].mxu0
  %12782 = vmatprep.mubr.f32.mxu0 0.0
  %12783 = vmatmul.mubr.f32.gmra.mrb[0].mxu0 %v12437
  %v12784 = vpop.f32.mrb[0].mxu0
  %v12785 = vadd.f32 0.0, %v12784
  %v12786 = vpop.f32.mrb[0].mxu0
  %12787 = vmatprep.mubr.f32.mxu0 0.0
  %12788 = vmatmul.mubr.f32.gmra.mrb[0].mxu0 %v12440
  %v12789 = vpop.f32.mrb[0].mxu0
  %v12790 = vadd.f32 0.0, %v12789
  %v12791 = vpop.f32.mrb[0].mxu0
  %12792 = vmatprep.mubr.f32.mxu0 0.0
  %12793 = vmatmul.mubr.f32.gmra.mrb[0].mxu0 %v12443
  %v12794 = vpop.f32.mrb[0].mxu0
  %v12795 = vadd.f32 0.0, %v12794
  %v12796 = vpop.f32.mrb[0].mxu0
  %12797 = vmatprep.mubr.f32.mxu0 0.0
  %12798 = vmatmul.mubr.f32.gmra.mrb[0].mxu0 %v12446
  %v12799 = vpop.f32.mrb[0].mxu0
  %v12800 = vadd.f32 0.0, %v12799
  %v12801 = vpop.f32.mrb[0].mxu0
  %12802 = vmatprep.mubr.f32.mxu0 0.0
  %12803 = vmatmul.mubr.f32.gmra.mrb[0].mxu0 %v12449
  %v12804 = vpop.f32.mrb[0].mxu0
  %v12805 = vadd.f32 0.0, %v12804
  %v12806 = vpop.f32.mrb[0].mxu0
  %12807 = vmatprep.mubr.f32.mxu0 0.0
  %12808 = vmatmul.mubr.f32.gmra.mrb[0].mxu0 %v12452
  %v12809 = vpop.f32.mrb[0].mxu0
  %v12810 = vadd.f32 0.0, %v12809
  %v12811 = vpop.f32.mrb[0].mxu0
  %12812 = vmatprep.mubr.f32.mxu0 0.0
  %12813 = vmatmul.mubr.f32.gmra.mrb[0].mxu0 %v12455
  %v12814 = vpop.f32.mrb[0].mxu0
  %v12815 = vadd.f32 0.0, %v12814
  %v12816 = vpop.f32.mrb[0].mxu0
  %12817 = vmatprep.mubr.f32.mxu0 0.0
  %12818 = vmatmul.mubr.f32.gmra.mrb[0].mxu0 %v12458
  %v12819 = vpop.f32.mrb[0].mxu0
  %v12820 = vadd.f32 0.0, %v12819
  %v12821 = vpop.f32.mrb[0].mxu0
  %12822 = vmatprep.mubr.f32.mxu0 0.0
  %12823 = vmatmul.mubr.f32.gmra.mrb[0].mxu0 %v12461
  %v12824 = vpop.f32.mrb[0].mxu0
  %v12825 = vadd.f32 0.0, %v12824
  %v12826 = vpop.f32.mrb[0].mxu0
  %12827 = vmatprep.mubr.f32.mxu0 0.0
  %12828 = vmatmul.mubr.f32.gmra.mrb[0].mxu0 %v12464
  %v12829 = vpop.f32.mrb[0].mxu0
  %v12830 = vadd.f32 0.0, %v12829
  %v12831 = vpop.f32.mrb[0].mxu0
  %12832 = vmatprep.mubr.f32.mxu0 0.0
  %12833 = vmatmul.mubr.f32.gmra.mrb[0].mxu0 %v12467
  %v12834 = vpop.f32.mrb[0].mxu0
  %v12835 = vadd.f32 0.0, %v12834
  %v12836 = vpop.f32.mrb[0].mxu0
  %12837 = vmatprep.mubr.f32.mxu0 0.0
  %12838 = vmatmul.mubr.f32.gmra.mrb[0].mxu0 %v12470
  %v12839 = vpop.f32.mrb[0].mxu0
  %v12840 = vadd.f32 0.0, %v12839
  %v12841 = vpop.f32.mrb[0].mxu0
  %12842 = vmatprep.mubr.f32.mxu0 0.0
  %12843 = vmatmul.mubr.f32.gmra.mrb[0].mxu0 %v12473
  %v12844 = vpop.f32.mrb[0].mxu0
  %v12845 = vadd.f32 0.0, %v12844
  %v12846 = vpop.f32.mrb[0].mxu0
  %12847 = vmatprep.mubr.f32.mxu0 0.0
  %12848 = vmatmul.mubr.f32.gmra.mrb[0].mxu0 %v12476
  %v12849 = vpop.f32.mrb[0].mxu0
  %v12850 = vadd.f32 0.0, %v12849
  %v12851 = vpop.f32.mrb[0].mxu0
  %12852 = vmatprep.mubr.f32.mxu0 0.0
  %12853 = vmatmul.mubr.f32.gmra.mrb[0].mxu0 %v12479
  %v12854 = vpop.f32.mrb[0].mxu0
  %v12855 = vadd.f32 0.0, %v12854
  %v12856 = vpop.f32.mrb[0].mxu0
  %12857 = vmatprep.mubr.f32.mxu0 0.0
  %12858 = vmatmul.mubr.f32.gmra.mrb[0].mxu0 %v12482
  %v12859 = vpop.f32.mrb[0].mxu0
  %v12860 = vadd.f32 0.0, %v12859
  %v12861 = vpop.f32.mrb[0].mxu0
  %12862 = vmatprep.mubr.f32.mxu0 0.0
  %12863 = vmatmul.mubr.f32.gmra.mrb[0].mxu0 %v12485
  %v12864 = vpop.f32.mrb[0].mxu0
  %v12865 = vadd.f32 0.0, %v12864
  %v12866 = vpop.f32.mrb[0].mxu0
  %12867 = vmatprep.mubr.f32.mxu0 0.0
  %12868 = vmatmul.mubr.f32.gmra.mrb[0].mxu0 %v12488
  %v12869 = vpop.f32.mrb[0].mxu0
  %v12870 = vadd.f32 0.0, %v12869
  %v12871 = vpop.f32.mrb[0].mxu0
  %12872 = vmatprep.mubr.f32.mxu0 0.0
  %12873 = vmatmul.mubr.f32.gmra.mrb[0].mxu0 %v12491
  %v12874 = vpop.f32.mrb[0].mxu0
  %v12875 = vadd.f32 0.0, %v12874
  %v12876 = vpop.f32.mrb[0].mxu0
  %12877 = vdwg.mxu0
  %v12878 = vadd.f32 %v12171, %v12560
  %v12879 = vadd.f32 %v12172, %v12565
  %v12880 = vadd.f32 %v12173, %v12570
  %v12881 = vadd.f32 %v12174, %v12575
  %v12882 = vadd.f32 %v12175, %v12580
  %v12883 = vadd.f32 %v12176, %v12585
  %v12884 = vadd.f32 %v12177, %v12590
  %v12885 = vadd.f32 %v12178, %v12595
  %v12886 = vadd.f32 %v12179, %v12600
  %v12887 = vadd.f32 %v12180, %v12605
  %v12888 = vadd.f32 %v12181, %v12610
  %v12889 = vadd.f32 %v12182, %v12615
  %v12890 = vadd.f32 %v12183, %v12620
  %v12891 = vadd.f32 %v12184, %v12625
  %v12892 = vadd.f32 %v12185, %v12630
  %v12893 = vadd.f32 %v12186, %v12635
  %v12894 = vadd.f32 %v12187, %v12640
  %v12895 = vadd.f32 %v12188, %v12645
  %v12896 = vadd.f32 %v12189, %v12650
  %v12897 = vadd.f32 %v12190, %v12655
  %v12898 = vadd.f32 %v12191, %v12660
  %v12899 = vadd.f32 %v12192, %v12665
  %v12900 = vadd.f32 %v12193, %v12670
  %v12901 = vadd.f32 %v12194, %v12675
  %v12902 = vadd.f32 %v12195, %v12680
  %v12903 = vadd.f32 %v12196, %v12685
  %v12904 = vadd.f32 %v12197, %v12690
  %v12905 = vadd.f32 %v12198, %v12695
  %v12906 = vadd.f32 %v12199, %v12700
  %v12907 = vadd.f32 %v12200, %v12705
  %v12908 = vadd.f32 %v12201, %v12710
  %v12909 = vadd.f32 %v12202, %v12715
  %v12910 = vadd.f32 %v12203, %v12720
  %v12911 = vadd.f32 %v12204, %v12725
  %v12912 = vadd.f32 %v12205, %v12730
  %v12913 = vadd.f32 %v12206, %v12735
  %v12914 = vadd.f32 %v12207, %v12740
  %v12915 = vadd.f32 %v12208, %v12745
  %v12916 = vadd.f32 %v12209, %v12750
  %v12917 = vadd.f32 %v12210, %v12755
  %v12918 = vadd.f32 %v12211, %v12760
  %v12919 = vadd.f32 %v12212, %v12765
  %v12920 = vadd.f32 %v12213, %v12770
  %v12921 = vadd.f32 %v12214, %v12775
  %v12922 = vadd.f32 %v12215, %v12780
  %v12923 = vadd.f32 %v12216, %v12785
  %v12924 = vadd.f32 %v12217, %v12790
  %v12925 = vadd.f32 %v12218, %v12795
  %v12926 = vadd.f32 %v12219, %v12800
  %v12927 = vadd.f32 %v12220, %v12805
  %v12928 = vadd.f32 %v12221, %v12810
  %v12929 = vadd.f32 %v12222, %v12815
  %v12930 = vadd.f32 %v12223, %v12820
  %v12931 = vadd.f32 %v12224, %v12825
  %v12932 = vadd.f32 %v12225, %v12830
  %v12933 = vadd.f32 %v12226, %v12835
  %v12934 = vadd.f32 %v12227, %v12840
  %v12935 = vadd.f32 %v12228, %v12845
  %v12936 = vadd.f32 %v12229, %v12850
  %v12937 = vadd.f32 %v12230, %v12855
  %v12938 = vadd.f32 %v12231, %v12860
  %v12939 = vadd.f32 %v12232, %v12865
  %v12940 = vadd.f32 %v12233, %v12870
  %v12941 = vadd.f32 %v12234, %v12875
  %v12942 = vsel %vm6559, %v12878, 0.0
  %v12943 = vsel %vm6559, %v12879, 0.0
  %v12944 = vadd.f32 %v12942, %v12943
  %v12945 = vsel %vm6559, %v12880, 0.0
  %v12946 = vadd.f32 %v12944, %v12945
  %v12947 = vsel %vm6559, %v12881, 0.0
  %v12948 = vadd.f32 %v12946, %v12947
  %v12949 = vsel %vm6559, %v12882, 0.0
  %v12950 = vadd.f32 %v12948, %v12949
  %v12951 = vsel %vm6559, %v12883, 0.0
  %v12952 = vadd.f32 %v12950, %v12951
  %v12953 = vsel %vm6559, %v12884, 0.0
  %v12954 = vadd.f32 %v12952, %v12953
  %v12955 = vsel %vm6559, %v12885, 0.0
  %v12956 = vadd.f32 %v12954, %v12955
  %v12957 = vsel %vm6559, %v12886, 0.0
  %v12958 = vadd.f32 %v12956, %v12957
  %v12959 = vsel %vm6559, %v12887, 0.0
  %v12960 = vadd.f32 %v12958, %v12959
  %v12961 = vsel %vm6559, %v12888, 0.0
  %v12962 = vadd.f32 %v12960, %v12961
  %v12963 = vsel %vm6559, %v12889, 0.0
  %v12964 = vadd.f32 %v12962, %v12963
  %v12965 = vsel %vm6559, %v12890, 0.0
  %v12966 = vadd.f32 %v12964, %v12965
  %v12967 = vsel %vm6559, %v12891, 0.0
  %v12968 = vadd.f32 %v12966, %v12967
  %v12969 = vsel %vm6559, %v12892, 0.0
  %v12970 = vadd.f32 %v12968, %v12969
  %v12971 = vsel %vm6559, %v12893, 0.0
  %v12972 = vadd.f32 %v12970, %v12971
  %v12973 = vsel %vm6559, %v12894, 0.0
  %v12974 = vadd.f32 %v12972, %v12973
  %v12975 = vsel %vm6559, %v12895, 0.0
  %v12976 = vadd.f32 %v12974, %v12975
  %v12977 = vsel %vm6559, %v12896, 0.0
  %v12978 = vadd.f32 %v12976, %v12977
  %v12979 = vsel %vm6559, %v12897, 0.0
  %v12980 = vadd.f32 %v12978, %v12979
  %v12981 = vsel %vm6559, %v12898, 0.0
  %v12982 = vadd.f32 %v12980, %v12981
  %v12983 = vsel %vm6559, %v12899, 0.0
  %v12984 = vadd.f32 %v12982, %v12983
  %v12985 = vsel %vm6559, %v12900, 0.0
  %v12986 = vadd.f32 %v12984, %v12985
  %v12987 = vsel %vm6559, %v12901, 0.0
  %v12988 = vadd.f32 %v12986, %v12987
  %v12989 = vsel %vm6559, %v12902, 0.0
  %v12990 = vadd.f32 %v12988, %v12989
  %v12991 = vsel %vm6559, %v12903, 0.0
  %v12992 = vadd.f32 %v12990, %v12991
  %v12993 = vsel %vm6559, %v12904, 0.0
  %v12994 = vadd.f32 %v12992, %v12993
  %v12995 = vsel %vm6559, %v12905, 0.0
  %v12996 = vadd.f32 %v12994, %v12995
  %v12997 = vsel %vm6559, %v12906, 0.0
  %v12998 = vadd.f32 %v12996, %v12997
  %v12999 = vsel %vm6559, %v12907, 0.0
  %v13000 = vadd.f32 %v12998, %v12999
  %v13001 = vsel %vm6559, %v12908, 0.0
  %v13002 = vadd.f32 %v13000, %v13001
  %v13003 = vsel %vm6559, %v12909, 0.0
  %v13004 = vadd.f32 %v13002, %v13003
  %v13005 = vsel %vm6559, %v12910, 0.0
  %v13006 = vadd.f32 %v13004, %v13005
  %v13007 = vsel %vm6559, %v12911, 0.0
  %v13008 = vadd.f32 %v13006, %v13007
  %v13009 = vsel %vm6559, %v12912, 0.0
  %v13010 = vadd.f32 %v13008, %v13009
  %v13011 = vsel %vm6559, %v12913, 0.0
  %v13012 = vadd.f32 %v13010, %v13011
  %v13013 = vsel %vm6559, %v12914, 0.0
  %v13014 = vadd.f32 %v13012, %v13013
  %v13015 = vsel %vm6559, %v12915, 0.0
  %v13016 = vadd.f32 %v13014, %v13015
  %v13017 = vsel %vm6559, %v12916, 0.0
  %v13018 = vadd.f32 %v13016, %v13017
  %v13019 = vsel %vm6559, %v12917, 0.0
  %v13020 = vadd.f32 %v13018, %v13019
  %v13021 = vsel %vm6559, %v12918, 0.0
  %v13022 = vadd.f32 %v13020, %v13021
  %v13023 = vsel %vm6559, %v12919, 0.0
  %v13024 = vadd.f32 %v13022, %v13023
  %v13025 = vsel %vm6559, %v12920, 0.0
  %v13026 = vadd.f32 %v13024, %v13025
  %v13027 = vsel %vm6559, %v12921, 0.0
  %v13028 = vadd.f32 %v13026, %v13027
  %v13029 = vsel %vm6559, %v12922, 0.0
  %v13030 = vadd.f32 %v13028, %v13029
  %v13031 = vsel %vm6559, %v12923, 0.0
  %v13032 = vadd.f32 %v13030, %v13031
  %v13033 = vsel %vm6559, %v12924, 0.0
  %v13034 = vadd.f32 %v13032, %v13033
  %v13035 = vsel %vm6559, %v12925, 0.0
  %v13036 = vadd.f32 %v13034, %v13035
  %v13037 = vsel %vm6559, %v12926, 0.0
  %v13038 = vadd.f32 %v13036, %v13037
  %v13039 = vsel %vm6559, %v12927, 0.0
  %v13040 = vadd.f32 %v13038, %v13039
  %v13041 = vsel %vm6559, %v12928, 0.0
  %v13042 = vadd.f32 %v13040, %v13041
  %v13043 = vsel %vm6559, %v12929, 0.0
  %v13044 = vadd.f32 %v13042, %v13043
  %v13045 = vsel %vm6559, %v12930, 0.0
  %v13046 = vadd.f32 %v13044, %v13045
  %v13047 = vsel %vm6559, %v12931, 0.0
  %v13048 = vadd.f32 %v13046, %v13047
  %v13049 = vsel %vm6559, %v12932, 0.0
  %v13050 = vadd.f32 %v13048, %v13049
  %v13051 = vsel %vm6559, %v12933, 0.0
  %v13052 = vadd.f32 %v13050, %v13051
  %v13053 = vsel %vm6559, %v12934, 0.0
  %v13054 = vadd.f32 %v13052, %v13053
  %v13055 = vsel %vm6559, %v12935, 0.0
  %v13056 = vadd.f32 %v13054, %v13055
  %v13057 = vsel %vm6559, %v12936, 0.0
  %v13058 = vadd.f32 %v13056, %v13057
  %v13059 = vsel %vm6559, %v12937, 0.0
  %v13060 = vadd.f32 %v13058, %v13059
  %v13061 = vsel %vm6559, %v12938, 0.0
  %v13062 = vadd.f32 %v13060, %v13061
  %v13063 = vsel %vm6559, %v12939, 0.0
  %v13064 = vadd.f32 %v13062, %v13063
  %v13065 = vsel %vm6559, %v12940, 0.0
  %v13066 = vadd.f32 %v13064, %v13065
  %v13067 = vsel %vm6559, %v12941, 0.0
  %v13068 = vadd.f32 %v13066, %v13067
  %v13069 = vrot.slane %v13068, 4
  %v13070 = vadd.f32 %v13068, %v13069
  %v13071 = vrot.slane %v13070, 2
  %v13072 = vadd.f32 %v13070, %v13071
  %v13073 = vrot.slane %v13072, 1
  %v13074 = vadd.f32 %v13072, %v13073
  %v13075 = vmul.f32 %v12878, %v12878
  %v13076 = vmul.f32 %v12879, %v12879
  %v13077 = vmul.f32 %v12880, %v12880
  %v13078 = vmul.f32 %v12881, %v12881
  %v13079 = vmul.f32 %v12882, %v12882
  %v13080 = vmul.f32 %v12883, %v12883
  %v13081 = vmul.f32 %v12884, %v12884
  %v13082 = vmul.f32 %v12885, %v12885
  %v13083 = vmul.f32 %v12886, %v12886
  %v13084 = vmul.f32 %v12887, %v12887
  %v13085 = vmul.f32 %v12888, %v12888
  %v13086 = vmul.f32 %v12889, %v12889
  %v13087 = vmul.f32 %v12890, %v12890
  %v13088 = vmul.f32 %v12891, %v12891
  %v13089 = vmul.f32 %v12892, %v12892
  %v13090 = vmul.f32 %v12893, %v12893
  %v13091 = vmul.f32 %v12894, %v12894
  %v13092 = vmul.f32 %v12895, %v12895
  %v13093 = vmul.f32 %v12896, %v12896
  %v13094 = vmul.f32 %v12897, %v12897
  %v13095 = vmul.f32 %v12898, %v12898
  %v13096 = vmul.f32 %v12899, %v12899
  %v13097 = vmul.f32 %v12900, %v12900
  %v13098 = vmul.f32 %v12901, %v12901
  %v13099 = vmul.f32 %v12902, %v12902
  %v13100 = vmul.f32 %v12903, %v12903
  %v13101 = vmul.f32 %v12904, %v12904
  %v13102 = vmul.f32 %v12905, %v12905
  %v13103 = vmul.f32 %v12906, %v12906
  %v13104 = vmul.f32 %v12907, %v12907
  %v13105 = vmul.f32 %v12908, %v12908
  %v13106 = vmul.f32 %v12909, %v12909
  %v13107 = vmul.f32 %v12910, %v12910
  %v13108 = vmul.f32 %v12911, %v12911
  %v13109 = vmul.f32 %v12912, %v12912
  %v13110 = vmul.f32 %v12913, %v12913
  %v13111 = vmul.f32 %v12914, %v12914
  %v13112 = vmul.f32 %v12915, %v12915
  %v13113 = vmul.f32 %v12916, %v12916
  %v13114 = vmul.f32 %v12917, %v12917
  %v13115 = vmul.f32 %v12918, %v12918
  %v13116 = vmul.f32 %v12919, %v12919
  %v13117 = vmul.f32 %v12920, %v12920
  %v13118 = vmul.f32 %v12921, %v12921
  %v13119 = vmul.f32 %v12922, %v12922
  %v13120 = vmul.f32 %v12923, %v12923
  %v13121 = vmul.f32 %v12924, %v12924
  %v13122 = vmul.f32 %v12925, %v12925
  %v13123 = vmul.f32 %v12926, %v12926
  %v13124 = vmul.f32 %v12927, %v12927
  %v13125 = vmul.f32 %v12928, %v12928
  %v13126 = vmul.f32 %v12929, %v12929
  %v13127 = vmul.f32 %v12930, %v12930
  %v13128 = vmul.f32 %v12931, %v12931
  %v13129 = vmul.f32 %v12932, %v12932
  %v13130 = vmul.f32 %v12933, %v12933
  %v13131 = vmul.f32 %v12934, %v12934
  %v13132 = vmul.f32 %v12935, %v12935
  %v13133 = vmul.f32 %v12936, %v12936
  %v13134 = vmul.f32 %v12937, %v12937
  %v13135 = vmul.f32 %v12938, %v12938
  %v13136 = vmul.f32 %v12939, %v12939
  %v13137 = vmul.f32 %v12940, %v12940
  %v13138 = vmul.f32 %v12941, %v12941
  %v13139 = vsel %vm6559, %v13075, 0.0
  %v13140 = vsel %vm6559, %v13076, 0.0
  %v13141 = vadd.f32 %v13139, %v13140
  %v13142 = vsel %vm6559, %v13077, 0.0
  %v13143 = vadd.f32 %v13141, %v13142
  %v13144 = vsel %vm6559, %v13078, 0.0
  %v13145 = vadd.f32 %v13143, %v13144
  %v13146 = vsel %vm6559, %v13079, 0.0
  %v13147 = vadd.f32 %v13145, %v13146
  %v13148 = vsel %vm6559, %v13080, 0.0
  %v13149 = vadd.f32 %v13147, %v13148
  %v13150 = vsel %vm6559, %v13081, 0.0
  %v13151 = vadd.f32 %v13149, %v13150
  %v13152 = vsel %vm6559, %v13082, 0.0
  %v13153 = vadd.f32 %v13151, %v13152
  %v13154 = vsel %vm6559, %v13083, 0.0
  %v13155 = vadd.f32 %v13153, %v13154
  %v13156 = vsel %vm6559, %v13084, 0.0
  %v13157 = vadd.f32 %v13155, %v13156
  %v13158 = vsel %vm6559, %v13085, 0.0
  %v13159 = vadd.f32 %v13157, %v13158
  %v13160 = vsel %vm6559, %v13086, 0.0
  %v13161 = vadd.f32 %v13159, %v13160
  %v13162 = vsel %vm6559, %v13087, 0.0
  %v13163 = vadd.f32 %v13161, %v13162
  %v13164 = vsel %vm6559, %v13088, 0.0
  %v13165 = vadd.f32 %v13163, %v13164
  %v13166 = vsel %vm6559, %v13089, 0.0
  %v13167 = vadd.f32 %v13165, %v13166
  %v13168 = vsel %vm6559, %v13090, 0.0
  %v13169 = vadd.f32 %v13167, %v13168
  %v13170 = vsel %vm6559, %v13091, 0.0
  %v13171 = vadd.f32 %v13169, %v13170
  %v13172 = vsel %vm6559, %v13092, 0.0
  %v13173 = vadd.f32 %v13171, %v13172
  %v13174 = vsel %vm6559, %v13093, 0.0
  %v13175 = vadd.f32 %v13173, %v13174
  %v13176 = vsel %vm6559, %v13094, 0.0
  %v13177 = vadd.f32 %v13175, %v13176
  %v13178 = vsel %vm6559, %v13095, 0.0
  %v13179 = vadd.f32 %v13177, %v13178
  %v13180 = vsel %vm6559, %v13096, 0.0
  %v13181 = vadd.f32 %v13179, %v13180
  %v13182 = vsel %vm6559, %v13097, 0.0
  %v13183 = vadd.f32 %v13181, %v13182
  %v13184 = vsel %vm6559, %v13098, 0.0
  %v13185 = vadd.f32 %v13183, %v13184
  %v13186 = vsel %vm6559, %v13099, 0.0
  %v13187 = vadd.f32 %v13185, %v13186
  %v13188 = vsel %vm6559, %v13100, 0.0
  %v13189 = vadd.f32 %v13187, %v13188
  %v13190 = vsel %vm6559, %v13101, 0.0
  %v13191 = vadd.f32 %v13189, %v13190
  %v13192 = vsel %vm6559, %v13102, 0.0
  %v13193 = vadd.f32 %v13191, %v13192
  %v13194 = vsel %vm6559, %v13103, 0.0
  %v13195 = vadd.f32 %v13193, %v13194
  %v13196 = vsel %vm6559, %v13104, 0.0
  %v13197 = vadd.f32 %v13195, %v13196
  %v13198 = vsel %vm6559, %v13105, 0.0
  %v13199 = vadd.f32 %v13197, %v13198
  %v13200 = vsel %vm6559, %v13106, 0.0
  %v13201 = vadd.f32 %v13199, %v13200
  %v13202 = vsel %vm6559, %v13107, 0.0
  %v13203 = vadd.f32 %v13201, %v13202
  %v13204 = vsel %vm6559, %v13108, 0.0
  %v13205 = vadd.f32 %v13203, %v13204
  %v13206 = vsel %vm6559, %v13109, 0.0
  %v13207 = vadd.f32 %v13205, %v13206
  %v13208 = vsel %vm6559, %v13110, 0.0
  %v13209 = vadd.f32 %v13207, %v13208
  %v13210 = vsel %vm6559, %v13111, 0.0
  %v13211 = vadd.f32 %v13209, %v13210
  %v13212 = vsel %vm6559, %v13112, 0.0
  %v13213 = vadd.f32 %v13211, %v13212
  %v13214 = vsel %vm6559, %v13113, 0.0
  %v13215 = vadd.f32 %v13213, %v13214
  %v13216 = vsel %vm6559, %v13114, 0.0
  %v13217 = vadd.f32 %v13215, %v13216
  %v13218 = vsel %vm6559, %v13115, 0.0
  %v13219 = vadd.f32 %v13217, %v13218
  %v13220 = vsel %vm6559, %v13116, 0.0
  %v13221 = vadd.f32 %v13219, %v13220
  %v13222 = vsel %vm6559, %v13117, 0.0
  %v13223 = vadd.f32 %v13221, %v13222
  %v13224 = vsel %vm6559, %v13118, 0.0
  %v13225 = vadd.f32 %v13223, %v13224
  %v13226 = vsel %vm6559, %v13119, 0.0
  %v13227 = vadd.f32 %v13225, %v13226
  %v13228 = vsel %vm6559, %v13120, 0.0
  %v13229 = vadd.f32 %v13227, %v13228
  %v13230 = vsel %vm6559, %v13121, 0.0
  %v13231 = vadd.f32 %v13229, %v13230
  %v13232 = vsel %vm6559, %v13122, 0.0
  %v13233 = vadd.f32 %v13231, %v13232
  %v13234 = vsel %vm6559, %v13123, 0.0
  %v13235 = vadd.f32 %v13233, %v13234
  %v13236 = vsel %vm6559, %v13124, 0.0
  %v13237 = vadd.f32 %v13235, %v13236
  %v13238 = vsel %vm6559, %v13125, 0.0
  %v13239 = vadd.f32 %v13237, %v13238
  %v13240 = vsel %vm6559, %v13126, 0.0
  %v13241 = vadd.f32 %v13239, %v13240
  %v13242 = vsel %vm6559, %v13127, 0.0
  %v13243 = vadd.f32 %v13241, %v13242
  %v13244 = vsel %vm6559, %v13128, 0.0
  %v13245 = vadd.f32 %v13243, %v13244
  %v13246 = vsel %vm6559, %v13129, 0.0
  %v13247 = vadd.f32 %v13245, %v13246
  %v13248 = vsel %vm6559, %v13130, 0.0
  %v13249 = vadd.f32 %v13247, %v13248
  %v13250 = vsel %vm6559, %v13131, 0.0
  %v13251 = vadd.f32 %v13249, %v13250
  %v13252 = vsel %vm6559, %v13132, 0.0
  %v13253 = vadd.f32 %v13251, %v13252
  %v13254 = vsel %vm6559, %v13133, 0.0
  %v13255 = vadd.f32 %v13253, %v13254
  %v13256 = vsel %vm6559, %v13134, 0.0
  %v13257 = vadd.f32 %v13255, %v13256
  %v13258 = vsel %vm6559, %v13135, 0.0
  %v13259 = vadd.f32 %v13257, %v13258
  %v13260 = vsel %vm6559, %v13136, 0.0
  %v13261 = vadd.f32 %v13259, %v13260
  %v13262 = vsel %vm6559, %v13137, 0.0
  %v13263 = vadd.f32 %v13261, %v13262
  %v13264 = vsel %vm6559, %v13138, 0.0
  %v13265 = vadd.f32 %v13263, %v13264
  %v13266 = vrot.slane %v13265, 4
  %v13267 = vadd.f32 %v13265, %v13266
  %v13268 = vrot.slane %v13267, 2
  %v13269 = vadd.f32 %v13267, %v13268
  %v13270 = vrot.slane %v13269, 1
  %v13271 = vadd.f32 %v13269, %v13270
  %v13272 = vmul.f32 %v13074, 0.001953125
  %v13273 = vmul.f32 %v13271, 0.001953125
  %v13274 = vmul.f32 %v13272, %v13272
  %v13275 = vsub.f32 %v13273, %v13274
  %v13276 = vadd.f32 %v13275, 1e-05
  %v13277 = vrsqrt.pop %v13276
  %v13278 = vld [vmem:[%s3] sm:$0x1]
  %v13279 = vmul.f32 %v13278, %v13277
  %v13280 = vld [vmem:[%s4] sm:$0x1]
  %v13281 = vmul.f32 %v13272, %v13279
  %v13282 = vsub.f32 %v13280, %v13281
  %v13284 = vlaneseq
  %v13285 = vshrl.u32 %v13284, 7
  %v13286 = vsub.s32 0, %v13285
  %v13287 = vrot.slane %v13279, %v13286
  %v13289 = vmul.f32 %v12878, %v13287
  %v13290 = vmul.f32 %v12879, %v13287
  %v13291 = vmul.f32 %v12880, %v13287
  %v13292 = vmul.f32 %v12881, %v13287
  %v13293 = vmul.f32 %v12882, %v13287
  %v13294 = vmul.f32 %v12883, %v13287
  %v13295 = vmul.f32 %v12884, %v13287
  %v13296 = vmul.f32 %v12885, %v13287
  %v13297 = vmul.f32 %v12886, %v13287
  %v13298 = vmul.f32 %v12887, %v13287
  %v13299 = vmul.f32 %v12888, %v13287
  %v13300 = vmul.f32 %v12889, %v13287
  %v13301 = vmul.f32 %v12890, %v13287
  %v13302 = vmul.f32 %v12891, %v13287
  %v13303 = vmul.f32 %v12892, %v13287
  %v13304 = vmul.f32 %v12893, %v13287
  %v13305 = vmul.f32 %v12894, %v13287
  %v13306 = vmul.f32 %v12895, %v13287
  %v13307 = vmul.f32 %v12896, %v13287
  %v13308 = vmul.f32 %v12897, %v13287
  %v13309 = vmul.f32 %v12898, %v13287
  %v13310 = vmul.f32 %v12899, %v13287
  %v13311 = vmul.f32 %v12900, %v13287
  %v13312 = vmul.f32 %v12901, %v13287
  %v13313 = vmul.f32 %v12902, %v13287
  %v13314 = vmul.f32 %v12903, %v13287
  %v13315 = vmul.f32 %v12904, %v13287
  %v13316 = vmul.f32 %v12905, %v13287
  %v13317 = vmul.f32 %v12906, %v13287
  %v13318 = vmul.f32 %v12907, %v13287
  %v13319 = vmul.f32 %v12908, %v13287
  %v13320 = vmul.f32 %v12909, %v13287
  %v13321 = vmul.f32 %v12910, %v13287
  %v13322 = vmul.f32 %v12911, %v13287
  %v13323 = vmul.f32 %v12912, %v13287
  %v13324 = vmul.f32 %v12913, %v13287
  %v13325 = vmul.f32 %v12914, %v13287
  %v13326 = vmul.f32 %v12915, %v13287
  %v13327 = vmul.f32 %v12916, %v13287
  %v13328 = vmul.f32 %v12917, %v13287
  %v13329 = vmul.f32 %v12918, %v13287
  %v13330 = vmul.f32 %v12919, %v13287
  %v13331 = vmul.f32 %v12920, %v13287
  %v13332 = vmul.f32 %v12921, %v13287
  %v13333 = vmul.f32 %v12922, %v13287
  %v13334 = vmul.f32 %v12923, %v13287
  %v13335 = vmul.f32 %v12924, %v13287
  %v13336 = vmul.f32 %v12925, %v13287
  %v13337 = vmul.f32 %v12926, %v13287
  %v13338 = vmul.f32 %v12927, %v13287
  %v13339 = vmul.f32 %v12928, %v13287
  %v13340 = vmul.f32 %v12929, %v13287
  %v13341 = vmul.f32 %v12930, %v13287
  %v13342 = vmul.f32 %v12931, %v13287
  %v13343 = vmul.f32 %v12932, %v13287
  %v13344 = vmul.f32 %v12933, %v13287
  %v13345 = vmul.f32 %v12934, %v13287
  %v13346 = vmul.f32 %v12935, %v13287
  %v13347 = vmul.f32 %v12936, %v13287
  %v13348 = vmul.f32 %v12937, %v13287
  %v13349 = vmul.f32 %v12938, %v13287
  %v13350 = vmul.f32 %v12939, %v13287
  %v13351 = vmul.f32 %v12940, %v13287
  %v13352 = vmul.f32 %v12941, %v13287
  %v13354 = vlaneseq
  %v13355 = vshrl.u32 %v13354, 7
  %v13356 = vsub.s32 0, %v13355
  %v13357 = vrot.slane %v13282, %v13356
  %v13359 = vadd.f32 %v13289, %v13357
  %v13360 = vadd.f32 %v13290, %v13357
  %v13361 = vadd.f32 %v13291, %v13357
  %v13362 = vadd.f32 %v13292, %v13357
  %v13363 = vadd.f32 %v13293, %v13357
  %v13364 = vadd.f32 %v13294, %v13357
  %v13365 = vadd.f32 %v13295, %v13357
  %v13366 = vadd.f32 %v13296, %v13357
  %v13367 = vadd.f32 %v13297, %v13357
  %v13368 = vadd.f32 %v13298, %v13357
  %v13369 = vadd.f32 %v13299, %v13357
  %v13370 = vadd.f32 %v13300, %v13357
  %v13371 = vadd.f32 %v13301, %v13357
  %v13372 = vadd.f32 %v13302, %v13357
  %v13373 = vadd.f32 %v13303, %v13357
  %v13374 = vadd.f32 %v13304, %v13357
  %v13375 = vadd.f32 %v13305, %v13357
  %v13376 = vadd.f32 %v13306, %v13357
  %v13377 = vadd.f32 %v13307, %v13357
  %v13378 = vadd.f32 %v13308, %v13357
  %v13379 = vadd.f32 %v13309, %v13357
  %v13380 = vadd.f32 %v13310, %v13357
  %v13381 = vadd.f32 %v13311, %v13357
  %v13382 = vadd.f32 %v13312, %v13357
  %v13383 = vadd.f32 %v13313, %v13357
  %v13384 = vadd.f32 %v13314, %v13357
  %v13385 = vadd.f32 %v13315, %v13357
  %v13386 = vadd.f32 %v13316, %v13357
  %v13387 = vadd.f32 %v13317, %v13357
  %v13388 = vadd.f32 %v13318, %v13357
  %v13389 = vadd.f32 %v13319, %v13357
  %v13390 = vadd.f32 %v13320, %v13357
  %v13391 = vadd.f32 %v13321, %v13357
  %v13392 = vadd.f32 %v13322, %v13357
  %v13393 = vadd.f32 %v13323, %v13357
  %v13394 = vadd.f32 %v13324, %v13357
  %v13395 = vadd.f32 %v13325, %v13357
  %v13396 = vadd.f32 %v13326, %v13357
  %v13397 = vadd.f32 %v13327, %v13357
  %v13398 = vadd.f32 %v13328, %v13357
  %v13399 = vadd.f32 %v13329, %v13357
  %v13400 = vadd.f32 %v13330, %v13357
  %v13401 = vadd.f32 %v13331, %v13357
  %v13402 = vadd.f32 %v13332, %v13357
  %v13403 = vadd.f32 %v13333, %v13357
  %v13404 = vadd.f32 %v13334, %v13357
  %v13405 = vadd.f32 %v13335, %v13357
  %v13406 = vadd.f32 %v13336, %v13357
  %v13407 = vadd.f32 %v13337, %v13357
  %v13408 = vadd.f32 %v13338, %v13357
  %v13409 = vadd.f32 %v13339, %v13357
  %v13410 = vadd.f32 %v13340, %v13357
  %v13411 = vadd.f32 %v13341, %v13357
  %v13412 = vadd.f32 %v13342, %v13357
  %v13413 = vadd.f32 %v13343, %v13357
  %v13414 = vadd.f32 %v13344, %v13357
  %v13415 = vadd.f32 %v13345, %v13357
  %v13416 = vadd.f32 %v13346, %v13357
  %v13417 = vadd.f32 %v13347, %v13357
  %v13418 = vadd.f32 %v13348, %v13357
  %v13419 = vadd.f32 %v13349, %v13357
  %v13420 = vadd.f32 %v13350, %v13357
  %v13421 = vadd.f32 %v13351, %v13357
  %v13422 = vadd.f32 %v13352, %v13357
  %v13423 = vtanh.pop %v13359
  %v13424 = vtanh.pop %v13360
  %v13425 = vtanh.pop %v13361
  %v13426 = vtanh.pop %v13362
  %v13427 = vtanh.pop %v13363
  %v13428 = vtanh.pop %v13364
  %v13429 = vtanh.pop %v13365
  %v13430 = vtanh.pop %v13366
  %v13431 = vtanh.pop %v13367
  %v13432 = vtanh.pop %v13368
  %v13433 = vtanh.pop %v13369
  %v13434 = vtanh.pop %v13370
  %v13435 = vtanh.pop %v13371
  %v13436 = vtanh.pop %v13372
  %v13437 = vtanh.pop %v13373
  %v13438 = vtanh.pop %v13374
  %v13439 = vtanh.pop %v13375
  %v13440 = vtanh.pop %v13376
  %v13441 = vtanh.pop %v13377
  %v13442 = vtanh.pop %v13378
  %v13443 = vtanh.pop %v13379
  %v13444 = vtanh.pop %v13380
  %v13445 = vtanh.pop %v13381
  %v13446 = vtanh.pop %v13382
  %v13447 = vtanh.pop %v13383
  %v13448 = vtanh.pop %v13384
  %v13449 = vtanh.pop %v13385
  %v13450 = vtanh.pop %v13386
  %v13451 = vtanh.pop %v13387
  %v13452 = vtanh.pop %v13388
  %v13453 = vtanh.pop %v13389
  %v13454 = vtanh.pop %v13390
  %v13455 = vtanh.pop %v13391
  %v13456 = vtanh.pop %v13392
  %v13457 = vtanh.pop %v13393
  %v13458 = vtanh.pop %v13394
  %v13459 = vtanh.pop %v13395
  %v13460 = vtanh.pop %v13396
  %v13461 = vtanh.pop %v13397
  %v13462 = vtanh.pop %v13398
  %v13463 = vtanh.pop %v13399
  %v13464 = vtanh.pop %v13400
  %v13465 = vtanh.pop %v13401
  %v13466 = vtanh.pop %v13402
  %v13467 = vtanh.pop %v13403
  %v13468 = vtanh.pop %v13404
  %v13469 = vtanh.pop %v13405
  %v13470 = vtanh.pop %v13406
  %v13471 = vtanh.pop %v13407
  %v13472 = vtanh.pop %v13408
  %v13473 = vtanh.pop %v13409
  %v13474 = vtanh.pop %v13410
  %v13475 = vtanh.pop %v13411
  %v13476 = vtanh.pop %v13412
  %v13477 = vtanh.pop %v13413
  %v13478 = vtanh.pop %v13414
  %v13479 = vtanh.pop %v13415
  %v13480 = vtanh.pop %v13416
  %v13481 = vtanh.pop %v13417
  %v13482 = vtanh.pop %v13418
  %v13483 = vtanh.pop %v13419
  %v13484 = vtanh.pop %v13420
  %v13485 = vtanh.pop %v13421
  %v13486 = vtanh.pop %v13422
  %13487 = vxpose.xlu0.b32.start [1/16] %v13423, 128
  %13488 = vxpose.xlu0.b32.cont [2/16] %v13424, 128
  %13489 = vxpose.xlu0.b32.cont [3/16] %v13425, 128
  %13490 = vxpose.xlu0.b32.cont [4/16] %v13426, 128
  %13491 = vxpose.xlu0.b32.cont [5/16] %v13427, 128
  %13492 = vxpose.xlu0.b32.cont [6/16] %v13428, 128
  %13493 = vxpose.xlu0.b32.cont [7/16] %v13429, 128
  %13494 = vxpose.xlu0.b32.cont [8/16] %v13430, 128
  %13495 = vxpose.xlu0.b32.cont [9/16] %v13431, 128
  %13496 = vxpose.xlu0.b32.cont [10/16] %v13432, 128
  %13497 = vxpose.xlu0.b32.cont [11/16] %v13433, 128
  %13498 = vxpose.xlu0.b32.cont [12/16] %v13434, 128
  %13499 = vxpose.xlu0.b32.cont [13/16] %v13435, 128
  %13500 = vxpose.xlu0.b32.cont [14/16] %v13436, 128
  %13501 = vxpose.xlu0.b32.cont [15/16] %v13437, 128
  %13502 = vxpose.xlu0.b32.end [16/16] %v13438, 128
  %v13503 = vpop.trf.xlu0
  %v13504 = vpop.trf.xlu0
  %v13505 = vpop.trf.xlu0
  %v13506 = vpop.trf.xlu0
  %v13507 = vpop.trf.xlu0
  %v13508 = vpop.trf.xlu0
  %v13509 = vpop.trf.xlu0
  %v13510 = vpop.trf.xlu0
  %v13511 = vpop.trf.xlu0
  %v13512 = vpop.trf.xlu0
  %v13513 = vpop.trf.xlu0
  %v13514 = vpop.trf.xlu0
  %v13515 = vpop.trf.xlu0
  %v13516 = vpop.trf.xlu0
  %v13517 = vpop.trf.xlu0
  %v13518 = vpop.trf.xlu0
  %13519 = vxpose.xlu0.b32.start [1/16] %v13439, 128
  %13520 = vxpose.xlu0.b32.cont [2/16] %v13440, 128
  %13521 = vxpose.xlu0.b32.cont [3/16] %v13441, 128
  %13522 = vxpose.xlu0.b32.cont [4/16] %v13442, 128
  %13523 = vxpose.xlu0.b32.cont [5/16] %v13443, 128
  %13524 = vxpose.xlu0.b32.cont [6/16] %v13444, 128
  %13525 = vxpose.xlu0.b32.cont [7/16] %v13445, 128
  %13526 = vxpose.xlu0.b32.cont [8/16] %v13446, 128
  %13527 = vxpose.xlu0.b32.cont [9/16] %v13447, 128
  %13528 = vxpose.xlu0.b32.cont [10/16] %v13448, 128
  %13529 = vxpose.xlu0.b32.cont [11/16] %v13449, 128
  %13530 = vxpose.xlu0.b32.cont [12/16] %v13450, 128
  %13531 = vxpose.xlu0.b32.cont [13/16] %v13451, 128
  %13532 = vxpose.xlu0.b32.cont [14/16] %v13452, 128
  %13533 = vxpose.xlu0.b32.cont [15/16] %v13453, 128
  %13534 = vxpose.xlu0.b32.end [16/16] %v13454, 128
  %v13535 = vpop.trf.xlu0
  %v13536 = vpop.trf.xlu0
  %v13537 = vpop.trf.xlu0
  %v13538 = vpop.trf.xlu0
  %v13539 = vpop.trf.xlu0
  %v13540 = vpop.trf.xlu0
  %v13541 = vpop.trf.xlu0
  %v13542 = vpop.trf.xlu0
  %v13543 = vpop.trf.xlu0
  %v13544 = vpop.trf.xlu0
  %v13545 = vpop.trf.xlu0
  %v13546 = vpop.trf.xlu0
  %v13547 = vpop.trf.xlu0
  %v13548 = vpop.trf.xlu0
  %v13549 = vpop.trf.xlu0
  %v13550 = vpop.trf.xlu0
  %13551 = vst [vmem:[%s5] sm:$0xff] %v13503
  %13552 = vst [vmem:[%s5 + $0x8] sm:$0xff] %v13535
  %13553 = vxpose.xlu0.b32.start [1/16] %v13455, 128
  %13554 = vxpose.xlu0.b32.cont [2/16] %v13456, 128
  %13555 = vxpose.xlu0.b32.cont [3/16] %v13457, 128
  %13556 = vxpose.xlu0.b32.cont [4/16] %v13458, 128
  %13557 = vxpose.xlu0.b32.cont [5/16] %v13459, 128
  %13558 = vxpose.xlu0.b32.cont [6/16] %v13460, 128
  %13559 = vxpose.xlu0.b32.cont [7/16] %v13461, 128
  %13560 = vxpose.xlu0.b32.cont [8/16] %v13462, 128
  %13561 = vxpose.xlu0.b32.cont [9/16] %v13463, 128
  %13562 = vxpose.xlu0.b32.cont [10/16] %v13464, 128
  %13563 = vxpose.xlu0.b32.cont [11/16] %v13465, 128
  %13564 = vxpose.xlu0.b32.cont [12/16] %v13466, 128
  %13565 = vxpose.xlu0.b32.cont [13/16] %v13467, 128
  %13566 = vxpose.xlu0.b32.cont [14/16] %v13468, 128
  %13567 = vxpose.xlu0.b32.cont [15/16] %v13469, 128
  %13568 = vxpose.xlu0.b32.end [16/16] %v13470, 128
  %v13569 = vpop.trf.xlu0
  %v13570 = vpop.trf.xlu0
  %v13571 = vpop.trf.xlu0
  %v13572 = vpop.trf.xlu0
  %v13573 = vpop.trf.xlu0
  %v13574 = vpop.trf.xlu0
  %v13575 = vpop.trf.xlu0
  %v13576 = vpop.trf.xlu0
  %v13577 = vpop.trf.xlu0
  %v13578 = vpop.trf.xlu0
  %v13579 = vpop.trf.xlu0
  %v13580 = vpop.trf.xlu0
  %v13581 = vpop.trf.xlu0
  %v13582 = vpop.trf.xlu0
  %v13583 = vpop.trf.xlu0
  %v13584 = vpop.trf.xlu0
  %13585 = vxpose.xlu0.b32.start [1/16] %v13471, 128
  %13586 = vxpose.xlu0.b32.cont [2/16] %v13472, 128
  %13587 = vxpose.xlu0.b32.cont [3/16] %v13473, 128
  %13588 = vxpose.xlu0.b32.cont [4/16] %v13474, 128
  %13589 = vxpose.xlu0.b32.cont [5/16] %v13475, 128
  %13590 = vxpose.xlu0.b32.cont [6/16] %v13476, 128
  %13591 = vxpose.xlu0.b32.cont [7/16] %v13477, 128
  %13592 = vxpose.xlu0.b32.cont [8/16] %v13478, 128
  %13593 = vxpose.xlu0.b32.cont [9/16] %v13479, 128
  %13594 = vxpose.xlu0.b32.cont [10/16] %v13480, 128
  %13595 = vxpose.xlu0.b32.cont [11/16] %v13481, 128
  %13596 = vxpose.xlu0.b32.cont [12/16] %v13482, 128
  %13597 = vxpose.xlu0.b32.cont [13/16] %v13483, 128
  %13598 = vxpose.xlu0.b32.cont [14/16] %v13484, 128
  %13599 = vxpose.xlu0.b32.cont [15/16] %v13485, 128
  %13600 = vxpose.xlu0.b32.end [16/16] %v13486, 128
  %v13601 = vpop.trf.xlu0
  %v13602 = vpop.trf.xlu0
  %v13603 = vpop.trf.xlu0
  %v13604 = vpop.trf.xlu0
  %v13605 = vpop.trf.xlu0
  %v13606 = vpop.trf.xlu0
  %v13607 = vpop.trf.xlu0
  %v13608 = vpop.trf.xlu0
  %v13609 = vpop.trf.xlu0
  %v13610 = vpop.trf.xlu0
  %v13611 = vpop.trf.xlu0
  %v13612 = vpop.trf.xlu0
  %v13613 = vpop.trf.xlu0
  %v13614 = vpop.trf.xlu0
  %v13615 = vpop.trf.xlu0
  %v13616 = vpop.trf.xlu0
  %13617 = vst [vmem:[%s5 + $0x10] sm:$0xff] %v13569
  %13618 = vst [vmem:[%s5 + $0x18] sm:$0xff] %v13601
  // Predicated region
  $region22: #{double_conv.1} parent=0 // pred_check
    _
  $region23: #{double_conv.1} parent=0 // pred_check_branch
    %13620 = sbr.rel (0) target = $region25
  $region24: #{double_conv.1} parent=0 // pred_region
    _
  $region25: #{double_conv.1} parent=0 // pred_fallthru
    _
  // Predicated region
  $region26: #{double_conv.1} parent=0 // pred_check
    _
  $region27: #{double_conv.1} parent=0 // pred_check_branch
    %13622 = sbr.rel (0) target = $region29
  $region28: #{double_conv.1} parent=0 // pred_region
    _
  $region29: #{double_conv.1} parent=0 // pred_fallthru
    _

</llo_original>
